<compile_context>
chip_gen: v6e
topology: v6e:2x2x1
jax: 0.10.0
libtpu: 0.0.40
codegen_flags: <defaults>
</compile_context>

<pallas_src>
import jax
import jax.numpy as jnp
from jax import lax
from jax.experimental import pallas as pl
from jax.experimental.pallas import tpu as pltpu

# ----------------------------- configuration --------------------------------
NUM_KPTS = 17          # cfg.head.dcc_cfg['num_keypoints'] = 17
POSE_DIM = 32          # DCC in_channels (pose vector length)
FEAT_CH = 32           # DCC feat_channels
NUM_BINS_X = 32        # DCC num_bins[0]
NUM_BINS_Y = 16        # DCC num_bins[1]
SPE_CH = 16            # sine positional-encoding channels (must be even)
SPE_TEMPERATURE = 300.0
BBOX_PADDING = 1.25    # model.head.bbox_padding
EPS = 1e-8
SPE_HALF = SPE_CH // 2
DIM_T = tuple(float(SPE_TEMPERATURE ** (2 * (i // 2) / SPE_HALF))
              for i in range(SPE_HALF))

# folded-weight layout (built in init_params)
CINP = POSE_DIM + 1                # 33: pose channels + ones row (folded bias)
KBLK = 40                          # rows / keypoint: ax(8)|bx(8)|ay(8)|by(8)|cxh|cyh|pad(6)
D_COEF = NUM_KPTS * KBLK           # 680
XCOEF_OFF, YCOEF_OFF = 0, 16
XBIAS_OFF, YBIAS_OFF = 32, 33

# output slab rows (channel-major, anchors on lanes)
ROW_TL = 0
ROW_BR = 2
ROW_SCORE = 4
ROW_VIS = 5
ROW_KX = ROW_VIS + NUM_KPTS        # 22
ROW_KY = ROW_KX + NUM_KPTS         # 39
OUT_CH = ROW_KY + NUM_KPTS         # 56


def _hint8(x):
    # alignment hint for dynamic sublane offsets (skip for static Python ints)
    return x if isinstance(x, int) else pl.multiple_of(x, 8)


# ------------------------ fused decode + DCC kernel --------------------------
def _end2end_kernel(bbox_ref, cls_ref, vis_ref, pose_ref, priors_ref, stride_ref,
                    w_ref, out_ref, coef_ref, trig_ref):
    n = out_ref.shape[-1]          # anchors in this block (lane axis)
    K = NUM_KPTS
    H = SPE_HALF

    # ---------------- decode_bbox + sigmoid scores (all lane-dense in N) ------
    bp = bbox_ref[0]               # (4, n)
    stride = stride_ref[...]       # (1, n)
    priors = priors_ref[...]       # (2, n)

    xy = bp[0:2, :] * stride + priors
    wh = jnp.exp(bp[2:4, :]) * stride
    tl = xy - wh * 0.5
    br = xy + wh * 0.5

    out_ref[0, ROW_TL:ROW_TL + 2, :] = tl
    out_ref[0, ROW_BR:ROW_BR + 2, :] = br
    out_ref[0, ROW_SCORE:ROW_SCORE + 1, :] = jax.nn.sigmoid(cls_ref[0])
    out_ref[0, ROW_VIS:ROW_VIS + K, :] = jax.nn.sigmoid(vis_ref[0])

    # bbox_xyxy2cs — kept on-chip, never round-trips to HBM
    center = (tl + br) * 0.5       # (2, n)
    scale = (br - tl) * BBOX_PADDING
    cgx = center[0:1, :] - priors[0:1, :]
    cgy = center[1:2, :] - priors[1:2, :]
    sclx = scale[0:1, :]
    scly = scale[1:2, :]

    # ---------------- DCC.forward_test -----------------------------------------
    # TODO(synk): the GAU (gated attention unit) block of DCC is omitted
    # (its source is not part of the provided module).
    #
    # One wide bf16 MXU matmul replaces the 17x(pose_to_kpts + x_fc/y_fc) chain;
    # the linear+BN bias rides the ones-row appended to the pose vectors.
    coef_ref[...] = jnp.dot(w_ref[...], pose_ref[0],
                            preferred_element_type=jnp.float32)      # (D_COEF, n)

    def axis_pass(nbins, scl, ctr, coef_off, bias_off, out_row):
        # bins = a*idx + c ; trig planes need `bins`, the expectation uses the
        # shared iota plane + per-anchor affine (fewer live vregs in the loop).
        a = scl * (1.0 / (nbins - 1))                                 # (1, n)
        c = ctr - 0.5 * scl                                           # (1, n)
        idx = lax.broadcasted_iota(jnp.int32, (nbins, n), 0).astype(jnp.float32)
        bins = idx * a + c                                            # (nbins, n)

        # sine positional-encoding planes, hoisted across keypoints (VMEM scratch)
        # TODO(synk): optionally store trig planes as bf16 on v6e/v7x (skip on v5e).
        for j, t in enumerate(DIM_T):
            inv = 1.0 / t
            trig_ref[pl.ds(j * nbins, nbins), :] = jnp.cos(bins * inv)
            trig_ref[pl.ds((H + j) * nbins, nbins), :] = jnp.sin(bins * inv)

        def finish(hm, row_idx):
            # DCC._apply_softmax + expectation decode (affine form)
            hm = jnp.clip(hm, -5e4, 5e4)
            hm = hm - jnp.max(hm, axis=0, keepdims=True)
            e = jnp.exp(hm)
            num = jnp.sum(e * idx, axis=0, keepdims=True)
            den = jnp.sum(e, axis=0, keepdims=True)
            row = a * (num * pl.reciprocal(den + EPS, approx=True)) + c
            out_ref[0, pl.ds(row_idx, 1), :] = row     # 1-sublane, full-lane store

        def process(kp0, kp1, with_second):
            # each trig plane is read ONCE and applied to (up to) two keypoints
            c0 = _hint8(kp0 * KBLK + coef_off)
            cc0 = coef_ref[pl.ds(c0, 2 * H), :]                       # (16, n)
            ch0 = coef_ref[pl.ds(kp0 * KBLK + bias_off, 1), :]        # (1, n)
            hm0 = jnp.broadcast_to(ch0, (nbins, n))
            if with_second:
                c1 = _hint8(kp1 * KBLK + coef_off)
                cc1 = coef_ref[pl.ds(c1, 2 * H), :]
                ch1 = coef_ref[pl.ds(kp1 * KBLK + bias_off, 1), :]
                hm1 = jnp.broadcast_to(ch1, (nbins, n))
            for j in range(2 * H):                   # static unroll (16 planes)
                t = trig_ref[pl.ds(j * nbins, nbins), :]
                hm0 = hm0 + t * cc0[j:j + 1, :]
                if with_second:
                    hm1 = hm1 + t * cc1[j:j + 1, :]
            finish(hm0, out_row + kp0)
            if with_second:
                finish(hm1, out_row + kp1)

        @pl.loop(0, K // 2)
        def _(i):
            process(2 * i, 2 * i + 1, True)
        if K % 2 == 1:
            process(K - 1, K - 1, False)             # tail keypoint (no waste)

    axis_pass(NUM_BINS_X, sclx, cgx, XCOEF_OFF, XBIAS_OFF, ROW_KX)
    axis_pass(NUM_BINS_Y, scly, cgy, YCOEF_OFF, YBIAS_OFF, ROW_KY)


# ------------------------------ pallas_call wrapper ---------------------------
def _round_up(x, m):
    return ((x + m - 1) // m) * m


def _pad_last(x, n_pad):
    pad = n_pad - x.shape[-1]
    if pad == 0:
        return x
    return jnp.pad(x, [(0, 0)] * (x.ndim - 1) + [(0, pad)])


def end2end_pallas(bbox_cm, cls_cm, vis_cm, pose_aug_cm, priors_t, stride_t, w_aug,
                   *, n_block=256):
    B, _, N = bbox_cm.shape
    K = NUM_KPTS

    # ---- block selection: never run the whole anchor axis as a single block ---
    nb = max(128, (int(n_block) // 128) * 128)
    nb = min(nb, _round_up(N, 128))
    if B == 1 and _round_up(N, nb) // nb < 2 and nb > 128:
        nb = max(128, _round_up(nb // 2, 128))       # keep both v7x TCs busy
    n_pad = _round_up(N, nb)
    grid = (B, n_pad // nb)

    args = [_pad_last(bbox_cm, n_pad), _pad_last(cls_cm, n_pad),
            _pad_last(vis_cm, n_pad), _pad_last(pose_aug_cm, n_pad),
            _pad_last(priors_t, n_pad), _pad_last(stride_t, n_pad), w_aug]

    # explicit VMEM budget: scratch + 2x double-buffered blocks + headroom
    bytes_scratch = (D_COEF + 2 * SPE_HALF * NUM_BINS_X) * nb * 4
    bytes_blocks = ((4 + 1 + K + 2 + 1 + OUT_CH) * nb * 4 + CINP * nb * 2
                    + D_COEF * CINP * 2)
    vmem_limit = int(min(96 * 2 ** 20,
                         max(16 * 2 ** 20, 2 * (bytes_scratch + 2 * bytes_blocks))))

    out = pl.pallas_call(
        _end2end_kernel,
        out_shape=jax.ShapeDtypeStruct((B, OUT_CH, n_pad), jnp.float32),
        grid_spec=pltpu.PrefetchScalarGridSpec(
            num_scalar_prefetch=0, grid=grid,
            in_specs=[
                pl.BlockSpec((1, 4, nb), lambda b, j: (b, 0, j)),
                pl.BlockSpec((1, 1, nb), lambda b, j: (b, 0, j)),
                pl.BlockSpec((1, K, nb), lambda b, j: (b, 0, j)),
                pl.BlockSpec((1, CINP, nb), lambda b, j: (b, 0, j)),
                pl.BlockSpec((2, nb), lambda b, j: (0, j)),
                pl.BlockSpec((1, nb), lambda b, j: (0, j)),
                pl.BlockSpec((D_COEF, CINP), lambda b, j: (0, 0)),
            ],
            out_specs=pl.BlockSpec((1, OUT_CH, nb), lambda b, j: (b, 0, j)),
            scratch_shapes=[
                pltpu.VMEM((D_COEF, nb), jnp.float32),                     # coefficients
                pltpu.VMEM((2 * SPE_HALF * NUM_BINS_X, nb), jnp.float32),  # trig planes
            ]),
        compiler_params=pltpu.CompilerParams(
            dimension_semantics=("parallel", "parallel"),
            vmem_limit_bytes=vmem_limit),
    )(*args)
    return out[:, :, :N]           # drop padded anchors before topk


# ------------------------------ plain-JAX glue --------------------------------
def flatten_predictions_cm(preds):
    # channel-major flatten: [B,C,H,W] -> [B,C,H*W], concat over levels.
    # Anchor ordering (h*W + w) is identical to permute(0,2,3,1).flatten(1,2).
    flat = [p.reshape(p.shape[0], p.shape[1], -1) for p in preds]
    return jnp.concatenate(flat, axis=2)


def rtm_topk_cm(out_slab, keep_top_k=1000):
    # torch.topk + gather done on the channel-major output slab.
    B, C, N = out_slab.shape
    k = min(keep_top_k, N)
    topk_scores, topk_idx = jax.lax.top_k(out_slab[:, ROW_SCORE, :], k)   # (B, k)
    idx = jnp.broadcast_to(topk_idx[:, None, :], (B, C, k))
    g = jnp.take_along_axis(out_slab, idx, axis=2)                        # (B, C, k)

    topk_bboxes = jnp.transpose(g[:, ROW_TL:ROW_TL + 4, :], (0, 2, 1))    # (B, k, 4)
    kx = g[:, ROW_KX:ROW_KX + NUM_KPTS, :]
    ky = g[:, ROW_KY:ROW_KY + NUM_KPTS, :]
    topk_keypoints = jnp.transpose(jnp.stack([kx, ky], axis=-1), (0, 2, 1, 3))  # (B,k,17,2)
    vis = jnp.transpose(g[:, ROW_VIS:ROW_VIS + NUM_KPTS, :], (0, 2, 1))
    topk_keypoints_scores = vis[..., None]                                # (B, k, 17, 1)
    return topk_bboxes, topk_scores[..., None], topk_keypoints, topk_keypoints_scores


def toy_model(params, inputs, strides=(8, 16)):
    # Stand-in for the external wrapped RTMO `model` (backbone + heads):
    # average-pool the NCHW image per stride and apply 1x1-conv heads.
    B, C, H, W = inputs.shape
    cls_l, bbox_l, vis_l, pose_l, pri_l, str_l = [], [], [], [], [], []
    for s in strides:
        Hs, Ws = H // s, W // s
        f = inputs.reshape(B, C, Hs, s, Ws, s).mean(axis=(3, 5))   # (B, C, Hs, Ws)

        def head(w, b):
            return jnp.einsum('bchw,co->bohw', f, w) + b[None, :, None, None]

        cls_l.append(head(params['w_cls'], params['b_cls']))
        bbox_l.append(head(params['w_bbox'], params['b_bbox']))
        vis_l.append(head(params['w_vis'], params['b_vis']))
        pose_l.append(head(params['w_pose'], params['b_pose']))

        yy, xx = jnp.meshgrid(jnp.arange(Hs), jnp.arange(Ws), indexing='ij')
        pri_l.append(jnp.stack([xx.reshape(-1) * s, yy.reshape(-1) * s],
                               axis=-1).astype(jnp.float32))
        str_l.append(jnp.full((Hs * Ws, 1), float(s), dtype=jnp.float32))
    priors = jnp.concatenate(pri_l, axis=0)      # flatten_priors   (N, 2)
    stride = jnp.concatenate(str_l, axis=0)      # flatten_stride   (N, 1)
    return cls_l, bbox_l, vis_l, pose_l, priors, stride


def end2end_forward(params, inputs, keep_top_k=16):
    cls_scores, bbox_preds, kpt_vis, pose_vecs, priors, stride = toy_model(params, inputs)

    flat_cls = flatten_predictions_cm(cls_scores)     # (B, 1, N)
    flat_bbox = flatten_predictions_cm(bbox_preds)    # (B, 4, N)
    flat_vis = flatten_predictions_cm(kpt_vis)        # (B, 17, N)
    flat_pose = flatten_predictions_cm(pose_vecs)     # (B, 32, N)

    B, _, N = flat_bbox.shape
    # augmented pose: [pose | 1] so the folded bias rides the matmul; bf16 for MXU.
    ones = jnp.ones((B, 1, N), jnp.float32)
    pose_aug = jnp.concatenate([flat_pose, ones], axis=1).astype(jnp.bfloat16)

    out_slab = end2end_pallas(flat_bbox, flat_cls, flat_vis, pose_aug,
                              priors.T, stride.T, params['dcc']['w_aug'])
    return rtm_topk_cm(out_slab, keep_top_k)


# ------------------------------ parameter init --------------------------------
def _build_w_aug(wp_f, bp_f, wx, x_fc_b, wy, y_fc_b):
    """Fold pose_to_kpts (Linear + eval-BN) with x_fc/y_fc into one (D_COEF, CINP) weight.

    Row layout per keypoint block (KBLK=40 rows):
      [ax(8) | bx(8) | ay(8) | by(8) | cxh(1) | cyh(1) | pad(6)]
    Column layout: [32 pose weights | folded bias] matching pose_aug = [pose | 1].
    """
    K, Cin, F = wp_f.shape
    H = SPE_HALF
    wxc, wxs = wx[:H], wx[H:]          # (H, F): cos / sin halves of x_fc weight^T
    wyc, wys = wy[:H], wy[H:]

    def trig_rows(w_hf):
        w = jnp.einsum('kcf,hf->khc', wp_f, w_hf)      # (K, H, Cin)
        b = jnp.einsum('kf,hf->kh', bp_f, w_hf)        # (K, H)
        return w, b

    def bias_rows(b_f):
        w = jnp.einsum('kcf,f->kc', wp_f, b_f)[:, None, :]   # (K, 1, Cin)
        b = jnp.einsum('kf,f->k', bp_f, b_f)[:, None]        # (K, 1)
        return w, b

    def pack(w, b):    # (K,R,Cin),(K,R) -> (K,R,CINP)
        return jnp.concatenate([w, b[..., None]], axis=-1)

    zrows = jnp.zeros((K, KBLK - (4 * H + 2), CINP), jnp.float32)   # (K, 6, CINP)
    blk = jnp.concatenate([
        pack(*trig_rows(wxc)), pack(*trig_rows(wxs)),
        pack(*trig_rows(wyc)), pack(*trig_rows(wys)),
        pack(*bias_rows(x_fc_b)), pack(*bias_rows(y_fc_b)), zrows,
    ], axis=1)                                                       # (K, KBLK, CINP)
    return blk.reshape(K * KBLK, CINP).astype(jnp.bfloat16)


def init_params(key):
    ks = jax.random.split(key, 20)

    def nrm(k, shape, scale=0.1):
        return jax.random.normal(k, shape, dtype=jnp.float32) * scale

    p = {
        'w_cls': nrm(ks[0], (3, 1)), 'b_cls': nrm(ks[1], (1,)),
        'w_bbox': nrm(ks[2], (3, 4)), 'b_bbox': nrm(ks[3], (4,)),
        'w_vis': nrm(ks[4], (3, NUM_KPTS)), 'b_vis': nrm(ks[5], (NUM_KPTS,)),
        'w_pose': nrm(ks[6], (3, POSE_DIM)), 'b_pose': nrm(ks[7], (POSE_DIM,)),
    }

    K, F = NUM_KPTS, FEAT_CH
    wp = nrm(ks[8], (K, POSE_DIM, F))
    bp = nrm(ks[9], (K, F))
    # eval-mode BatchNorm1d fused into pose_to_kpts (switch_to_deploy analogue)
    gamma = 1.0 + nrm(ks[10], (K, F))
    beta = nrm(ks[11], (K, F))
    mean = nrm(ks[12], (K, F))
    var = jnp.abs(nrm(ks[13], (K, F))) + 1.0
    bnscale = gamma / jnp.sqrt(var + 1e-5)
    wp_f = wp * bnscale[:, None, :]
    bp_f = (bp - mean) * bnscale + beta

    wx = nrm(ks[14], (SPE_CH, F)); x_fc_b = nrm(ks[15], (F,))
    wy = nrm(ks[16], (SPE_CH, F)); y_fc_b = nrm(ks[17], (F,))

    p['dcc'] = {'w_aug': _build_w_aug(wp_f, bp_f, wx, x_fc_b, wy, y_fc_b)}
    return p


# ----------------------------------- main --------------------------------------
if __name__ == "__main__":
    root = jax.random.PRNGKey(0)
    k_in, k_par = jax.random.split(root)

    B, H, W = 2, 64, 64
    inputs = jax.random.normal(k_in, (B, 3, H, W), dtype=jnp.float32)  # NCHW images
    params = init_params(k_par)

    keep_top_k = 16
    fwd = jax.jit(lambda prm, x: end2end_forward(prm, x, keep_top_k=keep_top_k))
    outs = fwd(params, inputs)
    outs = jax.block_until_ready(outs)

    tb, tbs, tk, tks = outs
    assert tb.shape == (B, keep_top_k, 4)
    assert tbs.shape == (B, keep_top_k, 1)
    assert tk.shape == (B, keep_top_k, NUM_KPTS, 2)
    assert tks.shape == (B, keep_top_k, NUM_KPTS, 1)
    assert all(jnp.isfinite(o).all() for o in (tb, tbs, tk, tks))
    print("KERNEL_OK")
</pallas_src>

<mosaic_0001>
module attributes {stable_mosaic.version = 11 : i64} {
  func.func @_end2end_kernel(%arg0: i32, %arg1: i32, %arg2: memref<1x4x128xf32, #tpu.memory_space<vmem>>, %arg3: memref<1x1x128xf32, #tpu.memory_space<vmem>>, %arg4: memref<1x17x128xf32, #tpu.memory_space<vmem>>, %arg5: memref<1x33x128xbf16, #tpu.memory_space<vmem>>, %arg6: memref<2x128xf32, #tpu.memory_space<vmem>>, %arg7: memref<1x128xf32, #tpu.memory_space<vmem>>, %arg8: memref<680x33xbf16, #tpu.memory_space<vmem>>, %arg9: memref<1x56x128xf32, #tpu.memory_space<vmem>>, %arg10: memref<680x128xf32, #tpu.memory_space<vmem>>, %arg11: memref<512x128xf32, #tpu.memory_space<vmem>>) attributes {dimension_semantics = [#tpu.dimension_semantics<parallel>, #tpu.dimension_semantics<parallel>], iteration_bounds = array<i64: 2, 1>, scalar_prefetch = 0 : i64, scratch_operands = 2 : i64, tpu.core_type = #tpu.core_type<tc>, window_params = [{transform_indices = @transform_0, window_bounds = array<i64: 1, 4, 128>}, {transform_indices = @transform_1, window_bounds = array<i64: 1, 1, 128>}, {transform_indices = @transform_2, window_bounds = array<i64: 1, 17, 128>}, {transform_indices = @transform_3, window_bounds = array<i64: 1, 33, 128>}, {transform_indices = @transform_4, window_bounds = array<i64: 2, 128>}, {transform_indices = @transform_5, window_bounds = array<i64: 1, 128>}, {pipeline_mode = #tpu.pipeline_mode<synchronous>, transform_indices = @transform_6, window_bounds = array<i64: 680, 33>}, {transform_indices = @transform_7, window_bounds = array<i64: 1, 56, 128>}]} {
    %c0 = arith.constant 0 : index
    %c0_0 = arith.constant 0 : index
    %c0_1 = arith.constant 0 : index
    %0 = vector.load %arg2[%c0, %c0_0, %c0_1] : memref<1x4x128xf32, #tpu.memory_space<vmem>>, vector<1x4x128xf32>
    %1 = vector.shape_cast %0 : vector<1x4x128xf32> to vector<4x128xf32>
    %c0_2 = arith.constant 0 : index
    %c0_3 = arith.constant 0 : index
    %2 = vector.load %arg7[%c0_2, %c0_3] : memref<1x128xf32, #tpu.memory_space<vmem>>, vector<1x128xf32>
    %c0_4 = arith.constant 0 : index
    %c0_5 = arith.constant 0 : index
    %3 = vector.load %arg6[%c0_4, %c0_5] : memref<2x128xf32, #tpu.memory_space<vmem>>, vector<2x128xf32>
    %4 = vector.extract_strided_slice %1 {offsets = [0, 0], sizes = [2, 128], strides = [1, 1]} : vector<4x128xf32> to vector<2x128xf32>
    %5 = vector.broadcast %2 : vector<1x128xf32> to vector<2x128xf32>
    %6 = arith.mulf %4, %5 : vector<2x128xf32>
    %7 = arith.addf %6, %3 : vector<2x128xf32>
    %8 = vector.extract_strided_slice %1 {offsets = [2, 0], sizes = [2, 128], strides = [1, 1]} : vector<4x128xf32> to vector<2x128xf32>
    %9 = math.exp %8 : vector<2x128xf32>
    %10 = vector.broadcast %2 : vector<1x128xf32> to vector<2x128xf32>
    %11 = arith.mulf %9, %10 : vector<2x128xf32>
    %cst = arith.constant 5.000000e-01 : f32
    %12 = vector.broadcast %cst : f32 to vector<2x128xf32>
    %13 = arith.mulf %11, %12 : vector<2x128xf32>
    %14 = arith.subf %7, %13 : vector<2x128xf32>
    %cst_6 = arith.constant 5.000000e-01 : f32
    %15 = vector.broadcast %cst_6 : f32 to vector<2x128xf32>
    %16 = arith.mulf %11, %15 : vector<2x128xf32>
    %17 = arith.addf %7, %16 : vector<2x128xf32>
    %c0_7 = arith.constant 0 : index
    %c0_8 = arith.constant 0 : index
    %c0_9 = arith.constant 0 : index
    %18 = vector.load %arg9[%c0_7, %c0_8, %c0_9] : memref<1x56x128xf32, #tpu.memory_space<vmem>>, vector<1x2x128xf32>
    %19 = vector.shape_cast %18 : vector<1x2x128xf32> to vector<2x128xf32>
    %20 = vector.shape_cast %14 : vector<2x128xf32> to vector<1x2x128xf32>
    tpu.vector_store %arg9[%c0_7, %c0_8, %c0_9], %20 {strides = array<i32>} : memref<1x56x128xf32, #tpu.memory_space<vmem>>, vector<1x2x128xf32>,
    %c0_10 = arith.constant 0 : index
    %c2 = arith.constant 2 : index
    %c0_11 = arith.constant 0 : index
    %21 = vector.load %arg9[%c0_10, %c2, %c0_11] : memref<1x56x128xf32, #tpu.memory_space<vmem>>, vector<1x2x128xf32>
    %22 = vector.shape_cast %21 : vector<1x2x128xf32> to vector<2x128xf32>
    %23 = vector.shape_cast %17 : vector<2x128xf32> to vector<1x2x128xf32>
    tpu.vector_store %arg9[%c0_10, %c2, %c0_11], %23 {strides = array<i32>} : memref<1x56x128xf32, #tpu.memory_space<vmem>>, vector<1x2x128xf32>,
    %c0_12 = arith.constant 0 : index
    %c0_13 = arith.constant 0 : index
    %c0_14 = arith.constant 0 : index
    %24 = vector.load %arg3[%c0_12, %c0_13, %c0_14] : memref<1x1x128xf32, #tpu.memory_space<vmem>>, vector<1x1x128xf32>
    %25 = vector.shape_cast %24 : vector<1x1x128xf32> to vector<1x128xf32>
    %26 = arith.negf %25 : vector<1x128xf32>
    %27 = math.exp %26 : vector<1x128xf32>
    %cst_15 = arith.constant 1.000000e+00 : f32
    %28 = vector.broadcast %cst_15 : f32 to vector<1x128xf32>
    %29 = arith.addf %28, %27 : vector<1x128xf32>
    %30 = arith.divf %28, %29 : vector<1x128xf32>
    %c0_16 = arith.constant 0 : index
    %c4 = arith.constant 4 : index
    %c0_17 = arith.constant 0 : index
    %31 = vector.load %arg9[%c0_16, %c4, %c0_17] : memref<1x56x128xf32, #tpu.memory_space<vmem>>, vector<1x1x128xf32>
    %32 = vector.shape_cast %31 : vector<1x1x128xf32> to vector<1x128xf32>
    %33 = vector.shape_cast %30 : vector<1x128xf32> to vector<1x1x128xf32>
    tpu.vector_store %arg9[%c0_16, %c4, %c0_17], %33 {strides = array<i32>} : memref<1x56x128xf32, #tpu.memory_space<vmem>>, vector<1x1x128xf32>,
    %c0_18 = arith.constant 0 : index
    %c0_19 = arith.constant 0 : index
    %c0_20 = arith.constant 0 : index
    %34 = vector.load %arg4[%c0_18, %c0_19, %c0_20] : memref<1x17x128xf32, #tpu.memory_space<vmem>>, vector<1x17x128xf32>
    %35 = vector.shape_cast %34 : vector<1x17x128xf32> to vector<17x128xf32>
    %36 = arith.negf %35 : vector<17x128xf32>
    %37 = math.exp %36 : vector<17x128xf32>
    %cst_21 = arith.constant 1.000000e+00 : f32
    %38 = vector.broadcast %cst_21 : f32 to vector<17x128xf32>
    %39 = arith.addf %38, %37 : vector<17x128xf32>
    %40 = arith.divf %38, %39 : vector<17x128xf32>
    %c0_22 = arith.constant 0 : index
    %c5 = arith.constant 5 : index
    %c0_23 = arith.constant 0 : index
    %41 = vector.load %arg9[%c0_22, %c5, %c0_23] : memref<1x56x128xf32, #tpu.memory_space<vmem>>, vector<1x17x128xf32>
    %42 = vector.shape_cast %41 : vector<1x17x128xf32> to vector<17x128xf32>
    %43 = vector.shape_cast %40 : vector<17x128xf32> to vector<1x17x128xf32>
    tpu.vector_store %arg9[%c0_22, %c5, %c0_23], %43 {strides = array<i32>} : memref<1x56x128xf32, #tpu.memory_space<vmem>>, vector<1x17x128xf32>,
    %44 = arith.addf %14, %17 : vector<2x128xf32>
    %cst_24 = arith.constant 5.000000e-01 : f32
    %45 = vector.broadcast %cst_24 : f32 to vector<2x128xf32>
    %46 = arith.mulf %44, %45 : vector<2x128xf32>
    %47 = arith.subf %17, %14 : vector<2x128xf32>
    %cst_25 = arith.constant 1.250000e+00 : f32
    %48 = vector.broadcast %cst_25 : f32 to vector<2x128xf32>
    %49 = arith.mulf %47, %48 : vector<2x128xf32>
    %50 = vector.extract_strided_slice %46 {offsets = [0, 0], sizes = [1, 128], strides = [1, 1]} : vector<2x128xf32> to vector<1x128xf32>
    %51 = vector.extract_strided_slice %3 {offsets = [0, 0], sizes = [1, 128], strides = [1, 1]} : vector<2x128xf32> to vector<1x128xf32>
    %52 = arith.subf %50, %51 : vector<1x128xf32>
    %53 = vector.extract_strided_slice %46 {offsets = [1, 0], sizes = [1, 128], strides = [1, 1]} : vector<2x128xf32> to vector<1x128xf32>
    %54 = vector.extract_strided_slice %3 {offsets = [1, 0], sizes = [1, 128], strides = [1, 1]} : vector<2x128xf32> to vector<1x128xf32>
    %55 = arith.subf %53, %54 : vector<1x128xf32>
    %56 = vector.extract_strided_slice %49 {offsets = [0, 0], sizes = [1, 128], strides = [1, 1]} : vector<2x128xf32> to vector<1x128xf32>
    %57 = vector.extract_strided_slice %49 {offsets = [1, 0], sizes = [1, 128], strides = [1, 1]} : vector<2x128xf32> to vector<1x128xf32>
    %c0_26 = arith.constant 0 : index
    %c0_27 = arith.constant 0 : index
    %58 = vector.load %arg8[%c0_26, %c0_27] : memref<680x33xbf16, #tpu.memory_space<vmem>>, vector<680x33xbf16>
    %c0_28 = arith.constant 0 : index
    %c0_29 = arith.constant 0 : index
    %c0_30 = arith.constant 0 : index
    %59 = vector.load %arg5[%c0_28, %c0_29, %c0_30] : memref<1x33x128xbf16, #tpu.memory_space<vmem>>, vector<1x33x128xbf16>
    %60 = vector.shape_cast %59 : vector<1x33x128xbf16> to vector<33x128xbf16>
    %cst_31 = arith.constant dense<0.000000e+00> : vector<680x128xf32>
    %61 = tpu.matmul %58, %60, %cst_31 {dimension_numbers = #tpu.dot_dimension_numbers<[1], [0], [0], [1], [0, 0, 1, 1], [], []>} : vector<680x33xbf16>, vector<33x128xbf16>, vector<680x128xf32> -> vector<680x128xf32>
    %c0_32 = arith.constant 0 : index
    %c0_33 = arith.constant 0 : index
    %62 = vector.load %arg10[%c0_32, %c0_33] : memref<680x128xf32, #tpu.memory_space<vmem>>, vector<680x128xf32>
    tpu.vector_store %arg10[%c0_32, %c0_33], %61 {strides = array<i32>} : memref<680x128xf32, #tpu.memory_space<vmem>>, vector<680x128xf32>,
    %cst_34 = arith.constant 0.0322580636 : f32
    %63 = vector.broadcast %cst_34 : f32 to vector<1x128xf32>
    %64 = arith.mulf %56, %63 : vector<1x128xf32>
    %cst_35 = arith.constant 5.000000e-01 : f32
    %65 = vector.broadcast %cst_35 : f32 to vector<1x128xf32>
    %66 = arith.mulf %65, %56 : vector<1x128xf32>
    %67 = arith.subf %52, %66 : vector<1x128xf32>
    %68 = tpu.iota {dimensions = array<i32: 0>} : vector<32x128xi32>
    %69 = arith.sitofp %68 : vector<32x128xi32> to vector<32x128xf32>
    %70 = vector.broadcast %64 : vector<1x128xf32> to vector<32x128xf32>
    %71 = arith.mulf %69, %70 : vector<32x128xf32>
    %72 = vector.broadcast %67 : vector<1x128xf32> to vector<32x128xf32>
    %73 = arith.addf %71, %72 : vector<32x128xf32>
    %cst_36 = arith.constant 1.000000e+00 : f32
    %74 = vector.broadcast %cst_36 : f32 to vector<32x128xf32>
    %75 = arith.mulf %73, %74 : vector<32x128xf32>
    %76 = math.cos %75 : vector<32x128xf32>
    %c0_37 = arith.constant 0 : index
    %c0_38 = arith.constant 0 : index
    %77 = vector.load %arg11[%c0_37, %c0_38] : memref<512x128xf32, #tpu.memory_space<vmem>>, vector<32x128xf32>
    tpu.vector_store %arg11[%c0_37, %c0_38], %76 {strides = array<i32>} : memref<512x128xf32, #tpu.memory_space<vmem>>, vector<32x128xf32>,
    %cst_39 = arith.constant 1.000000e+00 : f32
    %78 = vector.broadcast %cst_39 : f32 to vector<32x128xf32>
    %79 = arith.mulf %73, %78 : vector<32x128xf32>
    %80 = math.sin %79 : vector<32x128xf32>
    %c256 = arith.constant 256 : index
    %c0_40 = arith.constant 0 : index
    %81 = vector.load %arg11[%c256, %c0_40] : memref<512x128xf32, #tpu.memory_space<vmem>>, vector<32x128xf32>
    tpu.vector_store %arg11[%c256, %c0_40], %80 {strides = array<i32>} : memref<512x128xf32, #tpu.memory_space<vmem>>, vector<32x128xf32>,
    %cst_41 = arith.constant 1.000000e+00 : f32
    %82 = vector.broadcast %cst_41 : f32 to vector<32x128xf32>
    %83 = arith.mulf %73, %82 : vector<32x128xf32>
    %84 = math.cos %83 : vector<32x128xf32>
    %c32 = arith.constant 32 : index
    %c0_42 = arith.constant 0 : index
    %85 = vector.load %arg11[%c32, %c0_42] : memref<512x128xf32, #tpu.memory_space<vmem>>, vector<32x128xf32>
    tpu.vector_store %arg11[%c32, %c0_42], %84 {strides = array<i32>} : memref<512x128xf32, #tpu.memory_space<vmem>>, vector<32x128xf32>,
    %cst_43 = arith.constant 1.000000e+00 : f32
    %86 = vector.broadcast %cst_43 : f32 to vector<32x128xf32>
    %87 = arith.mulf %73, %86 : vector<32x128xf32>
    %88 = math.sin %87 : vector<32x128xf32>
    %c288 = arith.constant 288 : index
    %c0_44 = arith.constant 0 : index
    %89 = vector.load %arg11[%c288, %c0_44] : memref<512x128xf32, #tpu.memory_space<vmem>>, vector<32x128xf32>
    tpu.vector_store %arg11[%c288, %c0_44], %88 {strides = array<i32>} : memref<512x128xf32, #tpu.memory_space<vmem>>, vector<32x128xf32>,
    %cst_45 = arith.constant 0.240281135 : f32
    %90 = vector.broadcast %cst_45 : f32 to vector<32x128xf32>
    %91 = arith.mulf %73, %90 : vector<32x128xf32>
    %92 = math.cos %91 : vector<32x128xf32>
    %c64 = arith.constant 64 : index
    %c0_46 = arith.constant 0 : index
    %93 = vector.load %arg11[%c64, %c0_46] : memref<512x128xf32, #tpu.memory_space<vmem>>, vector<32x128xf32>
    tpu.vector_store %arg11[%c64, %c0_46], %92 {strides = array<i32>} : memref<512x128xf32, #tpu.memory_space<vmem>>, vector<32x128xf32>,
    %cst_47 = arith.constant 0.240281135 : f32
    %94 = vector.broadcast %cst_47 : f32 to vector<32x128xf32>
    %95 = arith.mulf %73, %94 : vector<32x128xf32>
    %96 = math.sin %95 : vector<32x128xf32>
    %c320 = arith.constant 320 : index
    %c0_48 = arith.constant 0 : index
    %97 = vector.load %arg11[%c320, %c0_48] : memref<512x128xf32, #tpu.memory_space<vmem>>, vector<32x128xf32>
    tpu.vector_store %arg11[%c320, %c0_48], %96 {strides = array<i32>} : memref<512x128xf32, #tpu.memory_space<vmem>>, vector<32x128xf32>,
    %cst_49 = arith.constant 0.240281135 : f32
    %98 = vector.broadcast %cst_49 : f32 to vector<32x128xf32>
    %99 = arith.mulf %73, %98 : vector<32x128xf32>
    %100 = math.cos %99 : vector<32x128xf32>
    %c96 = arith.constant 96 : index
    %c0_50 = arith.constant 0 : index
    %101 = vector.load %arg11[%c96, %c0_50] : memref<512x128xf32, #tpu.memory_space<vmem>>, vector<32x128xf32>
    tpu.vector_store %arg11[%c96, %c0_50], %100 {strides = array<i32>} : memref<512x128xf32, #tpu.memory_space<vmem>>, vector<32x128xf32>,
    %cst_51 = arith.constant 0.240281135 : f32
    %102 = vector.broadcast %cst_51 : f32 to vector<32x128xf32>
    %103 = arith.mulf %73, %102 : vector<32x128xf32>
    %104 = math.sin %103 : vector<32x128xf32>
    %c352 = arith.constant 352 : index
    %c0_52 = arith.constant 0 : index
    %105 = vector.load %arg11[%c352, %c0_52] : memref<512x128xf32, #tpu.memory_space<vmem>>, vector<32x128xf32>
    tpu.vector_store %arg11[%c352, %c0_52], %104 {strides = array<i32>} : memref<512x128xf32, #tpu.memory_space<vmem>>, vector<32x128xf32>,
    %cst_53 = arith.constant 0.0577350259 : f32
    %106 = vector.broadcast %cst_53 : f32 to vector<32x128xf32>
    %107 = arith.mulf %73, %106 : vector<32x128xf32>
    %108 = math.cos %107 : vector<32x128xf32>
    %c128 = arith.constant 128 : index
    %c0_54 = arith.constant 0 : index
    %109 = vector.load %arg11[%c128, %c0_54] : memref<512x128xf32, #tpu.memory_space<vmem>>, vector<32x128xf32>
    tpu.vector_store %arg11[%c128, %c0_54], %108 {strides = array<i32>} : memref<512x128xf32, #tpu.memory_space<vmem>>, vector<32x128xf32>,
    %cst_55 = arith.constant 0.0577350259 : f32
    %110 = vector.broadcast %cst_55 : f32 to vector<32x128xf32>
    %111 = arith.mulf %73, %110 : vector<32x128xf32>
    %112 = math.sin %111 : vector<32x128xf32>
    %c384 = arith.constant 384 : index
    %c0_56 = arith.constant 0 : index
    %113 = vector.load %arg11[%c384, %c0_56] : memref<512x128xf32, #tpu.memory_space<vmem>>, vector<32x128xf32>
    tpu.vector_store %arg11[%c384, %c0_56], %112 {strides = array<i32>} : memref<512x128xf32, #tpu.memory_space<vmem>>, vector<32x128xf32>,
    %cst_57 = arith.constant 0.0577350259 : f32
    %114 = vector.broadcast %cst_57 : f32 to vector<32x128xf32>
    %115 = arith.mulf %73, %114 : vector<32x128xf32>
    %116 = math.cos %115 : vector<32x128xf32>
    %c160 = arith.constant 160 : index
    %c0_58 = arith.constant 0 : index
    %117 = vector.load %arg11[%c160, %c0_58] : memref<512x128xf32, #tpu.memory_space<vmem>>, vector<32x128xf32>
    tpu.vector_store %arg11[%c160, %c0_58], %116 {strides = array<i32>} : memref<512x128xf32, #tpu.memory_space<vmem>>, vector<32x128xf32>,
    %cst_59 = arith.constant 0.0577350259 : f32
    %118 = vector.broadcast %cst_59 : f32 to vector<32x128xf32>
    %119 = arith.mulf %73, %118 : vector<32x128xf32>
    %120 = math.sin %119 : vector<32x128xf32>
    %c416 = arith.constant 416 : index
    %c0_60 = arith.constant 0 : index
    %121 = vector.load %arg11[%c416, %c0_60] : memref<512x128xf32, #tpu.memory_space<vmem>>, vector<32x128xf32>
    tpu.vector_store %arg11[%c416, %c0_60], %120 {strides = array<i32>} : memref<512x128xf32, #tpu.memory_space<vmem>>, vector<32x128xf32>,
    %cst_61 = arith.constant 0.0138726383 : f32
    %122 = vector.broadcast %cst_61 : f32 to vector<32x128xf32>
    %123 = arith.mulf %73, %122 : vector<32x128xf32>
    %124 = math.cos %123 : vector<32x128xf32>
    %c192 = arith.constant 192 : index
    %c0_62 = arith.constant 0 : index
    %125 = vector.load %arg11[%c192, %c0_62] : memref<512x128xf32, #tpu.memory_space<vmem>>, vector<32x128xf32>
    tpu.vector_store %arg11[%c192, %c0_62], %124 {strides = array<i32>} : memref<512x128xf32, #tpu.memory_space<vmem>>, vector<32x128xf32>,
    %cst_63 = arith.constant 0.0138726383 : f32
    %126 = vector.broadcast %cst_63 : f32 to vector<32x128xf32>
    %127 = arith.mulf %73, %126 : vector<32x128xf32>
    %128 = math.sin %127 : vector<32x128xf32>
    %c448 = arith.constant 448 : index
    %c0_64 = arith.constant 0 : index
    %129 = vector.load %arg11[%c448, %c0_64] : memref<512x128xf32, #tpu.memory_space<vmem>>, vector<32x128xf32>
    tpu.vector_store %arg11[%c448, %c0_64], %128 {strides = array<i32>} : memref<512x128xf32, #tpu.memory_space<vmem>>, vector<32x128xf32>,
    %cst_65 = arith.constant 0.0138726383 : f32
    %130 = vector.broadcast %cst_65 : f32 to vector<32x128xf32>
    %131 = arith.mulf %73, %130 : vector<32x128xf32>
    %132 = math.cos %131 : vector<32x128xf32>
    %c224 = arith.constant 224 : index
    %c0_66 = arith.constant 0 : index
    %133 = vector.load %arg11[%c224, %c0_66] : memref<512x128xf32, #tpu.memory_space<vmem>>, vector<32x128xf32>
    tpu.vector_store %arg11[%c224, %c0_66], %132 {strides = array<i32>} : memref<512x128xf32, #tpu.memory_space<vmem>>, vector<32x128xf32>,
    %cst_67 = arith.constant 0.0138726383 : f32
    %134 = vector.broadcast %cst_67 : f32 to vector<32x128xf32>
    %135 = arith.mulf %73, %134 : vector<32x128xf32>
    %136 = math.sin %135 : vector<32x128xf32>
    %c480 = arith.constant 480 : index
    %c0_68 = arith.constant 0 : index
    %137 = vector.load %arg11[%c480, %c0_68] : memref<512x128xf32, #tpu.memory_space<vmem>>, vector<32x128xf32>
    tpu.vector_store %arg11[%c480, %c0_68], %136 {strides = array<i32>} : memref<512x128xf32, #tpu.memory_space<vmem>>, vector<32x128xf32>,
    %c0_i32 = arith.constant 0 : i32
    %c8_i32 = arith.constant 8 : i32
    %138 = arith.addi %c0_i32, %c8_i32 : i32
    %c1_i32 = arith.constant 1 : i32
    scf.for %arg12 = %c0_i32 to %138 step %c1_i32  : i32 {
      %c1_i32_200 = arith.constant 1 : i32
      %429 = arith.muli %arg12, %c1_i32_200 : i32
      %c0_i32_201 = arith.constant 0 : i32
      %430 = arith.addi %c0_i32_201, %429 : i32
      %c2_i32 = arith.constant 2 : i32
      %431 = arith.muli %c2_i32, %430 : i32
      %c2_i32_202 = arith.constant 2 : i32
      %432 = arith.muli %c2_i32_202, %430 : i32
      %c1_i32_203 = arith.constant 1 : i32
      %433 = arith.addi %432, %c1_i32_203 : i32
      %c40_i32 = arith.constant 40 : i32
      %434 = arith.muli %431, %c40_i32 : i32
      %c0_i32_204 = arith.constant 0 : i32
      %435 = arith.addi %434, %c0_i32_204 : i32
      %436 = tpu.assume_multiple %435, 8 : i32
      %437 = arith.index_cast %436 : i32 to index
      %c0_205 = arith.constant 0 : index
      %438 = vector.load %arg10[%437, %c0_205] : memref<680x128xf32, #tpu.memory_space<vmem>>, vector<16x128xf32>
      %c40_i32_206 = arith.constant 40 : i32
      %439 = arith.muli %431, %c40_i32_206 : i32
      %c32_i32 = arith.constant 32 : i32
      %440 = arith.addi %439, %c32_i32 : i32
      %441 = arith.index_cast %440 : i32 to index
      %c0_207 = arith.constant 0 : index
      %442 = vector.load %arg10[%441, %c0_207] : memref<680x128xf32, #tpu.memory_space<vmem>>, vector<1x128xf32>
      %443 = vector.shape_cast %442 : vector<1x128xf32> to vector<1x128xf32>
      %444 = vector.broadcast %443 : vector<1x128xf32> to vector<32x128xf32>
      %c40_i32_208 = arith.constant 40 : i32
      %445 = arith.muli %433, %c40_i32_208 : i32
      %c0_i32_209 = arith.constant 0 : i32
      %446 = arith.addi %445, %c0_i32_209 : i32
      %447 = tpu.assume_multiple %446, 8 : i32
      %448 = arith.index_cast %447 : i32 to index
      %c0_210 = arith.constant 0 : index
      %449 = vector.load %arg10[%448, %c0_210] : memref<680x128xf32, #tpu.memory_space<vmem>>, vector<16x128xf32>
      %c40_i32_211 = arith.constant 40 : i32
      %450 = arith.muli %433, %c40_i32_211 : i32
      %c32_i32_212 = arith.constant 32 : i32
      %451 = arith.addi %450, %c32_i32_212 : i32
      %452 = arith.index_cast %451 : i32 to index
      %c0_213 = arith.constant 0 : index
      %453 = vector.load %arg10[%452, %c0_213] : memref<680x128xf32, #tpu.memory_space<vmem>>, vector<1x128xf32>
      %454 = vector.shape_cast %453 : vector<1x128xf32> to vector<1x128xf32>
      %455 = vector.broadcast %454 : vector<1x128xf32> to vector<32x128xf32>
      %c0_214 = arith.constant 0 : index
      %c0_215 = arith.constant 0 : index
      %456 = vector.load %arg11[%c0_214, %c0_215] : memref<512x128xf32, #tpu.memory_space<vmem>>, vector<32x128xf32>
      %457 = vector.extract_strided_slice %438 {offsets = [0, 0], sizes = [1, 128], strides = [1, 1]} : vector<16x128xf32> to vector<1x128xf32>
      %458 = vector.broadcast %457 : vector<1x128xf32> to vector<32x128xf32>
      %459 = arith.mulf %456, %458 : vector<32x128xf32>
      %460 = arith.addf %444, %459 : vector<32x128xf32>
      %461 = vector.extract_strided_slice %449 {offsets = [0, 0], sizes = [1, 128], strides = [1, 1]} : vector<16x128xf32> to vector<1x128xf32>
      %462 = vector.broadcast %461 : vector<1x128xf32> to vector<32x128xf32>
      %463 = arith.mulf %456, %462 : vector<32x128xf32>
      %464 = arith.addf %455, %463 : vector<32x128xf32>
      %c32_216 = arith.constant 32 : index
      %c0_217 = arith.constant 0 : index
      %465 = vector.load %arg11[%c32_216, %c0_217] : memref<512x128xf32, #tpu.memory_space<vmem>>, vector<32x128xf32>
      %466 = vector.extract_strided_slice %438 {offsets = [1, 0], sizes = [1, 128], strides = [1, 1]} : vector<16x128xf32> to vector<1x128xf32>
      %467 = vector.broadcast %466 : vector<1x128xf32> to vector<32x128xf32>
      %468 = arith.mulf %465, %467 : vector<32x128xf32>
      %469 = arith.addf %460, %468 : vector<32x128xf32>
      %470 = vector.extract_strided_slice %449 {offsets = [1, 0], sizes = [1, 128], strides = [1, 1]} : vector<16x128xf32> to vector<1x128xf32>
      %471 = vector.broadcast %470 : vector<1x128xf32> to vector<32x128xf32>
      %472 = arith.mulf %465, %471 : vector<32x128xf32>
      %473 = arith.addf %464, %472 : vector<32x128xf32>
      %c64_218 = arith.constant 64 : index
      %c0_219 = arith.constant 0 : index
      %474 = vector.load %arg11[%c64_218, %c0_219] : memref<512x128xf32, #tpu.memory_space<vmem>>, vector<32x128xf32>
      %475 = vector.extract_strided_slice %438 {offsets = [2, 0], sizes = [1, 128], strides = [1, 1]} : vector<16x128xf32> to vector<1x128xf32>
      %476 = vector.broadcast %475 : vector<1x128xf32> to vector<32x128xf32>
      %477 = arith.mulf %474, %476 : vector<32x128xf32>
      %478 = arith.addf %469, %477 : vector<32x128xf32>
      %479 = vector.extract_strided_slice %449 {offsets = [2, 0], sizes = [1, 128], strides = [1, 1]} : vector<16x128xf32> to vector<1x128xf32>
      %480 = vector.broadcast %479 : vector<1x128xf32> to vector<32x128xf32>
      %481 = arith.mulf %474, %480 : vector<32x128xf32>
      %482 = arith.addf %473, %481 : vector<32x128xf32>
      %c96_220 = arith.constant 96 : index
      %c0_221 = arith.constant 0 : index
      %483 = vector.load %arg11[%c96_220, %c0_221] : memref<512x128xf32, #tpu.memory_space<vmem>>, vector<32x128xf32>
      %484 = vector.extract_strided_slice %438 {offsets = [3, 0], sizes = [1, 128], strides = [1, 1]} : vector<16x128xf32> to vector<1x128xf32>
      %485 = vector.broadcast %484 : vector<1x128xf32> to vector<32x128xf32>
      %486 = arith.mulf %483, %485 : vector<32x128xf32>
      %487 = arith.addf %478, %486 : vector<32x128xf32>
      %488 = vector.extract_strided_slice %449 {offsets = [3, 0], sizes = [1, 128], strides = [1, 1]} : vector<16x128xf32> to vector<1x128xf32>
      %489 = vector.broadcast %488 : vector<1x128xf32> to vector<32x128xf32>
      %490 = arith.mulf %483, %489 : vector<32x128xf32>
      %491 = arith.addf %482, %490 : vector<32x128xf32>
      %c128_222 = arith.constant 128 : index
      %c0_223 = arith.constant 0 : index
      %492 = vector.load %arg11[%c128_222, %c0_223] : memref<512x128xf32, #tpu.memory_space<vmem>>, vector<32x128xf32>
      %493 = vector.extract_strided_slice %438 {offsets = [4, 0], sizes = [1, 128], strides = [1, 1]} : vector<16x128xf32> to vector<1x128xf32>
      %494 = vector.broadcast %493 : vector<1x128xf32> to vector<32x128xf32>
      %495 = arith.mulf %492, %494 : vector<32x128xf32>
      %496 = arith.addf %487, %495 : vector<32x128xf32>
      %497 = vector.extract_strided_slice %449 {offsets = [4, 0], sizes = [1, 128], strides = [1, 1]} : vector<16x128xf32> to vector<1x128xf32>
      %498 = vector.broadcast %497 : vector<1x128xf32> to vector<32x128xf32>
      %499 = arith.mulf %492, %498 : vector<32x128xf32>
      %500 = arith.addf %491, %499 : vector<32x128xf32>
      %c160_224 = arith.constant 160 : index
      %c0_225 = arith.constant 0 : index
      %501 = vector.load %arg11[%c160_224, %c0_225] : memref<512x128xf32, #tpu.memory_space<vmem>>, vector<32x128xf32>
      %502 = vector.extract_strided_slice %438 {offsets = [5, 0], sizes = [1, 128], strides = [1, 1]} : vector<16x128xf32> to vector<1x128xf32>
      %503 = vector.broadcast %502 : vector<1x128xf32> to vector<32x128xf32>
      %504 = arith.mulf %501, %503 : vector<32x128xf32>
      %505 = arith.addf %496, %504 : vector<32x128xf32>
      %506 = vector.extract_strided_slice %449 {offsets = [5, 0], sizes = [1, 128], strides = [1, 1]} : vector<16x128xf32> to vector<1x128xf32>
      %507 = vector.broadcast %506 : vector<1x128xf32> to vector<32x128xf32>
      %508 = arith.mulf %501, %507 : vector<32x128xf32>
      %509 = arith.addf %500, %508 : vector<32x128xf32>
      %c192_226 = arith.constant 192 : index
      %c0_227 = arith.constant 0 : index
      %510 = vector.load %arg11[%c192_226, %c0_227] : memref<512x128xf32, #tpu.memory_space<vmem>>, vector<32x128xf32>
      %511 = vector.extract_strided_slice %438 {offsets = [6, 0], sizes = [1, 128], strides = [1, 1]} : vector<16x128xf32> to vector<1x128xf32>
      %512 = vector.broadcast %511 : vector<1x128xf32> to vector<32x128xf32>
      %513 = arith.mulf %510, %512 : vector<32x128xf32>
      %514 = arith.addf %505, %513 : vector<32x128xf32>
      %515 = vector.extract_strided_slice %449 {offsets = [6, 0], sizes = [1, 128], strides = [1, 1]} : vector<16x128xf32> to vector<1x128xf32>
      %516 = vector.broadcast %515 : vector<1x128xf32> to vector<32x128xf32>
      %517 = arith.mulf %510, %516 : vector<32x128xf32>
      %518 = arith.addf %509, %517 : vector<32x128xf32>
      %c224_228 = arith.constant 224 : index
      %c0_229 = arith.constant 0 : index
      %519 = vector.load %arg11[%c224_228, %c0_229] : memref<512x128xf32, #tpu.memory_space<vmem>>, vector<32x128xf32>
      %520 = vector.extract_strided_slice %438 {offsets = [7, 0], sizes = [1, 128], strides = [1, 1]} : vector<16x128xf32> to vector<1x128xf32>
      %521 = vector.broadcast %520 : vector<1x128xf32> to vector<32x128xf32>
      %522 = arith.mulf %519, %521 : vector<32x128xf32>
      %523 = arith.addf %514, %522 : vector<32x128xf32>
      %524 = vector.extract_strided_slice %449 {offsets = [7, 0], sizes = [1, 128], strides = [1, 1]} : vector<16x128xf32> to vector<1x128xf32>
      %525 = vector.broadcast %524 : vector<1x128xf32> to vector<32x128xf32>
      %526 = arith.mulf %519, %525 : vector<32x128xf32>
      %527 = arith.addf %518, %526 : vector<32x128xf32>
      %c256_230 = arith.constant 256 : index
      %c0_231 = arith.constant 0 : index
      %528 = vector.load %arg11[%c256_230, %c0_231] : memref<512x128xf32, #tpu.memory_space<vmem>>, vector<32x128xf32>
      %529 = vector.extract_strided_slice %438 {offsets = [8, 0], sizes = [1, 128], strides = [1, 1]} : vector<16x128xf32> to vector<1x128xf32>
      %530 = vector.broadcast %529 : vector<1x128xf32> to vector<32x128xf32>
      %531 = arith.mulf %528, %530 : vector<32x128xf32>
      %532 = arith.addf %523, %531 : vector<32x128xf32>
      %533 = vector.extract_strided_slice %449 {offsets = [8, 0], sizes = [1, 128], strides = [1, 1]} : vector<16x128xf32> to vector<1x128xf32>
      %534 = vector.broadcast %533 : vector<1x128xf32> to vector<32x128xf32>
      %535 = arith.mulf %528, %534 : vector<32x128xf32>
      %536 = arith.addf %527, %535 : vector<32x128xf32>
      %c288_232 = arith.constant 288 : index
      %c0_233 = arith.constant 0 : index
      %537 = vector.load %arg11[%c288_232, %c0_233] : memref<512x128xf32, #tpu.memory_space<vmem>>, vector<32x128xf32>
      %538 = vector.extract_strided_slice %438 {offsets = [9, 0], sizes = [1, 128], strides = [1, 1]} : vector<16x128xf32> to vector<1x128xf32>
      %539 = vector.broadcast %538 : vector<1x128xf32> to vector<32x128xf32>
      %540 = arith.mulf %537, %539 : vector<32x128xf32>
      %541 = arith.addf %532, %540 : vector<32x128xf32>
      %542 = vector.extract_strided_slice %449 {offsets = [9, 0], sizes = [1, 128], strides = [1, 1]} : vector<16x128xf32> to vector<1x128xf32>
      %543 = vector.broadcast %542 : vector<1x128xf32> to vector<32x128xf32>
      %544 = arith.mulf %537, %543 : vector<32x128xf32>
      %545 = arith.addf %536, %544 : vector<32x128xf32>
      %c320_234 = arith.constant 320 : index
      %c0_235 = arith.constant 0 : index
      %546 = vector.load %arg11[%c320_234, %c0_235] : memref<512x128xf32, #tpu.memory_space<vmem>>, vector<32x128xf32>
      %547 = vector.extract_strided_slice %438 {offsets = [10, 0], sizes = [1, 128], strides = [1, 1]} : vector<16x128xf32> to vector<1x128xf32>
      %548 = vector.broadcast %547 : vector<1x128xf32> to vector<32x128xf32>
      %549 = arith.mulf %546, %548 : vector<32x128xf32>
      %550 = arith.addf %541, %549 : vector<32x128xf32>
      %551 = vector.extract_strided_slice %449 {offsets = [10, 0], sizes = [1, 128], strides = [1, 1]} : vector<16x128xf32> to vector<1x128xf32>
      %552 = vector.broadcast %551 : vector<1x128xf32> to vector<32x128xf32>
      %553 = arith.mulf %546, %552 : vector<32x128xf32>
      %554 = arith.addf %545, %553 : vector<32x128xf32>
      %c352_236 = arith.constant 352 : index
      %c0_237 = arith.constant 0 : index
      %555 = vector.load %arg11[%c352_236, %c0_237] : memref<512x128xf32, #tpu.memory_space<vmem>>, vector<32x128xf32>
      %556 = vector.extract_strided_slice %438 {offsets = [11, 0], sizes = [1, 128], strides = [1, 1]} : vector<16x128xf32> to vector<1x128xf32>
      %557 = vector.broadcast %556 : vector<1x128xf32> to vector<32x128xf32>
      %558 = arith.mulf %555, %557 : vector<32x128xf32>
      %559 = arith.addf %550, %558 : vector<32x128xf32>
      %560 = vector.extract_strided_slice %449 {offsets = [11, 0], sizes = [1, 128], strides = [1, 1]} : vector<16x128xf32> to vector<1x128xf32>
      %561 = vector.broadcast %560 : vector<1x128xf32> to vector<32x128xf32>
      %562 = arith.mulf %555, %561 : vector<32x128xf32>
      %563 = arith.addf %554, %562 : vector<32x128xf32>
      %c384_238 = arith.constant 384 : index
      %c0_239 = arith.constant 0 : index
      %564 = vector.load %arg11[%c384_238, %c0_239] : memref<512x128xf32, #tpu.memory_space<vmem>>, vector<32x128xf32>
      %565 = vector.extract_strided_slice %438 {offsets = [12, 0], sizes = [1, 128], strides = [1, 1]} : vector<16x128xf32> to vector<1x128xf32>
      %566 = vector.broadcast %565 : vector<1x128xf32> to vector<32x128xf32>
      %567 = arith.mulf %564, %566 : vector<32x128xf32>
      %568 = arith.addf %559, %567 : vector<32x128xf32>
      %569 = vector.extract_strided_slice %449 {offsets = [12, 0], sizes = [1, 128], strides = [1, 1]} : vector<16x128xf32> to vector<1x128xf32>
      %570 = vector.broadcast %569 : vector<1x128xf32> to vector<32x128xf32>
      %571 = arith.mulf %564, %570 : vector<32x128xf32>
      %572 = arith.addf %563, %571 : vector<32x128xf32>
      %c416_240 = arith.constant 416 : index
      %c0_241 = arith.constant 0 : index
      %573 = vector.load %arg11[%c416_240, %c0_241] : memref<512x128xf32, #tpu.memory_space<vmem>>, vector<32x128xf32>
      %574 = vector.extract_strided_slice %438 {offsets = [13, 0], sizes = [1, 128], strides = [1, 1]} : vector<16x128xf32> to vector<1x128xf32>
      %575 = vector.broadcast %574 : vector<1x128xf32> to vector<32x128xf32>
      %576 = arith.mulf %573, %575 : vector<32x128xf32>
      %577 = arith.addf %568, %576 : vector<32x128xf32>
      %578 = vector.extract_strided_slice %449 {offsets = [13, 0], sizes = [1, 128], strides = [1, 1]} : vector<16x128xf32> to vector<1x128xf32>
      %579 = vector.broadcast %578 : vector<1x128xf32> to vector<32x128xf32>
      %580 = arith.mulf %573, %579 : vector<32x128xf32>
      %581 = arith.addf %572, %580 : vector<32x128xf32>
      %c448_242 = arith.constant 448 : index
      %c0_243 = arith.constant 0 : index
      %582 = vector.load %arg11[%c448_242, %c0_243] : memref<512x128xf32, #tpu.memory_space<vmem>>, vector<32x128xf32>
      %583 = vector.extract_strided_slice %438 {offsets = [14, 0], sizes = [1, 128], strides = [1, 1]} : vector<16x128xf32> to vector<1x128xf32>
      %584 = vector.broadcast %583 : vector<1x128xf32> to vector<32x128xf32>
      %585 = arith.mulf %582, %584 : vector<32x128xf32>
      %586 = arith.addf %577, %585 : vector<32x128xf32>
      %587 = vector.extract_strided_slice %449 {offsets = [14, 0], sizes = [1, 128], strides = [1, 1]} : vector<16x128xf32> to vector<1x128xf32>
      %588 = vector.broadcast %587 : vector<1x128xf32> to vector<32x128xf32>
      %589 = arith.mulf %582, %588 : vector<32x128xf32>
      %590 = arith.addf %581, %589 : vector<32x128xf32>
      %c480_244 = arith.constant 480 : index
      %c0_245 = arith.constant 0 : index
      %591 = vector.load %arg11[%c480_244, %c0_245] : memref<512x128xf32, #tpu.memory_space<vmem>>, vector<32x128xf32>
      %592 = vector.extract_strided_slice %438 {offsets = [15, 0], sizes = [1, 128], strides = [1, 1]} : vector<16x128xf32> to vector<1x128xf32>
      %593 = vector.broadcast %592 : vector<1x128xf32> to vector<32x128xf32>
      %594 = arith.mulf %591, %593 : vector<32x128xf32>
      %595 = arith.addf %586, %594 : vector<32x128xf32>
      %596 = vector.extract_strided_slice %449 {offsets = [15, 0], sizes = [1, 128], strides = [1, 1]} : vector<16x128xf32> to vector<1x128xf32>
      %597 = vector.broadcast %596 : vector<1x128xf32> to vector<32x128xf32>
      %598 = arith.mulf %591, %597 : vector<32x128xf32>
      %599 = arith.addf %590, %598 : vector<32x128xf32>
      %c22_i32 = arith.constant 22 : i32
      %600 = arith.addi %c22_i32, %431 : i32
      %cst_246 = arith.constant -5.000000e+04 : f32
      %cst_247 = arith.constant 5.000000e+04 : f32
      %601 = vector.broadcast %cst_246 : f32 to vector<32x128xf32>
      %602 = arith.maximumf %601, %595 : vector<32x128xf32>
      %603 = vector.broadcast %cst_247 : f32 to vector<32x128xf32>
      %604 = arith.minimumf %603, %602 : vector<32x128xf32>
      %cst_248 = arith.constant dense<0xFF800000> : vector<128xf32>
      %605 = vector.multi_reduction <maximumf>, %604, %cst_248 [0] : vector<32x128xf32> to vector<128xf32>
      %606 = vector.shape_cast %605 : vector<128xf32> to vector<1x128xf32>
      %607 = vector.broadcast %606 : vector<1x128xf32> to vector<32x128xf32>
      %608 = arith.subf %604, %607 : vector<32x128xf32>
      %609 = math.exp %608 : vector<32x128xf32>
      %610 = arith.mulf %609, %69 : vector<32x128xf32>
      %cst_249 = arith.constant dense<0.000000e+00> : vector<128xf32>
      %611 = vector.multi_reduction <add>, %610, %cst_249 [0] : vector<32x128xf32> to vector<128xf32>
      %612 = vector.shape_cast %611 : vector<128xf32> to vector<1x128xf32>
      %cst_250 = arith.constant dense<0.000000e+00> : vector<128xf32>
      %613 = vector.multi_reduction <add>, %609, %cst_250 [0] : vector<32x128xf32> to vector<128xf32>
      %614 = vector.shape_cast %613 : vector<128xf32> to vector<1x128xf32>
      %cst_251 = arith.constant 9.99999993E-9 : f32
      %615 = vector.broadcast %cst_251 : f32 to vector<1x128xf32>
      %616 = arith.addf %614, %615 : vector<1x128xf32>
      %617 = tpu.reciprocal %616 {approx = true} : vector<1x128xf32> -> vector<1x128xf32>
      %618 = arith.mulf %612, %617 : vector<1x128xf32>
      %619 = arith.mulf %64, %618 : vector<1x128xf32>
      %620 = arith.addf %619, %67 : vector<1x128xf32>
      %c0_252 = arith.constant 0 : index
      %621 = arith.index_cast %600 : i32 to index
      %c0_253 = arith.constant 0 : index
      %622 = vector.load %arg9[%c0_252, %621, %c0_253] : memref<1x56x128xf32, #tpu.memory_space<vmem>>, vector<1x1x128xf32>
      %623 = vector.shape_cast %622 : vector<1x1x128xf32> to vector<1x128xf32>
      %624 = vector.shape_cast %620 : vector<1x128xf32> to vector<1x1x128xf32>
      tpu.vector_store %arg9[%c0_252, %621, %c0_253], %624 {strides = array<i32>} : memref<1x56x128xf32, #tpu.memory_space<vmem>>, vector<1x1x128xf32>,
      %c22_i32_254 = arith.constant 22 : i32
      %625 = arith.addi %c22_i32_254, %433 : i32
      %cst_255 = arith.constant -5.000000e+04 : f32
      %cst_256 = arith.constant 5.000000e+04 : f32
      %626 = vector.broadcast %cst_255 : f32 to vector<32x128xf32>
      %627 = arith.maximumf %626, %599 : vector<32x128xf32>
      %628 = vector.broadcast %cst_256 : f32 to vector<32x128xf32>
      %629 = arith.minimumf %628, %627 : vector<32x128xf32>
      %cst_257 = arith.constant dense<0xFF800000> : vector<128xf32>
      %630 = vector.multi_reduction <maximumf>, %629, %cst_257 [0] : vector<32x128xf32> to vector<128xf32>
      %631 = vector.shape_cast %630 : vector<128xf32> to vector<1x128xf32>
      %632 = vector.broadcast %631 : vector<1x128xf32> to vector<32x128xf32>
      %633 = arith.subf %629, %632 : vector<32x128xf32>
      %634 = math.exp %633 : vector<32x128xf32>
      %635 = arith.mulf %634, %69 : vector<32x128xf32>
      %cst_258 = arith.constant dense<0.000000e+00> : vector<128xf32>
      %636 = vector.multi_reduction <add>, %635, %cst_258 [0] : vector<32x128xf32> to vector<128xf32>
      %637 = vector.shape_cast %636 : vector<128xf32> to vector<1x128xf32>
      %cst_259 = arith.constant dense<0.000000e+00> : vector<128xf32>
      %638 = vector.multi_reduction <add>, %634, %cst_259 [0] : vector<32x128xf32> to vector<128xf32>
      %639 = vector.shape_cast %638 : vector<128xf32> to vector<1x128xf32>
      %cst_260 = arith.constant 9.99999993E-9 : f32
      %640 = vector.broadcast %cst_260 : f32 to vector<1x128xf32>
      %641 = arith.addf %639, %640 : vector<1x128xf32>
      %642 = tpu.reciprocal %641 {approx = true} : vector<1x128xf32> -> vector<1x128xf32>
      %643 = arith.mulf %637, %642 : vector<1x128xf32>
      %644 = arith.mulf %64, %643 : vector<1x128xf32>
      %645 = arith.addf %644, %67 : vector<1x128xf32>
      %c0_261 = arith.constant 0 : index
      %646 = arith.index_cast %625 : i32 to index
      %c0_262 = arith.constant 0 : index
      %647 = vector.load %arg9[%c0_261, %646, %c0_262] : memref<1x56x128xf32, #tpu.memory_space<vmem>>, vector<1x1x128xf32>
      %648 = vector.shape_cast %647 : vector<1x1x128xf32> to vector<1x128xf32>
      %649 = vector.shape_cast %645 : vector<1x128xf32> to vector<1x1x128xf32>
      tpu.vector_store %arg9[%c0_261, %646, %c0_262], %649 {strides = array<i32>} : memref<1x56x128xf32, #tpu.memory_space<vmem>>, vector<1x1x128xf32>,
    }
    %c8_i32_69 = arith.constant 8 : i32
    %c640 = arith.constant 640 : index
    %c0_70 = arith.constant 0 : index
    %139 = vector.load %arg10[%c640, %c0_70] : memref<680x128xf32, #tpu.memory_space<vmem>>, vector<16x128xf32>
    %c672 = arith.constant 672 : index
    %c0_71 = arith.constant 0 : index
    %140 = vector.load %arg10[%c672, %c0_71] : memref<680x128xf32, #tpu.memory_space<vmem>>, vector<1x128xf32>
    %141 = vector.shape_cast %140 : vector<1x128xf32> to vector<1x128xf32>
    %142 = vector.broadcast %141 : vector<1x128xf32> to vector<32x128xf32>
    %c0_72 = arith.constant 0 : index
    %c0_73 = arith.constant 0 : index
    %143 = vector.load %arg11[%c0_72, %c0_73] : memref<512x128xf32, #tpu.memory_space<vmem>>, vector<32x128xf32>
    %144 = vector.extract_strided_slice %139 {offsets = [0, 0], sizes = [1, 128], strides = [1, 1]} : vector<16x128xf32> to vector<1x128xf32>
    %145 = vector.broadcast %144 : vector<1x128xf32> to vector<32x128xf32>
    %146 = arith.mulf %143, %145 : vector<32x128xf32>
    %147 = arith.addf %142, %146 : vector<32x128xf32>
    %c32_74 = arith.constant 32 : index
    %c0_75 = arith.constant 0 : index
    %148 = vector.load %arg11[%c32_74, %c0_75] : memref<512x128xf32, #tpu.memory_space<vmem>>, vector<32x128xf32>
    %149 = vector.extract_strided_slice %139 {offsets = [1, 0], sizes = [1, 128], strides = [1, 1]} : vector<16x128xf32> to vector<1x128xf32>
    %150 = vector.broadcast %149 : vector<1x128xf32> to vector<32x128xf32>
    %151 = arith.mulf %148, %150 : vector<32x128xf32>
    %152 = arith.addf %147, %151 : vector<32x128xf32>
    %c64_76 = arith.constant 64 : index
    %c0_77 = arith.constant 0 : index
    %153 = vector.load %arg11[%c64_76, %c0_77] : memref<512x128xf32, #tpu.memory_space<vmem>>, vector<32x128xf32>
    %154 = vector.extract_strided_slice %139 {offsets = [2, 0], sizes = [1, 128], strides = [1, 1]} : vector<16x128xf32> to vector<1x128xf32>
    %155 = vector.broadcast %154 : vector<1x128xf32> to vector<32x128xf32>
    %156 = arith.mulf %153, %155 : vector<32x128xf32>
    %157 = arith.addf %152, %156 : vector<32x128xf32>
    %c96_78 = arith.constant 96 : index
    %c0_79 = arith.constant 0 : index
    %158 = vector.load %arg11[%c96_78, %c0_79] : memref<512x128xf32, #tpu.memory_space<vmem>>, vector<32x128xf32>
    %159 = vector.extract_strided_slice %139 {offsets = [3, 0], sizes = [1, 128], strides = [1, 1]} : vector<16x128xf32> to vector<1x128xf32>
    %160 = vector.broadcast %159 : vector<1x128xf32> to vector<32x128xf32>
    %161 = arith.mulf %158, %160 : vector<32x128xf32>
    %162 = arith.addf %157, %161 : vector<32x128xf32>
    %c128_80 = arith.constant 128 : index
    %c0_81 = arith.constant 0 : index
    %163 = vector.load %arg11[%c128_80, %c0_81] : memref<512x128xf32, #tpu.memory_space<vmem>>, vector<32x128xf32>
    %164 = vector.extract_strided_slice %139 {offsets = [4, 0], sizes = [1, 128], strides = [1, 1]} : vector<16x128xf32> to vector<1x128xf32>
    %165 = vector.broadcast %164 : vector<1x128xf32> to vector<32x128xf32>
    %166 = arith.mulf %163, %165 : vector<32x128xf32>
    %167 = arith.addf %162, %166 : vector<32x128xf32>
    %c160_82 = arith.constant 160 : index
    %c0_83 = arith.constant 0 : index
    %168 = vector.load %arg11[%c160_82, %c0_83] : memref<512x128xf32, #tpu.memory_space<vmem>>, vector<32x128xf32>
    %169 = vector.extract_strided_slice %139 {offsets = [5, 0], sizes = [1, 128], strides = [1, 1]} : vector<16x128xf32> to vector<1x128xf32>
    %170 = vector.broadcast %169 : vector<1x128xf32> to vector<32x128xf32>
    %171 = arith.mulf %168, %170 : vector<32x128xf32>
    %172 = arith.addf %167, %171 : vector<32x128xf32>
    %c192_84 = arith.constant 192 : index
    %c0_85 = arith.constant 0 : index
    %173 = vector.load %arg11[%c192_84, %c0_85] : memref<512x128xf32, #tpu.memory_space<vmem>>, vector<32x128xf32>
    %174 = vector.extract_strided_slice %139 {offsets = [6, 0], sizes = [1, 128], strides = [1, 1]} : vector<16x128xf32> to vector<1x128xf32>
    %175 = vector.broadcast %174 : vector<1x128xf32> to vector<32x128xf32>
    %176 = arith.mulf %173, %175 : vector<32x128xf32>
    %177 = arith.addf %172, %176 : vector<32x128xf32>
    %c224_86 = arith.constant 224 : index
    %c0_87 = arith.constant 0 : index
    %178 = vector.load %arg11[%c224_86, %c0_87] : memref<512x128xf32, #tpu.memory_space<vmem>>, vector<32x128xf32>
    %179 = vector.extract_strided_slice %139 {offsets = [7, 0], sizes = [1, 128], strides = [1, 1]} : vector<16x128xf32> to vector<1x128xf32>
    %180 = vector.broadcast %179 : vector<1x128xf32> to vector<32x128xf32>
    %181 = arith.mulf %178, %180 : vector<32x128xf32>
    %182 = arith.addf %177, %181 : vector<32x128xf32>
    %c256_88 = arith.constant 256 : index
    %c0_89 = arith.constant 0 : index
    %183 = vector.load %arg11[%c256_88, %c0_89] : memref<512x128xf32, #tpu.memory_space<vmem>>, vector<32x128xf32>
    %184 = vector.extract_strided_slice %139 {offsets = [8, 0], sizes = [1, 128], strides = [1, 1]} : vector<16x128xf32> to vector<1x128xf32>
    %185 = vector.broadcast %184 : vector<1x128xf32> to vector<32x128xf32>
    %186 = arith.mulf %183, %185 : vector<32x128xf32>
    %187 = arith.addf %182, %186 : vector<32x128xf32>
    %c288_90 = arith.constant 288 : index
    %c0_91 = arith.constant 0 : index
    %188 = vector.load %arg11[%c288_90, %c0_91] : memref<512x128xf32, #tpu.memory_space<vmem>>, vector<32x128xf32>
    %189 = vector.extract_strided_slice %139 {offsets = [9, 0], sizes = [1, 128], strides = [1, 1]} : vector<16x128xf32> to vector<1x128xf32>
    %190 = vector.broadcast %189 : vector<1x128xf32> to vector<32x128xf32>
    %191 = arith.mulf %188, %190 : vector<32x128xf32>
    %192 = arith.addf %187, %191 : vector<32x128xf32>
    %c320_92 = arith.constant 320 : index
    %c0_93 = arith.constant 0 : index
    %193 = vector.load %arg11[%c320_92, %c0_93] : memref<512x128xf32, #tpu.memory_space<vmem>>, vector<32x128xf32>
    %194 = vector.extract_strided_slice %139 {offsets = [10, 0], sizes = [1, 128], strides = [1, 1]} : vector<16x128xf32> to vector<1x128xf32>
    %195 = vector.broadcast %194 : vector<1x128xf32> to vector<32x128xf32>
    %196 = arith.mulf %193, %195 : vector<32x128xf32>
    %197 = arith.addf %192, %196 : vector<32x128xf32>
    %c352_94 = arith.constant 352 : index
    %c0_95 = arith.constant 0 : index
    %198 = vector.load %arg11[%c352_94, %c0_95] : memref<512x128xf32, #tpu.memory_space<vmem>>, vector<32x128xf32>
    %199 = vector.extract_strided_slice %139 {offsets = [11, 0], sizes = [1, 128], strides = [1, 1]} : vector<16x128xf32> to vector<1x128xf32>
    %200 = vector.broadcast %199 : vector<1x128xf32> to vector<32x128xf32>
    %201 = arith.mulf %198, %200 : vector<32x128xf32>
    %202 = arith.addf %197, %201 : vector<32x128xf32>
    %c384_96 = arith.constant 384 : index
    %c0_97 = arith.constant 0 : index
    %203 = vector.load %arg11[%c384_96, %c0_97] : memref<512x128xf32, #tpu.memory_space<vmem>>, vector<32x128xf32>
    %204 = vector.extract_strided_slice %139 {offsets = [12, 0], sizes = [1, 128], strides = [1, 1]} : vector<16x128xf32> to vector<1x128xf32>
    %205 = vector.broadcast %204 : vector<1x128xf32> to vector<32x128xf32>
    %206 = arith.mulf %203, %205 : vector<32x128xf32>
    %207 = arith.addf %202, %206 : vector<32x128xf32>
    %c416_98 = arith.constant 416 : index
    %c0_99 = arith.constant 0 : index
    %208 = vector.load %arg11[%c416_98, %c0_99] : memref<512x128xf32, #tpu.memory_space<vmem>>, vector<32x128xf32>
    %209 = vector.extract_strided_slice %139 {offsets = [13, 0], sizes = [1, 128], strides = [1, 1]} : vector<16x128xf32> to vector<1x128xf32>
    %210 = vector.broadcast %209 : vector<1x128xf32> to vector<32x128xf32>
    %211 = arith.mulf %208, %210 : vector<32x128xf32>
    %212 = arith.addf %207, %211 : vector<32x128xf32>
    %c448_100 = arith.constant 448 : index
    %c0_101 = arith.constant 0 : index
    %213 = vector.load %arg11[%c448_100, %c0_101] : memref<512x128xf32, #tpu.memory_space<vmem>>, vector<32x128xf32>
    %214 = vector.extract_strided_slice %139 {offsets = [14, 0], sizes = [1, 128], strides = [1, 1]} : vector<16x128xf32> to vector<1x128xf32>
    %215 = vector.broadcast %214 : vector<1x128xf32> to vector<32x128xf32>
    %216 = arith.mulf %213, %215 : vector<32x128xf32>
    %217 = arith.addf %212, %216 : vector<32x128xf32>
    %c480_102 = arith.constant 480 : index
    %c0_103 = arith.constant 0 : index
    %218 = vector.load %arg11[%c480_102, %c0_103] : memref<512x128xf32, #tpu.memory_space<vmem>>, vector<32x128xf32>
    %219 = vector.extract_strided_slice %139 {offsets = [15, 0], sizes = [1, 128], strides = [1, 1]} : vector<16x128xf32> to vector<1x128xf32>
    %220 = vector.broadcast %219 : vector<1x128xf32> to vector<32x128xf32>
    %221 = arith.mulf %218, %220 : vector<32x128xf32>
    %222 = arith.addf %217, %221 : vector<32x128xf32>
    %cst_104 = arith.constant -5.000000e+04 : f32
    %cst_105 = arith.constant 5.000000e+04 : f32
    %223 = vector.broadcast %cst_104 : f32 to vector<32x128xf32>
    %224 = arith.maximumf %223, %222 : vector<32x128xf32>
    %225 = vector.broadcast %cst_105 : f32 to vector<32x128xf32>
    %226 = arith.minimumf %225, %224 : vector<32x128xf32>
    %cst_106 = arith.constant dense<0xFF800000> : vector<128xf32>
    %227 = vector.multi_reduction <maximumf>, %226, %cst_106 [0] : vector<32x128xf32> to vector<128xf32>
    %228 = vector.shape_cast %227 : vector<128xf32> to vector<1x128xf32>
    %229 = vector.broadcast %228 : vector<1x128xf32> to vector<32x128xf32>
    %230 = arith.subf %226, %229 : vector<32x128xf32>
    %231 = math.exp %230 : vector<32x128xf32>
    %232 = arith.mulf %231, %69 : vector<32x128xf32>
    %cst_107 = arith.constant dense<0.000000e+00> : vector<128xf32>
    %233 = vector.multi_reduction <add>, %232, %cst_107 [0] : vector<32x128xf32> to vector<128xf32>
    %234 = vector.shape_cast %233 : vector<128xf32> to vector<1x128xf32>
    %cst_108 = arith.constant dense<0.000000e+00> : vector<128xf32>
    %235 = vector.multi_reduction <add>, %231, %cst_108 [0] : vector<32x128xf32> to vector<128xf32>
    %236 = vector.shape_cast %235 : vector<128xf32> to vector<1x128xf32>
    %cst_109 = arith.constant 9.99999993E-9 : f32
    %237 = vector.broadcast %cst_109 : f32 to vector<1x128xf32>
    %238 = arith.addf %236, %237 : vector<1x128xf32>
    %239 = tpu.reciprocal %238 {approx = true} : vector<1x128xf32> -> vector<1x128xf32>
    %240 = arith.mulf %234, %239 : vector<1x128xf32>
    %241 = arith.mulf %64, %240 : vector<1x128xf32>
    %242 = arith.addf %241, %67 : vector<1x128xf32>
    %c0_110 = arith.constant 0 : index
    %c38 = arith.constant 38 : index
    %c0_111 = arith.constant 0 : index
    %243 = vector.load %arg9[%c0_110, %c38, %c0_111] : memref<1x56x128xf32, #tpu.memory_space<vmem>>, vector<1x1x128xf32>
    %244 = vector.shape_cast %243 : vector<1x1x128xf32> to vector<1x128xf32>
    %245 = vector.shape_cast %242 : vector<1x128xf32> to vector<1x1x128xf32>
    tpu.vector_store %arg9[%c0_110, %c38, %c0_111], %245 {strides = array<i32>} : memref<1x56x128xf32, #tpu.memory_space<vmem>>, vector<1x1x128xf32>,
    %cst_112 = arith.constant 0.0666666701 : f32
    %246 = vector.broadcast %cst_112 : f32 to vector<1x128xf32>
    %247 = arith.mulf %57, %246 : vector<1x128xf32>
    %cst_113 = arith.constant 5.000000e-01 : f32
    %248 = vector.broadcast %cst_113 : f32 to vector<1x128xf32>
    %249 = arith.mulf %248, %57 : vector<1x128xf32>
    %250 = arith.subf %55, %249 : vector<1x128xf32>
    %251 = tpu.iota {dimensions = array<i32: 0>} : vector<16x128xi32>
    %252 = arith.sitofp %251 : vector<16x128xi32> to vector<16x128xf32>
    %253 = vector.broadcast %247 : vector<1x128xf32> to vector<16x128xf32>
    %254 = arith.mulf %252, %253 : vector<16x128xf32>
    %255 = vector.broadcast %250 : vector<1x128xf32> to vector<16x128xf32>
    %256 = arith.addf %254, %255 : vector<16x128xf32>
    %cst_114 = arith.constant 1.000000e+00 : f32
    %257 = vector.broadcast %cst_114 : f32 to vector<16x128xf32>
    %258 = arith.mulf %256, %257 : vector<16x128xf32>
    %259 = math.cos %258 : vector<16x128xf32>
    %c0_115 = arith.constant 0 : index
    %c0_116 = arith.constant 0 : index
    %260 = vector.load %arg11[%c0_115, %c0_116] : memref<512x128xf32, #tpu.memory_space<vmem>>, vector<16x128xf32>
    tpu.vector_store %arg11[%c0_115, %c0_116], %259 {strides = array<i32>} : memref<512x128xf32, #tpu.memory_space<vmem>>, vector<16x128xf32>,
    %cst_117 = arith.constant 1.000000e+00 : f32
    %261 = vector.broadcast %cst_117 : f32 to vector<16x128xf32>
    %262 = arith.mulf %256, %261 : vector<16x128xf32>
    %263 = math.sin %262 : vector<16x128xf32>
    %c128_118 = arith.constant 128 : index
    %c0_119 = arith.constant 0 : index
    %264 = vector.load %arg11[%c128_118, %c0_119] : memref<512x128xf32, #tpu.memory_space<vmem>>, vector<16x128xf32>
    tpu.vector_store %arg11[%c128_118, %c0_119], %263 {strides = array<i32>} : memref<512x128xf32, #tpu.memory_space<vmem>>, vector<16x128xf32>,
    %cst_120 = arith.constant 1.000000e+00 : f32
    %265 = vector.broadcast %cst_120 : f32 to vector<16x128xf32>
    %266 = arith.mulf %256, %265 : vector<16x128xf32>
    %267 = math.cos %266 : vector<16x128xf32>
    %c16 = arith.constant 16 : index
    %c0_121 = arith.constant 0 : index
    %268 = vector.load %arg11[%c16, %c0_121] : memref<512x128xf32, #tpu.memory_space<vmem>>, vector<16x128xf32>
    tpu.vector_store %arg11[%c16, %c0_121], %267 {strides = array<i32>} : memref<512x128xf32, #tpu.memory_space<vmem>>, vector<16x128xf32>,
    %cst_122 = arith.constant 1.000000e+00 : f32
    %269 = vector.broadcast %cst_122 : f32 to vector<16x128xf32>
    %270 = arith.mulf %256, %269 : vector<16x128xf32>
    %271 = math.sin %270 : vector<16x128xf32>
    %c144 = arith.constant 144 : index
    %c0_123 = arith.constant 0 : index
    %272 = vector.load %arg11[%c144, %c0_123] : memref<512x128xf32, #tpu.memory_space<vmem>>, vector<16x128xf32>
    tpu.vector_store %arg11[%c144, %c0_123], %271 {strides = array<i32>} : memref<512x128xf32, #tpu.memory_space<vmem>>, vector<16x128xf32>,
    %cst_124 = arith.constant 0.240281135 : f32
    %273 = vector.broadcast %cst_124 : f32 to vector<16x128xf32>
    %274 = arith.mulf %256, %273 : vector<16x128xf32>
    %275 = math.cos %274 : vector<16x128xf32>
    %c32_125 = arith.constant 32 : index
    %c0_126 = arith.constant 0 : index
    %276 = vector.load %arg11[%c32_125, %c0_126] : memref<512x128xf32, #tpu.memory_space<vmem>>, vector<16x128xf32>
    tpu.vector_store %arg11[%c32_125, %c0_126], %275 {strides = array<i32>} : memref<512x128xf32, #tpu.memory_space<vmem>>, vector<16x128xf32>,
    %cst_127 = arith.constant 0.240281135 : f32
    %277 = vector.broadcast %cst_127 : f32 to vector<16x128xf32>
    %278 = arith.mulf %256, %277 : vector<16x128xf32>
    %279 = math.sin %278 : vector<16x128xf32>
    %c160_128 = arith.constant 160 : index
    %c0_129 = arith.constant 0 : index
    %280 = vector.load %arg11[%c160_128, %c0_129] : memref<512x128xf32, #tpu.memory_space<vmem>>, vector<16x128xf32>
    tpu.vector_store %arg11[%c160_128, %c0_129], %279 {strides = array<i32>} : memref<512x128xf32, #tpu.memory_space<vmem>>, vector<16x128xf32>,
    %cst_130 = arith.constant 0.240281135 : f32
    %281 = vector.broadcast %cst_130 : f32 to vector<16x128xf32>
    %282 = arith.mulf %256, %281 : vector<16x128xf32>
    %283 = math.cos %282 : vector<16x128xf32>
    %c48 = arith.constant 48 : index
    %c0_131 = arith.constant 0 : index
    %284 = vector.load %arg11[%c48, %c0_131] : memref<512x128xf32, #tpu.memory_space<vmem>>, vector<16x128xf32>
    tpu.vector_store %arg11[%c48, %c0_131], %283 {strides = array<i32>} : memref<512x128xf32, #tpu.memory_space<vmem>>, vector<16x128xf32>,
    %cst_132 = arith.constant 0.240281135 : f32
    %285 = vector.broadcast %cst_132 : f32 to vector<16x128xf32>
    %286 = arith.mulf %256, %285 : vector<16x128xf32>
    %287 = math.sin %286 : vector<16x128xf32>
    %c176 = arith.constant 176 : index
    %c0_133 = arith.constant 0 : index
    %288 = vector.load %arg11[%c176, %c0_133] : memref<512x128xf32, #tpu.memory_space<vmem>>, vector<16x128xf32>
    tpu.vector_store %arg11[%c176, %c0_133], %287 {strides = array<i32>} : memref<512x128xf32, #tpu.memory_space<vmem>>, vector<16x128xf32>,
    %cst_134 = arith.constant 0.0577350259 : f32
    %289 = vector.broadcast %cst_134 : f32 to vector<16x128xf32>
    %290 = arith.mulf %256, %289 : vector<16x128xf32>
    %291 = math.cos %290 : vector<16x128xf32>
    %c64_135 = arith.constant 64 : index
    %c0_136 = arith.constant 0 : index
    %292 = vector.load %arg11[%c64_135, %c0_136] : memref<512x128xf32, #tpu.memory_space<vmem>>, vector<16x128xf32>
    tpu.vector_store %arg11[%c64_135, %c0_136], %291 {strides = array<i32>} : memref<512x128xf32, #tpu.memory_space<vmem>>, vector<16x128xf32>,
    %cst_137 = arith.constant 0.0577350259 : f32
    %293 = vector.broadcast %cst_137 : f32 to vector<16x128xf32>
    %294 = arith.mulf %256, %293 : vector<16x128xf32>
    %295 = math.sin %294 : vector<16x128xf32>
    %c192_138 = arith.constant 192 : index
    %c0_139 = arith.constant 0 : index
    %296 = vector.load %arg11[%c192_138, %c0_139] : memref<512x128xf32, #tpu.memory_space<vmem>>, vector<16x128xf32>
    tpu.vector_store %arg11[%c192_138, %c0_139], %295 {strides = array<i32>} : memref<512x128xf32, #tpu.memory_space<vmem>>, vector<16x128xf32>,
    %cst_140 = arith.constant 0.0577350259 : f32
    %297 = vector.broadcast %cst_140 : f32 to vector<16x128xf32>
    %298 = arith.mulf %256, %297 : vector<16x128xf32>
    %299 = math.cos %298 : vector<16x128xf32>
    %c80 = arith.constant 80 : index
    %c0_141 = arith.constant 0 : index
    %300 = vector.load %arg11[%c80, %c0_141] : memref<512x128xf32, #tpu.memory_space<vmem>>, vector<16x128xf32>
    tpu.vector_store %arg11[%c80, %c0_141], %299 {strides = array<i32>} : memref<512x128xf32, #tpu.memory_space<vmem>>, vector<16x128xf32>,
    %cst_142 = arith.constant 0.0577350259 : f32
    %301 = vector.broadcast %cst_142 : f32 to vector<16x128xf32>
    %302 = arith.mulf %256, %301 : vector<16x128xf32>
    %303 = math.sin %302 : vector<16x128xf32>
    %c208 = arith.constant 208 : index
    %c0_143 = arith.constant 0 : index
    %304 = vector.load %arg11[%c208, %c0_143] : memref<512x128xf32, #tpu.memory_space<vmem>>, vector<16x128xf32>
    tpu.vector_store %arg11[%c208, %c0_143], %303 {strides = array<i32>} : memref<512x128xf32, #tpu.memory_space<vmem>>, vector<16x128xf32>,
    %cst_144 = arith.constant 0.0138726383 : f32
    %305 = vector.broadcast %cst_144 : f32 to vector<16x128xf32>
    %306 = arith.mulf %256, %305 : vector<16x128xf32>
    %307 = math.cos %306 : vector<16x128xf32>
    %c96_145 = arith.constant 96 : index
    %c0_146 = arith.constant 0 : index
    %308 = vector.load %arg11[%c96_145, %c0_146] : memref<512x128xf32, #tpu.memory_space<vmem>>, vector<16x128xf32>
    tpu.vector_store %arg11[%c96_145, %c0_146], %307 {strides = array<i32>} : memref<512x128xf32, #tpu.memory_space<vmem>>, vector<16x128xf32>,
    %cst_147 = arith.constant 0.0138726383 : f32
    %309 = vector.broadcast %cst_147 : f32 to vector<16x128xf32>
    %310 = arith.mulf %256, %309 : vector<16x128xf32>
    %311 = math.sin %310 : vector<16x128xf32>
    %c224_148 = arith.constant 224 : index
    %c0_149 = arith.constant 0 : index
    %312 = vector.load %arg11[%c224_148, %c0_149] : memref<512x128xf32, #tpu.memory_space<vmem>>, vector<16x128xf32>
    tpu.vector_store %arg11[%c224_148, %c0_149], %311 {strides = array<i32>} : memref<512x128xf32, #tpu.memory_space<vmem>>, vector<16x128xf32>,
    %cst_150 = arith.constant 0.0138726383 : f32
    %313 = vector.broadcast %cst_150 : f32 to vector<16x128xf32>
    %314 = arith.mulf %256, %313 : vector<16x128xf32>
    %315 = math.cos %314 : vector<16x128xf32>
    %c112 = arith.constant 112 : index
    %c0_151 = arith.constant 0 : index
    %316 = vector.load %arg11[%c112, %c0_151] : memref<512x128xf32, #tpu.memory_space<vmem>>, vector<16x128xf32>
    tpu.vector_store %arg11[%c112, %c0_151], %315 {strides = array<i32>} : memref<512x128xf32, #tpu.memory_space<vmem>>, vector<16x128xf32>,
    %cst_152 = arith.constant 0.0138726383 : f32
    %317 = vector.broadcast %cst_152 : f32 to vector<16x128xf32>
    %318 = arith.mulf %256, %317 : vector<16x128xf32>
    %319 = math.sin %318 : vector<16x128xf32>
    %c240 = arith.constant 240 : index
    %c0_153 = arith.constant 0 : index
    %320 = vector.load %arg11[%c240, %c0_153] : memref<512x128xf32, #tpu.memory_space<vmem>>, vector<16x128xf32>
    tpu.vector_store %arg11[%c240, %c0_153], %319 {strides = array<i32>} : memref<512x128xf32, #tpu.memory_space<vmem>>, vector<16x128xf32>,
    %c0_i32_154 = arith.constant 0 : i32
    %c8_i32_155 = arith.constant 8 : i32
    %321 = arith.addi %c0_i32_154, %c8_i32_155 : i32
    %c1_i32_156 = arith.constant 1 : i32
    scf.for %arg12 = %c0_i32_154 to %321 step %c1_i32_156  : i32 {
      %c1_i32_200 = arith.constant 1 : i32
      %429 = arith.muli %arg12, %c1_i32_200 : i32
      %c0_i32_201 = arith.constant 0 : i32
      %430 = arith.addi %c0_i32_201, %429 : i32
      %c2_i32 = arith.constant 2 : i32
      %431 = arith.muli %c2_i32, %430 : i32
      %c2_i32_202 = arith.constant 2 : i32
      %432 = arith.muli %c2_i32_202, %430 : i32
      %c1_i32_203 = arith.constant 1 : i32
      %433 = arith.addi %432, %c1_i32_203 : i32
      %c40_i32 = arith.constant 40 : i32
      %434 = arith.muli %431, %c40_i32 : i32
      %c16_i32 = arith.constant 16 : i32
      %435 = arith.addi %434, %c16_i32 : i32
      %436 = tpu.assume_multiple %435, 8 : i32
      %437 = arith.index_cast %436 : i32 to index
      %c0_204 = arith.constant 0 : index
      %438 = vector.load %arg10[%437, %c0_204] : memref<680x128xf32, #tpu.memory_space<vmem>>, vector<16x128xf32>
      %c40_i32_205 = arith.constant 40 : i32
      %439 = arith.muli %431, %c40_i32_205 : i32
      %c33_i32 = arith.constant 33 : i32
      %440 = arith.addi %439, %c33_i32 : i32
      %441 = arith.index_cast %440 : i32 to index
      %c0_206 = arith.constant 0 : index
      %442 = vector.load %arg10[%441, %c0_206] : memref<680x128xf32, #tpu.memory_space<vmem>>, vector<1x128xf32>
      %443 = vector.shape_cast %442 : vector<1x128xf32> to vector<1x128xf32>
      %444 = vector.broadcast %443 : vector<1x128xf32> to vector<16x128xf32>
      %c40_i32_207 = arith.constant 40 : i32
      %445 = arith.muli %433, %c40_i32_207 : i32
      %c16_i32_208 = arith.constant 16 : i32
      %446 = arith.addi %445, %c16_i32_208 : i32
      %447 = tpu.assume_multiple %446, 8 : i32
      %448 = arith.index_cast %447 : i32 to index
      %c0_209 = arith.constant 0 : index
      %449 = vector.load %arg10[%448, %c0_209] : memref<680x128xf32, #tpu.memory_space<vmem>>, vector<16x128xf32>
      %c40_i32_210 = arith.constant 40 : i32
      %450 = arith.muli %433, %c40_i32_210 : i32
      %c33_i32_211 = arith.constant 33 : i32
      %451 = arith.addi %450, %c33_i32_211 : i32
      %452 = arith.index_cast %451 : i32 to index
      %c0_212 = arith.constant 0 : index
      %453 = vector.load %arg10[%452, %c0_212] : memref<680x128xf32, #tpu.memory_space<vmem>>, vector<1x128xf32>
      %454 = vector.shape_cast %453 : vector<1x128xf32> to vector<1x128xf32>
      %455 = vector.broadcast %454 : vector<1x128xf32> to vector<16x128xf32>
      %c0_213 = arith.constant 0 : index
      %c0_214 = arith.constant 0 : index
      %456 = vector.load %arg11[%c0_213, %c0_214] : memref<512x128xf32, #tpu.memory_space<vmem>>, vector<16x128xf32>
      %457 = vector.extract_strided_slice %438 {offsets = [0, 0], sizes = [1, 128], strides = [1, 1]} : vector<16x128xf32> to vector<1x128xf32>
      %458 = vector.broadcast %457 : vector<1x128xf32> to vector<16x128xf32>
      %459 = arith.mulf %456, %458 : vector<16x128xf32>
      %460 = arith.addf %444, %459 : vector<16x128xf32>
      %461 = vector.extract_strided_slice %449 {offsets = [0, 0], sizes = [1, 128], strides = [1, 1]} : vector<16x128xf32> to vector<1x128xf32>
      %462 = vector.broadcast %461 : vector<1x128xf32> to vector<16x128xf32>
      %463 = arith.mulf %456, %462 : vector<16x128xf32>
      %464 = arith.addf %455, %463 : vector<16x128xf32>
      %c16_215 = arith.constant 16 : index
      %c0_216 = arith.constant 0 : index
      %465 = vector.load %arg11[%c16_215, %c0_216] : memref<512x128xf32, #tpu.memory_space<vmem>>, vector<16x128xf32>
      %466 = vector.extract_strided_slice %438 {offsets = [1, 0], sizes = [1, 128], strides = [1, 1]} : vector<16x128xf32> to vector<1x128xf32>
      %467 = vector.broadcast %466 : vector<1x128xf32> to vector<16x128xf32>
      %468 = arith.mulf %465, %467 : vector<16x128xf32>
      %469 = arith.addf %460, %468 : vector<16x128xf32>
      %470 = vector.extract_strided_slice %449 {offsets = [1, 0], sizes = [1, 128], strides = [1, 1]} : vector<16x128xf32> to vector<1x128xf32>
      %471 = vector.broadcast %470 : vector<1x128xf32> to vector<16x128xf32>
      %472 = arith.mulf %465, %471 : vector<16x128xf32>
      %473 = arith.addf %464, %472 : vector<16x128xf32>
      %c32_217 = arith.constant 32 : index
      %c0_218 = arith.constant 0 : index
      %474 = vector.load %arg11[%c32_217, %c0_218] : memref<512x128xf32, #tpu.memory_space<vmem>>, vector<16x128xf32>
      %475 = vector.extract_strided_slice %438 {offsets = [2, 0], sizes = [1, 128], strides = [1, 1]} : vector<16x128xf32> to vector<1x128xf32>
      %476 = vector.broadcast %475 : vector<1x128xf32> to vector<16x128xf32>
      %477 = arith.mulf %474, %476 : vector<16x128xf32>
      %478 = arith.addf %469, %477 : vector<16x128xf32>
      %479 = vector.extract_strided_slice %449 {offsets = [2, 0], sizes = [1, 128], strides = [1, 1]} : vector<16x128xf32> to vector<1x128xf32>
      %480 = vector.broadcast %479 : vector<1x128xf32> to vector<16x128xf32>
      %481 = arith.mulf %474, %480 : vector<16x128xf32>
      %482 = arith.addf %473, %481 : vector<16x128xf32>
      %c48_219 = arith.constant 48 : index
      %c0_220 = arith.constant 0 : index
      %483 = vector.load %arg11[%c48_219, %c0_220] : memref<512x128xf32, #tpu.memory_space<vmem>>, vector<16x128xf32>
      %484 = vector.extract_strided_slice %438 {offsets = [3, 0], sizes = [1, 128], strides = [1, 1]} : vector<16x128xf32> to vector<1x128xf32>
      %485 = vector.broadcast %484 : vector<1x128xf32> to vector<16x128xf32>
      %486 = arith.mulf %483, %485 : vector<16x128xf32>
      %487 = arith.addf %478, %486 : vector<16x128xf32>
      %488 = vector.extract_strided_slice %449 {offsets = [3, 0], sizes = [1, 128], strides = [1, 1]} : vector<16x128xf32> to vector<1x128xf32>
      %489 = vector.broadcast %488 : vector<1x128xf32> to vector<16x128xf32>
      %490 = arith.mulf %483, %489 : vector<16x128xf32>
      %491 = arith.addf %482, %490 : vector<16x128xf32>
      %c64_221 = arith.constant 64 : index
      %c0_222 = arith.constant 0 : index
      %492 = vector.load %arg11[%c64_221, %c0_222] : memref<512x128xf32, #tpu.memory_space<vmem>>, vector<16x128xf32>
      %493 = vector.extract_strided_slice %438 {offsets = [4, 0], sizes = [1, 128], strides = [1, 1]} : vector<16x128xf32> to vector<1x128xf32>
      %494 = vector.broadcast %493 : vector<1x128xf32> to vector<16x128xf32>
      %495 = arith.mulf %492, %494 : vector<16x128xf32>
      %496 = arith.addf %487, %495 : vector<16x128xf32>
      %497 = vector.extract_strided_slice %449 {offsets = [4, 0], sizes = [1, 128], strides = [1, 1]} : vector<16x128xf32> to vector<1x128xf32>
      %498 = vector.broadcast %497 : vector<1x128xf32> to vector<16x128xf32>
      %499 = arith.mulf %492, %498 : vector<16x128xf32>
      %500 = arith.addf %491, %499 : vector<16x128xf32>
      %c80_223 = arith.constant 80 : index
      %c0_224 = arith.constant 0 : index
      %501 = vector.load %arg11[%c80_223, %c0_224] : memref<512x128xf32, #tpu.memory_space<vmem>>, vector<16x128xf32>
      %502 = vector.extract_strided_slice %438 {offsets = [5, 0], sizes = [1, 128], strides = [1, 1]} : vector<16x128xf32> to vector<1x128xf32>
      %503 = vector.broadcast %502 : vector<1x128xf32> to vector<16x128xf32>
      %504 = arith.mulf %501, %503 : vector<16x128xf32>
      %505 = arith.addf %496, %504 : vector<16x128xf32>
      %506 = vector.extract_strided_slice %449 {offsets = [5, 0], sizes = [1, 128], strides = [1, 1]} : vector<16x128xf32> to vector<1x128xf32>
      %507 = vector.broadcast %506 : vector<1x128xf32> to vector<16x128xf32>
      %508 = arith.mulf %501, %507 : vector<16x128xf32>
      %509 = arith.addf %500, %508 : vector<16x128xf32>
      %c96_225 = arith.constant 96 : index
      %c0_226 = arith.constant 0 : index
      %510 = vector.load %arg11[%c96_225, %c0_226] : memref<512x128xf32, #tpu.memory_space<vmem>>, vector<16x128xf32>
      %511 = vector.extract_strided_slice %438 {offsets = [6, 0], sizes = [1, 128], strides = [1, 1]} : vector<16x128xf32> to vector<1x128xf32>
      %512 = vector.broadcast %511 : vector<1x128xf32> to vector<16x128xf32>
      %513 = arith.mulf %510, %512 : vector<16x128xf32>
      %514 = arith.addf %505, %513 : vector<16x128xf32>
      %515 = vector.extract_strided_slice %449 {offsets = [6, 0], sizes = [1, 128], strides = [1, 1]} : vector<16x128xf32> to vector<1x128xf32>
      %516 = vector.broadcast %515 : vector<1x128xf32> to vector<16x128xf32>
      %517 = arith.mulf %510, %516 : vector<16x128xf32>
      %518 = arith.addf %509, %517 : vector<16x128xf32>
      %c112_227 = arith.constant 112 : index
      %c0_228 = arith.constant 0 : index
      %519 = vector.load %arg11[%c112_227, %c0_228] : memref<512x128xf32, #tpu.memory_space<vmem>>, vector<16x128xf32>
      %520 = vector.extract_strided_slice %438 {offsets = [7, 0], sizes = [1, 128], strides = [1, 1]} : vector<16x128xf32> to vector<1x128xf32>
      %521 = vector.broadcast %520 : vector<1x128xf32> to vector<16x128xf32>
      %522 = arith.mulf %519, %521 : vector<16x128xf32>
      %523 = arith.addf %514, %522 : vector<16x128xf32>
      %524 = vector.extract_strided_slice %449 {offsets = [7, 0], sizes = [1, 128], strides = [1, 1]} : vector<16x128xf32> to vector<1x128xf32>
      %525 = vector.broadcast %524 : vector<1x128xf32> to vector<16x128xf32>
      %526 = arith.mulf %519, %525 : vector<16x128xf32>
      %527 = arith.addf %518, %526 : vector<16x128xf32>
      %c128_229 = arith.constant 128 : index
      %c0_230 = arith.constant 0 : index
      %528 = vector.load %arg11[%c128_229, %c0_230] : memref<512x128xf32, #tpu.memory_space<vmem>>, vector<16x128xf32>
      %529 = vector.extract_strided_slice %438 {offsets = [8, 0], sizes = [1, 128], strides = [1, 1]} : vector<16x128xf32> to vector<1x128xf32>
      %530 = vector.broadcast %529 : vector<1x128xf32> to vector<16x128xf32>
      %531 = arith.mulf %528, %530 : vector<16x128xf32>
      %532 = arith.addf %523, %531 : vector<16x128xf32>
      %533 = vector.extract_strided_slice %449 {offsets = [8, 0], sizes = [1, 128], strides = [1, 1]} : vector<16x128xf32> to vector<1x128xf32>
      %534 = vector.broadcast %533 : vector<1x128xf32> to vector<16x128xf32>
      %535 = arith.mulf %528, %534 : vector<16x128xf32>
      %536 = arith.addf %527, %535 : vector<16x128xf32>
      %c144_231 = arith.constant 144 : index
      %c0_232 = arith.constant 0 : index
      %537 = vector.load %arg11[%c144_231, %c0_232] : memref<512x128xf32, #tpu.memory_space<vmem>>, vector<16x128xf32>
      %538 = vector.extract_strided_slice %438 {offsets = [9, 0], sizes = [1, 128], strides = [1, 1]} : vector<16x128xf32> to vector<1x128xf32>
      %539 = vector.broadcast %538 : vector<1x128xf32> to vector<16x128xf32>
      %540 = arith.mulf %537, %539 : vector<16x128xf32>
      %541 = arith.addf %532, %540 : vector<16x128xf32>
      %542 = vector.extract_strided_slice %449 {offsets = [9, 0], sizes = [1, 128], strides = [1, 1]} : vector<16x128xf32> to vector<1x128xf32>
      %543 = vector.broadcast %542 : vector<1x128xf32> to vector<16x128xf32>
      %544 = arith.mulf %537, %543 : vector<16x128xf32>
      %545 = arith.addf %536, %544 : vector<16x128xf32>
      %c160_233 = arith.constant 160 : index
      %c0_234 = arith.constant 0 : index
      %546 = vector.load %arg11[%c160_233, %c0_234] : memref<512x128xf32, #tpu.memory_space<vmem>>, vector<16x128xf32>
      %547 = vector.extract_strided_slice %438 {offsets = [10, 0], sizes = [1, 128], strides = [1, 1]} : vector<16x128xf32> to vector<1x128xf32>
      %548 = vector.broadcast %547 : vector<1x128xf32> to vector<16x128xf32>
      %549 = arith.mulf %546, %548 : vector<16x128xf32>
      %550 = arith.addf %541, %549 : vector<16x128xf32>
      %551 = vector.extract_strided_slice %449 {offsets = [10, 0], sizes = [1, 128], strides = [1, 1]} : vector<16x128xf32> to vector<1x128xf32>
      %552 = vector.broadcast %551 : vector<1x128xf32> to vector<16x128xf32>
      %553 = arith.mulf %546, %552 : vector<16x128xf32>
      %554 = arith.addf %545, %553 : vector<16x128xf32>
      %c176_235 = arith.constant 176 : index
      %c0_236 = arith.constant 0 : index
      %555 = vector.load %arg11[%c176_235, %c0_236] : memref<512x128xf32, #tpu.memory_space<vmem>>, vector<16x128xf32>
      %556 = vector.extract_strided_slice %438 {offsets = [11, 0], sizes = [1, 128], strides = [1, 1]} : vector<16x128xf32> to vector<1x128xf32>
      %557 = vector.broadcast %556 : vector<1x128xf32> to vector<16x128xf32>
      %558 = arith.mulf %555, %557 : vector<16x128xf32>
      %559 = arith.addf %550, %558 : vector<16x128xf32>
      %560 = vector.extract_strided_slice %449 {offsets = [11, 0], sizes = [1, 128], strides = [1, 1]} : vector<16x128xf32> to vector<1x128xf32>
      %561 = vector.broadcast %560 : vector<1x128xf32> to vector<16x128xf32>
      %562 = arith.mulf %555, %561 : vector<16x128xf32>
      %563 = arith.addf %554, %562 : vector<16x128xf32>
      %c192_237 = arith.constant 192 : index
      %c0_238 = arith.constant 0 : index
      %564 = vector.load %arg11[%c192_237, %c0_238] : memref<512x128xf32, #tpu.memory_space<vmem>>, vector<16x128xf32>
      %565 = vector.extract_strided_slice %438 {offsets = [12, 0], sizes = [1, 128], strides = [1, 1]} : vector<16x128xf32> to vector<1x128xf32>
      %566 = vector.broadcast %565 : vector<1x128xf32> to vector<16x128xf32>
      %567 = arith.mulf %564, %566 : vector<16x128xf32>
      %568 = arith.addf %559, %567 : vector<16x128xf32>
      %569 = vector.extract_strided_slice %449 {offsets = [12, 0], sizes = [1, 128], strides = [1, 1]} : vector<16x128xf32> to vector<1x128xf32>
      %570 = vector.broadcast %569 : vector<1x128xf32> to vector<16x128xf32>
      %571 = arith.mulf %564, %570 : vector<16x128xf32>
      %572 = arith.addf %563, %571 : vector<16x128xf32>
      %c208_239 = arith.constant 208 : index
      %c0_240 = arith.constant 0 : index
      %573 = vector.load %arg11[%c208_239, %c0_240] : memref<512x128xf32, #tpu.memory_space<vmem>>, vector<16x128xf32>
      %574 = vector.extract_strided_slice %438 {offsets = [13, 0], sizes = [1, 128], strides = [1, 1]} : vector<16x128xf32> to vector<1x128xf32>
      %575 = vector.broadcast %574 : vector<1x128xf32> to vector<16x128xf32>
      %576 = arith.mulf %573, %575 : vector<16x128xf32>
      %577 = arith.addf %568, %576 : vector<16x128xf32>
      %578 = vector.extract_strided_slice %449 {offsets = [13, 0], sizes = [1, 128], strides = [1, 1]} : vector<16x128xf32> to vector<1x128xf32>
      %579 = vector.broadcast %578 : vector<1x128xf32> to vector<16x128xf32>
      %580 = arith.mulf %573, %579 : vector<16x128xf32>
      %581 = arith.addf %572, %580 : vector<16x128xf32>
      %c224_241 = arith.constant 224 : index
      %c0_242 = arith.constant 0 : index
      %582 = vector.load %arg11[%c224_241, %c0_242] : memref<512x128xf32, #tpu.memory_space<vmem>>, vector<16x128xf32>
      %583 = vector.extract_strided_slice %438 {offsets = [14, 0], sizes = [1, 128], strides = [1, 1]} : vector<16x128xf32> to vector<1x128xf32>
      %584 = vector.broadcast %583 : vector<1x128xf32> to vector<16x128xf32>
      %585 = arith.mulf %582, %584 : vector<16x128xf32>
      %586 = arith.addf %577, %585 : vector<16x128xf32>
      %587 = vector.extract_strided_slice %449 {offsets = [14, 0], sizes = [1, 128], strides = [1, 1]} : vector<16x128xf32> to vector<1x128xf32>
      %588 = vector.broadcast %587 : vector<1x128xf32> to vector<16x128xf32>
      %589 = arith.mulf %582, %588 : vector<16x128xf32>
      %590 = arith.addf %581, %589 : vector<16x128xf32>
      %c240_243 = arith.constant 240 : index
      %c0_244 = arith.constant 0 : index
      %591 = vector.load %arg11[%c240_243, %c0_244] : memref<512x128xf32, #tpu.memory_space<vmem>>, vector<16x128xf32>
      %592 = vector.extract_strided_slice %438 {offsets = [15, 0], sizes = [1, 128], strides = [1, 1]} : vector<16x128xf32> to vector<1x128xf32>
      %593 = vector.broadcast %592 : vector<1x128xf32> to vector<16x128xf32>
      %594 = arith.mulf %591, %593 : vector<16x128xf32>
      %595 = arith.addf %586, %594 : vector<16x128xf32>
      %596 = vector.extract_strided_slice %449 {offsets = [15, 0], sizes = [1, 128], strides = [1, 1]} : vector<16x128xf32> to vector<1x128xf32>
      %597 = vector.broadcast %596 : vector<1x128xf32> to vector<16x128xf32>
      %598 = arith.mulf %591, %597 : vector<16x128xf32>
      %599 = arith.addf %590, %598 : vector<16x128xf32>
      %c39_i32 = arith.constant 39 : i32
      %600 = arith.addi %c39_i32, %431 : i32
      %cst_245 = arith.constant -5.000000e+04 : f32
      %cst_246 = arith.constant 5.000000e+04 : f32
      %601 = vector.broadcast %cst_245 : f32 to vector<16x128xf32>
      %602 = arith.maximumf %601, %595 : vector<16x128xf32>
      %603 = vector.broadcast %cst_246 : f32 to vector<16x128xf32>
      %604 = arith.minimumf %603, %602 : vector<16x128xf32>
      %cst_247 = arith.constant dense<0xFF800000> : vector<128xf32>
      %605 = vector.multi_reduction <maximumf>, %604, %cst_247 [0] : vector<16x128xf32> to vector<128xf32>
      %606 = vector.shape_cast %605 : vector<128xf32> to vector<1x128xf32>
      %607 = vector.broadcast %606 : vector<1x128xf32> to vector<16x128xf32>
      %608 = arith.subf %604, %607 : vector<16x128xf32>
      %609 = math.exp %608 : vector<16x128xf32>
      %610 = arith.mulf %609, %252 : vector<16x128xf32>
      %cst_248 = arith.constant dense<0.000000e+00> : vector<128xf32>
      %611 = vector.multi_reduction <add>, %610, %cst_248 [0] : vector<16x128xf32> to vector<128xf32>
      %612 = vector.shape_cast %611 : vector<128xf32> to vector<1x128xf32>
      %cst_249 = arith.constant dense<0.000000e+00> : vector<128xf32>
      %613 = vector.multi_reduction <add>, %609, %cst_249 [0] : vector<16x128xf32> to vector<128xf32>
      %614 = vector.shape_cast %613 : vector<128xf32> to vector<1x128xf32>
      %cst_250 = arith.constant 9.99999993E-9 : f32
      %615 = vector.broadcast %cst_250 : f32 to vector<1x128xf32>
      %616 = arith.addf %614, %615 : vector<1x128xf32>
      %617 = tpu.reciprocal %616 {approx = true} : vector<1x128xf32> -> vector<1x128xf32>
      %618 = arith.mulf %612, %617 : vector<1x128xf32>
      %619 = arith.mulf %247, %618 : vector<1x128xf32>
      %620 = arith.addf %619, %250 : vector<1x128xf32>
      %c0_251 = arith.constant 0 : index
      %621 = arith.index_cast %600 : i32 to index
      %c0_252 = arith.constant 0 : index
      %622 = vector.load %arg9[%c0_251, %621, %c0_252] : memref<1x56x128xf32, #tpu.memory_space<vmem>>, vector<1x1x128xf32>
      %623 = vector.shape_cast %622 : vector<1x1x128xf32> to vector<1x128xf32>
      %624 = vector.shape_cast %620 : vector<1x128xf32> to vector<1x1x128xf32>
      tpu.vector_store %arg9[%c0_251, %621, %c0_252], %624 {strides = array<i32>} : memref<1x56x128xf32, #tpu.memory_space<vmem>>, vector<1x1x128xf32>,
      %c39_i32_253 = arith.constant 39 : i32
      %625 = arith.addi %c39_i32_253, %433 : i32
      %cst_254 = arith.constant -5.000000e+04 : f32
      %cst_255 = arith.constant 5.000000e+04 : f32
      %626 = vector.broadcast %cst_254 : f32 to vector<16x128xf32>
      %627 = arith.maximumf %626, %599 : vector<16x128xf32>
      %628 = vector.broadcast %cst_255 : f32 to vector<16x128xf32>
      %629 = arith.minimumf %628, %627 : vector<16x128xf32>
      %cst_256 = arith.constant dense<0xFF800000> : vector<128xf32>
      %630 = vector.multi_reduction <maximumf>, %629, %cst_256 [0] : vector<16x128xf32> to vector<128xf32>
      %631 = vector.shape_cast %630 : vector<128xf32> to vector<1x128xf32>
      %632 = vector.broadcast %631 : vector<1x128xf32> to vector<16x128xf32>
      %633 = arith.subf %629, %632 : vector<16x128xf32>
      %634 = math.exp %633 : vector<16x128xf32>
      %635 = arith.mulf %634, %252 : vector<16x128xf32>
      %cst_257 = arith.constant dense<0.000000e+00> : vector<128xf32>
      %636 = vector.multi_reduction <add>, %635, %cst_257 [0] : vector<16x128xf32> to vector<128xf32>
      %637 = vector.shape_cast %636 : vector<128xf32> to vector<1x128xf32>
      %cst_258 = arith.constant dense<0.000000e+00> : vector<128xf32>
      %638 = vector.multi_reduction <add>, %634, %cst_258 [0] : vector<16x128xf32> to vector<128xf32>
      %639 = vector.shape_cast %638 : vector<128xf32> to vector<1x128xf32>
      %cst_259 = arith.constant 9.99999993E-9 : f32
      %640 = vector.broadcast %cst_259 : f32 to vector<1x128xf32>
      %641 = arith.addf %639, %640 : vector<1x128xf32>
      %642 = tpu.reciprocal %641 {approx = true} : vector<1x128xf32> -> vector<1x128xf32>
      %643 = arith.mulf %637, %642 : vector<1x128xf32>
      %644 = arith.mulf %247, %643 : vector<1x128xf32>
      %645 = arith.addf %644, %250 : vector<1x128xf32>
      %c0_260 = arith.constant 0 : index
      %646 = arith.index_cast %625 : i32 to index
      %c0_261 = arith.constant 0 : index
      %647 = vector.load %arg9[%c0_260, %646, %c0_261] : memref<1x56x128xf32, #tpu.memory_space<vmem>>, vector<1x1x128xf32>
      %648 = vector.shape_cast %647 : vector<1x1x128xf32> to vector<1x128xf32>
      %649 = vector.shape_cast %645 : vector<1x128xf32> to vector<1x1x128xf32>
      tpu.vector_store %arg9[%c0_260, %646, %c0_261], %649 {strides = array<i32>} : memref<1x56x128xf32, #tpu.memory_space<vmem>>, vector<1x1x128xf32>,
    }
    %c8_i32_157 = arith.constant 8 : i32
    %c656 = arith.constant 656 : index
    %c0_158 = arith.constant 0 : index
    %322 = vector.load %arg10[%c656, %c0_158] : memref<680x128xf32, #tpu.memory_space<vmem>>, vector<16x128xf32>
    %c673 = arith.constant 673 : index
    %c0_159 = arith.constant 0 : index
    %323 = vector.load %arg10[%c673, %c0_159] : memref<680x128xf32, #tpu.memory_space<vmem>>, vector<1x128xf32>
    %324 = vector.shape_cast %323 : vector<1x128xf32> to vector<1x128xf32>
    %325 = vector.broadcast %324 : vector<1x128xf32> to vector<16x128xf32>
    %c0_160 = arith.constant 0 : index
    %c0_161 = arith.constant 0 : index
    %326 = vector.load %arg11[%c0_160, %c0_161] : memref<512x128xf32, #tpu.memory_space<vmem>>, vector<16x128xf32>
    %327 = vector.extract_strided_slice %322 {offsets = [0, 0], sizes = [1, 128], strides = [1, 1]} : vector<16x128xf32> to vector<1x128xf32>
    %328 = vector.broadcast %327 : vector<1x128xf32> to vector<16x128xf32>
    %329 = arith.mulf %326, %328 : vector<16x128xf32>
    %330 = arith.addf %325, %329 : vector<16x128xf32>
    %c16_162 = arith.constant 16 : index
    %c0_163 = arith.constant 0 : index
    %331 = vector.load %arg11[%c16_162, %c0_163] : memref<512x128xf32, #tpu.memory_space<vmem>>, vector<16x128xf32>
    %332 = vector.extract_strided_slice %322 {offsets = [1, 0], sizes = [1, 128], strides = [1, 1]} : vector<16x128xf32> to vector<1x128xf32>
    %333 = vector.broadcast %332 : vector<1x128xf32> to vector<16x128xf32>
    %334 = arith.mulf %331, %333 : vector<16x128xf32>
    %335 = arith.addf %330, %334 : vector<16x128xf32>
    %c32_164 = arith.constant 32 : index
    %c0_165 = arith.constant 0 : index
    %336 = vector.load %arg11[%c32_164, %c0_165] : memref<512x128xf32, #tpu.memory_space<vmem>>, vector<16x128xf32>
    %337 = vector.extract_strided_slice %322 {offsets = [2, 0], sizes = [1, 128], strides = [1, 1]} : vector<16x128xf32> to vector<1x128xf32>
    %338 = vector.broadcast %337 : vector<1x128xf32> to vector<16x128xf32>
    %339 = arith.mulf %336, %338 : vector<16x128xf32>
    %340 = arith.addf %335, %339 : vector<16x128xf32>
    %c48_166 = arith.constant 48 : index
    %c0_167 = arith.constant 0 : index
    %341 = vector.load %arg11[%c48_166, %c0_167] : memref<512x128xf32, #tpu.memory_space<vmem>>, vector<16x128xf32>
    %342 = vector.extract_strided_slice %322 {offsets = [3, 0], sizes = [1, 128], strides = [1, 1]} : vector<16x128xf32> to vector<1x128xf32>
    %343 = vector.broadcast %342 : vector<1x128xf32> to vector<16x128xf32>
    %344 = arith.mulf %341, %343 : vector<16x128xf32>
    %345 = arith.addf %340, %344 : vector<16x128xf32>
    %c64_168 = arith.constant 64 : index
    %c0_169 = arith.constant 0 : index
    %346 = vector.load %arg11[%c64_168, %c0_169] : memref<512x128xf32, #tpu.memory_space<vmem>>, vector<16x128xf32>
    %347 = vector.extract_strided_slice %322 {offsets = [4, 0], sizes = [1, 128], strides = [1, 1]} : vector<16x128xf32> to vector<1x128xf32>
    %348 = vector.broadcast %347 : vector<1x128xf32> to vector<16x128xf32>
    %349 = arith.mulf %346, %348 : vector<16x128xf32>
    %350 = arith.addf %345, %349 : vector<16x128xf32>
    %c80_170 = arith.constant 80 : index
    %c0_171 = arith.constant 0 : index
    %351 = vector.load %arg11[%c80_170, %c0_171] : memref<512x128xf32, #tpu.memory_space<vmem>>, vector<16x128xf32>
    %352 = vector.extract_strided_slice %322 {offsets = [5, 0], sizes = [1, 128], strides = [1, 1]} : vector<16x128xf32> to vector<1x128xf32>
    %353 = vector.broadcast %352 : vector<1x128xf32> to vector<16x128xf32>
    %354 = arith.mulf %351, %353 : vector<16x128xf32>
    %355 = arith.addf %350, %354 : vector<16x128xf32>
    %c96_172 = arith.constant 96 : index
    %c0_173 = arith.constant 0 : index
    %356 = vector.load %arg11[%c96_172, %c0_173] : memref<512x128xf32, #tpu.memory_space<vmem>>, vector<16x128xf32>
    %357 = vector.extract_strided_slice %322 {offsets = [6, 0], sizes = [1, 128], strides = [1, 1]} : vector<16x128xf32> to vector<1x128xf32>
    %358 = vector.broadcast %357 : vector<1x128xf32> to vector<16x128xf32>
    %359 = arith.mulf %356, %358 : vector<16x128xf32>
    %360 = arith.addf %355, %359 : vector<16x128xf32>
    %c112_174 = arith.constant 112 : index
    %c0_175 = arith.constant 0 : index
    %361 = vector.load %arg11[%c112_174, %c0_175] : memref<512x128xf32, #tpu.memory_space<vmem>>, vector<16x128xf32>
    %362 = vector.extract_strided_slice %322 {offsets = [7, 0], sizes = [1, 128], strides = [1, 1]} : vector<16x128xf32> to vector<1x128xf32>
    %363 = vector.broadcast %362 : vector<1x128xf32> to vector<16x128xf32>
    %364 = arith.mulf %361, %363 : vector<16x128xf32>
    %365 = arith.addf %360, %364 : vector<16x128xf32>
    %c128_176 = arith.constant 128 : index
    %c0_177 = arith.constant 0 : index
    %366 = vector.load %arg11[%c128_176, %c0_177] : memref<512x128xf32, #tpu.memory_space<vmem>>, vector<16x128xf32>
    %367 = vector.extract_strided_slice %322 {offsets = [8, 0], sizes = [1, 128], strides = [1, 1]} : vector<16x128xf32> to vector<1x128xf32>
    %368 = vector.broadcast %367 : vector<1x128xf32> to vector<16x128xf32>
    %369 = arith.mulf %366, %368 : vector<16x128xf32>
    %370 = arith.addf %365, %369 : vector<16x128xf32>
    %c144_178 = arith.constant 144 : index
    %c0_179 = arith.constant 0 : index
    %371 = vector.load %arg11[%c144_178, %c0_179] : memref<512x128xf32, #tpu.memory_space<vmem>>, vector<16x128xf32>
    %372 = vector.extract_strided_slice %322 {offsets = [9, 0], sizes = [1, 128], strides = [1, 1]} : vector<16x128xf32> to vector<1x128xf32>
    %373 = vector.broadcast %372 : vector<1x128xf32> to vector<16x128xf32>
    %374 = arith.mulf %371, %373 : vector<16x128xf32>
    %375 = arith.addf %370, %374 : vector<16x128xf32>
    %c160_180 = arith.constant 160 : index
    %c0_181 = arith.constant 0 : index
    %376 = vector.load %arg11[%c160_180, %c0_181] : memref<512x128xf32, #tpu.memory_space<vmem>>, vector<16x128xf32>
    %377 = vector.extract_strided_slice %322 {offsets = [10, 0], sizes = [1, 128], strides = [1, 1]} : vector<16x128xf32> to vector<1x128xf32>
    %378 = vector.broadcast %377 : vector<1x128xf32> to vector<16x128xf32>
    %379 = arith.mulf %376, %378 : vector<16x128xf32>
    %380 = arith.addf %375, %379 : vector<16x128xf32>
    %c176_182 = arith.constant 176 : index
    %c0_183 = arith.constant 0 : index
    %381 = vector.load %arg11[%c176_182, %c0_183] : memref<512x128xf32, #tpu.memory_space<vmem>>, vector<16x128xf32>
    %382 = vector.extract_strided_slice %322 {offsets = [11, 0], sizes = [1, 128], strides = [1, 1]} : vector<16x128xf32> to vector<1x128xf32>
    %383 = vector.broadcast %382 : vector<1x128xf32> to vector<16x128xf32>
    %384 = arith.mulf %381, %383 : vector<16x128xf32>
    %385 = arith.addf %380, %384 : vector<16x128xf32>
    %c192_184 = arith.constant 192 : index
    %c0_185 = arith.constant 0 : index
    %386 = vector.load %arg11[%c192_184, %c0_185] : memref<512x128xf32, #tpu.memory_space<vmem>>, vector<16x128xf32>
    %387 = vector.extract_strided_slice %322 {offsets = [12, 0], sizes = [1, 128], strides = [1, 1]} : vector<16x128xf32> to vector<1x128xf32>
    %388 = vector.broadcast %387 : vector<1x128xf32> to vector<16x128xf32>
    %389 = arith.mulf %386, %388 : vector<16x128xf32>
    %390 = arith.addf %385, %389 : vector<16x128xf32>
    %c208_186 = arith.constant 208 : index
    %c0_187 = arith.constant 0 : index
    %391 = vector.load %arg11[%c208_186, %c0_187] : memref<512x128xf32, #tpu.memory_space<vmem>>, vector<16x128xf32>
    %392 = vector.extract_strided_slice %322 {offsets = [13, 0], sizes = [1, 128], strides = [1, 1]} : vector<16x128xf32> to vector<1x128xf32>
    %393 = vector.broadcast %392 : vector<1x128xf32> to vector<16x128xf32>
    %394 = arith.mulf %391, %393 : vector<16x128xf32>
    %395 = arith.addf %390, %394 : vector<16x128xf32>
    %c224_188 = arith.constant 224 : index
    %c0_189 = arith.constant 0 : index
    %396 = vector.load %arg11[%c224_188, %c0_189] : memref<512x128xf32, #tpu.memory_space<vmem>>, vector<16x128xf32>
    %397 = vector.extract_strided_slice %322 {offsets = [14, 0], sizes = [1, 128], strides = [1, 1]} : vector<16x128xf32> to vector<1x128xf32>
    %398 = vector.broadcast %397 : vector<1x128xf32> to vector<16x128xf32>
    %399 = arith.mulf %396, %398 : vector<16x128xf32>
    %400 = arith.addf %395, %399 : vector<16x128xf32>
    %c240_190 = arith.constant 240 : index
    %c0_191 = arith.constant 0 : index
    %401 = vector.load %arg11[%c240_190, %c0_191] : memref<512x128xf32, #tpu.memory_space<vmem>>, vector<16x128xf32>
    %402 = vector.extract_strided_slice %322 {offsets = [15, 0], sizes = [1, 128], strides = [1, 1]} : vector<16x128xf32> to vector<1x128xf32>
    %403 = vector.broadcast %402 : vector<1x128xf32> to vector<16x128xf32>
    %404 = arith.mulf %401, %403 : vector<16x128xf32>
    %405 = arith.addf %400, %404 : vector<16x128xf32>
    %cst_192 = arith.constant -5.000000e+04 : f32
    %cst_193 = arith.constant 5.000000e+04 : f32
    %406 = vector.broadcast %cst_192 : f32 to vector<16x128xf32>
    %407 = arith.maximumf %406, %405 : vector<16x128xf32>
    %408 = vector.broadcast %cst_193 : f32 to vector<16x128xf32>
    %409 = arith.minimumf %408, %407 : vector<16x128xf32>
    %cst_194 = arith.constant dense<0xFF800000> : vector<128xf32>
    %410 = vector.multi_reduction <maximumf>, %409, %cst_194 [0] : vector<16x128xf32> to vector<128xf32>
    %411 = vector.shape_cast %410 : vector<128xf32> to vector<1x128xf32>
    %412 = vector.broadcast %411 : vector<1x128xf32> to vector<16x128xf32>
    %413 = arith.subf %409, %412 : vector<16x128xf32>
    %414 = math.exp %413 : vector<16x128xf32>
    %415 = arith.mulf %414, %252 : vector<16x128xf32>
    %cst_195 = arith.constant dense<0.000000e+00> : vector<128xf32>
    %416 = vector.multi_reduction <add>, %415, %cst_195 [0] : vector<16x128xf32> to vector<128xf32>
    %417 = vector.shape_cast %416 : vector<128xf32> to vector<1x128xf32>
    %cst_196 = arith.constant dense<0.000000e+00> : vector<128xf32>
    %418 = vector.multi_reduction <add>, %414, %cst_196 [0] : vector<16x128xf32> to vector<128xf32>
    %419 = vector.shape_cast %418 : vector<128xf32> to vector<1x128xf32>
    %cst_197 = arith.constant 9.99999993E-9 : f32
    %420 = vector.broadcast %cst_197 : f32 to vector<1x128xf32>
    %421 = arith.addf %419, %420 : vector<1x128xf32>
    %422 = tpu.reciprocal %421 {approx = true} : vector<1x128xf32> -> vector<1x128xf32>
    %423 = arith.mulf %417, %422 : vector<1x128xf32>
    %424 = arith.mulf %247, %423 : vector<1x128xf32>
    %425 = arith.addf %424, %250 : vector<1x128xf32>
    %c0_198 = arith.constant 0 : index
    %c55 = arith.constant 55 : index
    %c0_199 = arith.constant 0 : index
    %426 = vector.load %arg9[%c0_198, %c55, %c0_199] : memref<1x56x128xf32, #tpu.memory_space<vmem>>, vector<1x1x128xf32>
    %427 = vector.shape_cast %426 : vector<1x1x128xf32> to vector<1x128xf32>
    %428 = vector.shape_cast %425 : vector<1x128xf32> to vector<1x1x128xf32>
    tpu.vector_store %arg9[%c0_198, %c55, %c0_199], %428 {strides = array<i32>} : memref<1x56x128xf32, #tpu.memory_space<vmem>>, vector<1x1x128xf32>,
    return
  }
  func.func @transform_0(%arg0: i32, %arg1: i32) -> (i32, i32, i32) {
    %c0_i32 = arith.constant 0 : i32
    %c0_i32_0 = arith.constant 0 : i32
    return %arg0, %c0_i32, %arg1 : i32, i32, i32
  }
  func.func @transform_1(%arg0: i32, %arg1: i32) -> (i32, i32, i32) {
    %c0_i32 = arith.constant 0 : i32
    %c0_i32_0 = arith.constant 0 : i32
    return %arg0, %c0_i32, %arg1 : i32, i32, i32
  }
  func.func @transform_2(%arg0: i32, %arg1: i32) -> (i32, i32, i32) {
    %c0_i32 = arith.constant 0 : i32
    %c0_i32_0 = arith.constant 0 : i32
    return %arg0, %c0_i32, %arg1 : i32, i32, i32
  }
  func.func @transform_3(%arg0: i32, %arg1: i32) -> (i32, i32, i32) {
    %c0_i32 = arith.constant 0 : i32
    %c0_i32_0 = arith.constant 0 : i32
    return %arg0, %c0_i32, %arg1 : i32, i32, i32
  }
  func.func @transform_4(%arg0: i32, %arg1: i32) -> (i32, i32) {
    %c0_i32 = arith.constant 0 : i32
    %c0_i32_0 = arith.constant 0 : i32
    return %c0_i32, %arg1 : i32, i32
  }
  func.func @transform_5(%arg0: i32, %arg1: i32) -> (i32, i32) {
    %c0_i32 = arith.constant 0 : i32
    %c0_i32_0 = arith.constant 0 : i32
    return %c0_i32, %arg1 : i32, i32
  }
  func.func @transform_6(%arg0: i32, %arg1: i32) -> (i32, i32) {
    %c0_i32 = arith.constant 0 : i32
    %c0_i32_0 = arith.constant 0 : i32
    %c0_i32_1 = arith.constant 0 : i32
    return %c0_i32, %c0_i32_0 : i32, i32
  }
  func.func @transform_7(%arg0: i32, %arg1: i32) -> (i32, i32, i32) {
    %c0_i32 = arith.constant 0 : i32
    %c0_i32_0 = arith.constant 0 : i32
    return %arg0, %c0_i32, %arg1 : i32, i32, i32
  }
}

</mosaic_0001>

<llo_original>
// kernel: _lambda_.1
$region0: #{_lambda_.1}
  #allocation0 [shape = 'u32[]', space=smem, size = 0x4, offset = 0x4, fixed_abs, tag = 'smem constant byte address 0x4 - core index']
  #allocation1 [shape = 'u32[144,128]{1,0:T(1,128)}', space=vmem, size = 0x12000, scoped, tag = 'internal scratch']
  #allocation2 [shape = 'f32[680,128]{1,0:T(8,128)}', space=vmem, size = 0x55000, scoped, tag = 'scratch operand']
  #allocation3 [shape = 'f32[512,128]{1,0:T(8,128)}', space=vmem, size = 0x40000, scoped, tag = 'scratch operand']
  %s0 = inlined_call_operand.vmem [shape: f32[2,4,128], index: 0, kind: input, shape index: {}]
  %s1 = inlined_call_operand.vmem [shape: f32[2,1,128], index: 1, kind: input, shape index: {}]
  %s2 = inlined_call_operand.vmem [shape: f32[2,17,128], index: 2, kind: input, shape index: {}]
  %s3 = inlined_call_operand.vmem [shape: bf16[2,33,128], index: 3, kind: input, shape index: {}]
  %s4 = inlined_call_operand.vmem [shape: f32[2,128], index: 4, kind: input, shape index: {}]
  %s5 = inlined_call_operand.vmem [shape: f32[1,128], index: 5, kind: input, shape index: {}]
  %s6 = inlined_call_operand.vmem [shape: bf16[680,33], index: 6, kind: input, shape index: {}]
  %s7 = inlined_call_operand.vmem [shape: f32[2,56,128], index: 7, kind: output, shape index: {}]
  %s8 = sld [smem:[#allocation0]]
  $region75: #{_lambda_.1} parent=0
    _
  %s10 = ssub.s32 1, %s8
  %s11 = scalar_select 0, %s10, %s8
  loop: start=0, step=1, limit=4
  $region2: #{_lambda_.1} parent=0 // loop_pre_header
    _
  $region3: #{_lambda_.1} parent=0 // loop_header
    %s13 = sphi 0, %s17
    %p14 = scmp.ge.s32.totalorder %s13, 4
    %s20 = sphi 0, %s32
    %s21 = sphi 0, %s28
    %s22 = sphi 0, %s20
    %s23 = sphi 0, %s21
    %s24 = sphi 0, %s22
    %s25 = sphi 0, %s23
    %s37 = sphi 0, %s39
    %s40 = sphi 0, %s37
    %s41 = sphi 0, %s40
    %s57 = sphi 0, %s41
    %s65 = sphi 0, %s67
    %s68 = sphi 0, %s65
    %s69 = sphi 0, %s68
    %s85 = sphi 0, %s69
    %s93 = sphi 0, %s95
    %s96 = sphi 0, %s93
    %s97 = sphi 0, %s96
    %s113 = sphi 0, %s97
    %s121 = sphi 0, %s123
    %s124 = sphi 0, %s121
    %s125 = sphi 0, %s124
    %s141 = sphi 0, %s125
    %s147 = sphi 0, %s149
    %s150 = sphi 0, %s147
    %s151 = sphi 0, %s150
    %s167 = sphi 0, %s151
    %s173 = sphi 0, %s175
    %s176 = sphi 0, %s173
    %s177 = sphi 0, %s176
    %s193 = sphi 0, %s177
    %s197 = sphi 0, %s197
    %s199 = sphi 0, %s197
    %s200 = sphi 0, %s199
    %s214 = sphi 0, %s200
    %s222 = sphi 0, %s224
    %s225 = sphi 0, %s222
    %s226 = sphi 0, %s225
    %s242 = sphi 0, %s226
  $region4: #{_lambda_.1} parent=0 // loop_header_branch
    %16 = sbr.rel (%p14) target = $region8
  $region5: #{_lambda_.1} parent=0 // loop_body
    %s18 = ssub.s32 %s13, 1
    %s19 = ssub.s32 %s13, 2
    %s26 = sadd.s32 1, %s21
    %p27 = scmp.ge.s32.totalorder %s26, 1
    %s28 = scalar_select %p27, 0, %s26
    %s29 = sadd.s32 1, %s20
    %s30 = scalar_select %p27, %s29, %s20
    %p31 = scmp.ge.s32.totalorder %s30, 2
    %s32 = scalar_select %p31, 0, %s30
    %s33 = ssub.s32 %s20, %s32
    %s34 = ssub.s32 %s21, %s28
    %s35 = sor.u32 %s33, %s34
    %p36 = scmp.eq.s32.totalorder %s35, 0
    %s38 = sadd.s32 %s37, 1
    %s39 = scalar_select %p36, %s37, %s38
    %p42 = pneg %p36
    %p43 = scmp.eq.s32.totalorder %s13, 1
    %p44 = por %p42, %p43
    %p45 = scmp.ne.s32.totalorder %s37, %s40
    %p46 = scmp.eq.s32.totalorder %s13, 0
    %p47 = por %p45, %p46
    %p48 = scmp.ne.s32.totalorder %s37, %s40
    %p49 = scmp.eq.s32.totalorder %s18, 1
    %p50 = por %p48, %p49
    %p51 = scmp.ne.s32.totalorder %s40, %s41
    %p52 = scmp.eq.s32.totalorder %s18, 0
    %p53 = por %p51, %p52
    %p54 = scmp.ne.s32.totalorder %s40, %s41
    %p55 = scmp.eq.s32.totalorder %s19, 1
    %p56 = por %p54, %p55
    %p58 = scmp.ne.s32.totalorder %s41, %s57
    %p59 = scmp.eq.s32.totalorder %s19, 0
    %p60 = por %p58, %p59
    %s61 = ssub.s32 %s20, %s32
    %s62 = ssub.s32 %s21, %s28
    %s63 = sor.u32 %s61, %s62
    %p64 = scmp.eq.s32.totalorder %s63, 0
    %s66 = sadd.s32 %s65, 1
    %s67 = scalar_select %p64, %s65, %s66
    %p70 = pneg %p64
    %p71 = scmp.eq.s32.totalorder %s13, 1
    %p72 = por %p70, %p71
    %p73 = scmp.ne.s32.totalorder %s65, %s68
    %p74 = scmp.eq.s32.totalorder %s13, 0
    %p75 = por %p73, %p74
    %p76 = scmp.ne.s32.totalorder %s65, %s68
    %p77 = scmp.eq.s32.totalorder %s18, 1
    %p78 = por %p76, %p77
    %p79 = scmp.ne.s32.totalorder %s68, %s69
    %p80 = scmp.eq.s32.totalorder %s18, 0
    %p81 = por %p79, %p80
    %p82 = scmp.ne.s32.totalorder %s68, %s69
    %p83 = scmp.eq.s32.totalorder %s19, 1
    %p84 = por %p82, %p83
    %p86 = scmp.ne.s32.totalorder %s69, %s85
    %p87 = scmp.eq.s32.totalorder %s19, 0
    %p88 = por %p86, %p87
    %s89 = ssub.s32 %s20, %s32
    %s90 = ssub.s32 %s21, %s28
    %s91 = sor.u32 %s89, %s90
    %p92 = scmp.eq.s32.totalorder %s91, 0
    %s94 = sadd.s32 %s93, 1
    %s95 = scalar_select %p92, %s93, %s94
    %p98 = pneg %p92
    %p99 = scmp.eq.s32.totalorder %s13, 1
    %p100 = por %p98, %p99
    %p101 = scmp.ne.s32.totalorder %s93, %s96
    %p102 = scmp.eq.s32.totalorder %s13, 0
    %p103 = por %p101, %p102
    %p104 = scmp.ne.s32.totalorder %s93, %s96
    %p105 = scmp.eq.s32.totalorder %s18, 1
    %p106 = por %p104, %p105
    %p107 = scmp.ne.s32.totalorder %s96, %s97
    %p108 = scmp.eq.s32.totalorder %s18, 0
    %p109 = por %p107, %p108
    %p110 = scmp.ne.s32.totalorder %s96, %s97
    %p111 = scmp.eq.s32.totalorder %s19, 1
    %p112 = por %p110, %p111
    %p114 = scmp.ne.s32.totalorder %s97, %s113
    %p115 = scmp.eq.s32.totalorder %s19, 0
    %p116 = por %p114, %p115
    %s117 = ssub.s32 %s20, %s32
    %s118 = ssub.s32 %s21, %s28
    %s119 = sor.u32 %s117, %s118
    %p120 = scmp.eq.s32.totalorder %s119, 0
    %s122 = sadd.s32 %s121, 1
    %s123 = scalar_select %p120, %s121, %s122
    %p126 = pneg %p120
    %p127 = scmp.eq.s32.totalorder %s13, 1
    %p128 = por %p126, %p127
    %p129 = scmp.ne.s32.totalorder %s121, %s124
    %p130 = scmp.eq.s32.totalorder %s13, 0
    %p131 = por %p129, %p130
    %p132 = scmp.ne.s32.totalorder %s121, %s124
    %p133 = scmp.eq.s32.totalorder %s18, 1
    %p134 = por %p132, %p133
    %p135 = scmp.ne.s32.totalorder %s124, %s125
    %p136 = scmp.eq.s32.totalorder %s18, 0
    %p137 = por %p135, %p136
    %p138 = scmp.ne.s32.totalorder %s124, %s125
    %p139 = scmp.eq.s32.totalorder %s19, 1
    %p140 = por %p138, %p139
    %p142 = scmp.ne.s32.totalorder %s125, %s141
    %p143 = scmp.eq.s32.totalorder %s19, 0
    %p144 = por %p142, %p143
    %s145 = ssub.s32 %s21, %s28
    %p146 = scmp.eq.s32.totalorder %s145, 0
    %s148 = sadd.s32 %s147, 1
    %s149 = scalar_select %p146, %s147, %s148
    %p152 = pneg %p146
    %p153 = scmp.eq.s32.totalorder %s13, 1
    %p154 = por %p152, %p153
    %p155 = scmp.ne.s32.totalorder %s147, %s150
    %p156 = scmp.eq.s32.totalorder %s13, 0
    %p157 = por %p155, %p156
    %p158 = scmp.ne.s32.totalorder %s147, %s150
    %p159 = scmp.eq.s32.totalorder %s18, 1
    %p160 = por %p158, %p159
    %p161 = scmp.ne.s32.totalorder %s150, %s151
    %p162 = scmp.eq.s32.totalorder %s18, 0
    %p163 = por %p161, %p162
    %p164 = scmp.ne.s32.totalorder %s150, %s151
    %p165 = scmp.eq.s32.totalorder %s19, 1
    %p166 = por %p164, %p165
    %p168 = scmp.ne.s32.totalorder %s151, %s167
    %p169 = scmp.eq.s32.totalorder %s19, 0
    %p170 = por %p168, %p169
    %s171 = ssub.s32 %s21, %s28
    %p172 = scmp.eq.s32.totalorder %s171, 0
    %s174 = sadd.s32 %s173, 1
    %s175 = scalar_select %p172, %s173, %s174
    %p178 = pneg %p172
    %p179 = scmp.eq.s32.totalorder %s13, 1
    %p180 = por %p178, %p179
    %p181 = scmp.ne.s32.totalorder %s173, %s176
    %p182 = scmp.eq.s32.totalorder %s13, 0
    %p183 = por %p181, %p182
    %p184 = scmp.ne.s32.totalorder %s173, %s176
    %p185 = scmp.eq.s32.totalorder %s18, 1
    %p186 = por %p184, %p185
    %p187 = scmp.ne.s32.totalorder %s176, %s177
    %p188 = scmp.eq.s32.totalorder %s18, 0
    %p189 = por %p187, %p188
    %p190 = scmp.ne.s32.totalorder %s176, %s177
    %p191 = scmp.eq.s32.totalorder %s19, 1
    %p192 = por %p190, %p191
    %p194 = scmp.ne.s32.totalorder %s177, %s193
    %p195 = scmp.eq.s32.totalorder %s19, 0
    %p196 = por %p194, %p195
    %s198 = sadd.s32 %s197, 1
    %p201 = scmp.eq.s32.totalorder %s13, 1
    %p202 = scmp.ne.s32.totalorder %s197, %s199
    %p203 = scmp.eq.s32.totalorder %s13, 0
    %p204 = por %p202, %p203
    %p205 = scmp.ne.s32.totalorder %s197, %s199
    %p206 = scmp.eq.s32.totalorder %s18, 1
    %p207 = por %p205, %p206
    %p208 = scmp.ne.s32.totalorder %s199, %s200
    %p209 = scmp.eq.s32.totalorder %s18, 0
    %p210 = por %p208, %p209
    %p211 = scmp.ne.s32.totalorder %s199, %s200
    %p212 = scmp.eq.s32.totalorder %s19, 1
    %p213 = por %p211, %p212
    %p215 = scmp.ne.s32.totalorder %s200, %s214
    %p216 = scmp.eq.s32.totalorder %s19, 0
    %p217 = por %p215, %p216
    %s218 = ssub.s32 %s20, %s32
    %s219 = ssub.s32 %s21, %s28
    %s220 = sor.u32 %s218, %s219
    %p221 = scmp.eq.s32.totalorder %s220, 0
    %s223 = sadd.s32 %s222, 1
    %s224 = scalar_select %p221, %s222, %s223
    %p227 = pneg %p221
    %p228 = scmp.eq.s32.totalorder %s13, 1
    %p229 = por %p227, %p228
    %p230 = scmp.ne.s32.totalorder %s222, %s225
    %p231 = scmp.eq.s32.totalorder %s13, 0
    %p232 = por %p230, %p231
    %p233 = scmp.ne.s32.totalorder %s222, %s225
    %p234 = scmp.eq.s32.totalorder %s18, 1
    %p235 = por %p233, %p234
    %p236 = scmp.ne.s32.totalorder %s225, %s226
    %p237 = scmp.eq.s32.totalorder %s18, 0
    %p238 = por %p236, %p237
    %p239 = scmp.ne.s32.totalorder %s225, %s226
    %p240 = scmp.eq.s32.totalorder %s19, 1
    %p241 = por %p239, %p240
    %p243 = scmp.ne.s32.totalorder %s226, %s242
    %p244 = scmp.eq.s32.totalorder %s19, 0
    %p245 = por %p243, %p244
    %p246 = scmp.le.s32.totalorder 1, %s13
    %p247 = scmp.lt.s32.totalorder %s13, 3
    %p248 = pnand %p246, %p247
    %p249 = pneg %p248
    // Predicated region
    $region9: #{_lambda_.1} parent=5 // pred_check
      _
    $region10: #{_lambda_.1} parent=5 // pred_check_branch
      %251 = sbr.rel (%p248) target = $region12
    $region11: #{_lambda_.1} parent=5 // pred_region
      %s252 = ssub.s32 %s13, 1
      // Predicated region
      $region13: #{_lambda_.1} parent=11 // pred_check
        %p253 = pneg %p163
      $region14: #{_lambda_.1} parent=11 // pred_check_branch
        %255 = sbr.rel (%p253) target = $region16
      $region15: #{_lambda_.1} parent=11 // pred_region
        %p256 = scmp.lt.s32.totalorder %s23, 0
        %s257 = scalar_select %p256, %s23, 0
        %s258 = smul.addr %s257, 2
        %s259 = scalar_lea.vmem %s4, %s258
      $region16: #{_lambda_.1} parent=11 // pred_fallthru
        _
      // Predicated region
      $region17: #{_lambda_.1} parent=11 // pred_check
        %p260 = pneg %p189
      $region18: #{_lambda_.1} parent=11 // pred_check_branch
        %262 = sbr.rel (%p260) target = $region20
      $region19: #{_lambda_.1} parent=11 // pred_region
        %p263 = scmp.lt.s32.totalorder %s23, 0
        %s264 = scalar_select %p263, %s23, 0
        %s265 = scalar_lea.vmem %s5, %s264
      $region20: #{_lambda_.1} parent=11 // pred_fallthru
        _
      // Predicated region
      $region21: #{_lambda_.1} parent=11 // pred_check
        %p266 = pneg %p210
      $region22: #{_lambda_.1} parent=11 // pred_check_branch
        %268 = sbr.rel (%p266) target = $region24
      $region23: #{_lambda_.1} parent=11 // pred_region
        _
      $region24: #{_lambda_.1} parent=11 // pred_fallthru
        _
    $region12: #{_lambda_.1} parent=5 // pred_fallthru
      _
    %p269 = scmp.lt.s32.totalorder %s13, 2
    // Predicated region
    $region25: #{_lambda_.1} parent=5 // pred_check
      %p270 = pneg %p269
    $region26: #{_lambda_.1} parent=5 // pred_check_branch
      %272 = sbr.rel (%p270) target = $region28
    $region27: #{_lambda_.1} parent=5 // pred_region
      // Predicated region
      $region29: #{_lambda_.1} parent=27 // pred_check
        %p273 = pneg %p47
      $region30: #{_lambda_.1} parent=27 // pred_check_branch
        %275 = sbr.rel (%p273) target = $region32
      $region31: #{_lambda_.1} parent=27 // pred_region
        %p276 = scmp.lt.s32.totalorder %s20, 1
        %s277 = scalar_select %p276, %s20, 1
        %p278 = scmp.lt.s32.totalorder %s21, 0
        %s279 = scalar_select %p278, %s21, 0
        %s280 = sadd.s32 %s279, %s277
        %s281 = smul.addr %s280, 4
        %s282 = scalar_lea.vmem %s0, %s281
      $region32: #{_lambda_.1} parent=27 // pred_fallthru
        _
      // Predicated region
      $region33: #{_lambda_.1} parent=27 // pred_check
        %p283 = pneg %p75
      $region34: #{_lambda_.1} parent=27 // pred_check_branch
        %285 = sbr.rel (%p283) target = $region36
      $region35: #{_lambda_.1} parent=27 // pred_region
        %p286 = scmp.lt.s32.totalorder %s20, 1
        %s287 = scalar_select %p286, %s20, 1
        %p288 = scmp.lt.s32.totalorder %s21, 0
        %s289 = scalar_select %p288, %s21, 0
        %s290 = sadd.s32 %s289, %s287
        %s291 = scalar_lea.vmem %s1, %s290
      $region36: #{_lambda_.1} parent=27 // pred_fallthru
        _
      // Predicated region
      $region37: #{_lambda_.1} parent=27 // pred_check
        %p292 = pneg %p103
      $region38: #{_lambda_.1} parent=27 // pred_check_branch
        %294 = sbr.rel (%p292) target = $region40
      $region39: #{_lambda_.1} parent=27 // pred_region
        %p295 = scmp.lt.s32.totalorder %s20, 1
        %s296 = scalar_select %p295, %s20, 1
        %p297 = scmp.lt.s32.totalorder %s21, 0
        %s298 = scalar_select %p297, %s21, 0
        %s299 = smul.addr %s296, 3
        %s300 = sadd.s32 %s298, %s299
        %s301 = smul.addr %s300, 8
        %s302 = scalar_lea.vmem %s2, %s301
      $region40: #{_lambda_.1} parent=27 // pred_fallthru
        _
      // Predicated region
      $region41: #{_lambda_.1} parent=27 // pred_check
        %p303 = pneg %p131
      $region42: #{_lambda_.1} parent=27 // pred_check_branch
        %305 = sbr.rel (%p303) target = $region44
      $region43: #{_lambda_.1} parent=27 // pred_region
        %p306 = scmp.lt.s32.totalorder %s20, 1
        %s307 = scalar_select %p306, %s20, 1
        %p308 = scmp.lt.s32.totalorder %s21, 0
        %s309 = scalar_select %p308, %s21, 0
        %s310 = smul.addr %s307, 5
        %s311 = sadd.s32 %s309, %s310
        %s312 = smul.addr %s311, 4
        %s313 = scalar_lea.vmem %s3, %s312
      $region44: #{_lambda_.1} parent=27 // pred_fallthru
        _
    $region28: #{_lambda_.1} parent=5 // pred_fallthru
      _
    %p314 = scmp.le.s32.totalorder 1, %s13
    %p315 = scmp.lt.s32.totalorder %s13, 3
    %p316 = pnand %p314, %p315
    %p317 = pneg %p316
    // Predicated region
    $region45: #{_lambda_.1} parent=5 // pred_check
      _
    $region46: #{_lambda_.1} parent=5 // pred_check_branch
      %319 = sbr.rel (%p316) target = $region48
    $region47: #{_lambda_.1} parent=5 // pred_region
      %s320 = ssub.s32 %s13, 1
      %p321 = scmp.lt.s32.totalorder %s22, 1
      %s322 = scalar_select %p321, %s22, 1
      %p323 = scmp.lt.s32.totalorder %s23, 0
      %s324 = scalar_select %p323, %s23, 0
      %s325 = sadd.s32 %s324, %s322
      %s326 = smul.addr %s325, 4
      %s327 = scalar_lea.vmem %s0, %s326
      %p328 = pneg %p53
      %p329 = pneg %p50
      %p330 = scmp.lt.s32.totalorder %s22, 1
      %s331 = scalar_select %p330, %s22, 1
      %p332 = scmp.lt.s32.totalorder %s23, 0
      %s333 = scalar_select %p332, %s23, 0
      %s334 = sadd.s32 %s333, %s331
      %s335 = scalar_lea.vmem %s1, %s334
      %p336 = pneg %p81
      %p337 = pneg %p78
      %p338 = scmp.lt.s32.totalorder %s22, 1
      %s339 = scalar_select %p338, %s22, 1
      %p340 = scmp.lt.s32.totalorder %s23, 0
      %s341 = scalar_select %p340, %s23, 0
      %s342 = smul.addr %s339, 3
      %s343 = sadd.s32 %s341, %s342
      %s344 = smul.addr %s343, 8
      %s345 = scalar_lea.vmem %s2, %s344
      %p346 = pneg %p109
      %p347 = pneg %p106
      %p348 = scmp.lt.s32.totalorder %s22, 1
      %s349 = scalar_select %p348, %s22, 1
      %p350 = scmp.lt.s32.totalorder %s23, 0
      %s351 = scalar_select %p350, %s23, 0
      %s352 = smul.addr %s349, 5
      %s353 = sadd.s32 %s351, %s352
      %s354 = smul.addr %s353, 4
      %s355 = scalar_lea.vmem %s3, %s354
      %p356 = pneg %p137
      %p357 = pneg %p134
      %p358 = scmp.lt.s32.totalorder %s23, 0
      %s359 = scalar_select %p358, %s23, 0
      %s360 = smul.addr %s359, 2
      %s361 = scalar_lea.vmem %s4, %s360
      %p362 = pneg %p163
      %p363 = pneg %p160
      %p364 = scmp.lt.s32.totalorder %s23, 0
      %s365 = scalar_select %p364, %s23, 0
      %s366 = scalar_lea.vmem %s5, %s365
      %p367 = pneg %p189
      %p368 = pneg %p186
      %p369 = pneg %p210
      %p370 = pneg %p207
      %p371 = pneg %p238
      %p372 = pneg %p235
      %p373 = scmp.lt.s32.totalorder %s22, 1
      %s374 = scalar_select %p373, %s22, 1
      %p375 = scmp.lt.s32.totalorder %s23, 0
      %s376 = scalar_select %p375, %s23, 0
      %s377 = smul.addr %s374, 7
      %s378 = sadd.s32 %s376, %s377
      %s379 = smul.addr %s378, 8
      %s380 = scalar_lea.vmem %s7, %s379
      %p381 = scmp.lt.s32.totalorder %s22, 1
      %s382 = scalar_select %p381, %s22, 1
      %p383 = scmp.lt.s32.totalorder %s23, 0
      %s384 = scalar_select %p383, %s23, 0
      %s385 = sadd.s32 %s384, %s382
      %s386 = smul.addr %s385, 4
      %s387 = scalar_lea.vmem %s0, %s386
      %p388 = scmp.lt.s32.totalorder %s22, 1
      %s389 = scalar_select %p388, %s22, 1
      %p390 = scmp.lt.s32.totalorder %s23, 0
      %s391 = scalar_select %p390, %s23, 0
      %s392 = sadd.s32 %s391, %s389
      %s393 = scalar_lea.vmem %s1, %s392
      %p394 = scmp.lt.s32.totalorder %s22, 1
      %s395 = scalar_select %p394, %s22, 1
      %p396 = scmp.lt.s32.totalorder %s23, 0
      %s397 = scalar_select %p396, %s23, 0
      %s398 = smul.addr %s395, 3
      %s399 = sadd.s32 %s397, %s398
      %s400 = smul.addr %s399, 8
      %s401 = scalar_lea.vmem %s2, %s400
      %p402 = scmp.lt.s32.totalorder %s22, 1
      %s403 = scalar_select %p402, %s22, 1
      %p404 = scmp.lt.s32.totalorder %s23, 0
      %s405 = scalar_select %p404, %s23, 0
      %s406 = smul.addr %s403, 5
      %s407 = sadd.s32 %s405, %s406
      %s408 = smul.addr %s407, 4
      %s409 = scalar_lea.vmem %s3, %s408
      %p410 = scmp.lt.s32.totalorder %s23, 0
      %s411 = scalar_select %p410, %s23, 0
      %s412 = smul.addr %s411, 2
      %s413 = scalar_lea.vmem %s4, %s412
      %p414 = scmp.lt.s32.totalorder %s23, 0
      %s415 = scalar_select %p414, %s23, 0
      %s416 = scalar_lea.vmem %s5, %s415
      %p417 = scmp.lt.s32.totalorder %s22, 1
      %s418 = scalar_select %p417, %s22, 1
      %p419 = scmp.lt.s32.totalorder %s23, 0
      %s420 = scalar_select %p419, %s23, 0
      %s421 = smul.addr %s418, 7
      %s422 = sadd.s32 %s420, %s421
      %s423 = smul.addr %s422, 8
      %s424 = scalar_lea.vmem %s7, %s423
      %v426 = vld [vmem:[%s387] sm:$0xf]
      %v427 = vld [vmem:[%s416] sm:$0x1]
      %v428 = vld [vmem:[%s413] sm:$0x3]
      %v430 = vlaneseq
      %v431 = vshrl.u32 %v430, 7
      %v432 = vsub.s32 0, %v431
      %v433 = vrot.slane %v427, %v432
      %v435 = vmul.f32 %v426, %v433
      %v436 = vadd.f32 %v435, %v428
      %v437 = vmul.f32 %v426, 1.442695
      %v438 = vpow.pop %v437
      %v439 = vmul.f32 %v438, %v433
      %v440 = vmul.f32 %v439, 0.5
      %v442 = vrot.slane %v440, 2
      %v444 = vsub.f32 %v436, %v442
      %v445 = vadd.f32 %v436, %v442
      %446 = vst [vmem:[%s424] sm:$0x3] %v444
      %447 = vst [vmem:[%s424 + $0x2] sm:$0x3] %v445
      %v448 = vld [vmem:[%s393] sm:$0x1]
      %v449 = vxor.u32 %v448, 2147483648
      %v450 = vmul.f32 %v449, 1.442695
      %v451 = vpow.pop %v450
      %v452 = vadd.f32 %v451, 1.0
      %v453 = vrcp.pop %v452
      %v454 = vmul.f32 1.0, %v453
      %455 = vst [vmem:[%s424 + $0x4] sm:$0x1] %v454
      %v456 = vld [vmem:[%s401] sm:$0xff]
      %v457 = vld [vmem:[%s401 + $0x8] sm:$0xff]
      %v458 = vld [vmem:[%s401 + $0x10] sm:$0x1]
      %v459 = vxor.u32 %v456, 2147483648
      %v460 = vxor.u32 %v457, 2147483648
      %v461 = vxor.u32 %v458, 2147483648
      %v462 = vmul.f32 %v459, 1.442695
      %v463 = vpow.pop %v462
      %v464 = vmul.f32 %v460, 1.442695
      %v465 = vpow.pop %v464
      %v466 = vmul.f32 %v461, 1.442695
      %v467 = vpow.pop %v466
      %v468 = vadd.f32 %v463, 1.0
      %v469 = vadd.f32 %v465, 1.0
      %v470 = vadd.f32 %v467, 1.0
      %v471 = vrcp.pop %v468
      %v472 = vmul.f32 1.0, %v471
      %v473 = vrcp.pop %v469
      %v474 = vmul.f32 1.0, %v473
      %v475 = vrcp.pop %v470
      %v476 = vmul.f32 1.0, %v475
      %477 = vst [vmem:[%s424 + $0x5] sm:$0xff] %v472
      %478 = vst [vmem:[%s424 + $0xd] sm:$0xff] %v474
      %479 = vst [vmem:[%s424 + $0x15] sm:$0x1] %v476
      %v480 = vadd.f32 %v444, %v445
      %v481 = vmul.f32 %v480, 0.5
      %v482 = vsub.f32 %v445, %v444
      %v483 = vmul.f32 %v482, 1.25
      %v484 = vsub.f32 %v481, %v428
      %v485 = vld [vmem:[%s6] sm:$0xf]
      %v486 = vld [vmem:[%s6 + $0x4] sm:$0xf]
      %v487 = vld [vmem:[%s6 + $0x8] sm:$0xf]
      %v488 = vld [vmem:[%s6 + $0xc] sm:$0xf]
      %v489 = vld [vmem:[%s6 + $0x10] sm:$0xf]
      %v490 = vld [vmem:[%s6 + $0x14] sm:$0xf]
      %v491 = vld [vmem:[%s6 + $0x18] sm:$0xf]
      %v492 = vld [vmem:[%s6 + $0x1c] sm:$0xf]
      %v493 = vld [vmem:[%s6 + $0x20] sm:$0xf]
      %v494 = vld [vmem:[%s6 + $0x24] sm:$0xf]
      %v495 = vld [vmem:[%s6 + $0x28] sm:$0xf]
      %v496 = vld [vmem:[%s6 + $0x2c] sm:$0xf]
      %v497 = vld [vmem:[%s6 + $0x30] sm:$0xf]
      %v498 = vld [vmem:[%s6 + $0x34] sm:$0xf]
      %v499 = vld [vmem:[%s6 + $0x38] sm:$0xf]
      %v500 = vld [vmem:[%s6 + $0x3c] sm:$0xf]
      %v501 = vld [vmem:[%s6 + $0x40] sm:$0xf]
      %v502 = vld [vmem:[%s6 + $0x44] sm:$0xf]
      %v503 = vld [vmem:[%s6 + $0x48] sm:$0xf]
      %v504 = vld [vmem:[%s6 + $0x4c] sm:$0xf]
      %v505 = vld [vmem:[%s6 + $0x50] sm:$0xf]
      %v506 = vld [vmem:[%s6 + $0x54] sm:$0xf]
      %v507 = vld [vmem:[%s6 + $0x58] sm:$0xf]
      %v508 = vld [vmem:[%s6 + $0x5c] sm:$0xf]
      %v509 = vld [vmem:[%s6 + $0x60] sm:$0xf]
      %v510 = vld [vmem:[%s6 + $0x64] sm:$0xf]
      %v511 = vld [vmem:[%s6 + $0x68] sm:$0xf]
      %v512 = vld [vmem:[%s6 + $0x6c] sm:$0xf]
      %v513 = vld [vmem:[%s6 + $0x70] sm:$0xf]
      %v514 = vld [vmem:[%s6 + $0x74] sm:$0xf]
      %v515 = vld [vmem:[%s6 + $0x78] sm:$0xf]
      %v516 = vld [vmem:[%s6 + $0x7c] sm:$0xf]
      %v517 = vld [vmem:[%s6 + $0x80] sm:$0xf]
      %v518 = vld [vmem:[%s6 + $0x84] sm:$0xf]
      %v519 = vld [vmem:[%s6 + $0x88] sm:$0xf]
      %v520 = vld [vmem:[%s6 + $0x8c] sm:$0xf]
      %v521 = vld [vmem:[%s6 + $0x90] sm:$0xf]
      %v522 = vld [vmem:[%s6 + $0x94] sm:$0xf]
      %v523 = vld [vmem:[%s6 + $0x98] sm:$0xf]
      %v524 = vld [vmem:[%s6 + $0x9c] sm:$0xf]
      %v525 = vld [vmem:[%s6 + $0xa0] sm:$0xf]
      %v526 = vld [vmem:[%s6 + $0xa4] sm:$0xf]
      %v527 = vld [vmem:[%s6 + $0xa8] sm:$0xf]
      %v528 = vld [vmem:[%s6 + $0xac] sm:$0xf]
      %v529 = vld [vmem:[%s6 + $0xb0] sm:$0xf]
      %v530 = vld [vmem:[%s6 + $0xb4] sm:$0xf]
      %v531 = vld [vmem:[%s6 + $0xb8] sm:$0xf]
      %v532 = vld [vmem:[%s6 + $0xbc] sm:$0xf]
      %v533 = vld [vmem:[%s6 + $0xc0] sm:$0xf]
      %v534 = vld [vmem:[%s6 + $0xc4] sm:$0xf]
      %v535 = vld [vmem:[%s6 + $0xc8] sm:$0xf]
      %v536 = vld [vmem:[%s6 + $0xcc] sm:$0xf]
      %v537 = vld [vmem:[%s6 + $0xd0] sm:$0xf]
      %v538 = vld [vmem:[%s6 + $0xd4] sm:$0xf]
      %v539 = vld [vmem:[%s6 + $0xd8] sm:$0xf]
      %v540 = vld [vmem:[%s6 + $0xdc] sm:$0xf]
      %v541 = vld [vmem:[%s6 + $0xe0] sm:$0xf]
      %v542 = vld [vmem:[%s6 + $0xe4] sm:$0xf]
      %v543 = vld [vmem:[%s6 + $0xe8] sm:$0xf]
      %v544 = vld [vmem:[%s6 + $0xec] sm:$0xf]
      %v545 = vld [vmem:[%s6 + $0xf0] sm:$0xf]
      %v546 = vld [vmem:[%s6 + $0xf4] sm:$0xf]
      %v547 = vld [vmem:[%s6 + $0xf8] sm:$0xf]
      %v548 = vld [vmem:[%s6 + $0xfc] sm:$0xf]
      %v549 = vld [vmem:[%s6 + $0x100] sm:$0xf]
      %v550 = vld [vmem:[%s6 + $0x104] sm:$0xf]
      %v551 = vld [vmem:[%s6 + $0x108] sm:$0xf]
      %v552 = vld [vmem:[%s6 + $0x10c] sm:$0xf]
      %v553 = vld [vmem:[%s6 + $0x110] sm:$0xf]
      %v554 = vld [vmem:[%s6 + $0x114] sm:$0xf]
      %v555 = vld [vmem:[%s6 + $0x118] sm:$0xf]
      %v556 = vld [vmem:[%s6 + $0x11c] sm:$0xf]
      %v557 = vld [vmem:[%s6 + $0x120] sm:$0xf]
      %v558 = vld [vmem:[%s6 + $0x124] sm:$0xf]
      %v559 = vld [vmem:[%s6 + $0x128] sm:$0xf]
      %v560 = vld [vmem:[%s6 + $0x12c] sm:$0xf]
      %v561 = vld [vmem:[%s6 + $0x130] sm:$0xf]
      %v562 = vld [vmem:[%s6 + $0x134] sm:$0xf]
      %v563 = vld [vmem:[%s6 + $0x138] sm:$0xf]
      %v564 = vld [vmem:[%s6 + $0x13c] sm:$0xf]
      %v565 = vld [vmem:[%s6 + $0x140] sm:$0xf]
      %v566 = vld [vmem:[%s6 + $0x144] sm:$0xf]
      %v567 = vld [vmem:[%s6 + $0x148] sm:$0xf]
      %v568 = vld [vmem:[%s6 + $0x14c] sm:$0xf]
      %v569 = vld [vmem:[%s6 + $0x150] sm:$0xf]
      %v570 = vld [vmem:[%s409] sm:$0xf]
      %v571 = vld [vmem:[%s409 + $0x4] sm:$0xf]
      %v572 = vld [vmem:[%s409 + $0x8] sm:$0xf]
      %v573 = vld [vmem:[%s409 + $0xc] sm:$0xf]
      %v574 = vld [vmem:[%s409 + $0x10] sm:$0x1]
      %v660 = vunpack.c.l.b16 %v485
      %v661 = vunpack.c.l.b16 %v486
      %v662 = vunpack.c.l.b16 %v487
      %v663 = vunpack.c.l.b16 %v488
      %v664 = vunpack.c.l.b16 %v489
      %v665 = vunpack.c.l.b16 %v490
      %v666 = vunpack.c.l.b16 %v491
      %v667 = vunpack.c.l.b16 %v492
      %v668 = vunpack.c.l.b16 %v493
      %v669 = vunpack.c.l.b16 %v494
      %v670 = vunpack.c.l.b16 %v495
      %v671 = vunpack.c.l.b16 %v496
      %v672 = vunpack.c.l.b16 %v497
      %v673 = vunpack.c.l.b16 %v498
      %v674 = vunpack.c.l.b16 %v499
      %v675 = vunpack.c.l.b16 %v500
      %v676 = vunpack.c.l.b16 %v501
      %v677 = vunpack.c.l.b16 %v502
      %v678 = vunpack.c.l.b16 %v503
      %v679 = vunpack.c.l.b16 %v504
      %v680 = vunpack.c.l.b16 %v505
      %v681 = vunpack.c.l.b16 %v506
      %v682 = vunpack.c.l.b16 %v507
      %v683 = vunpack.c.l.b16 %v508
      %v684 = vunpack.c.l.b16 %v509
      %v685 = vunpack.c.l.b16 %v510
      %v686 = vunpack.c.l.b16 %v511
      %v687 = vunpack.c.l.b16 %v512
      %v688 = vunpack.c.l.b16 %v513
      %v689 = vunpack.c.l.b16 %v514
      %v690 = vunpack.c.l.b16 %v515
      %v691 = vunpack.c.l.b16 %v516
      %v692 = vunpack.c.l.b16 %v517
      %v693 = vunpack.c.l.b16 %v518
      %v694 = vunpack.c.l.b16 %v519
      %v695 = vunpack.c.l.b16 %v520
      %v696 = vunpack.c.l.b16 %v521
      %v697 = vunpack.c.l.b16 %v522
      %v698 = vunpack.c.l.b16 %v523
      %v699 = vunpack.c.l.b16 %v524
      %v700 = vunpack.c.l.b16 %v525
      %v701 = vunpack.c.l.b16 %v526
      %v702 = vunpack.c.l.b16 %v527
      %v703 = vunpack.c.l.b16 %v528
      %v704 = vunpack.c.l.b16 %v529
      %v705 = vunpack.c.l.b16 %v530
      %v706 = vunpack.c.l.b16 %v531
      %v707 = vunpack.c.l.b16 %v532
      %v708 = vunpack.c.l.b16 %v533
      %v709 = vunpack.c.l.b16 %v534
      %v710 = vunpack.c.l.b16 %v535
      %v711 = vunpack.c.l.b16 %v536
      %v712 = vunpack.c.l.b16 %v537
      %v713 = vunpack.c.l.b16 %v538
      %v714 = vunpack.c.l.b16 %v539
      %v715 = vunpack.c.l.b16 %v540
      %v716 = vunpack.c.l.b16 %v541
      %v717 = vunpack.c.l.b16 %v542
      %v718 = vunpack.c.l.b16 %v543
      %v719 = vunpack.c.l.b16 %v544
      %v720 = vunpack.c.l.b16 %v545
      %v721 = vunpack.c.l.b16 %v546
      %v722 = vunpack.c.l.b16 %v547
      %v723 = vunpack.c.l.b16 %v548
      %v724 = vunpack.c.l.b16 %v549
      %v725 = vunpack.c.l.b16 %v550
      %v726 = vunpack.c.l.b16 %v551
      %v727 = vunpack.c.l.b16 %v552
      %v728 = vunpack.c.l.b16 %v553
      %v729 = vunpack.c.l.b16 %v554
      %v730 = vunpack.c.l.b16 %v555
      %v731 = vunpack.c.l.b16 %v556
      %v732 = vunpack.c.l.b16 %v557
      %v733 = vunpack.c.l.b16 %v558
      %v734 = vunpack.c.l.b16 %v559
      %v735 = vunpack.c.l.b16 %v560
      %v736 = vunpack.c.l.b16 %v561
      %v737 = vunpack.c.l.b16 %v562
      %v738 = vunpack.c.l.b16 %v563
      %v739 = vunpack.c.l.b16 %v564
      %v740 = vunpack.c.l.b16 %v565
      %v741 = vunpack.c.l.b16 %v566
      %v742 = vunpack.c.l.b16 %v567
      %v743 = vunpack.c.l.b16 %v568
      %v744 = vunpack.c.l.b16 %v569
      %v745 = vpack.c.b16 %v661, %v660
      %v746 = vpack.c.b16 %v663, %v662
      %v747 = vpack.c.b16 %v665, %v664
      %v748 = vpack.c.b16 %v667, %v666
      %v749 = vpack.c.b16 %v669, %v668
      %v750 = vpack.c.b16 %v671, %v670
      %v751 = vpack.c.b16 %v673, %v672
      %v752 = vpack.c.b16 %v675, %v674
      %v753 = vpack.c.b16 %v677, %v676
      %v754 = vpack.c.b16 %v679, %v678
      %v755 = vpack.c.b16 %v681, %v680
      %v756 = vpack.c.b16 %v683, %v682
      %v757 = vpack.c.b16 %v685, %v684
      %v758 = vpack.c.b16 %v687, %v686
      %v759 = vpack.c.b16 %v689, %v688
      %v760 = vpack.c.b16 %v691, %v690
      %v761 = vpack.c.b16 %v693, %v692
      %v762 = vpack.c.b16 %v695, %v694
      %v763 = vpack.c.b16 %v697, %v696
      %v764 = vpack.c.b16 %v699, %v698
      %v765 = vpack.c.b16 %v701, %v700
      %v766 = vpack.c.b16 %v703, %v702
      %v767 = vpack.c.b16 %v705, %v704
      %v768 = vpack.c.b16 %v707, %v706
      %v769 = vpack.c.b16 %v709, %v708
      %v770 = vpack.c.b16 %v711, %v710
      %v771 = vpack.c.b16 %v713, %v712
      %v772 = vpack.c.b16 %v715, %v714
      %v773 = vpack.c.b16 %v717, %v716
      %v774 = vpack.c.b16 %v719, %v718
      %v775 = vpack.c.b16 %v721, %v720
      %v776 = vpack.c.b16 %v723, %v722
      %v777 = vpack.c.b16 %v725, %v724
      %v778 = vpack.c.b16 %v727, %v726
      %v779 = vpack.c.b16 %v729, %v728
      %v780 = vpack.c.b16 %v731, %v730
      %v781 = vpack.c.b16 %v733, %v732
      %v782 = vpack.c.b16 %v735, %v734
      %v783 = vpack.c.b16 %v737, %v736
      %v784 = vpack.c.b16 %v739, %v738
      %v785 = vpack.c.b16 %v741, %v740
      %v786 = vpack.c.b16 %v743, %v742
      %v787 = vpack.c.b16 %v744, %v744
      %v793 = vunpack.c.l.b16 %v570
      %v794 = vunpack.c.l.b16 %v571
      %v795 = vunpack.c.l.b16 %v572
      %v796 = vunpack.c.l.b16 %v573
      %v797 = vunpack.c.l.b16 %v574
      %v798 = vpack.c.b16 %v794, %v793
      %v799 = vpack.c.b16 %v796, %v795
      %v800 = vpack.c.b16 %v797, %v797
      %vm803 = vcmask 269312
      %v805 = vsel %vm803, %v745, 0
      %v808 = vsel %vm803, %v746, 0
      %v811 = vsel %vm803, %v747, 0
      %v814 = vsel %vm803, %v748, 0
      %v817 = vsel %vm803, %v749, 0
      %v820 = vsel %vm803, %v750, 0
      %v823 = vsel %vm803, %v751, 0
      %v826 = vsel %vm803, %v752, 0
      %v829 = vsel %vm803, %v753, 0
      %v832 = vsel %vm803, %v754, 0
      %v835 = vsel %vm803, %v755, 0
      %v838 = vsel %vm803, %v756, 0
      %v841 = vsel %vm803, %v757, 0
      %v844 = vsel %vm803, %v758, 0
      %v847 = vsel %vm803, %v759, 0
      %v850 = vsel %vm803, %v760, 0
      %v853 = vsel %vm803, %v761, 0
      %v856 = vsel %vm803, %v762, 0
      %v859 = vsel %vm803, %v763, 0
      %v862 = vsel %vm803, %v764, 0
      %v865 = vsel %vm803, %v765, 0
      %v868 = vsel %vm803, %v766, 0
      %v871 = vsel %vm803, %v767, 0
      %v874 = vsel %vm803, %v768, 0
      %v877 = vsel %vm803, %v769, 0
      %v880 = vsel %vm803, %v770, 0
      %v883 = vsel %vm803, %v771, 0
      %v886 = vsel %vm803, %v772, 0
      %v889 = vsel %vm803, %v773, 0
      %v892 = vsel %vm803, %v774, 0
      %v895 = vsel %vm803, %v775, 0
      %v898 = vsel %vm803, %v776, 0
      %v901 = vsel %vm803, %v777, 0
      %v904 = vsel %vm803, %v778, 0
      %v907 = vsel %vm803, %v779, 0
      %v910 = vsel %vm803, %v780, 0
      %v913 = vsel %vm803, %v781, 0
      %v916 = vsel %vm803, %v782, 0
      %v919 = vsel %vm803, %v783, 0
      %v922 = vsel %vm803, %v784, 0
      %v925 = vsel %vm803, %v785, 0
      %v928 = vsel %vm803, %v786, 0
      %v931 = vsel %vm803, %v787, 0
      %vm933 = vcmask 1040384
      %v934 = vsel 0, 4294967295, 65535
      %v935 = vsel %vm933, %v934, 0
      %v937 = vand.u32 %v800, %v935
      %939 = vmatprep.subr.bf16.mxu0 0
      %940 = vmatpush1.bf16.msra.mxu0 0
      %941 = vmatprep.subr.bf16.mxu0 0
      %942 = vmatpush1.bf16.msra.mxu0 0
      %943 = vmatprep.subr.bf16.mxu0 0
      %944 = vmatpush1.bf16.msra.mxu0 0
      %945 = vmatprep.subr.bf16.mxu0 0
      %946 = vmatpush1.bf16.msra.mxu0 0
      %947 = vmatprep.subr.bf16.mxu0 0
      %948 = vmatpush1.bf16.msra.mxu0 0
      %949 = vmatprep.subr.bf16.mxu0 0
      %950 = vmatpush1.bf16.msra.mxu0 %v937
      %951 = vmatprep.subr.bf16.mxu0 0
      %952 = vmatpush1.bf16.msra.mxu0 %v799
      %953 = vmatprep.subr.bf16.mxu0 0
      %954 = vmatpush1.bf16.msra.mxu0 %v798
      %955 = vmatprep.subr.bf16.mxu0 0
      %956 = vmatpush2.bf16.msra.mxu0 0
      %957 = vmatprep.subr.bf16.mxu0 0
      %958 = vmatpush2.bf16.msra.mxu0 0
      %959 = vmatprep.subr.bf16.mxu0 0
      %960 = vmatpush2.bf16.msra.mxu0 0
      %961 = vmatprep.subr.bf16.mxu0 0
      %962 = vmatpush2.bf16.msra.mxu0 0
      %963 = vmatprep.subr.bf16.mxu0 0
      %964 = vmatpush2.bf16.msra.mxu0 0
      %965 = vmatprep.subr.bf16.mxu0 0
      %966 = vmatpush2.bf16.msra.mxu0 0
      %967 = vmatprep.subr.bf16.mxu0 0
      %968 = vmatpush2.bf16.msra.mxu0 0
      %969 = vmatprep.subr.bf16.mxu0 0
      %970 = vmatpush2.bf16.msra.mxu0 0
      %971 = vmatprep.mubr.bf16.mxu0 0
      %972 = vmatmul.mubr.bf16.gmra.mxu0 %v805
      %v973 = vpop.f32.mrf.mxu0
      %v974 = vadd.f32 0.0, %v973
      %v975 = vpop.f32.mrf.mxu0
      %v976 = vpop.f32.mrf.mxu0
      %v977 = vadd.f32 0.0, %v976
      %v978 = vpop.f32.mrf.mxu0
      %979 = vmatprep.mubr.bf16.mxu0 0
      %980 = vmatmul.mubr.bf16.gmra.mxu0 %v808
      %v981 = vpop.f32.mrf.mxu0
      %v982 = vadd.f32 0.0, %v981
      %v983 = vpop.f32.mrf.mxu0
      %v984 = vpop.f32.mrf.mxu0
      %v985 = vadd.f32 0.0, %v984
      %v986 = vpop.f32.mrf.mxu0
      %987 = vmatprep.mubr.bf16.mxu0 0
      %988 = vmatmul.mubr.bf16.gmra.mxu0 %v811
      %v989 = vpop.f32.mrf.mxu0
      %v990 = vadd.f32 0.0, %v989
      %v991 = vpop.f32.mrf.mxu0
      %v992 = vpop.f32.mrf.mxu0
      %v993 = vadd.f32 0.0, %v992
      %v994 = vpop.f32.mrf.mxu0
      %995 = vmatprep.mubr.bf16.mxu0 0
      %996 = vmatmul.mubr.bf16.gmra.mxu0 %v814
      %v997 = vpop.f32.mrf.mxu0
      %v998 = vadd.f32 0.0, %v997
      %v999 = vpop.f32.mrf.mxu0
      %v1000 = vpop.f32.mrf.mxu0
      %v1001 = vadd.f32 0.0, %v1000
      %v1002 = vpop.f32.mrf.mxu0
      %1003 = vmatprep.mubr.bf16.mxu0 0
      %1004 = vmatmul.mubr.bf16.gmra.mxu0 %v817
      %v1005 = vpop.f32.mrf.mxu0
      %v1006 = vadd.f32 0.0, %v1005
      %v1007 = vpop.f32.mrf.mxu0
      %v1008 = vpop.f32.mrf.mxu0
      %v1009 = vadd.f32 0.0, %v1008
      %v1010 = vpop.f32.mrf.mxu0
      %1011 = vmatprep.mubr.bf16.mxu0 0
      %1012 = vmatmul.mubr.bf16.gmra.mxu0 %v820
      %v1013 = vpop.f32.mrf.mxu0
      %v1014 = vadd.f32 0.0, %v1013
      %v1015 = vpop.f32.mrf.mxu0
      %v1016 = vpop.f32.mrf.mxu0
      %v1017 = vadd.f32 0.0, %v1016
      %v1018 = vpop.f32.mrf.mxu0
      %1019 = vmatprep.mubr.bf16.mxu0 0
      %1020 = vmatmul.mubr.bf16.gmra.mxu0 %v823
      %v1021 = vpop.f32.mrf.mxu0
      %v1022 = vadd.f32 0.0, %v1021
      %v1023 = vpop.f32.mrf.mxu0
      %v1024 = vpop.f32.mrf.mxu0
      %v1025 = vadd.f32 0.0, %v1024
      %v1026 = vpop.f32.mrf.mxu0
      %1027 = vmatprep.mubr.bf16.mxu0 0
      %1028 = vmatmul.mubr.bf16.gmra.mxu0 %v826
      %v1029 = vpop.f32.mrf.mxu0
      %v1030 = vadd.f32 0.0, %v1029
      %v1031 = vpop.f32.mrf.mxu0
      %v1032 = vpop.f32.mrf.mxu0
      %v1033 = vadd.f32 0.0, %v1032
      %v1034 = vpop.f32.mrf.mxu0
      %1035 = vmatprep.mubr.bf16.mxu0 0
      %1036 = vmatmul.mubr.bf16.gmra.mxu0 %v829
      %v1037 = vpop.f32.mrf.mxu0
      %v1038 = vadd.f32 0.0, %v1037
      %v1039 = vpop.f32.mrf.mxu0
      %v1040 = vpop.f32.mrf.mxu0
      %v1041 = vadd.f32 0.0, %v1040
      %v1042 = vpop.f32.mrf.mxu0
      %1043 = vmatprep.mubr.bf16.mxu0 0
      %1044 = vmatmul.mubr.bf16.gmra.mxu0 %v832
      %v1045 = vpop.f32.mrf.mxu0
      %v1046 = vadd.f32 0.0, %v1045
      %v1047 = vpop.f32.mrf.mxu0
      %v1048 = vpop.f32.mrf.mxu0
      %v1049 = vadd.f32 0.0, %v1048
      %v1050 = vpop.f32.mrf.mxu0
      %1051 = vmatprep.mubr.bf16.mxu0 0
      %1052 = vmatmul.mubr.bf16.gmra.mxu0 %v835
      %v1053 = vpop.f32.mrf.mxu0
      %v1054 = vadd.f32 0.0, %v1053
      %v1055 = vpop.f32.mrf.mxu0
      %v1056 = vpop.f32.mrf.mxu0
      %v1057 = vadd.f32 0.0, %v1056
      %v1058 = vpop.f32.mrf.mxu0
      %1059 = vmatprep.mubr.bf16.mxu0 0
      %1060 = vmatmul.mubr.bf16.gmra.mxu0 %v838
      %v1061 = vpop.f32.mrf.mxu0
      %v1062 = vadd.f32 0.0, %v1061
      %v1063 = vpop.f32.mrf.mxu0
      %v1064 = vpop.f32.mrf.mxu0
      %v1065 = vadd.f32 0.0, %v1064
      %v1066 = vpop.f32.mrf.mxu0
      %1067 = vmatprep.mubr.bf16.mxu0 0
      %1068 = vmatmul.mubr.bf16.gmra.mxu0 %v841
      %v1069 = vpop.f32.mrf.mxu0
      %v1070 = vadd.f32 0.0, %v1069
      %v1071 = vpop.f32.mrf.mxu0
      %v1072 = vpop.f32.mrf.mxu0
      %v1073 = vadd.f32 0.0, %v1072
      %v1074 = vpop.f32.mrf.mxu0
      %1075 = vmatprep.mubr.bf16.mxu0 0
      %1076 = vmatmul.mubr.bf16.gmra.mxu0 %v844
      %v1077 = vpop.f32.mrf.mxu0
      %v1078 = vadd.f32 0.0, %v1077
      %v1079 = vpop.f32.mrf.mxu0
      %v1080 = vpop.f32.mrf.mxu0
      %v1081 = vadd.f32 0.0, %v1080
      %v1082 = vpop.f32.mrf.mxu0
      %1083 = vmatprep.mubr.bf16.mxu0 0
      %1084 = vmatmul.mubr.bf16.gmra.mxu0 %v847
      %v1085 = vpop.f32.mrf.mxu0
      %v1086 = vadd.f32 0.0, %v1085
      %v1087 = vpop.f32.mrf.mxu0
      %v1088 = vpop.f32.mrf.mxu0
      %v1089 = vadd.f32 0.0, %v1088
      %v1090 = vpop.f32.mrf.mxu0
      %1091 = vmatprep.mubr.bf16.mxu0 0
      %1092 = vmatmul.mubr.bf16.gmra.mxu0 %v850
      %v1093 = vpop.f32.mrf.mxu0
      %v1094 = vadd.f32 0.0, %v1093
      %v1095 = vpop.f32.mrf.mxu0
      %v1096 = vpop.f32.mrf.mxu0
      %v1097 = vadd.f32 0.0, %v1096
      %v1098 = vpop.f32.mrf.mxu0
      %1099 = vmatprep.mubr.bf16.mxu0 0
      %1100 = vmatmul.mubr.bf16.gmra.mxu0 %v853
      %v1101 = vpop.f32.mrf.mxu0
      %v1102 = vadd.f32 0.0, %v1101
      %v1103 = vpop.f32.mrf.mxu0
      %v1104 = vpop.f32.mrf.mxu0
      %v1105 = vadd.f32 0.0, %v1104
      %v1106 = vpop.f32.mrf.mxu0
      %1107 = vmatprep.mubr.bf16.mxu0 0
      %1108 = vmatmul.mubr.bf16.gmra.mxu0 %v856
      %v1109 = vpop.f32.mrf.mxu0
      %v1110 = vadd.f32 0.0, %v1109
      %v1111 = vpop.f32.mrf.mxu0
      %v1112 = vpop.f32.mrf.mxu0
      %v1113 = vadd.f32 0.0, %v1112
      %v1114 = vpop.f32.mrf.mxu0
      %1115 = vmatprep.mubr.bf16.mxu0 0
      %1116 = vmatmul.mubr.bf16.gmra.mxu0 %v859
      %v1117 = vpop.f32.mrf.mxu0
      %v1118 = vadd.f32 0.0, %v1117
      %v1119 = vpop.f32.mrf.mxu0
      %v1120 = vpop.f32.mrf.mxu0
      %v1121 = vadd.f32 0.0, %v1120
      %v1122 = vpop.f32.mrf.mxu0
      %1123 = vmatprep.mubr.bf16.mxu0 0
      %1124 = vmatmul.mubr.bf16.gmra.mxu0 %v862
      %v1125 = vpop.f32.mrf.mxu0
      %v1126 = vadd.f32 0.0, %v1125
      %v1127 = vpop.f32.mrf.mxu0
      %v1128 = vpop.f32.mrf.mxu0
      %v1129 = vadd.f32 0.0, %v1128
      %v1130 = vpop.f32.mrf.mxu0
      %1131 = vmatprep.mubr.bf16.mxu0 0
      %1132 = vmatmul.mubr.bf16.gmra.mxu0 %v865
      %v1133 = vpop.f32.mrf.mxu0
      %v1134 = vadd.f32 0.0, %v1133
      %v1135 = vpop.f32.mrf.mxu0
      %v1136 = vpop.f32.mrf.mxu0
      %v1137 = vadd.f32 0.0, %v1136
      %v1138 = vpop.f32.mrf.mxu0
      %1139 = vmatprep.mubr.bf16.mxu0 0
      %1140 = vmatmul.mubr.bf16.gmra.mxu0 %v868
      %v1141 = vpop.f32.mrf.mxu0
      %v1142 = vadd.f32 0.0, %v1141
      %v1143 = vpop.f32.mrf.mxu0
      %v1144 = vpop.f32.mrf.mxu0
      %v1145 = vadd.f32 0.0, %v1144
      %v1146 = vpop.f32.mrf.mxu0
      %1147 = vmatprep.mubr.bf16.mxu0 0
      %1148 = vmatmul.mubr.bf16.gmra.mxu0 %v871
      %v1149 = vpop.f32.mrf.mxu0
      %v1150 = vadd.f32 0.0, %v1149
      %v1151 = vpop.f32.mrf.mxu0
      %v1152 = vpop.f32.mrf.mxu0
      %v1153 = vadd.f32 0.0, %v1152
      %v1154 = vpop.f32.mrf.mxu0
      %1155 = vmatprep.mubr.bf16.mxu0 0
      %1156 = vmatmul.mubr.bf16.gmra.mxu0 %v874
      %v1157 = vpop.f32.mrf.mxu0
      %v1158 = vadd.f32 0.0, %v1157
      %v1159 = vpop.f32.mrf.mxu0
      %v1160 = vpop.f32.mrf.mxu0
      %v1161 = vadd.f32 0.0, %v1160
      %v1162 = vpop.f32.mrf.mxu0
      %1163 = vmatprep.mubr.bf16.mxu0 0
      %1164 = vmatmul.mubr.bf16.gmra.mxu0 %v877
      %v1165 = vpop.f32.mrf.mxu0
      %v1166 = vadd.f32 0.0, %v1165
      %v1167 = vpop.f32.mrf.mxu0
      %v1168 = vpop.f32.mrf.mxu0
      %v1169 = vadd.f32 0.0, %v1168
      %v1170 = vpop.f32.mrf.mxu0
      %1171 = vmatprep.mubr.bf16.mxu0 0
      %1172 = vmatmul.mubr.bf16.gmra.mxu0 %v880
      %v1173 = vpop.f32.mrf.mxu0
      %v1174 = vadd.f32 0.0, %v1173
      %v1175 = vpop.f32.mrf.mxu0
      %v1176 = vpop.f32.mrf.mxu0
      %v1177 = vadd.f32 0.0, %v1176
      %v1178 = vpop.f32.mrf.mxu0
      %1179 = vmatprep.mubr.bf16.mxu0 0
      %1180 = vmatmul.mubr.bf16.gmra.mxu0 %v883
      %v1181 = vpop.f32.mrf.mxu0
      %v1182 = vadd.f32 0.0, %v1181
      %v1183 = vpop.f32.mrf.mxu0
      %v1184 = vpop.f32.mrf.mxu0
      %v1185 = vadd.f32 0.0, %v1184
      %v1186 = vpop.f32.mrf.mxu0
      %1187 = vmatprep.mubr.bf16.mxu0 0
      %1188 = vmatmul.mubr.bf16.gmra.mxu0 %v886
      %v1189 = vpop.f32.mrf.mxu0
      %v1190 = vadd.f32 0.0, %v1189
      %v1191 = vpop.f32.mrf.mxu0
      %v1192 = vpop.f32.mrf.mxu0
      %v1193 = vadd.f32 0.0, %v1192
      %v1194 = vpop.f32.mrf.mxu0
      %1195 = vmatprep.mubr.bf16.mxu0 0
      %1196 = vmatmul.mubr.bf16.gmra.mxu0 %v889
      %v1197 = vpop.f32.mrf.mxu0
      %v1198 = vadd.f32 0.0, %v1197
      %v1199 = vpop.f32.mrf.mxu0
      %v1200 = vpop.f32.mrf.mxu0
      %v1201 = vadd.f32 0.0, %v1200
      %v1202 = vpop.f32.mrf.mxu0
      %1203 = vmatprep.mubr.bf16.mxu0 0
      %1204 = vmatmul.mubr.bf16.gmra.mxu0 %v892
      %v1205 = vpop.f32.mrf.mxu0
      %v1206 = vadd.f32 0.0, %v1205
      %v1207 = vpop.f32.mrf.mxu0
      %v1208 = vpop.f32.mrf.mxu0
      %v1209 = vadd.f32 0.0, %v1208
      %v1210 = vpop.f32.mrf.mxu0
      %1211 = vmatprep.mubr.bf16.mxu0 0
      %1212 = vmatmul.mubr.bf16.gmra.mxu0 %v895
      %v1213 = vpop.f32.mrf.mxu0
      %v1214 = vadd.f32 0.0, %v1213
      %v1215 = vpop.f32.mrf.mxu0
      %v1216 = vpop.f32.mrf.mxu0
      %v1217 = vadd.f32 0.0, %v1216
      %v1218 = vpop.f32.mrf.mxu0
      %1219 = vmatprep.mubr.bf16.mxu0 0
      %1220 = vmatmul.mubr.bf16.gmra.mxu0 %v898
      %v1221 = vpop.f32.mrf.mxu0
      %v1222 = vadd.f32 0.0, %v1221
      %v1223 = vpop.f32.mrf.mxu0
      %v1224 = vpop.f32.mrf.mxu0
      %v1225 = vadd.f32 0.0, %v1224
      %v1226 = vpop.f32.mrf.mxu0
      %1227 = vmatprep.mubr.bf16.mxu0 0
      %1228 = vmatmul.mubr.bf16.gmra.mxu0 %v901
      %v1229 = vpop.f32.mrf.mxu0
      %v1230 = vadd.f32 0.0, %v1229
      %v1231 = vpop.f32.mrf.mxu0
      %v1232 = vpop.f32.mrf.mxu0
      %v1233 = vadd.f32 0.0, %v1232
      %v1234 = vpop.f32.mrf.mxu0
      %1235 = vmatprep.mubr.bf16.mxu0 0
      %1236 = vmatmul.mubr.bf16.gmra.mxu0 %v904
      %v1237 = vpop.f32.mrf.mxu0
      %v1238 = vadd.f32 0.0, %v1237
      %v1239 = vpop.f32.mrf.mxu0
      %v1240 = vpop.f32.mrf.mxu0
      %v1241 = vadd.f32 0.0, %v1240
      %v1242 = vpop.f32.mrf.mxu0
      %1243 = vmatprep.mubr.bf16.mxu0 0
      %1244 = vmatmul.mubr.bf16.gmra.mxu0 %v907
      %v1245 = vpop.f32.mrf.mxu0
      %v1246 = vadd.f32 0.0, %v1245
      %v1247 = vpop.f32.mrf.mxu0
      %v1248 = vpop.f32.mrf.mxu0
      %v1249 = vadd.f32 0.0, %v1248
      %v1250 = vpop.f32.mrf.mxu0
      %1251 = vmatprep.mubr.bf16.mxu0 0
      %1252 = vmatmul.mubr.bf16.gmra.mxu0 %v910
      %v1253 = vpop.f32.mrf.mxu0
      %v1254 = vadd.f32 0.0, %v1253
      %v1255 = vpop.f32.mrf.mxu0
      %v1256 = vpop.f32.mrf.mxu0
      %v1257 = vadd.f32 0.0, %v1256
      %v1258 = vpop.f32.mrf.mxu0
      %1259 = vmatprep.mubr.bf16.mxu0 0
      %1260 = vmatmul.mubr.bf16.gmra.mxu0 %v913
      %v1261 = vpop.f32.mrf.mxu0
      %v1262 = vadd.f32 0.0, %v1261
      %v1263 = vpop.f32.mrf.mxu0
      %v1264 = vpop.f32.mrf.mxu0
      %v1265 = vadd.f32 0.0, %v1264
      %v1266 = vpop.f32.mrf.mxu0
      %1267 = vmatprep.mubr.bf16.mxu0 0
      %1268 = vmatmul.mubr.bf16.gmra.mxu0 %v916
      %v1269 = vpop.f32.mrf.mxu0
      %v1270 = vadd.f32 0.0, %v1269
      %v1271 = vpop.f32.mrf.mxu0
      %v1272 = vpop.f32.mrf.mxu0
      %v1273 = vadd.f32 0.0, %v1272
      %v1274 = vpop.f32.mrf.mxu0
      %1275 = vmatprep.mubr.bf16.mxu0 0
      %1276 = vmatmul.mubr.bf16.gmra.mxu0 %v919
      %v1277 = vpop.f32.mrf.mxu0
      %v1278 = vadd.f32 0.0, %v1277
      %v1279 = vpop.f32.mrf.mxu0
      %v1280 = vpop.f32.mrf.mxu0
      %v1281 = vadd.f32 0.0, %v1280
      %v1282 = vpop.f32.mrf.mxu0
      %1283 = vmatprep.mubr.bf16.mxu0 0
      %1284 = vmatmul.mubr.bf16.gmra.mxu0 %v922
      %v1285 = vpop.f32.mrf.mxu0
      %v1286 = vadd.f32 0.0, %v1285
      %v1287 = vpop.f32.mrf.mxu0
      %v1288 = vpop.f32.mrf.mxu0
      %v1289 = vadd.f32 0.0, %v1288
      %v1290 = vpop.f32.mrf.mxu0
      %1291 = vmatprep.mubr.bf16.mxu0 0
      %1292 = vmatmul.mubr.bf16.gmra.mxu0 %v925
      %v1293 = vpop.f32.mrf.mxu0
      %v1294 = vadd.f32 0.0, %v1293
      %v1295 = vpop.f32.mrf.mxu0
      %v1296 = vpop.f32.mrf.mxu0
      %v1297 = vadd.f32 0.0, %v1296
      %v1298 = vpop.f32.mrf.mxu0
      %1299 = vmatprep.mubr.bf16.mxu0 0
      %1300 = vmatmul.mubr.bf16.gmra.mxu0 %v928
      %v1301 = vpop.f32.mrf.mxu0
      %v1302 = vadd.f32 0.0, %v1301
      %v1303 = vpop.f32.mrf.mxu0
      %v1304 = vpop.f32.mrf.mxu0
      %v1305 = vadd.f32 0.0, %v1304
      %v1306 = vpop.f32.mrf.mxu0
      %1307 = vmatprep.mubr.bf16.mxu0 0
      %1308 = vmatmul.mubr.bf16.gmra.mxu0 %v931
      %v1309 = vpop.f32.mrf.mxu0
      %v1310 = vadd.f32 0.0, %v1309
      %v1311 = vpop.f32.mrf.mxu0
      %v1312 = vpop.f32.mrf.mxu0
      %v1313 = vpop.f32.mrf.mxu0
      %1314 = vdwg.mxu0
      %1315 = vst [vmem:[#allocation2] sm:$0xff] %v974
      %1316 = vst [vmem:[#allocation2 + $0x8] sm:$0xff] %v977
      %1317 = vst [vmem:[#allocation2 + $0x10] sm:$0xff] %v982
      %1318 = vst [vmem:[#allocation2 + $0x18] sm:$0xff] %v985
      %1319 = vst [vmem:[#allocation2 + $0x20] sm:$0xff] %v990
      %1320 = vst [vmem:[#allocation2 + $0x28] sm:$0xff] %v993
      %1321 = vst [vmem:[#allocation2 + $0x30] sm:$0xff] %v998
      %1322 = vst [vmem:[#allocation2 + $0x38] sm:$0xff] %v1001
      %1323 = vst [vmem:[#allocation2 + $0x40] sm:$0xff] %v1006
      %1324 = vst [vmem:[#allocation2 + $0x48] sm:$0xff] %v1009
      %1325 = vst [vmem:[#allocation2 + $0x50] sm:$0xff] %v1014
      %1326 = vst [vmem:[#allocation2 + $0x58] sm:$0xff] %v1017
      %1327 = vst [vmem:[#allocation2 + $0x60] sm:$0xff] %v1022
      %1328 = vst [vmem:[#allocation2 + $0x68] sm:$0xff] %v1025
      %1329 = vst [vmem:[#allocation2 + $0x70] sm:$0xff] %v1030
      %1330 = vst [vmem:[#allocation2 + $0x78] sm:$0xff] %v1033
      %1331 = vst [vmem:[#allocation2 + $0x80] sm:$0xff] %v1038
      %1332 = vst [vmem:[#allocation2 + $0x88] sm:$0xff] %v1041
      %1333 = vst [vmem:[#allocation2 + $0x90] sm:$0xff] %v1046
      %1334 = vst [vmem:[#allocation2 + $0x98] sm:$0xff] %v1049
      %1335 = vst [vmem:[#allocation2 + $0xa0] sm:$0xff] %v1054
      %1336 = vst [vmem:[#allocation2 + $0xa8] sm:$0xff] %v1057
      %1337 = vst [vmem:[#allocation2 + $0xb0] sm:$0xff] %v1062
      %1338 = vst [vmem:[#allocation2 + $0xb8] sm:$0xff] %v1065
      %1339 = vst [vmem:[#allocation2 + $0xc0] sm:$0xff] %v1070
      %1340 = vst [vmem:[#allocation2 + $0xc8] sm:$0xff] %v1073
      %1341 = vst [vmem:[#allocation2 + $0xd0] sm:$0xff] %v1078
      %1342 = vst [vmem:[#allocation2 + $0xd8] sm:$0xff] %v1081
      %1343 = vst [vmem:[#allocation2 + $0xe0] sm:$0xff] %v1086
      %1344 = vst [vmem:[#allocation2 + $0xe8] sm:$0xff] %v1089
      %1345 = vst [vmem:[#allocation2 + $0xf0] sm:$0xff] %v1094
      %1346 = vst [vmem:[#allocation2 + $0xf8] sm:$0xff] %v1097
      %1347 = vst [vmem:[#allocation2 + $0x100] sm:$0xff] %v1102
      %1348 = vst [vmem:[#allocation2 + $0x108] sm:$0xff] %v1105
      %1349 = vst [vmem:[#allocation2 + $0x110] sm:$0xff] %v1110
      %1350 = vst [vmem:[#allocation2 + $0x118] sm:$0xff] %v1113
      %1351 = vst [vmem:[#allocation2 + $0x120] sm:$0xff] %v1118
      %1352 = vst [vmem:[#allocation2 + $0x128] sm:$0xff] %v1121
      %1353 = vst [vmem:[#allocation2 + $0x130] sm:$0xff] %v1126
      %1354 = vst [vmem:[#allocation2 + $0x138] sm:$0xff] %v1129
      %1355 = vst [vmem:[#allocation2 + $0x140] sm:$0xff] %v1134
      %1356 = vst [vmem:[#allocation2 + $0x148] sm:$0xff] %v1137
      %1357 = vst [vmem:[#allocation2 + $0x150] sm:$0xff] %v1142
      %1358 = vst [vmem:[#allocation2 + $0x158] sm:$0xff] %v1145
      %1359 = vst [vmem:[#allocation2 + $0x160] sm:$0xff] %v1150
      %1360 = vst [vmem:[#allocation2 + $0x168] sm:$0xff] %v1153
      %1361 = vst [vmem:[#allocation2 + $0x170] sm:$0xff] %v1158
      %1362 = vst [vmem:[#allocation2 + $0x178] sm:$0xff] %v1161
      %1363 = vst [vmem:[#allocation2 + $0x180] sm:$0xff] %v1166
      %1364 = vst [vmem:[#allocation2 + $0x188] sm:$0xff] %v1169
      %1365 = vst [vmem:[#allocation2 + $0x190] sm:$0xff] %v1174
      %1366 = vst [vmem:[#allocation2 + $0x198] sm:$0xff] %v1177
      %1367 = vst [vmem:[#allocation2 + $0x1a0] sm:$0xff] %v1182
      %1368 = vst [vmem:[#allocation2 + $0x1a8] sm:$0xff] %v1185
      %1369 = vst [vmem:[#allocation2 + $0x1b0] sm:$0xff] %v1190
      %1370 = vst [vmem:[#allocation2 + $0x1b8] sm:$0xff] %v1193
      %1371 = vst [vmem:[#allocation2 + $0x1c0] sm:$0xff] %v1198
      %1372 = vst [vmem:[#allocation2 + $0x1c8] sm:$0xff] %v1201
      %1373 = vst [vmem:[#allocation2 + $0x1d0] sm:$0xff] %v1206
      %1374 = vst [vmem:[#allocation2 + $0x1d8] sm:$0xff] %v1209
      %1375 = vst [vmem:[#allocation2 + $0x1e0] sm:$0xff] %v1214
      %1376 = vst [vmem:[#allocation2 + $0x1e8] sm:$0xff] %v1217
      %1377 = vst [vmem:[#allocation2 + $0x1f0] sm:$0xff] %v1222
      %1378 = vst [vmem:[#allocation2 + $0x1f8] sm:$0xff] %v1225
      %1379 = vst [vmem:[#allocation2 + $0x200] sm:$0xff] %v1230
      %1380 = vst [vmem:[#allocation2 + $0x208] sm:$0xff] %v1233
      %1381 = vst [vmem:[#allocation2 + $0x210] sm:$0xff] %v1238
      %1382 = vst [vmem:[#allocation2 + $0x218] sm:$0xff] %v1241
      %1383 = vst [vmem:[#allocation2 + $0x220] sm:$0xff] %v1246
      %1384 = vst [vmem:[#allocation2 + $0x228] sm:$0xff] %v1249
      %1385 = vst [vmem:[#allocation2 + $0x230] sm:$0xff] %v1254
      %1386 = vst [vmem:[#allocation2 + $0x238] sm:$0xff] %v1257
      %1387 = vst [vmem:[#allocation2 + $0x240] sm:$0xff] %v1262
      %1388 = vst [vmem:[#allocation2 + $0x248] sm:$0xff] %v1265
      %1389 = vst [vmem:[#allocation2 + $0x250] sm:$0xff] %v1270
      %1390 = vst [vmem:[#allocation2 + $0x258] sm:$0xff] %v1273
      %1391 = vst [vmem:[#allocation2 + $0x260] sm:$0xff] %v1278
      %1392 = vst [vmem:[#allocation2 + $0x268] sm:$0xff] %v1281
      %1393 = vst [vmem:[#allocation2 + $0x270] sm:$0xff] %v1286
      %1394 = vst [vmem:[#allocation2 + $0x278] sm:$0xff] %v1289
      %1395 = vst [vmem:[#allocation2 + $0x280] sm:$0xff] %v1294
      %1396 = vst [vmem:[#allocation2 + $0x288] sm:$0xff] %v1297
      %1397 = vst [vmem:[#allocation2 + $0x290] sm:$0xff] %v1302
      %1398 = vst [vmem:[#allocation2 + $0x298] sm:$0xff] %v1305
      %1399 = vst [vmem:[#allocation2 + $0x2a0] sm:$0xff] %v1310
      %v1400 = vmul.f32 %v483, 0.032258064
      %v1401 = vmul.f32 %v483, 0.5
      %v1402 = vsub.f32 %v484, %v1401
      %v1403 = vlaneseq
      %v1404 = vshrl.u32 %v1403, 7
      %v1405 = vadd.s32 %v1404, 8
      %v1406 = vadd.s32 %v1404, 16
      %v1407 = vadd.s32 %v1404, 24
      %v1408 = vcvt.s32.f32 %v1404
      %v1409 = vcvt.s32.f32 %v1405
      %v1410 = vcvt.s32.f32 %v1406
      %v1411 = vcvt.s32.f32 %v1407
      %v1412 = vlaneseq
      %v1413 = vshrl.u32 %v1412, 7
      %v1414 = vsub.s32 0, %v1413
      %v1415 = vrot.slane %v1400, %v1414
      %v1416 = vmul.f32 %v1408, %v1415
      %v1417 = vmul.f32 %v1409, %v1415
      %v1418 = vmul.f32 %v1410, %v1415
      %v1419 = vmul.f32 %v1411, %v1415
      %v1420 = vlaneseq
      %v1421 = vshrl.u32 %v1420, 7
      %v1422 = vsub.s32 0, %v1421
      %v1423 = vrot.slane %v1402, %v1422
      %v1424 = vadd.f32 %v1416, %v1423
      %v1425 = vadd.f32 %v1417, %v1423
      %v1426 = vadd.f32 %v1418, %v1423
      %v1427 = vadd.f32 %v1419, %v1423
      %v1428 = vand.u32 2147483647, %v1424
      %vm1429 = vcmp.le.f32.partialorder %v1428, 0.7853982
      %vm1430 = vcmp.lt.s32.totalorder %v1424, 0
      %v1431 = vand.u32 %v1424, 2139095040
      %v1432 = vshrl.u32 %v1431, 23
      %v1433 = vsub.s32 %v1432, 127
      %v1434 = vand.u32 2147483647, %v1424
      %v1435 = vand.u32 %v1434, 8388607
      %v1436 = vor.u32 %v1435, 8388608
      %v1437 = vsub.s32 0, %v1436
      %v1438 = vadd.s32 %v1433, 1
      %vm1439 = vcmp.gt.s32.totalorder %v1438, 0
      %v1440 = vsel %vm1439, %v1438, 0
      %v1441 = vshrl.u32 %v1440, 5
      %v1442 = vand.u32 %v1440, 31
      %v1443 = vsub.s32 32, %v1442
      %v1444 = vshrl.u32 683565275, %v1443
      %v1445 = vshll.u32 683565275, %v1442
      %v1446 = vshrl.u32 2475754826, %v1443
      %v1447 = vor.u32 %v1445, %v1446
      %v1448 = vshll.u32 2475754826, %v1442
      %v1449 = vshrl.u32 2131351028, %v1443
      %v1450 = vor.u32 %v1448, %v1449
      %v1451 = vshll.u32 2131351028, %v1442
      %v1452 = vshrl.u32 2102212464, %v1443
      %v1453 = vor.u32 %v1451, %v1452
      %v1454 = vshll.u32 2102212464, %v1442
      %v1455 = vshrl.u32 920167782, %v1443
      %v1456 = vor.u32 %v1454, %v1455
      %v1457 = vshll.u32 920167782, %v1442
      %v1458 = vshrl.u32 1326507024, %v1443
      %v1459 = vor.u32 %v1457, %v1458
      %vm1460 = vcmp.lt.s32.totalorder %v1441, 1
      %vm1461 = vcmp.lt.s32.totalorder %v1441, 2
      %vm1462 = vcmp.lt.s32.totalorder %v1441, 3
      %vm1463 = vcmp.lt.s32.totalorder %v1441, 4
      %v1464 = vsel %vm1460, %v1444, %v1447
      %v1465 = vsel %vm1463, %v1453, 2102212464
      %v1466 = vsel %vm1462, %v1450, %v1465
      %v1467 = vsel %vm1461, %v1464, %v1466
      %v1468 = vsel %vm1460, %v1447, %v1450
      %v1469 = vsel %vm1463, %v1456, 920167782
      %v1470 = vsel %vm1462, %v1453, %v1469
      %v1471 = vsel %vm1461, %v1468, %v1470
      %v1472 = vsel %vm1460, %v1450, %v1453
      %v1473 = vsel %vm1463, %v1459, 1326507024
      %v1474 = vsel %vm1462, %v1456, %v1473
      %v1475 = vsel %vm1461, %v1472, %v1474
      %v1476 = vshll.u32 %v1436, 8
      %v1477 = vmul.u32.u64.compose %v1476, %v1475
      %v1478 = vextract.low.u32 %v1477
      %v1479 = vextract.high.u32 %v1477
      %v1480 = vmul.u32.u64.compose %v1476, %v1471
      %v1481 = vextract.low.u32 %v1480
      %v1482 = vextract.high.u32 %v1480
      %v1483 = vmul.u32 %v1476, %v1467
      %v1484 = vadd.s32 %v1479, %v1481
      %vm1485 = vc.u32 %v1479, %v1481
      %v1486 = vadd.s32 %v1482, 1
      %v1487 = vsel %vm1485, %v1486, %v1482
      %v1488 = vadd.s32 %v1483, %v1487
      %v1489 = vadd.s32 %v1488, 536870912
      %v1490 = vshrl.u32 %v1489, 30
      %v1491 = vshll.u32 %v1490, 30
      %v1492 = vsub.s32 %v1488, %v1491
      %vm1493 = vcmp.lt.s32.totalorder %v1492, 0
      %v1494 = vsub.s32 0, %v1492
      %v1495 = vsel %vm1493, %v1494, %v1492
      %v1496 = vclz %v1495
      %v1497 = vsub.s32 %v1496, 2
      %vm1498 = vcmp.gt.s32.totalorder 0, %v1497
      %v1499 = vsel %vm1498, 0, %v1497
      %v1500 = vsub.s32 32, %v1499
      %v1501 = vshll.u32 %v1492, %v1499
      %v1502 = vshrl.u32 %v1484, %v1500
      %v1503 = vor.u32 %v1501, %v1502
      %v1504 = vsub.s32 4294967266, %v1499
      %v1505 = vadd.s32 %v1504, 127
      %v1506 = vshll.u32 %v1505, 23
      %v1507 = vor.u32 4788187, %v1506
      %v1508 = vand.u32 2147483647, %v1507
      %v1510 = vcvt.s32.f32 %v1503
      %v1511 = vmul.f32 %v1510, %v1508
      %v1512 = vxor.u32 %v1511, 2147483648
      %v1513 = vsel %vm1430, %v1512, %v1511
      %v1514 = vsub.s32 4, %v1490
      %v1515 = vsel %vm1430, %v1514, %v1490
      %v1516 = vsel %vm1429, %v1424, %v1513
      %v1517 = vsel %vm1429, 0, %v1515
      %v1518 = vcosq.f32.pop %v1516
      %v1519 = vsinq.f32.pop %v1516
      %vm1520 = vweird.f32 %v1424
      %v1521 = vand.u32 %v1517, 3
      %vm1522 = vcmp.lt.s32.totalorder %v1521, 2
      %vm1523 = vcmp.eq.s32.totalorder %v1521, 0
      %v1524 = vxor.u32 %v1519, 2147483648
      %v1525 = vsel %vm1523, %v1518, %v1524
      %vm1526 = vcmp.eq.s32.totalorder %v1521, 2
      %v1527 = vxor.u32 %v1518, 2147483648
      %v1528 = vsel %vm1526, %v1527, %v1519
      %v1529 = vsel %vm1522, %v1525, %v1528
      %v1530 = vsel %vm1520, nan, %v1529
      %v1531 = vand.u32 2147483647, %v1425
      %vm1532 = vcmp.le.f32.partialorder %v1531, 0.7853982
      %vm1533 = vcmp.lt.s32.totalorder %v1425, 0
      %v1534 = vand.u32 %v1425, 2139095040
      %v1535 = vshrl.u32 %v1534, 23
      %v1536 = vsub.s32 %v1535, 127
      %v1537 = vand.u32 2147483647, %v1425
      %v1538 = vand.u32 %v1537, 8388607
      %v1539 = vor.u32 %v1538, 8388608
      %v1540 = vsub.s32 0, %v1539
      %v1541 = vadd.s32 %v1536, 1
      %vm1542 = vcmp.gt.s32.totalorder %v1541, 0
      %v1543 = vsel %vm1542, %v1541, 0
      %v1544 = vshrl.u32 %v1543, 5
      %v1545 = vand.u32 %v1543, 31
      %v1546 = vsub.s32 32, %v1545
      %v1547 = vshrl.u32 683565275, %v1546
      %v1548 = vshll.u32 683565275, %v1545
      %v1549 = vshrl.u32 2475754826, %v1546
      %v1550 = vor.u32 %v1548, %v1549
      %v1551 = vshll.u32 2475754826, %v1545
      %v1552 = vshrl.u32 2131351028, %v1546
      %v1553 = vor.u32 %v1551, %v1552
      %v1554 = vshll.u32 2131351028, %v1545
      %v1555 = vshrl.u32 2102212464, %v1546
      %v1556 = vor.u32 %v1554, %v1555
      %v1557 = vshll.u32 2102212464, %v1545
      %v1558 = vshrl.u32 920167782, %v1546
      %v1559 = vor.u32 %v1557, %v1558
      %v1560 = vshll.u32 920167782, %v1545
      %v1561 = vshrl.u32 1326507024, %v1546
      %v1562 = vor.u32 %v1560, %v1561
      %vm1563 = vcmp.lt.s32.totalorder %v1544, 1
      %vm1564 = vcmp.lt.s32.totalorder %v1544, 2
      %vm1565 = vcmp.lt.s32.totalorder %v1544, 3
      %vm1566 = vcmp.lt.s32.totalorder %v1544, 4
      %v1567 = vsel %vm1563, %v1547, %v1550
      %v1568 = vsel %vm1566, %v1556, 2102212464
      %v1569 = vsel %vm1565, %v1553, %v1568
      %v1570 = vsel %vm1564, %v1567, %v1569
      %v1571 = vsel %vm1563, %v1550, %v1553
      %v1572 = vsel %vm1566, %v1559, 920167782
      %v1573 = vsel %vm1565, %v1556, %v1572
      %v1574 = vsel %vm1564, %v1571, %v1573
      %v1575 = vsel %vm1563, %v1553, %v1556
      %v1576 = vsel %vm1566, %v1562, 1326507024
      %v1577 = vsel %vm1565, %v1559, %v1576
      %v1578 = vsel %vm1564, %v1575, %v1577
      %v1579 = vshll.u32 %v1539, 8
      %v1580 = vmul.u32.u64.compose %v1579, %v1578
      %v1581 = vextract.low.u32 %v1580
      %v1582 = vextract.high.u32 %v1580
      %v1583 = vmul.u32.u64.compose %v1579, %v1574
      %v1584 = vextract.low.u32 %v1583
      %v1585 = vextract.high.u32 %v1583
      %v1586 = vmul.u32 %v1579, %v1570
      %v1587 = vadd.s32 %v1582, %v1584
      %vm1588 = vc.u32 %v1582, %v1584
      %v1589 = vadd.s32 %v1585, 1
      %v1590 = vsel %vm1588, %v1589, %v1585
      %v1591 = vadd.s32 %v1586, %v1590
      %v1592 = vadd.s32 %v1591, 536870912
      %v1593 = vshrl.u32 %v1592, 30
      %v1594 = vshll.u32 %v1593, 30
      %v1595 = vsub.s32 %v1591, %v1594
      %vm1596 = vcmp.lt.s32.totalorder %v1595, 0
      %v1597 = vsub.s32 0, %v1595
      %v1598 = vsel %vm1596, %v1597, %v1595
      %v1599 = vclz %v1598
      %v1600 = vsub.s32 %v1599, 2
      %vm1601 = vcmp.gt.s32.totalorder 0, %v1600
      %v1602 = vsel %vm1601, 0, %v1600
      %v1603 = vsub.s32 32, %v1602
      %v1604 = vshll.u32 %v1595, %v1602
      %v1605 = vshrl.u32 %v1587, %v1603
      %v1606 = vor.u32 %v1604, %v1605
      %v1607 = vsub.s32 4294967266, %v1602
      %v1608 = vadd.s32 %v1607, 127
      %v1609 = vshll.u32 %v1608, 23
      %v1610 = vor.u32 4788187, %v1609
      %v1611 = vand.u32 2147483647, %v1610
      %v1613 = vcvt.s32.f32 %v1606
      %v1614 = vmul.f32 %v1613, %v1611
      %v1615 = vxor.u32 %v1614, 2147483648
      %v1616 = vsel %vm1533, %v1615, %v1614
      %v1617 = vsub.s32 4, %v1593
      %v1618 = vsel %vm1533, %v1617, %v1593
      %v1619 = vsel %vm1532, %v1425, %v1616
      %v1620 = vsel %vm1532, 0, %v1618
      %v1621 = vcosq.f32.pop %v1619
      %v1622 = vsinq.f32.pop %v1619
      %vm1623 = vweird.f32 %v1425
      %v1624 = vand.u32 %v1620, 3
      %vm1625 = vcmp.lt.s32.totalorder %v1624, 2
      %vm1626 = vcmp.eq.s32.totalorder %v1624, 0
      %v1627 = vxor.u32 %v1622, 2147483648
      %v1628 = vsel %vm1626, %v1621, %v1627
      %vm1629 = vcmp.eq.s32.totalorder %v1624, 2
      %v1630 = vxor.u32 %v1621, 2147483648
      %v1631 = vsel %vm1629, %v1630, %v1622
      %v1632 = vsel %vm1625, %v1628, %v1631
      %v1633 = vsel %vm1623, nan, %v1632
      %v1634 = vand.u32 2147483647, %v1426
      %vm1635 = vcmp.le.f32.partialorder %v1634, 0.7853982
      %vm1636 = vcmp.lt.s32.totalorder %v1426, 0
      %v1637 = vand.u32 %v1426, 2139095040
      %v1638 = vshrl.u32 %v1637, 23
      %v1639 = vsub.s32 %v1638, 127
      %v1640 = vand.u32 2147483647, %v1426
      %v1641 = vand.u32 %v1640, 8388607
      %v1642 = vor.u32 %v1641, 8388608
      %v1643 = vsub.s32 0, %v1642
      %v1644 = vadd.s32 %v1639, 1
      %vm1645 = vcmp.gt.s32.totalorder %v1644, 0
      %v1646 = vsel %vm1645, %v1644, 0
      %v1647 = vshrl.u32 %v1646, 5
      %v1648 = vand.u32 %v1646, 31
      %v1649 = vsub.s32 32, %v1648
      %v1650 = vshrl.u32 683565275, %v1649
      %v1651 = vshll.u32 683565275, %v1648
      %v1652 = vshrl.u32 2475754826, %v1649
      %v1653 = vor.u32 %v1651, %v1652
      %v1654 = vshll.u32 2475754826, %v1648
      %v1655 = vshrl.u32 2131351028, %v1649
      %v1656 = vor.u32 %v1654, %v1655
      %v1657 = vshll.u32 2131351028, %v1648
      %v1658 = vshrl.u32 2102212464, %v1649
      %v1659 = vor.u32 %v1657, %v1658
      %v1660 = vshll.u32 2102212464, %v1648
      %v1661 = vshrl.u32 920167782, %v1649
      %v1662 = vor.u32 %v1660, %v1661
      %v1663 = vshll.u32 920167782, %v1648
      %v1664 = vshrl.u32 1326507024, %v1649
      %v1665 = vor.u32 %v1663, %v1664
      %vm1666 = vcmp.lt.s32.totalorder %v1647, 1
      %vm1667 = vcmp.lt.s32.totalorder %v1647, 2
      %vm1668 = vcmp.lt.s32.totalorder %v1647, 3
      %vm1669 = vcmp.lt.s32.totalorder %v1647, 4
      %v1670 = vsel %vm1666, %v1650, %v1653
      %v1671 = vsel %vm1669, %v1659, 2102212464
      %v1672 = vsel %vm1668, %v1656, %v1671
      %v1673 = vsel %vm1667, %v1670, %v1672
      %v1674 = vsel %vm1666, %v1653, %v1656
      %v1675 = vsel %vm1669, %v1662, 920167782
      %v1676 = vsel %vm1668, %v1659, %v1675
      %v1677 = vsel %vm1667, %v1674, %v1676
      %v1678 = vsel %vm1666, %v1656, %v1659
      %v1679 = vsel %vm1669, %v1665, 1326507024
      %v1680 = vsel %vm1668, %v1662, %v1679
      %v1681 = vsel %vm1667, %v1678, %v1680
      %v1682 = vshll.u32 %v1642, 8
      %v1683 = vmul.u32.u64.compose %v1682, %v1681
      %v1684 = vextract.low.u32 %v1683
      %v1685 = vextract.high.u32 %v1683
      %v1686 = vmul.u32.u64.compose %v1682, %v1677
      %v1687 = vextract.low.u32 %v1686
      %v1688 = vextract.high.u32 %v1686
      %v1689 = vmul.u32 %v1682, %v1673
      %v1690 = vadd.s32 %v1685, %v1687
      %vm1691 = vc.u32 %v1685, %v1687
      %v1692 = vadd.s32 %v1688, 1
      %v1693 = vsel %vm1691, %v1692, %v1688
      %v1694 = vadd.s32 %v1689, %v1693
      %v1695 = vadd.s32 %v1694, 536870912
      %v1696 = vshrl.u32 %v1695, 30
      %v1697 = vshll.u32 %v1696, 30
      %v1698 = vsub.s32 %v1694, %v1697
      %vm1699 = vcmp.lt.s32.totalorder %v1698, 0
      %v1700 = vsub.s32 0, %v1698
      %v1701 = vsel %vm1699, %v1700, %v1698
      %v1702 = vclz %v1701
      %v1703 = vsub.s32 %v1702, 2
      %vm1704 = vcmp.gt.s32.totalorder 0, %v1703
      %v1705 = vsel %vm1704, 0, %v1703
      %v1706 = vsub.s32 32, %v1705
      %v1707 = vshll.u32 %v1698, %v1705
      %v1708 = vshrl.u32 %v1690, %v1706
      %v1709 = vor.u32 %v1707, %v1708
      %v1710 = vsub.s32 4294967266, %v1705
      %v1711 = vadd.s32 %v1710, 127
      %v1712 = vshll.u32 %v1711, 23
      %v1713 = vor.u32 4788187, %v1712
      %v1714 = vand.u32 2147483647, %v1713
      %v1716 = vcvt.s32.f32 %v1709
      %v1717 = vmul.f32 %v1716, %v1714
      %v1718 = vxor.u32 %v1717, 2147483648
      %v1719 = vsel %vm1636, %v1718, %v1717
      %v1720 = vsub.s32 4, %v1696
      %v1721 = vsel %vm1636, %v1720, %v1696
      %v1722 = vsel %vm1635, %v1426, %v1719
      %v1723 = vsel %vm1635, 0, %v1721
      %v1724 = vcosq.f32.pop %v1722
      %v1725 = vsinq.f32.pop %v1722
      %vm1726 = vweird.f32 %v1426
      %v1727 = vand.u32 %v1723, 3
      %vm1728 = vcmp.lt.s32.totalorder %v1727, 2
      %vm1729 = vcmp.eq.s32.totalorder %v1727, 0
      %v1730 = vxor.u32 %v1725, 2147483648
      %v1731 = vsel %vm1729, %v1724, %v1730
      %vm1732 = vcmp.eq.s32.totalorder %v1727, 2
      %v1733 = vxor.u32 %v1724, 2147483648
      %v1734 = vsel %vm1732, %v1733, %v1725
      %v1735 = vsel %vm1728, %v1731, %v1734
      %v1736 = vsel %vm1726, nan, %v1735
      %v1737 = vand.u32 2147483647, %v1427
      %vm1738 = vcmp.le.f32.partialorder %v1737, 0.7853982
      %vm1739 = vcmp.lt.s32.totalorder %v1427, 0
      %v1740 = vand.u32 %v1427, 2139095040
      %v1741 = vshrl.u32 %v1740, 23
      %v1742 = vsub.s32 %v1741, 127
      %v1743 = vand.u32 2147483647, %v1427
      %v1744 = vand.u32 %v1743, 8388607
      %v1745 = vor.u32 %v1744, 8388608
      %v1746 = vsub.s32 0, %v1745
      %v1747 = vadd.s32 %v1742, 1
      %vm1748 = vcmp.gt.s32.totalorder %v1747, 0
      %v1749 = vsel %vm1748, %v1747, 0
      %v1750 = vshrl.u32 %v1749, 5
      %v1751 = vand.u32 %v1749, 31
      %v1752 = vsub.s32 32, %v1751
      %v1753 = vshrl.u32 683565275, %v1752
      %v1754 = vshll.u32 683565275, %v1751
      %v1755 = vshrl.u32 2475754826, %v1752
      %v1756 = vor.u32 %v1754, %v1755
      %v1757 = vshll.u32 2475754826, %v1751
      %v1758 = vshrl.u32 2131351028, %v1752
      %v1759 = vor.u32 %v1757, %v1758
      %v1760 = vshll.u32 2131351028, %v1751
      %v1761 = vshrl.u32 2102212464, %v1752
      %v1762 = vor.u32 %v1760, %v1761
      %v1763 = vshll.u32 2102212464, %v1751
      %v1764 = vshrl.u32 920167782, %v1752
      %v1765 = vor.u32 %v1763, %v1764
      %v1766 = vshll.u32 920167782, %v1751
      %v1767 = vshrl.u32 1326507024, %v1752
      %v1768 = vor.u32 %v1766, %v1767
      %vm1769 = vcmp.lt.s32.totalorder %v1750, 1
      %vm1770 = vcmp.lt.s32.totalorder %v1750, 2
      %vm1771 = vcmp.lt.s32.totalorder %v1750, 3
      %vm1772 = vcmp.lt.s32.totalorder %v1750, 4
      %v1773 = vsel %vm1769, %v1753, %v1756
      %v1774 = vsel %vm1772, %v1762, 2102212464
      %v1775 = vsel %vm1771, %v1759, %v1774
      %v1776 = vsel %vm1770, %v1773, %v1775
      %v1777 = vsel %vm1769, %v1756, %v1759
      %v1778 = vsel %vm1772, %v1765, 920167782
      %v1779 = vsel %vm1771, %v1762, %v1778
      %v1780 = vsel %vm1770, %v1777, %v1779
      %v1781 = vsel %vm1769, %v1759, %v1762
      %v1782 = vsel %vm1772, %v1768, 1326507024
      %v1783 = vsel %vm1771, %v1765, %v1782
      %v1784 = vsel %vm1770, %v1781, %v1783
      %v1785 = vshll.u32 %v1745, 8
      %v1786 = vmul.u32.u64.compose %v1785, %v1784
      %v1787 = vextract.low.u32 %v1786
      %v1788 = vextract.high.u32 %v1786
      %v1789 = vmul.u32.u64.compose %v1785, %v1780
      %v1790 = vextract.low.u32 %v1789
      %v1791 = vextract.high.u32 %v1789
      %v1792 = vmul.u32 %v1785, %v1776
      %v1793 = vadd.s32 %v1788, %v1790
      %vm1794 = vc.u32 %v1788, %v1790
      %v1795 = vadd.s32 %v1791, 1
      %v1796 = vsel %vm1794, %v1795, %v1791
      %v1797 = vadd.s32 %v1792, %v1796
      %v1798 = vadd.s32 %v1797, 536870912
      %v1799 = vshrl.u32 %v1798, 30
      %v1800 = vshll.u32 %v1799, 30
      %v1801 = vsub.s32 %v1797, %v1800
      %vm1802 = vcmp.lt.s32.totalorder %v1801, 0
      %v1803 = vsub.s32 0, %v1801
      %v1804 = vsel %vm1802, %v1803, %v1801
      %v1805 = vclz %v1804
      %v1806 = vsub.s32 %v1805, 2
      %vm1807 = vcmp.gt.s32.totalorder 0, %v1806
      %v1808 = vsel %vm1807, 0, %v1806
      %v1809 = vsub.s32 32, %v1808
      %v1810 = vshll.u32 %v1801, %v1808
      %v1811 = vshrl.u32 %v1793, %v1809
      %v1812 = vor.u32 %v1810, %v1811
      %v1813 = vsub.s32 4294967266, %v1808
      %v1814 = vadd.s32 %v1813, 127
      %v1815 = vshll.u32 %v1814, 23
      %v1816 = vor.u32 4788187, %v1815
      %v1817 = vand.u32 2147483647, %v1816
      %v1819 = vcvt.s32.f32 %v1812
      %v1820 = vmul.f32 %v1819, %v1817
      %v1821 = vxor.u32 %v1820, 2147483648
      %v1822 = vsel %vm1739, %v1821, %v1820
      %v1823 = vsub.s32 4, %v1799
      %v1824 = vsel %vm1739, %v1823, %v1799
      %v1825 = vsel %vm1738, %v1427, %v1822
      %v1826 = vsel %vm1738, 0, %v1824
      %v1827 = vcosq.f32.pop %v1825
      %v1828 = vsinq.f32.pop %v1825
      %vm1829 = vweird.f32 %v1427
      %v1830 = vand.u32 %v1826, 3
      %vm1831 = vcmp.lt.s32.totalorder %v1830, 2
      %vm1832 = vcmp.eq.s32.totalorder %v1830, 0
      %v1833 = vxor.u32 %v1828, 2147483648
      %v1834 = vsel %vm1832, %v1827, %v1833
      %vm1835 = vcmp.eq.s32.totalorder %v1830, 2
      %v1836 = vxor.u32 %v1827, 2147483648
      %v1837 = vsel %vm1835, %v1836, %v1828
      %v1838 = vsel %vm1831, %v1834, %v1837
      %v1839 = vsel %vm1829, nan, %v1838
      %1840 = vst [vmem:[#allocation3] sm:$0xff] %v1530
      %1841 = vst [vmem:[#allocation3 + $0x8] sm:$0xff] %v1633
      %1842 = vst [vmem:[#allocation3 + $0x10] sm:$0xff] %v1736
      %1843 = vst [vmem:[#allocation3 + $0x18] sm:$0xff] %v1839
      %v1844 = vand.u32 2147483647, %v1424
      %vm1845 = vcmp.le.f32.partialorder %v1844, 0.7853982
      %vm1846 = vcmp.lt.s32.totalorder %v1424, 0
      %v1847 = vand.u32 %v1424, 2139095040
      %v1848 = vshrl.u32 %v1847, 23
      %v1849 = vsub.s32 %v1848, 127
      %v1850 = vand.u32 2147483647, %v1424
      %v1851 = vand.u32 %v1850, 8388607
      %v1852 = vor.u32 %v1851, 8388608
      %v1853 = vsub.s32 0, %v1852
      %v1854 = vadd.s32 %v1849, 1
      %vm1855 = vcmp.gt.s32.totalorder %v1854, 0
      %v1856 = vsel %vm1855, %v1854, 0
      %v1857 = vshrl.u32 %v1856, 5
      %v1858 = vand.u32 %v1856, 31
      %v1859 = vsub.s32 32, %v1858
      %v1860 = vshrl.u32 683565275, %v1859
      %v1861 = vshll.u32 683565275, %v1858
      %v1862 = vshrl.u32 2475754826, %v1859
      %v1863 = vor.u32 %v1861, %v1862
      %v1864 = vshll.u32 2475754826, %v1858
      %v1865 = vshrl.u32 2131351028, %v1859
      %v1866 = vor.u32 %v1864, %v1865
      %v1867 = vshll.u32 2131351028, %v1858
      %v1868 = vshrl.u32 2102212464, %v1859
      %v1869 = vor.u32 %v1867, %v1868
      %v1870 = vshll.u32 2102212464, %v1858
      %v1871 = vshrl.u32 920167782, %v1859
      %v1872 = vor.u32 %v1870, %v1871
      %v1873 = vshll.u32 920167782, %v1858
      %v1874 = vshrl.u32 1326507024, %v1859
      %v1875 = vor.u32 %v1873, %v1874
      %vm1876 = vcmp.lt.s32.totalorder %v1857, 1
      %vm1877 = vcmp.lt.s32.totalorder %v1857, 2
      %vm1878 = vcmp.lt.s32.totalorder %v1857, 3
      %vm1879 = vcmp.lt.s32.totalorder %v1857, 4
      %v1880 = vsel %vm1876, %v1860, %v1863
      %v1881 = vsel %vm1879, %v1869, 2102212464
      %v1882 = vsel %vm1878, %v1866, %v1881
      %v1883 = vsel %vm1877, %v1880, %v1882
      %v1884 = vsel %vm1876, %v1863, %v1866
      %v1885 = vsel %vm1879, %v1872, 920167782
      %v1886 = vsel %vm1878, %v1869, %v1885
      %v1887 = vsel %vm1877, %v1884, %v1886
      %v1888 = vsel %vm1876, %v1866, %v1869
      %v1889 = vsel %vm1879, %v1875, 1326507024
      %v1890 = vsel %vm1878, %v1872, %v1889
      %v1891 = vsel %vm1877, %v1888, %v1890
      %v1892 = vshll.u32 %v1852, 8
      %v1893 = vmul.u32.u64.compose %v1892, %v1891
      %v1894 = vextract.low.u32 %v1893
      %v1895 = vextract.high.u32 %v1893
      %v1896 = vmul.u32.u64.compose %v1892, %v1887
      %v1897 = vextract.low.u32 %v1896
      %v1898 = vextract.high.u32 %v1896
      %v1899 = vmul.u32 %v1892, %v1883
      %v1900 = vadd.s32 %v1895, %v1897
      %vm1901 = vc.u32 %v1895, %v1897
      %v1902 = vadd.s32 %v1898, 1
      %v1903 = vsel %vm1901, %v1902, %v1898
      %v1904 = vadd.s32 %v1899, %v1903
      %v1905 = vadd.s32 %v1904, 536870912
      %v1906 = vshrl.u32 %v1905, 30
      %v1907 = vshll.u32 %v1906, 30
      %v1908 = vsub.s32 %v1904, %v1907
      %vm1909 = vcmp.lt.s32.totalorder %v1908, 0
      %v1910 = vsub.s32 0, %v1908
      %v1911 = vsel %vm1909, %v1910, %v1908
      %v1912 = vclz %v1911
      %v1913 = vsub.s32 %v1912, 2
      %vm1914 = vcmp.gt.s32.totalorder 0, %v1913
      %v1915 = vsel %vm1914, 0, %v1913
      %v1916 = vsub.s32 32, %v1915
      %v1917 = vshll.u32 %v1908, %v1915
      %v1918 = vshrl.u32 %v1900, %v1916
      %v1919 = vor.u32 %v1917, %v1918
      %v1920 = vsub.s32 4294967266, %v1915
      %v1921 = vadd.s32 %v1920, 127
      %v1922 = vshll.u32 %v1921, 23
      %v1923 = vor.u32 4788187, %v1922
      %v1924 = vand.u32 2147483647, %v1923
      %v1926 = vcvt.s32.f32 %v1919
      %v1927 = vmul.f32 %v1926, %v1924
      %v1928 = vxor.u32 %v1927, 2147483648
      %v1929 = vsel %vm1846, %v1928, %v1927
      %v1930 = vsub.s32 4, %v1906
      %v1931 = vsel %vm1846, %v1930, %v1906
      %v1932 = vsel %vm1845, %v1424, %v1929
      %v1933 = vsel %vm1845, 0, %v1931
      %v1934 = vcosq.f32.pop %v1932
      %v1935 = vsinq.f32.pop %v1932
      %vm1936 = vweird.f32 %v1424
      %v1937 = vadd.s32 %v1933, 3
      %v1938 = vand.u32 %v1937, 3
      %vm1939 = vcmp.lt.s32.totalorder %v1938, 2
      %vm1940 = vcmp.eq.s32.totalorder %v1938, 0
      %v1941 = vxor.u32 %v1935, 2147483648
      %v1942 = vsel %vm1940, %v1934, %v1941
      %vm1943 = vcmp.eq.s32.totalorder %v1938, 2
      %v1944 = vxor.u32 %v1934, 2147483648
      %v1945 = vsel %vm1943, %v1944, %v1935
      %v1946 = vsel %vm1939, %v1942, %v1945
      %v1947 = vsel %vm1936, nan, %v1946
      %v1948 = vand.u32 2147483647, %v1425
      %vm1949 = vcmp.le.f32.partialorder %v1948, 0.7853982
      %vm1950 = vcmp.lt.s32.totalorder %v1425, 0
      %v1951 = vand.u32 %v1425, 2139095040
      %v1952 = vshrl.u32 %v1951, 23
      %v1953 = vsub.s32 %v1952, 127
      %v1954 = vand.u32 2147483647, %v1425
      %v1955 = vand.u32 %v1954, 8388607
      %v1956 = vor.u32 %v1955, 8388608
      %v1957 = vsub.s32 0, %v1956
      %v1958 = vadd.s32 %v1953, 1
      %vm1959 = vcmp.gt.s32.totalorder %v1958, 0
      %v1960 = vsel %vm1959, %v1958, 0
      %v1961 = vshrl.u32 %v1960, 5
      %v1962 = vand.u32 %v1960, 31
      %v1963 = vsub.s32 32, %v1962
      %v1964 = vshrl.u32 683565275, %v1963
      %v1965 = vshll.u32 683565275, %v1962
      %v1966 = vshrl.u32 2475754826, %v1963
      %v1967 = vor.u32 %v1965, %v1966
      %v1968 = vshll.u32 2475754826, %v1962
      %v1969 = vshrl.u32 2131351028, %v1963
      %v1970 = vor.u32 %v1968, %v1969
      %v1971 = vshll.u32 2131351028, %v1962
      %v1972 = vshrl.u32 2102212464, %v1963
      %v1973 = vor.u32 %v1971, %v1972
      %v1974 = vshll.u32 2102212464, %v1962
      %v1975 = vshrl.u32 920167782, %v1963
      %v1976 = vor.u32 %v1974, %v1975
      %v1977 = vshll.u32 920167782, %v1962
      %v1978 = vshrl.u32 1326507024, %v1963
      %v1979 = vor.u32 %v1977, %v1978
      %vm1980 = vcmp.lt.s32.totalorder %v1961, 1
      %vm1981 = vcmp.lt.s32.totalorder %v1961, 2
      %vm1982 = vcmp.lt.s32.totalorder %v1961, 3
      %vm1983 = vcmp.lt.s32.totalorder %v1961, 4
      %v1984 = vsel %vm1980, %v1964, %v1967
      %v1985 = vsel %vm1983, %v1973, 2102212464
      %v1986 = vsel %vm1982, %v1970, %v1985
      %v1987 = vsel %vm1981, %v1984, %v1986
      %v1988 = vsel %vm1980, %v1967, %v1970
      %v1989 = vsel %vm1983, %v1976, 920167782
      %v1990 = vsel %vm1982, %v1973, %v1989
      %v1991 = vsel %vm1981, %v1988, %v1990
      %v1992 = vsel %vm1980, %v1970, %v1973
      %v1993 = vsel %vm1983, %v1979, 1326507024
      %v1994 = vsel %vm1982, %v1976, %v1993
      %v1995 = vsel %vm1981, %v1992, %v1994
      %v1996 = vshll.u32 %v1956, 8
      %v1997 = vmul.u32.u64.compose %v1996, %v1995
      %v1998 = vextract.low.u32 %v1997
      %v1999 = vextract.high.u32 %v1997
      %v2000 = vmul.u32.u64.compose %v1996, %v1991
      %v2001 = vextract.low.u32 %v2000
      %v2002 = vextract.high.u32 %v2000
      %v2003 = vmul.u32 %v1996, %v1987
      %v2004 = vadd.s32 %v1999, %v2001
      %vm2005 = vc.u32 %v1999, %v2001
      %v2006 = vadd.s32 %v2002, 1
      %v2007 = vsel %vm2005, %v2006, %v2002
      %v2008 = vadd.s32 %v2003, %v2007
      %v2009 = vadd.s32 %v2008, 536870912
      %v2010 = vshrl.u32 %v2009, 30
      %v2011 = vshll.u32 %v2010, 30
      %v2012 = vsub.s32 %v2008, %v2011
      %vm2013 = vcmp.lt.s32.totalorder %v2012, 0
      %v2014 = vsub.s32 0, %v2012
      %v2015 = vsel %vm2013, %v2014, %v2012
      %v2016 = vclz %v2015
      %v2017 = vsub.s32 %v2016, 2
      %vm2018 = vcmp.gt.s32.totalorder 0, %v2017
      %v2019 = vsel %vm2018, 0, %v2017
      %v2020 = vsub.s32 32, %v2019
      %v2021 = vshll.u32 %v2012, %v2019
      %v2022 = vshrl.u32 %v2004, %v2020
      %v2023 = vor.u32 %v2021, %v2022
      %v2024 = vsub.s32 4294967266, %v2019
      %v2025 = vadd.s32 %v2024, 127
      %v2026 = vshll.u32 %v2025, 23
      %v2027 = vor.u32 4788187, %v2026
      %v2028 = vand.u32 2147483647, %v2027
      %v2030 = vcvt.s32.f32 %v2023
      %v2031 = vmul.f32 %v2030, %v2028
      %v2032 = vxor.u32 %v2031, 2147483648
      %v2033 = vsel %vm1950, %v2032, %v2031
      %v2034 = vsub.s32 4, %v2010
      %v2035 = vsel %vm1950, %v2034, %v2010
      %v2036 = vsel %vm1949, %v1425, %v2033
      %v2037 = vsel %vm1949, 0, %v2035
      %v2038 = vcosq.f32.pop %v2036
      %v2039 = vsinq.f32.pop %v2036
      %vm2040 = vweird.f32 %v1425
      %v2041 = vadd.s32 %v2037, 3
      %v2042 = vand.u32 %v2041, 3
      %vm2043 = vcmp.lt.s32.totalorder %v2042, 2
      %vm2044 = vcmp.eq.s32.totalorder %v2042, 0
      %v2045 = vxor.u32 %v2039, 2147483648
      %v2046 = vsel %vm2044, %v2038, %v2045
      %vm2047 = vcmp.eq.s32.totalorder %v2042, 2
      %v2048 = vxor.u32 %v2038, 2147483648
      %v2049 = vsel %vm2047, %v2048, %v2039
      %v2050 = vsel %vm2043, %v2046, %v2049
      %v2051 = vsel %vm2040, nan, %v2050
      %v2052 = vand.u32 2147483647, %v1426
      %vm2053 = vcmp.le.f32.partialorder %v2052, 0.7853982
      %vm2054 = vcmp.lt.s32.totalorder %v1426, 0
      %v2055 = vand.u32 %v1426, 2139095040
      %v2056 = vshrl.u32 %v2055, 23
      %v2057 = vsub.s32 %v2056, 127
      %v2058 = vand.u32 2147483647, %v1426
      %v2059 = vand.u32 %v2058, 8388607
      %v2060 = vor.u32 %v2059, 8388608
      %v2061 = vsub.s32 0, %v2060
      %v2062 = vadd.s32 %v2057, 1
      %vm2063 = vcmp.gt.s32.totalorder %v2062, 0
      %v2064 = vsel %vm2063, %v2062, 0
      %v2065 = vshrl.u32 %v2064, 5
      %v2066 = vand.u32 %v2064, 31
      %v2067 = vsub.s32 32, %v2066
      %v2068 = vshrl.u32 683565275, %v2067
      %v2069 = vshll.u32 683565275, %v2066
      %v2070 = vshrl.u32 2475754826, %v2067
      %v2071 = vor.u32 %v2069, %v2070
      %v2072 = vshll.u32 2475754826, %v2066
      %v2073 = vshrl.u32 2131351028, %v2067
      %v2074 = vor.u32 %v2072, %v2073
      %v2075 = vshll.u32 2131351028, %v2066
      %v2076 = vshrl.u32 2102212464, %v2067
      %v2077 = vor.u32 %v2075, %v2076
      %v2078 = vshll.u32 2102212464, %v2066
      %v2079 = vshrl.u32 920167782, %v2067
      %v2080 = vor.u32 %v2078, %v2079
      %v2081 = vshll.u32 920167782, %v2066
      %v2082 = vshrl.u32 1326507024, %v2067
      %v2083 = vor.u32 %v2081, %v2082
      %vm2084 = vcmp.lt.s32.totalorder %v2065, 1
      %vm2085 = vcmp.lt.s32.totalorder %v2065, 2
      %vm2086 = vcmp.lt.s32.totalorder %v2065, 3
      %vm2087 = vcmp.lt.s32.totalorder %v2065, 4
      %v2088 = vsel %vm2084, %v2068, %v2071
      %v2089 = vsel %vm2087, %v2077, 2102212464
      %v2090 = vsel %vm2086, %v2074, %v2089
      %v2091 = vsel %vm2085, %v2088, %v2090
      %v2092 = vsel %vm2084, %v2071, %v2074
      %v2093 = vsel %vm2087, %v2080, 920167782
      %v2094 = vsel %vm2086, %v2077, %v2093
      %v2095 = vsel %vm2085, %v2092, %v2094
      %v2096 = vsel %vm2084, %v2074, %v2077
      %v2097 = vsel %vm2087, %v2083, 1326507024
      %v2098 = vsel %vm2086, %v2080, %v2097
      %v2099 = vsel %vm2085, %v2096, %v2098
      %v2100 = vshll.u32 %v2060, 8
      %v2101 = vmul.u32.u64.compose %v2100, %v2099
      %v2102 = vextract.low.u32 %v2101
      %v2103 = vextract.high.u32 %v2101
      %v2104 = vmul.u32.u64.compose %v2100, %v2095
      %v2105 = vextract.low.u32 %v2104
      %v2106 = vextract.high.u32 %v2104
      %v2107 = vmul.u32 %v2100, %v2091
      %v2108 = vadd.s32 %v2103, %v2105
      %vm2109 = vc.u32 %v2103, %v2105
      %v2110 = vadd.s32 %v2106, 1
      %v2111 = vsel %vm2109, %v2110, %v2106
      %v2112 = vadd.s32 %v2107, %v2111
      %v2113 = vadd.s32 %v2112, 536870912
      %v2114 = vshrl.u32 %v2113, 30
      %v2115 = vshll.u32 %v2114, 30
      %v2116 = vsub.s32 %v2112, %v2115
      %vm2117 = vcmp.lt.s32.totalorder %v2116, 0
      %v2118 = vsub.s32 0, %v2116
      %v2119 = vsel %vm2117, %v2118, %v2116
      %v2120 = vclz %v2119
      %v2121 = vsub.s32 %v2120, 2
      %vm2122 = vcmp.gt.s32.totalorder 0, %v2121
      %v2123 = vsel %vm2122, 0, %v2121
      %v2124 = vsub.s32 32, %v2123
      %v2125 = vshll.u32 %v2116, %v2123
      %v2126 = vshrl.u32 %v2108, %v2124
      %v2127 = vor.u32 %v2125, %v2126
      %v2128 = vsub.s32 4294967266, %v2123
      %v2129 = vadd.s32 %v2128, 127
      %v2130 = vshll.u32 %v2129, 23
      %v2131 = vor.u32 4788187, %v2130
      %v2132 = vand.u32 2147483647, %v2131
      %v2134 = vcvt.s32.f32 %v2127
      %v2135 = vmul.f32 %v2134, %v2132
      %v2136 = vxor.u32 %v2135, 2147483648
      %v2137 = vsel %vm2054, %v2136, %v2135
      %v2138 = vsub.s32 4, %v2114
      %v2139 = vsel %vm2054, %v2138, %v2114
      %v2140 = vsel %vm2053, %v1426, %v2137
      %v2141 = vsel %vm2053, 0, %v2139
      %v2142 = vcosq.f32.pop %v2140
      %v2143 = vsinq.f32.pop %v2140
      %vm2144 = vweird.f32 %v1426
      %v2145 = vadd.s32 %v2141, 3
      %v2146 = vand.u32 %v2145, 3
      %vm2147 = vcmp.lt.s32.totalorder %v2146, 2
      %vm2148 = vcmp.eq.s32.totalorder %v2146, 0
      %v2149 = vxor.u32 %v2143, 2147483648
      %v2150 = vsel %vm2148, %v2142, %v2149
      %vm2151 = vcmp.eq.s32.totalorder %v2146, 2
      %v2152 = vxor.u32 %v2142, 2147483648
      %v2153 = vsel %vm2151, %v2152, %v2143
      %v2154 = vsel %vm2147, %v2150, %v2153
      %v2155 = vsel %vm2144, nan, %v2154
      %v2156 = vand.u32 2147483647, %v1427
      %vm2157 = vcmp.le.f32.partialorder %v2156, 0.7853982
      %vm2158 = vcmp.lt.s32.totalorder %v1427, 0
      %v2159 = vand.u32 %v1427, 2139095040
      %v2160 = vshrl.u32 %v2159, 23
      %v2161 = vsub.s32 %v2160, 127
      %v2162 = vand.u32 2147483647, %v1427
      %v2163 = vand.u32 %v2162, 8388607
      %v2164 = vor.u32 %v2163, 8388608
      %v2165 = vsub.s32 0, %v2164
      %v2166 = vadd.s32 %v2161, 1
      %vm2167 = vcmp.gt.s32.totalorder %v2166, 0
      %v2168 = vsel %vm2167, %v2166, 0
      %v2169 = vshrl.u32 %v2168, 5
      %v2170 = vand.u32 %v2168, 31
      %v2171 = vsub.s32 32, %v2170
      %v2172 = vshrl.u32 683565275, %v2171
      %v2173 = vshll.u32 683565275, %v2170
      %v2174 = vshrl.u32 2475754826, %v2171
      %v2175 = vor.u32 %v2173, %v2174
      %v2176 = vshll.u32 2475754826, %v2170
      %v2177 = vshrl.u32 2131351028, %v2171
      %v2178 = vor.u32 %v2176, %v2177
      %v2179 = vshll.u32 2131351028, %v2170
      %v2180 = vshrl.u32 2102212464, %v2171
      %v2181 = vor.u32 %v2179, %v2180
      %v2182 = vshll.u32 2102212464, %v2170
      %v2183 = vshrl.u32 920167782, %v2171
      %v2184 = vor.u32 %v2182, %v2183
      %v2185 = vshll.u32 920167782, %v2170
      %v2186 = vshrl.u32 1326507024, %v2171
      %v2187 = vor.u32 %v2185, %v2186
      %vm2188 = vcmp.lt.s32.totalorder %v2169, 1
      %vm2189 = vcmp.lt.s32.totalorder %v2169, 2
      %vm2190 = vcmp.lt.s32.totalorder %v2169, 3
      %vm2191 = vcmp.lt.s32.totalorder %v2169, 4
      %v2192 = vsel %vm2188, %v2172, %v2175
      %v2193 = vsel %vm2191, %v2181, 2102212464
      %v2194 = vsel %vm2190, %v2178, %v2193
      %v2195 = vsel %vm2189, %v2192, %v2194
      %v2196 = vsel %vm2188, %v2175, %v2178
      %v2197 = vsel %vm2191, %v2184, 920167782
      %v2198 = vsel %vm2190, %v2181, %v2197
      %v2199 = vsel %vm2189, %v2196, %v2198
      %v2200 = vsel %vm2188, %v2178, %v2181
      %v2201 = vsel %vm2191, %v2187, 1326507024
      %v2202 = vsel %vm2190, %v2184, %v2201
      %v2203 = vsel %vm2189, %v2200, %v2202
      %v2204 = vshll.u32 %v2164, 8
      %v2205 = vmul.u32.u64.compose %v2204, %v2203
      %v2206 = vextract.low.u32 %v2205
      %v2207 = vextract.high.u32 %v2205
      %v2208 = vmul.u32.u64.compose %v2204, %v2199
      %v2209 = vextract.low.u32 %v2208
      %v2210 = vextract.high.u32 %v2208
      %v2211 = vmul.u32 %v2204, %v2195
      %v2212 = vadd.s32 %v2207, %v2209
      %vm2213 = vc.u32 %v2207, %v2209
      %v2214 = vadd.s32 %v2210, 1
      %v2215 = vsel %vm2213, %v2214, %v2210
      %v2216 = vadd.s32 %v2211, %v2215
      %v2217 = vadd.s32 %v2216, 536870912
      %v2218 = vshrl.u32 %v2217, 30
      %v2219 = vshll.u32 %v2218, 30
      %v2220 = vsub.s32 %v2216, %v2219
      %vm2221 = vcmp.lt.s32.totalorder %v2220, 0
      %v2222 = vsub.s32 0, %v2220
      %v2223 = vsel %vm2221, %v2222, %v2220
      %v2224 = vclz %v2223
      %v2225 = vsub.s32 %v2224, 2
      %vm2226 = vcmp.gt.s32.totalorder 0, %v2225
      %v2227 = vsel %vm2226, 0, %v2225
      %v2228 = vsub.s32 32, %v2227
      %v2229 = vshll.u32 %v2220, %v2227
      %v2230 = vshrl.u32 %v2212, %v2228
      %v2231 = vor.u32 %v2229, %v2230
      %v2232 = vsub.s32 4294967266, %v2227
      %v2233 = vadd.s32 %v2232, 127
      %v2234 = vshll.u32 %v2233, 23
      %v2235 = vor.u32 4788187, %v2234
      %v2236 = vand.u32 2147483647, %v2235
      %v2238 = vcvt.s32.f32 %v2231
      %v2239 = vmul.f32 %v2238, %v2236
      %v2240 = vxor.u32 %v2239, 2147483648
      %v2241 = vsel %vm2158, %v2240, %v2239
      %v2242 = vsub.s32 4, %v2218
      %v2243 = vsel %vm2158, %v2242, %v2218
      %v2244 = vsel %vm2157, %v1427, %v2241
      %v2245 = vsel %vm2157, 0, %v2243
      %v2246 = vcosq.f32.pop %v2244
      %v2247 = vsinq.f32.pop %v2244
      %vm2248 = vweird.f32 %v1427
      %v2249 = vadd.s32 %v2245, 3
      %v2250 = vand.u32 %v2249, 3
      %vm2251 = vcmp.lt.s32.totalorder %v2250, 2
      %vm2252 = vcmp.eq.s32.totalorder %v2250, 0
      %v2253 = vxor.u32 %v2247, 2147483648
      %v2254 = vsel %vm2252, %v2246, %v2253
      %vm2255 = vcmp.eq.s32.totalorder %v2250, 2
      %v2256 = vxor.u32 %v2246, 2147483648
      %v2257 = vsel %vm2255, %v2256, %v2247
      %v2258 = vsel %vm2251, %v2254, %v2257
      %v2259 = vsel %vm2248, nan, %v2258
      %2260 = vst [vmem:[#allocation3 + $0x100] sm:$0xff] %v1947
      %2261 = vst [vmem:[#allocation3 + $0x108] sm:$0xff] %v2051
      %2262 = vst [vmem:[#allocation3 + $0x110] sm:$0xff] %v2155
      %2263 = vst [vmem:[#allocation3 + $0x118] sm:$0xff] %v2259
      %2264 = vst [vmem:[#allocation3 + $0x20] sm:$0xff] %v1530
      %2265 = vst [vmem:[#allocation3 + $0x28] sm:$0xff] %v1633
      %2266 = vst [vmem:[#allocation3 + $0x30] sm:$0xff] %v1736
      %2267 = vst [vmem:[#allocation3 + $0x38] sm:$0xff] %v1839
      %2268 = vst [vmem:[#allocation3 + $0x120] sm:$0xff] %v1947
      %2269 = vst [vmem:[#allocation3 + $0x128] sm:$0xff] %v2051
      %2270 = vst [vmem:[#allocation3 + $0x130] sm:$0xff] %v2155
      %2271 = vst [vmem:[#allocation3 + $0x138] sm:$0xff] %v2259
      %v2272 = vmul.f32 %v1424, 0.24028113
      %v2273 = vmul.f32 %v1425, 0.24028113
      %v2274 = vmul.f32 %v1426, 0.24028113
      %v2275 = vmul.f32 %v1427, 0.24028113
      %v2276 = vand.u32 2147483647, %v2272
      %vm2277 = vcmp.le.f32.partialorder %v2276, 0.7853982
      %vm2278 = vcmp.lt.s32.totalorder %v2272, 0
      %v2279 = vand.u32 %v2272, 2139095040
      %v2280 = vshrl.u32 %v2279, 23
      %v2281 = vsub.s32 %v2280, 127
      %v2282 = vand.u32 2147483647, %v2272
      %v2283 = vand.u32 %v2282, 8388607
      %v2284 = vor.u32 %v2283, 8388608
      %v2285 = vsub.s32 0, %v2284
      %v2286 = vadd.s32 %v2281, 1
      %vm2287 = vcmp.gt.s32.totalorder %v2286, 0
      %v2288 = vsel %vm2287, %v2286, 0
      %v2289 = vshrl.u32 %v2288, 5
      %v2290 = vand.u32 %v2288, 31
      %v2291 = vsub.s32 32, %v2290
      %v2292 = vshrl.u32 683565275, %v2291
      %v2293 = vshll.u32 683565275, %v2290
      %v2294 = vshrl.u32 2475754826, %v2291
      %v2295 = vor.u32 %v2293, %v2294
      %v2296 = vshll.u32 2475754826, %v2290
      %v2297 = vshrl.u32 2131351028, %v2291
      %v2298 = vor.u32 %v2296, %v2297
      %v2299 = vshll.u32 2131351028, %v2290
      %v2300 = vshrl.u32 2102212464, %v2291
      %v2301 = vor.u32 %v2299, %v2300
      %v2302 = vshll.u32 2102212464, %v2290
      %v2303 = vshrl.u32 920167782, %v2291
      %v2304 = vor.u32 %v2302, %v2303
      %v2305 = vshll.u32 920167782, %v2290
      %v2306 = vshrl.u32 1326507024, %v2291
      %v2307 = vor.u32 %v2305, %v2306
      %vm2308 = vcmp.lt.s32.totalorder %v2289, 1
      %vm2309 = vcmp.lt.s32.totalorder %v2289, 2
      %vm2310 = vcmp.lt.s32.totalorder %v2289, 3
      %vm2311 = vcmp.lt.s32.totalorder %v2289, 4
      %v2312 = vsel %vm2308, %v2292, %v2295
      %v2313 = vsel %vm2311, %v2301, 2102212464
      %v2314 = vsel %vm2310, %v2298, %v2313
      %v2315 = vsel %vm2309, %v2312, %v2314
      %v2316 = vsel %vm2308, %v2295, %v2298
      %v2317 = vsel %vm2311, %v2304, 920167782
      %v2318 = vsel %vm2310, %v2301, %v2317
      %v2319 = vsel %vm2309, %v2316, %v2318
      %v2320 = vsel %vm2308, %v2298, %v2301
      %v2321 = vsel %vm2311, %v2307, 1326507024
      %v2322 = vsel %vm2310, %v2304, %v2321
      %v2323 = vsel %vm2309, %v2320, %v2322
      %v2324 = vshll.u32 %v2284, 8
      %v2325 = vmul.u32.u64.compose %v2324, %v2323
      %v2326 = vextract.low.u32 %v2325
      %v2327 = vextract.high.u32 %v2325
      %v2328 = vmul.u32.u64.compose %v2324, %v2319
      %v2329 = vextract.low.u32 %v2328
      %v2330 = vextract.high.u32 %v2328
      %v2331 = vmul.u32 %v2324, %v2315
      %v2332 = vadd.s32 %v2327, %v2329
      %vm2333 = vc.u32 %v2327, %v2329
      %v2334 = vadd.s32 %v2330, 1
      %v2335 = vsel %vm2333, %v2334, %v2330
      %v2336 = vadd.s32 %v2331, %v2335
      %v2337 = vadd.s32 %v2336, 536870912
      %v2338 = vshrl.u32 %v2337, 30
      %v2339 = vshll.u32 %v2338, 30
      %v2340 = vsub.s32 %v2336, %v2339
      %vm2341 = vcmp.lt.s32.totalorder %v2340, 0
      %v2342 = vsub.s32 0, %v2340
      %v2343 = vsel %vm2341, %v2342, %v2340
      %v2344 = vclz %v2343
      %v2345 = vsub.s32 %v2344, 2
      %vm2346 = vcmp.gt.s32.totalorder 0, %v2345
      %v2347 = vsel %vm2346, 0, %v2345
      %v2348 = vsub.s32 32, %v2347
      %v2349 = vshll.u32 %v2340, %v2347
      %v2350 = vshrl.u32 %v2332, %v2348
      %v2351 = vor.u32 %v2349, %v2350
      %v2352 = vsub.s32 4294967266, %v2347
      %v2353 = vadd.s32 %v2352, 127
      %v2354 = vshll.u32 %v2353, 23
      %v2355 = vor.u32 4788187, %v2354
      %v2356 = vand.u32 2147483647, %v2355
      %v2358 = vcvt.s32.f32 %v2351
      %v2359 = vmul.f32 %v2358, %v2356
      %v2360 = vxor.u32 %v2359, 2147483648
      %v2361 = vsel %vm2278, %v2360, %v2359
      %v2362 = vsub.s32 4, %v2338
      %v2363 = vsel %vm2278, %v2362, %v2338
      %v2364 = vsel %vm2277, %v2272, %v2361
      %v2365 = vsel %vm2277, 0, %v2363
      %v2366 = vcosq.f32.pop %v2364
      %v2367 = vsinq.f32.pop %v2364
      %vm2368 = vweird.f32 %v2272
      %v2369 = vand.u32 %v2365, 3
      %vm2370 = vcmp.lt.s32.totalorder %v2369, 2
      %vm2371 = vcmp.eq.s32.totalorder %v2369, 0
      %v2372 = vxor.u32 %v2367, 2147483648
      %v2373 = vsel %vm2371, %v2366, %v2372
      %vm2374 = vcmp.eq.s32.totalorder %v2369, 2
      %v2375 = vxor.u32 %v2366, 2147483648
      %v2376 = vsel %vm2374, %v2375, %v2367
      %v2377 = vsel %vm2370, %v2373, %v2376
      %v2378 = vsel %vm2368, nan, %v2377
      %v2379 = vand.u32 2147483647, %v2273
      %vm2380 = vcmp.le.f32.partialorder %v2379, 0.7853982
      %vm2381 = vcmp.lt.s32.totalorder %v2273, 0
      %v2382 = vand.u32 %v2273, 2139095040
      %v2383 = vshrl.u32 %v2382, 23
      %v2384 = vsub.s32 %v2383, 127
      %v2385 = vand.u32 2147483647, %v2273
      %v2386 = vand.u32 %v2385, 8388607
      %v2387 = vor.u32 %v2386, 8388608
      %v2388 = vsub.s32 0, %v2387
      %v2389 = vadd.s32 %v2384, 1
      %vm2390 = vcmp.gt.s32.totalorder %v2389, 0
      %v2391 = vsel %vm2390, %v2389, 0
      %v2392 = vshrl.u32 %v2391, 5
      %v2393 = vand.u32 %v2391, 31
      %v2394 = vsub.s32 32, %v2393
      %v2395 = vshrl.u32 683565275, %v2394
      %v2396 = vshll.u32 683565275, %v2393
      %v2397 = vshrl.u32 2475754826, %v2394
      %v2398 = vor.u32 %v2396, %v2397
      %v2399 = vshll.u32 2475754826, %v2393
      %v2400 = vshrl.u32 2131351028, %v2394
      %v2401 = vor.u32 %v2399, %v2400
      %v2402 = vshll.u32 2131351028, %v2393
      %v2403 = vshrl.u32 2102212464, %v2394
      %v2404 = vor.u32 %v2402, %v2403
      %v2405 = vshll.u32 2102212464, %v2393
      %v2406 = vshrl.u32 920167782, %v2394
      %v2407 = vor.u32 %v2405, %v2406
      %v2408 = vshll.u32 920167782, %v2393
      %v2409 = vshrl.u32 1326507024, %v2394
      %v2410 = vor.u32 %v2408, %v2409
      %vm2411 = vcmp.lt.s32.totalorder %v2392, 1
      %vm2412 = vcmp.lt.s32.totalorder %v2392, 2
      %vm2413 = vcmp.lt.s32.totalorder %v2392, 3
      %vm2414 = vcmp.lt.s32.totalorder %v2392, 4
      %v2415 = vsel %vm2411, %v2395, %v2398
      %v2416 = vsel %vm2414, %v2404, 2102212464
      %v2417 = vsel %vm2413, %v2401, %v2416
      %v2418 = vsel %vm2412, %v2415, %v2417
      %v2419 = vsel %vm2411, %v2398, %v2401
      %v2420 = vsel %vm2414, %v2407, 920167782
      %v2421 = vsel %vm2413, %v2404, %v2420
      %v2422 = vsel %vm2412, %v2419, %v2421
      %v2423 = vsel %vm2411, %v2401, %v2404
      %v2424 = vsel %vm2414, %v2410, 1326507024
      %v2425 = vsel %vm2413, %v2407, %v2424
      %v2426 = vsel %vm2412, %v2423, %v2425
      %v2427 = vshll.u32 %v2387, 8
      %v2428 = vmul.u32.u64.compose %v2427, %v2426
      %v2429 = vextract.low.u32 %v2428
      %v2430 = vextract.high.u32 %v2428
      %v2431 = vmul.u32.u64.compose %v2427, %v2422
      %v2432 = vextract.low.u32 %v2431
      %v2433 = vextract.high.u32 %v2431
      %v2434 = vmul.u32 %v2427, %v2418
      %v2435 = vadd.s32 %v2430, %v2432
      %vm2436 = vc.u32 %v2430, %v2432
      %v2437 = vadd.s32 %v2433, 1
      %v2438 = vsel %vm2436, %v2437, %v2433
      %v2439 = vadd.s32 %v2434, %v2438
      %v2440 = vadd.s32 %v2439, 536870912
      %v2441 = vshrl.u32 %v2440, 30
      %v2442 = vshll.u32 %v2441, 30
      %v2443 = vsub.s32 %v2439, %v2442
      %vm2444 = vcmp.lt.s32.totalorder %v2443, 0
      %v2445 = vsub.s32 0, %v2443
      %v2446 = vsel %vm2444, %v2445, %v2443
      %v2447 = vclz %v2446
      %v2448 = vsub.s32 %v2447, 2
      %vm2449 = vcmp.gt.s32.totalorder 0, %v2448
      %v2450 = vsel %vm2449, 0, %v2448
      %v2451 = vsub.s32 32, %v2450
      %v2452 = vshll.u32 %v2443, %v2450
      %v2453 = vshrl.u32 %v2435, %v2451
      %v2454 = vor.u32 %v2452, %v2453
      %v2455 = vsub.s32 4294967266, %v2450
      %v2456 = vadd.s32 %v2455, 127
      %v2457 = vshll.u32 %v2456, 23
      %v2458 = vor.u32 4788187, %v2457
      %v2459 = vand.u32 2147483647, %v2458
      %v2461 = vcvt.s32.f32 %v2454
      %v2462 = vmul.f32 %v2461, %v2459
      %v2463 = vxor.u32 %v2462, 2147483648
      %v2464 = vsel %vm2381, %v2463, %v2462
      %v2465 = vsub.s32 4, %v2441
      %v2466 = vsel %vm2381, %v2465, %v2441
      %v2467 = vsel %vm2380, %v2273, %v2464
      %v2468 = vsel %vm2380, 0, %v2466
      %v2469 = vcosq.f32.pop %v2467
      %v2470 = vsinq.f32.pop %v2467
      %vm2471 = vweird.f32 %v2273
      %v2472 = vand.u32 %v2468, 3
      %vm2473 = vcmp.lt.s32.totalorder %v2472, 2
      %vm2474 = vcmp.eq.s32.totalorder %v2472, 0
      %v2475 = vxor.u32 %v2470, 2147483648
      %v2476 = vsel %vm2474, %v2469, %v2475
      %vm2477 = vcmp.eq.s32.totalorder %v2472, 2
      %v2478 = vxor.u32 %v2469, 2147483648
      %v2479 = vsel %vm2477, %v2478, %v2470
      %v2480 = vsel %vm2473, %v2476, %v2479
      %v2481 = vsel %vm2471, nan, %v2480
      %v2482 = vand.u32 2147483647, %v2274
      %vm2483 = vcmp.le.f32.partialorder %v2482, 0.7853982
      %vm2484 = vcmp.lt.s32.totalorder %v2274, 0
      %v2485 = vand.u32 %v2274, 2139095040
      %v2486 = vshrl.u32 %v2485, 23
      %v2487 = vsub.s32 %v2486, 127
      %v2488 = vand.u32 2147483647, %v2274
      %v2489 = vand.u32 %v2488, 8388607
      %v2490 = vor.u32 %v2489, 8388608
      %v2491 = vsub.s32 0, %v2490
      %v2492 = vadd.s32 %v2487, 1
      %vm2493 = vcmp.gt.s32.totalorder %v2492, 0
      %v2494 = vsel %vm2493, %v2492, 0
      %v2495 = vshrl.u32 %v2494, 5
      %v2496 = vand.u32 %v2494, 31
      %v2497 = vsub.s32 32, %v2496
      %v2498 = vshrl.u32 683565275, %v2497
      %v2499 = vshll.u32 683565275, %v2496
      %v2500 = vshrl.u32 2475754826, %v2497
      %v2501 = vor.u32 %v2499, %v2500
      %v2502 = vshll.u32 2475754826, %v2496
      %v2503 = vshrl.u32 2131351028, %v2497
      %v2504 = vor.u32 %v2502, %v2503
      %v2505 = vshll.u32 2131351028, %v2496
      %v2506 = vshrl.u32 2102212464, %v2497
      %v2507 = vor.u32 %v2505, %v2506
      %v2508 = vshll.u32 2102212464, %v2496
      %v2509 = vshrl.u32 920167782, %v2497
      %v2510 = vor.u32 %v2508, %v2509
      %v2511 = vshll.u32 920167782, %v2496
      %v2512 = vshrl.u32 1326507024, %v2497
      %v2513 = vor.u32 %v2511, %v2512
      %vm2514 = vcmp.lt.s32.totalorder %v2495, 1
      %vm2515 = vcmp.lt.s32.totalorder %v2495, 2
      %vm2516 = vcmp.lt.s32.totalorder %v2495, 3
      %vm2517 = vcmp.lt.s32.totalorder %v2495, 4
      %v2518 = vsel %vm2514, %v2498, %v2501
      %v2519 = vsel %vm2517, %v2507, 2102212464
      %v2520 = vsel %vm2516, %v2504, %v2519
      %v2521 = vsel %vm2515, %v2518, %v2520
      %v2522 = vsel %vm2514, %v2501, %v2504
      %v2523 = vsel %vm2517, %v2510, 920167782
      %v2524 = vsel %vm2516, %v2507, %v2523
      %v2525 = vsel %vm2515, %v2522, %v2524
      %v2526 = vsel %vm2514, %v2504, %v2507
      %v2527 = vsel %vm2517, %v2513, 1326507024
      %v2528 = vsel %vm2516, %v2510, %v2527
      %v2529 = vsel %vm2515, %v2526, %v2528
      %v2530 = vshll.u32 %v2490, 8
      %v2531 = vmul.u32.u64.compose %v2530, %v2529
      %v2532 = vextract.low.u32 %v2531
      %v2533 = vextract.high.u32 %v2531
      %v2534 = vmul.u32.u64.compose %v2530, %v2525
      %v2535 = vextract.low.u32 %v2534
      %v2536 = vextract.high.u32 %v2534
      %v2537 = vmul.u32 %v2530, %v2521
      %v2538 = vadd.s32 %v2533, %v2535
      %vm2539 = vc.u32 %v2533, %v2535
      %v2540 = vadd.s32 %v2536, 1
      %v2541 = vsel %vm2539, %v2540, %v2536
      %v2542 = vadd.s32 %v2537, %v2541
      %v2543 = vadd.s32 %v2542, 536870912
      %v2544 = vshrl.u32 %v2543, 30
      %v2545 = vshll.u32 %v2544, 30
      %v2546 = vsub.s32 %v2542, %v2545
      %vm2547 = vcmp.lt.s32.totalorder %v2546, 0
      %v2548 = vsub.s32 0, %v2546
      %v2549 = vsel %vm2547, %v2548, %v2546
      %v2550 = vclz %v2549
      %v2551 = vsub.s32 %v2550, 2
      %vm2552 = vcmp.gt.s32.totalorder 0, %v2551
      %v2553 = vsel %vm2552, 0, %v2551
      %v2554 = vsub.s32 32, %v2553
      %v2555 = vshll.u32 %v2546, %v2553
      %v2556 = vshrl.u32 %v2538, %v2554
      %v2557 = vor.u32 %v2555, %v2556
      %v2558 = vsub.s32 4294967266, %v2553
      %v2559 = vadd.s32 %v2558, 127
      %v2560 = vshll.u32 %v2559, 23
      %v2561 = vor.u32 4788187, %v2560
      %v2562 = vand.u32 2147483647, %v2561
      %v2564 = vcvt.s32.f32 %v2557
      %v2565 = vmul.f32 %v2564, %v2562
      %v2566 = vxor.u32 %v2565, 2147483648
      %v2567 = vsel %vm2484, %v2566, %v2565
      %v2568 = vsub.s32 4, %v2544
      %v2569 = vsel %vm2484, %v2568, %v2544
      %v2570 = vsel %vm2483, %v2274, %v2567
      %v2571 = vsel %vm2483, 0, %v2569
      %v2572 = vcosq.f32.pop %v2570
      %v2573 = vsinq.f32.pop %v2570
      %vm2574 = vweird.f32 %v2274
      %v2575 = vand.u32 %v2571, 3
      %vm2576 = vcmp.lt.s32.totalorder %v2575, 2
      %vm2577 = vcmp.eq.s32.totalorder %v2575, 0
      %v2578 = vxor.u32 %v2573, 2147483648
      %v2579 = vsel %vm2577, %v2572, %v2578
      %vm2580 = vcmp.eq.s32.totalorder %v2575, 2
      %v2581 = vxor.u32 %v2572, 2147483648
      %v2582 = vsel %vm2580, %v2581, %v2573
      %v2583 = vsel %vm2576, %v2579, %v2582
      %v2584 = vsel %vm2574, nan, %v2583
      %v2585 = vand.u32 2147483647, %v2275
      %vm2586 = vcmp.le.f32.partialorder %v2585, 0.7853982
      %vm2587 = vcmp.lt.s32.totalorder %v2275, 0
      %v2588 = vand.u32 %v2275, 2139095040
      %v2589 = vshrl.u32 %v2588, 23
      %v2590 = vsub.s32 %v2589, 127
      %v2591 = vand.u32 2147483647, %v2275
      %v2592 = vand.u32 %v2591, 8388607
      %v2593 = vor.u32 %v2592, 8388608
      %v2594 = vsub.s32 0, %v2593
      %v2595 = vadd.s32 %v2590, 1
      %vm2596 = vcmp.gt.s32.totalorder %v2595, 0
      %v2597 = vsel %vm2596, %v2595, 0
      %v2598 = vshrl.u32 %v2597, 5
      %v2599 = vand.u32 %v2597, 31
      %v2600 = vsub.s32 32, %v2599
      %v2601 = vshrl.u32 683565275, %v2600
      %v2602 = vshll.u32 683565275, %v2599
      %v2603 = vshrl.u32 2475754826, %v2600
      %v2604 = vor.u32 %v2602, %v2603
      %v2605 = vshll.u32 2475754826, %v2599
      %v2606 = vshrl.u32 2131351028, %v2600
      %v2607 = vor.u32 %v2605, %v2606
      %v2608 = vshll.u32 2131351028, %v2599
      %v2609 = vshrl.u32 2102212464, %v2600
      %v2610 = vor.u32 %v2608, %v2609
      %v2611 = vshll.u32 2102212464, %v2599
      %v2612 = vshrl.u32 920167782, %v2600
      %v2613 = vor.u32 %v2611, %v2612
      %v2614 = vshll.u32 920167782, %v2599
      %v2615 = vshrl.u32 1326507024, %v2600
      %v2616 = vor.u32 %v2614, %v2615
      %vm2617 = vcmp.lt.s32.totalorder %v2598, 1
      %vm2618 = vcmp.lt.s32.totalorder %v2598, 2
      %vm2619 = vcmp.lt.s32.totalorder %v2598, 3
      %vm2620 = vcmp.lt.s32.totalorder %v2598, 4
      %v2621 = vsel %vm2617, %v2601, %v2604
      %v2622 = vsel %vm2620, %v2610, 2102212464
      %v2623 = vsel %vm2619, %v2607, %v2622
      %v2624 = vsel %vm2618, %v2621, %v2623
      %v2625 = vsel %vm2617, %v2604, %v2607
      %v2626 = vsel %vm2620, %v2613, 920167782
      %v2627 = vsel %vm2619, %v2610, %v2626
      %v2628 = vsel %vm2618, %v2625, %v2627
      %v2629 = vsel %vm2617, %v2607, %v2610
      %v2630 = vsel %vm2620, %v2616, 1326507024
      %v2631 = vsel %vm2619, %v2613, %v2630
      %v2632 = vsel %vm2618, %v2629, %v2631
      %v2633 = vshll.u32 %v2593, 8
      %v2634 = vmul.u32.u64.compose %v2633, %v2632
      %v2635 = vextract.low.u32 %v2634
      %v2636 = vextract.high.u32 %v2634
      %v2637 = vmul.u32.u64.compose %v2633, %v2628
      %v2638 = vextract.low.u32 %v2637
      %v2639 = vextract.high.u32 %v2637
      %v2640 = vmul.u32 %v2633, %v2624
      %v2641 = vadd.s32 %v2636, %v2638
      %vm2642 = vc.u32 %v2636, %v2638
      %v2643 = vadd.s32 %v2639, 1
      %v2644 = vsel %vm2642, %v2643, %v2639
      %v2645 = vadd.s32 %v2640, %v2644
      %v2646 = vadd.s32 %v2645, 536870912
      %v2647 = vshrl.u32 %v2646, 30
      %v2648 = vshll.u32 %v2647, 30
      %v2649 = vsub.s32 %v2645, %v2648
      %vm2650 = vcmp.lt.s32.totalorder %v2649, 0
      %v2651 = vsub.s32 0, %v2649
      %v2652 = vsel %vm2650, %v2651, %v2649
      %v2653 = vclz %v2652
      %v2654 = vsub.s32 %v2653, 2
      %vm2655 = vcmp.gt.s32.totalorder 0, %v2654
      %v2656 = vsel %vm2655, 0, %v2654
      %v2657 = vsub.s32 32, %v2656
      %v2658 = vshll.u32 %v2649, %v2656
      %v2659 = vshrl.u32 %v2641, %v2657
      %v2660 = vor.u32 %v2658, %v2659
      %v2661 = vsub.s32 4294967266, %v2656
      %v2662 = vadd.s32 %v2661, 127
      %v2663 = vshll.u32 %v2662, 23
      %v2664 = vor.u32 4788187, %v2663
      %v2665 = vand.u32 2147483647, %v2664
      %v2667 = vcvt.s32.f32 %v2660
      %v2668 = vmul.f32 %v2667, %v2665
      %v2669 = vxor.u32 %v2668, 2147483648
      %v2670 = vsel %vm2587, %v2669, %v2668
      %v2671 = vsub.s32 4, %v2647
      %v2672 = vsel %vm2587, %v2671, %v2647
      %v2673 = vsel %vm2586, %v2275, %v2670
      %v2674 = vsel %vm2586, 0, %v2672
      %v2675 = vcosq.f32.pop %v2673
      %v2676 = vsinq.f32.pop %v2673
      %vm2677 = vweird.f32 %v2275
      %v2678 = vand.u32 %v2674, 3
      %vm2679 = vcmp.lt.s32.totalorder %v2678, 2
      %vm2680 = vcmp.eq.s32.totalorder %v2678, 0
      %v2681 = vxor.u32 %v2676, 2147483648
      %v2682 = vsel %vm2680, %v2675, %v2681
      %vm2683 = vcmp.eq.s32.totalorder %v2678, 2
      %v2684 = vxor.u32 %v2675, 2147483648
      %v2685 = vsel %vm2683, %v2684, %v2676
      %v2686 = vsel %vm2679, %v2682, %v2685
      %v2687 = vsel %vm2677, nan, %v2686
      %2688 = vst [vmem:[#allocation3 + $0x40] sm:$0xff] %v2378
      %2689 = vst [vmem:[#allocation3 + $0x48] sm:$0xff] %v2481
      %2690 = vst [vmem:[#allocation3 + $0x50] sm:$0xff] %v2584
      %2691 = vst [vmem:[#allocation3 + $0x58] sm:$0xff] %v2687
      %v2692 = vand.u32 2147483647, %v2272
      %vm2693 = vcmp.le.f32.partialorder %v2692, 0.7853982
      %vm2694 = vcmp.lt.s32.totalorder %v2272, 0
      %v2695 = vand.u32 %v2272, 2139095040
      %v2696 = vshrl.u32 %v2695, 23
      %v2697 = vsub.s32 %v2696, 127
      %v2698 = vand.u32 2147483647, %v2272
      %v2699 = vand.u32 %v2698, 8388607
      %v2700 = vor.u32 %v2699, 8388608
      %v2701 = vsub.s32 0, %v2700
      %v2702 = vadd.s32 %v2697, 1
      %vm2703 = vcmp.gt.s32.totalorder %v2702, 0
      %v2704 = vsel %vm2703, %v2702, 0
      %v2705 = vshrl.u32 %v2704, 5
      %v2706 = vand.u32 %v2704, 31
      %v2707 = vsub.s32 32, %v2706
      %v2708 = vshrl.u32 683565275, %v2707
      %v2709 = vshll.u32 683565275, %v2706
      %v2710 = vshrl.u32 2475754826, %v2707
      %v2711 = vor.u32 %v2709, %v2710
      %v2712 = vshll.u32 2475754826, %v2706
      %v2713 = vshrl.u32 2131351028, %v2707
      %v2714 = vor.u32 %v2712, %v2713
      %v2715 = vshll.u32 2131351028, %v2706
      %v2716 = vshrl.u32 2102212464, %v2707
      %v2717 = vor.u32 %v2715, %v2716
      %v2718 = vshll.u32 2102212464, %v2706
      %v2719 = vshrl.u32 920167782, %v2707
      %v2720 = vor.u32 %v2718, %v2719
      %v2721 = vshll.u32 920167782, %v2706
      %v2722 = vshrl.u32 1326507024, %v2707
      %v2723 = vor.u32 %v2721, %v2722
      %vm2724 = vcmp.lt.s32.totalorder %v2705, 1
      %vm2725 = vcmp.lt.s32.totalorder %v2705, 2
      %vm2726 = vcmp.lt.s32.totalorder %v2705, 3
      %vm2727 = vcmp.lt.s32.totalorder %v2705, 4
      %v2728 = vsel %vm2724, %v2708, %v2711
      %v2729 = vsel %vm2727, %v2717, 2102212464
      %v2730 = vsel %vm2726, %v2714, %v2729
      %v2731 = vsel %vm2725, %v2728, %v2730
      %v2732 = vsel %vm2724, %v2711, %v2714
      %v2733 = vsel %vm2727, %v2720, 920167782
      %v2734 = vsel %vm2726, %v2717, %v2733
      %v2735 = vsel %vm2725, %v2732, %v2734
      %v2736 = vsel %vm2724, %v2714, %v2717
      %v2737 = vsel %vm2727, %v2723, 1326507024
      %v2738 = vsel %vm2726, %v2720, %v2737
      %v2739 = vsel %vm2725, %v2736, %v2738
      %v2740 = vshll.u32 %v2700, 8
      %v2741 = vmul.u32.u64.compose %v2740, %v2739
      %v2742 = vextract.low.u32 %v2741
      %v2743 = vextract.high.u32 %v2741
      %v2744 = vmul.u32.u64.compose %v2740, %v2735
      %v2745 = vextract.low.u32 %v2744
      %v2746 = vextract.high.u32 %v2744
      %v2747 = vmul.u32 %v2740, %v2731
      %v2748 = vadd.s32 %v2743, %v2745
      %vm2749 = vc.u32 %v2743, %v2745
      %v2750 = vadd.s32 %v2746, 1
      %v2751 = vsel %vm2749, %v2750, %v2746
      %v2752 = vadd.s32 %v2747, %v2751
      %v2753 = vadd.s32 %v2752, 536870912
      %v2754 = vshrl.u32 %v2753, 30
      %v2755 = vshll.u32 %v2754, 30
      %v2756 = vsub.s32 %v2752, %v2755
      %vm2757 = vcmp.lt.s32.totalorder %v2756, 0
      %v2758 = vsub.s32 0, %v2756
      %v2759 = vsel %vm2757, %v2758, %v2756
      %v2760 = vclz %v2759
      %v2761 = vsub.s32 %v2760, 2
      %vm2762 = vcmp.gt.s32.totalorder 0, %v2761
      %v2763 = vsel %vm2762, 0, %v2761
      %v2764 = vsub.s32 32, %v2763
      %v2765 = vshll.u32 %v2756, %v2763
      %v2766 = vshrl.u32 %v2748, %v2764
      %v2767 = vor.u32 %v2765, %v2766
      %v2768 = vsub.s32 4294967266, %v2763
      %v2769 = vadd.s32 %v2768, 127
      %v2770 = vshll.u32 %v2769, 23
      %v2771 = vor.u32 4788187, %v2770
      %v2772 = vand.u32 2147483647, %v2771
      %v2774 = vcvt.s32.f32 %v2767
      %v2775 = vmul.f32 %v2774, %v2772
      %v2776 = vxor.u32 %v2775, 2147483648
      %v2777 = vsel %vm2694, %v2776, %v2775
      %v2778 = vsub.s32 4, %v2754
      %v2779 = vsel %vm2694, %v2778, %v2754
      %v2780 = vsel %vm2693, %v2272, %v2777
      %v2781 = vsel %vm2693, 0, %v2779
      %v2782 = vcosq.f32.pop %v2780
      %v2783 = vsinq.f32.pop %v2780
      %vm2784 = vweird.f32 %v2272
      %v2785 = vadd.s32 %v2781, 3
      %v2786 = vand.u32 %v2785, 3
      %vm2787 = vcmp.lt.s32.totalorder %v2786, 2
      %vm2788 = vcmp.eq.s32.totalorder %v2786, 0
      %v2789 = vxor.u32 %v2783, 2147483648
      %v2790 = vsel %vm2788, %v2782, %v2789
      %vm2791 = vcmp.eq.s32.totalorder %v2786, 2
      %v2792 = vxor.u32 %v2782, 2147483648
      %v2793 = vsel %vm2791, %v2792, %v2783
      %v2794 = vsel %vm2787, %v2790, %v2793
      %v2795 = vsel %vm2784, nan, %v2794
      %v2796 = vand.u32 2147483647, %v2273
      %vm2797 = vcmp.le.f32.partialorder %v2796, 0.7853982
      %vm2798 = vcmp.lt.s32.totalorder %v2273, 0
      %v2799 = vand.u32 %v2273, 2139095040
      %v2800 = vshrl.u32 %v2799, 23
      %v2801 = vsub.s32 %v2800, 127
      %v2802 = vand.u32 2147483647, %v2273
      %v2803 = vand.u32 %v2802, 8388607
      %v2804 = vor.u32 %v2803, 8388608
      %v2805 = vsub.s32 0, %v2804
      %v2806 = vadd.s32 %v2801, 1
      %vm2807 = vcmp.gt.s32.totalorder %v2806, 0
      %v2808 = vsel %vm2807, %v2806, 0
      %v2809 = vshrl.u32 %v2808, 5
      %v2810 = vand.u32 %v2808, 31
      %v2811 = vsub.s32 32, %v2810
      %v2812 = vshrl.u32 683565275, %v2811
      %v2813 = vshll.u32 683565275, %v2810
      %v2814 = vshrl.u32 2475754826, %v2811
      %v2815 = vor.u32 %v2813, %v2814
      %v2816 = vshll.u32 2475754826, %v2810
      %v2817 = vshrl.u32 2131351028, %v2811
      %v2818 = vor.u32 %v2816, %v2817
      %v2819 = vshll.u32 2131351028, %v2810
      %v2820 = vshrl.u32 2102212464, %v2811
      %v2821 = vor.u32 %v2819, %v2820
      %v2822 = vshll.u32 2102212464, %v2810
      %v2823 = vshrl.u32 920167782, %v2811
      %v2824 = vor.u32 %v2822, %v2823
      %v2825 = vshll.u32 920167782, %v2810
      %v2826 = vshrl.u32 1326507024, %v2811
      %v2827 = vor.u32 %v2825, %v2826
      %vm2828 = vcmp.lt.s32.totalorder %v2809, 1
      %vm2829 = vcmp.lt.s32.totalorder %v2809, 2
      %vm2830 = vcmp.lt.s32.totalorder %v2809, 3
      %vm2831 = vcmp.lt.s32.totalorder %v2809, 4
      %v2832 = vsel %vm2828, %v2812, %v2815
      %v2833 = vsel %vm2831, %v2821, 2102212464
      %v2834 = vsel %vm2830, %v2818, %v2833
      %v2835 = vsel %vm2829, %v2832, %v2834
      %v2836 = vsel %vm2828, %v2815, %v2818
      %v2837 = vsel %vm2831, %v2824, 920167782
      %v2838 = vsel %vm2830, %v2821, %v2837
      %v2839 = vsel %vm2829, %v2836, %v2838
      %v2840 = vsel %vm2828, %v2818, %v2821
      %v2841 = vsel %vm2831, %v2827, 1326507024
      %v2842 = vsel %vm2830, %v2824, %v2841
      %v2843 = vsel %vm2829, %v2840, %v2842
      %v2844 = vshll.u32 %v2804, 8
      %v2845 = vmul.u32.u64.compose %v2844, %v2843
      %v2846 = vextract.low.u32 %v2845
      %v2847 = vextract.high.u32 %v2845
      %v2848 = vmul.u32.u64.compose %v2844, %v2839
      %v2849 = vextract.low.u32 %v2848
      %v2850 = vextract.high.u32 %v2848
      %v2851 = vmul.u32 %v2844, %v2835
      %v2852 = vadd.s32 %v2847, %v2849
      %vm2853 = vc.u32 %v2847, %v2849
      %v2854 = vadd.s32 %v2850, 1
      %v2855 = vsel %vm2853, %v2854, %v2850
      %v2856 = vadd.s32 %v2851, %v2855
      %v2857 = vadd.s32 %v2856, 536870912
      %v2858 = vshrl.u32 %v2857, 30
      %v2859 = vshll.u32 %v2858, 30
      %v2860 = vsub.s32 %v2856, %v2859
      %vm2861 = vcmp.lt.s32.totalorder %v2860, 0
      %v2862 = vsub.s32 0, %v2860
      %v2863 = vsel %vm2861, %v2862, %v2860
      %v2864 = vclz %v2863
      %v2865 = vsub.s32 %v2864, 2
      %vm2866 = vcmp.gt.s32.totalorder 0, %v2865
      %v2867 = vsel %vm2866, 0, %v2865
      %v2868 = vsub.s32 32, %v2867
      %v2869 = vshll.u32 %v2860, %v2867
      %v2870 = vshrl.u32 %v2852, %v2868
      %v2871 = vor.u32 %v2869, %v2870
      %v2872 = vsub.s32 4294967266, %v2867
      %v2873 = vadd.s32 %v2872, 127
      %v2874 = vshll.u32 %v2873, 23
      %v2875 = vor.u32 4788187, %v2874
      %v2876 = vand.u32 2147483647, %v2875
      %v2878 = vcvt.s32.f32 %v2871
      %v2879 = vmul.f32 %v2878, %v2876
      %v2880 = vxor.u32 %v2879, 2147483648
      %v2881 = vsel %vm2798, %v2880, %v2879
      %v2882 = vsub.s32 4, %v2858
      %v2883 = vsel %vm2798, %v2882, %v2858
      %v2884 = vsel %vm2797, %v2273, %v2881
      %v2885 = vsel %vm2797, 0, %v2883
      %v2886 = vcosq.f32.pop %v2884
      %v2887 = vsinq.f32.pop %v2884
      %vm2888 = vweird.f32 %v2273
      %v2889 = vadd.s32 %v2885, 3
      %v2890 = vand.u32 %v2889, 3
      %vm2891 = vcmp.lt.s32.totalorder %v2890, 2
      %vm2892 = vcmp.eq.s32.totalorder %v2890, 0
      %v2893 = vxor.u32 %v2887, 2147483648
      %v2894 = vsel %vm2892, %v2886, %v2893
      %vm2895 = vcmp.eq.s32.totalorder %v2890, 2
      %v2896 = vxor.u32 %v2886, 2147483648
      %v2897 = vsel %vm2895, %v2896, %v2887
      %v2898 = vsel %vm2891, %v2894, %v2897
      %v2899 = vsel %vm2888, nan, %v2898
      %v2900 = vand.u32 2147483647, %v2274
      %vm2901 = vcmp.le.f32.partialorder %v2900, 0.7853982
      %vm2902 = vcmp.lt.s32.totalorder %v2274, 0
      %v2903 = vand.u32 %v2274, 2139095040
      %v2904 = vshrl.u32 %v2903, 23
      %v2905 = vsub.s32 %v2904, 127
      %v2906 = vand.u32 2147483647, %v2274
      %v2907 = vand.u32 %v2906, 8388607
      %v2908 = vor.u32 %v2907, 8388608
      %v2909 = vsub.s32 0, %v2908
      %v2910 = vadd.s32 %v2905, 1
      %vm2911 = vcmp.gt.s32.totalorder %v2910, 0
      %v2912 = vsel %vm2911, %v2910, 0
      %v2913 = vshrl.u32 %v2912, 5
      %v2914 = vand.u32 %v2912, 31
      %v2915 = vsub.s32 32, %v2914
      %v2916 = vshrl.u32 683565275, %v2915
      %v2917 = vshll.u32 683565275, %v2914
      %v2918 = vshrl.u32 2475754826, %v2915
      %v2919 = vor.u32 %v2917, %v2918
      %v2920 = vshll.u32 2475754826, %v2914
      %v2921 = vshrl.u32 2131351028, %v2915
      %v2922 = vor.u32 %v2920, %v2921
      %v2923 = vshll.u32 2131351028, %v2914
      %v2924 = vshrl.u32 2102212464, %v2915
      %v2925 = vor.u32 %v2923, %v2924
      %v2926 = vshll.u32 2102212464, %v2914
      %v2927 = vshrl.u32 920167782, %v2915
      %v2928 = vor.u32 %v2926, %v2927
      %v2929 = vshll.u32 920167782, %v2914
      %v2930 = vshrl.u32 1326507024, %v2915
      %v2931 = vor.u32 %v2929, %v2930
      %vm2932 = vcmp.lt.s32.totalorder %v2913, 1
      %vm2933 = vcmp.lt.s32.totalorder %v2913, 2
      %vm2934 = vcmp.lt.s32.totalorder %v2913, 3
      %vm2935 = vcmp.lt.s32.totalorder %v2913, 4
      %v2936 = vsel %vm2932, %v2916, %v2919
      %v2937 = vsel %vm2935, %v2925, 2102212464
      %v2938 = vsel %vm2934, %v2922, %v2937
      %v2939 = vsel %vm2933, %v2936, %v2938
      %v2940 = vsel %vm2932, %v2919, %v2922
      %v2941 = vsel %vm2935, %v2928, 920167782
      %v2942 = vsel %vm2934, %v2925, %v2941
      %v2943 = vsel %vm2933, %v2940, %v2942
      %v2944 = vsel %vm2932, %v2922, %v2925
      %v2945 = vsel %vm2935, %v2931, 1326507024
      %v2946 = vsel %vm2934, %v2928, %v2945
      %v2947 = vsel %vm2933, %v2944, %v2946
      %v2948 = vshll.u32 %v2908, 8
      %v2949 = vmul.u32.u64.compose %v2948, %v2947
      %v2950 = vextract.low.u32 %v2949
      %v2951 = vextract.high.u32 %v2949
      %v2952 = vmul.u32.u64.compose %v2948, %v2943
      %v2953 = vextract.low.u32 %v2952
      %v2954 = vextract.high.u32 %v2952
      %v2955 = vmul.u32 %v2948, %v2939
      %v2956 = vadd.s32 %v2951, %v2953
      %vm2957 = vc.u32 %v2951, %v2953
      %v2958 = vadd.s32 %v2954, 1
      %v2959 = vsel %vm2957, %v2958, %v2954
      %v2960 = vadd.s32 %v2955, %v2959
      %v2961 = vadd.s32 %v2960, 536870912
      %v2962 = vshrl.u32 %v2961, 30
      %v2963 = vshll.u32 %v2962, 30
      %v2964 = vsub.s32 %v2960, %v2963
      %vm2965 = vcmp.lt.s32.totalorder %v2964, 0
      %v2966 = vsub.s32 0, %v2964
      %v2967 = vsel %vm2965, %v2966, %v2964
      %v2968 = vclz %v2967
      %v2969 = vsub.s32 %v2968, 2
      %vm2970 = vcmp.gt.s32.totalorder 0, %v2969
      %v2971 = vsel %vm2970, 0, %v2969
      %v2972 = vsub.s32 32, %v2971
      %v2973 = vshll.u32 %v2964, %v2971
      %v2974 = vshrl.u32 %v2956, %v2972
      %v2975 = vor.u32 %v2973, %v2974
      %v2976 = vsub.s32 4294967266, %v2971
      %v2977 = vadd.s32 %v2976, 127
      %v2978 = vshll.u32 %v2977, 23
      %v2979 = vor.u32 4788187, %v2978
      %v2980 = vand.u32 2147483647, %v2979
      %v2982 = vcvt.s32.f32 %v2975
      %v2983 = vmul.f32 %v2982, %v2980
      %v2984 = vxor.u32 %v2983, 2147483648
      %v2985 = vsel %vm2902, %v2984, %v2983
      %v2986 = vsub.s32 4, %v2962
      %v2987 = vsel %vm2902, %v2986, %v2962
      %v2988 = vsel %vm2901, %v2274, %v2985
      %v2989 = vsel %vm2901, 0, %v2987
      %v2990 = vcosq.f32.pop %v2988
      %v2991 = vsinq.f32.pop %v2988
      %vm2992 = vweird.f32 %v2274
      %v2993 = vadd.s32 %v2989, 3
      %v2994 = vand.u32 %v2993, 3
      %vm2995 = vcmp.lt.s32.totalorder %v2994, 2
      %vm2996 = vcmp.eq.s32.totalorder %v2994, 0
      %v2997 = vxor.u32 %v2991, 2147483648
      %v2998 = vsel %vm2996, %v2990, %v2997
      %vm2999 = vcmp.eq.s32.totalorder %v2994, 2
      %v3000 = vxor.u32 %v2990, 2147483648
      %v3001 = vsel %vm2999, %v3000, %v2991
      %v3002 = vsel %vm2995, %v2998, %v3001
      %v3003 = vsel %vm2992, nan, %v3002
      %v3004 = vand.u32 2147483647, %v2275
      %vm3005 = vcmp.le.f32.partialorder %v3004, 0.7853982
      %vm3006 = vcmp.lt.s32.totalorder %v2275, 0
      %v3007 = vand.u32 %v2275, 2139095040
      %v3008 = vshrl.u32 %v3007, 23
      %v3009 = vsub.s32 %v3008, 127
      %v3010 = vand.u32 2147483647, %v2275
      %v3011 = vand.u32 %v3010, 8388607
      %v3012 = vor.u32 %v3011, 8388608
      %v3013 = vsub.s32 0, %v3012
      %v3014 = vadd.s32 %v3009, 1
      %vm3015 = vcmp.gt.s32.totalorder %v3014, 0
      %v3016 = vsel %vm3015, %v3014, 0
      %v3017 = vshrl.u32 %v3016, 5
      %v3018 = vand.u32 %v3016, 31
      %v3019 = vsub.s32 32, %v3018
      %v3020 = vshrl.u32 683565275, %v3019
      %v3021 = vshll.u32 683565275, %v3018
      %v3022 = vshrl.u32 2475754826, %v3019
      %v3023 = vor.u32 %v3021, %v3022
      %v3024 = vshll.u32 2475754826, %v3018
      %v3025 = vshrl.u32 2131351028, %v3019
      %v3026 = vor.u32 %v3024, %v3025
      %v3027 = vshll.u32 2131351028, %v3018
      %v3028 = vshrl.u32 2102212464, %v3019
      %v3029 = vor.u32 %v3027, %v3028
      %v3030 = vshll.u32 2102212464, %v3018
      %v3031 = vshrl.u32 920167782, %v3019
      %v3032 = vor.u32 %v3030, %v3031
      %v3033 = vshll.u32 920167782, %v3018
      %v3034 = vshrl.u32 1326507024, %v3019
      %v3035 = vor.u32 %v3033, %v3034
      %vm3036 = vcmp.lt.s32.totalorder %v3017, 1
      %vm3037 = vcmp.lt.s32.totalorder %v3017, 2
      %vm3038 = vcmp.lt.s32.totalorder %v3017, 3
      %vm3039 = vcmp.lt.s32.totalorder %v3017, 4
      %v3040 = vsel %vm3036, %v3020, %v3023
      %v3041 = vsel %vm3039, %v3029, 2102212464
      %v3042 = vsel %vm3038, %v3026, %v3041
      %v3043 = vsel %vm3037, %v3040, %v3042
      %v3044 = vsel %vm3036, %v3023, %v3026
      %v3045 = vsel %vm3039, %v3032, 920167782
      %v3046 = vsel %vm3038, %v3029, %v3045
      %v3047 = vsel %vm3037, %v3044, %v3046
      %v3048 = vsel %vm3036, %v3026, %v3029
      %v3049 = vsel %vm3039, %v3035, 1326507024
      %v3050 = vsel %vm3038, %v3032, %v3049
      %v3051 = vsel %vm3037, %v3048, %v3050
      %v3052 = vshll.u32 %v3012, 8
      %v3053 = vmul.u32.u64.compose %v3052, %v3051
      %v3054 = vextract.low.u32 %v3053
      %v3055 = vextract.high.u32 %v3053
      %v3056 = vmul.u32.u64.compose %v3052, %v3047
      %v3057 = vextract.low.u32 %v3056
      %v3058 = vextract.high.u32 %v3056
      %v3059 = vmul.u32 %v3052, %v3043
      %v3060 = vadd.s32 %v3055, %v3057
      %vm3061 = vc.u32 %v3055, %v3057
      %v3062 = vadd.s32 %v3058, 1
      %v3063 = vsel %vm3061, %v3062, %v3058
      %v3064 = vadd.s32 %v3059, %v3063
      %v3065 = vadd.s32 %v3064, 536870912
      %v3066 = vshrl.u32 %v3065, 30
      %v3067 = vshll.u32 %v3066, 30
      %v3068 = vsub.s32 %v3064, %v3067
      %vm3069 = vcmp.lt.s32.totalorder %v3068, 0
      %v3070 = vsub.s32 0, %v3068
      %v3071 = vsel %vm3069, %v3070, %v3068
      %v3072 = vclz %v3071
      %v3073 = vsub.s32 %v3072, 2
      %vm3074 = vcmp.gt.s32.totalorder 0, %v3073
      %v3075 = vsel %vm3074, 0, %v3073
      %v3076 = vsub.s32 32, %v3075
      %v3077 = vshll.u32 %v3068, %v3075
      %v3078 = vshrl.u32 %v3060, %v3076
      %v3079 = vor.u32 %v3077, %v3078
      %v3080 = vsub.s32 4294967266, %v3075
      %v3081 = vadd.s32 %v3080, 127
      %v3082 = vshll.u32 %v3081, 23
      %v3083 = vor.u32 4788187, %v3082
      %v3084 = vand.u32 2147483647, %v3083
      %v3086 = vcvt.s32.f32 %v3079
      %v3087 = vmul.f32 %v3086, %v3084
      %v3088 = vxor.u32 %v3087, 2147483648
      %v3089 = vsel %vm3006, %v3088, %v3087
      %v3090 = vsub.s32 4, %v3066
      %v3091 = vsel %vm3006, %v3090, %v3066
      %v3092 = vsel %vm3005, %v2275, %v3089
      %v3093 = vsel %vm3005, 0, %v3091
      %v3094 = vcosq.f32.pop %v3092
      %v3095 = vsinq.f32.pop %v3092
      %vm3096 = vweird.f32 %v2275
      %v3097 = vadd.s32 %v3093, 3
      %v3098 = vand.u32 %v3097, 3
      %vm3099 = vcmp.lt.s32.totalorder %v3098, 2
      %vm3100 = vcmp.eq.s32.totalorder %v3098, 0
      %v3101 = vxor.u32 %v3095, 2147483648
      %v3102 = vsel %vm3100, %v3094, %v3101
      %vm3103 = vcmp.eq.s32.totalorder %v3098, 2
      %v3104 = vxor.u32 %v3094, 2147483648
      %v3105 = vsel %vm3103, %v3104, %v3095
      %v3106 = vsel %vm3099, %v3102, %v3105
      %v3107 = vsel %vm3096, nan, %v3106
      %3108 = vst [vmem:[#allocation3 + $0x140] sm:$0xff] %v2795
      %3109 = vst [vmem:[#allocation3 + $0x148] sm:$0xff] %v2899
      %3110 = vst [vmem:[#allocation3 + $0x150] sm:$0xff] %v3003
      %3111 = vst [vmem:[#allocation3 + $0x158] sm:$0xff] %v3107
      %3112 = vst [vmem:[#allocation3 + $0x60] sm:$0xff] %v2378
      %3113 = vst [vmem:[#allocation3 + $0x68] sm:$0xff] %v2481
      %3114 = vst [vmem:[#allocation3 + $0x70] sm:$0xff] %v2584
      %3115 = vst [vmem:[#allocation3 + $0x78] sm:$0xff] %v2687
      %3116 = vst [vmem:[#allocation3 + $0x160] sm:$0xff] %v2795
      %3117 = vst [vmem:[#allocation3 + $0x168] sm:$0xff] %v2899
      %3118 = vst [vmem:[#allocation3 + $0x170] sm:$0xff] %v3003
      %3119 = vst [vmem:[#allocation3 + $0x178] sm:$0xff] %v3107
      %v3120 = vmul.f32 %v1424, 0.057735026
      %v3121 = vmul.f32 %v1425, 0.057735026
      %v3122 = vmul.f32 %v1426, 0.057735026
      %v3123 = vmul.f32 %v1427, 0.057735026
      %v3124 = vand.u32 2147483647, %v3120
      %vm3125 = vcmp.le.f32.partialorder %v3124, 0.7853982
      %vm3126 = vcmp.lt.s32.totalorder %v3120, 0
      %v3127 = vand.u32 %v3120, 2139095040
      %v3128 = vshrl.u32 %v3127, 23
      %v3129 = vsub.s32 %v3128, 127
      %v3130 = vand.u32 2147483647, %v3120
      %v3131 = vand.u32 %v3130, 8388607
      %v3132 = vor.u32 %v3131, 8388608
      %v3133 = vsub.s32 0, %v3132
      %v3134 = vadd.s32 %v3129, 1
      %vm3135 = vcmp.gt.s32.totalorder %v3134, 0
      %v3136 = vsel %vm3135, %v3134, 0
      %v3137 = vshrl.u32 %v3136, 5
      %v3138 = vand.u32 %v3136, 31
      %v3139 = vsub.s32 32, %v3138
      %v3140 = vshrl.u32 683565275, %v3139
      %v3141 = vshll.u32 683565275, %v3138
      %v3142 = vshrl.u32 2475754826, %v3139
      %v3143 = vor.u32 %v3141, %v3142
      %v3144 = vshll.u32 2475754826, %v3138
      %v3145 = vshrl.u32 2131351028, %v3139
      %v3146 = vor.u32 %v3144, %v3145
      %v3147 = vshll.u32 2131351028, %v3138
      %v3148 = vshrl.u32 2102212464, %v3139
      %v3149 = vor.u32 %v3147, %v3148
      %v3150 = vshll.u32 2102212464, %v3138
      %v3151 = vshrl.u32 920167782, %v3139
      %v3152 = vor.u32 %v3150, %v3151
      %v3153 = vshll.u32 920167782, %v3138
      %v3154 = vshrl.u32 1326507024, %v3139
      %v3155 = vor.u32 %v3153, %v3154
      %vm3156 = vcmp.lt.s32.totalorder %v3137, 1
      %vm3157 = vcmp.lt.s32.totalorder %v3137, 2
      %vm3158 = vcmp.lt.s32.totalorder %v3137, 3
      %vm3159 = vcmp.lt.s32.totalorder %v3137, 4
      %v3160 = vsel %vm3156, %v3140, %v3143
      %v3161 = vsel %vm3159, %v3149, 2102212464
      %v3162 = vsel %vm3158, %v3146, %v3161
      %v3163 = vsel %vm3157, %v3160, %v3162
      %v3164 = vsel %vm3156, %v3143, %v3146
      %v3165 = vsel %vm3159, %v3152, 920167782
      %v3166 = vsel %vm3158, %v3149, %v3165
      %v3167 = vsel %vm3157, %v3164, %v3166
      %v3168 = vsel %vm3156, %v3146, %v3149
      %v3169 = vsel %vm3159, %v3155, 1326507024
      %v3170 = vsel %vm3158, %v3152, %v3169
      %v3171 = vsel %vm3157, %v3168, %v3170
      %v3172 = vshll.u32 %v3132, 8
      %v3173 = vmul.u32.u64.compose %v3172, %v3171
      %v3174 = vextract.low.u32 %v3173
      %v3175 = vextract.high.u32 %v3173
      %v3176 = vmul.u32.u64.compose %v3172, %v3167
      %v3177 = vextract.low.u32 %v3176
      %v3178 = vextract.high.u32 %v3176
      %v3179 = vmul.u32 %v3172, %v3163
      %v3180 = vadd.s32 %v3175, %v3177
      %vm3181 = vc.u32 %v3175, %v3177
      %v3182 = vadd.s32 %v3178, 1
      %v3183 = vsel %vm3181, %v3182, %v3178
      %v3184 = vadd.s32 %v3179, %v3183
      %v3185 = vadd.s32 %v3184, 536870912
      %v3186 = vshrl.u32 %v3185, 30
      %v3187 = vshll.u32 %v3186, 30
      %v3188 = vsub.s32 %v3184, %v3187
      %vm3189 = vcmp.lt.s32.totalorder %v3188, 0
      %v3190 = vsub.s32 0, %v3188
      %v3191 = vsel %vm3189, %v3190, %v3188
      %v3192 = vclz %v3191
      %v3193 = vsub.s32 %v3192, 2
      %vm3194 = vcmp.gt.s32.totalorder 0, %v3193
      %v3195 = vsel %vm3194, 0, %v3193
      %v3196 = vsub.s32 32, %v3195
      %v3197 = vshll.u32 %v3188, %v3195
      %v3198 = vshrl.u32 %v3180, %v3196
      %v3199 = vor.u32 %v3197, %v3198
      %v3200 = vsub.s32 4294967266, %v3195
      %v3201 = vadd.s32 %v3200, 127
      %v3202 = vshll.u32 %v3201, 23
      %v3203 = vor.u32 4788187, %v3202
      %v3204 = vand.u32 2147483647, %v3203
      %v3206 = vcvt.s32.f32 %v3199
      %v3207 = vmul.f32 %v3206, %v3204
      %v3208 = vxor.u32 %v3207, 2147483648
      %v3209 = vsel %vm3126, %v3208, %v3207
      %v3210 = vsub.s32 4, %v3186
      %v3211 = vsel %vm3126, %v3210, %v3186
      %v3212 = vsel %vm3125, %v3120, %v3209
      %v3213 = vsel %vm3125, 0, %v3211
      %v3214 = vcosq.f32.pop %v3212
      %v3215 = vsinq.f32.pop %v3212
      %vm3216 = vweird.f32 %v3120
      %v3217 = vand.u32 %v3213, 3
      %vm3218 = vcmp.lt.s32.totalorder %v3217, 2
      %vm3219 = vcmp.eq.s32.totalorder %v3217, 0
      %v3220 = vxor.u32 %v3215, 2147483648
      %v3221 = vsel %vm3219, %v3214, %v3220
      %vm3222 = vcmp.eq.s32.totalorder %v3217, 2
      %v3223 = vxor.u32 %v3214, 2147483648
      %v3224 = vsel %vm3222, %v3223, %v3215
      %v3225 = vsel %vm3218, %v3221, %v3224
      %v3226 = vsel %vm3216, nan, %v3225
      %v3227 = vand.u32 2147483647, %v3121
      %vm3228 = vcmp.le.f32.partialorder %v3227, 0.7853982
      %vm3229 = vcmp.lt.s32.totalorder %v3121, 0
      %v3230 = vand.u32 %v3121, 2139095040
      %v3231 = vshrl.u32 %v3230, 23
      %v3232 = vsub.s32 %v3231, 127
      %v3233 = vand.u32 2147483647, %v3121
      %v3234 = vand.u32 %v3233, 8388607
      %v3235 = vor.u32 %v3234, 8388608
      %v3236 = vsub.s32 0, %v3235
      %v3237 = vadd.s32 %v3232, 1
      %vm3238 = vcmp.gt.s32.totalorder %v3237, 0
      %v3239 = vsel %vm3238, %v3237, 0
      %v3240 = vshrl.u32 %v3239, 5
      %v3241 = vand.u32 %v3239, 31
      %v3242 = vsub.s32 32, %v3241
      %v3243 = vshrl.u32 683565275, %v3242
      %v3244 = vshll.u32 683565275, %v3241
      %v3245 = vshrl.u32 2475754826, %v3242
      %v3246 = vor.u32 %v3244, %v3245
      %v3247 = vshll.u32 2475754826, %v3241
      %v3248 = vshrl.u32 2131351028, %v3242
      %v3249 = vor.u32 %v3247, %v3248
      %v3250 = vshll.u32 2131351028, %v3241
      %v3251 = vshrl.u32 2102212464, %v3242
      %v3252 = vor.u32 %v3250, %v3251
      %v3253 = vshll.u32 2102212464, %v3241
      %v3254 = vshrl.u32 920167782, %v3242
      %v3255 = vor.u32 %v3253, %v3254
      %v3256 = vshll.u32 920167782, %v3241
      %v3257 = vshrl.u32 1326507024, %v3242
      %v3258 = vor.u32 %v3256, %v3257
      %vm3259 = vcmp.lt.s32.totalorder %v3240, 1
      %vm3260 = vcmp.lt.s32.totalorder %v3240, 2
      %vm3261 = vcmp.lt.s32.totalorder %v3240, 3
      %vm3262 = vcmp.lt.s32.totalorder %v3240, 4
      %v3263 = vsel %vm3259, %v3243, %v3246
      %v3264 = vsel %vm3262, %v3252, 2102212464
      %v3265 = vsel %vm3261, %v3249, %v3264
      %v3266 = vsel %vm3260, %v3263, %v3265
      %v3267 = vsel %vm3259, %v3246, %v3249
      %v3268 = vsel %vm3262, %v3255, 920167782
      %v3269 = vsel %vm3261, %v3252, %v3268
      %v3270 = vsel %vm3260, %v3267, %v3269
      %v3271 = vsel %vm3259, %v3249, %v3252
      %v3272 = vsel %vm3262, %v3258, 1326507024
      %v3273 = vsel %vm3261, %v3255, %v3272
      %v3274 = vsel %vm3260, %v3271, %v3273
      %v3275 = vshll.u32 %v3235, 8
      %v3276 = vmul.u32.u64.compose %v3275, %v3274
      %v3277 = vextract.low.u32 %v3276
      %v3278 = vextract.high.u32 %v3276
      %v3279 = vmul.u32.u64.compose %v3275, %v3270
      %v3280 = vextract.low.u32 %v3279
      %v3281 = vextract.high.u32 %v3279
      %v3282 = vmul.u32 %v3275, %v3266
      %v3283 = vadd.s32 %v3278, %v3280
      %vm3284 = vc.u32 %v3278, %v3280
      %v3285 = vadd.s32 %v3281, 1
      %v3286 = vsel %vm3284, %v3285, %v3281
      %v3287 = vadd.s32 %v3282, %v3286
      %v3288 = vadd.s32 %v3287, 536870912
      %v3289 = vshrl.u32 %v3288, 30
      %v3290 = vshll.u32 %v3289, 30
      %v3291 = vsub.s32 %v3287, %v3290
      %vm3292 = vcmp.lt.s32.totalorder %v3291, 0
      %v3293 = vsub.s32 0, %v3291
      %v3294 = vsel %vm3292, %v3293, %v3291
      %v3295 = vclz %v3294
      %v3296 = vsub.s32 %v3295, 2
      %vm3297 = vcmp.gt.s32.totalorder 0, %v3296
      %v3298 = vsel %vm3297, 0, %v3296
      %v3299 = vsub.s32 32, %v3298
      %v3300 = vshll.u32 %v3291, %v3298
      %v3301 = vshrl.u32 %v3283, %v3299
      %v3302 = vor.u32 %v3300, %v3301
      %v3303 = vsub.s32 4294967266, %v3298
      %v3304 = vadd.s32 %v3303, 127
      %v3305 = vshll.u32 %v3304, 23
      %v3306 = vor.u32 4788187, %v3305
      %v3307 = vand.u32 2147483647, %v3306
      %v3309 = vcvt.s32.f32 %v3302
      %v3310 = vmul.f32 %v3309, %v3307
      %v3311 = vxor.u32 %v3310, 2147483648
      %v3312 = vsel %vm3229, %v3311, %v3310
      %v3313 = vsub.s32 4, %v3289
      %v3314 = vsel %vm3229, %v3313, %v3289
      %v3315 = vsel %vm3228, %v3121, %v3312
      %v3316 = vsel %vm3228, 0, %v3314
      %v3317 = vcosq.f32.pop %v3315
      %v3318 = vsinq.f32.pop %v3315
      %vm3319 = vweird.f32 %v3121
      %v3320 = vand.u32 %v3316, 3
      %vm3321 = vcmp.lt.s32.totalorder %v3320, 2
      %vm3322 = vcmp.eq.s32.totalorder %v3320, 0
      %v3323 = vxor.u32 %v3318, 2147483648
      %v3324 = vsel %vm3322, %v3317, %v3323
      %vm3325 = vcmp.eq.s32.totalorder %v3320, 2
      %v3326 = vxor.u32 %v3317, 2147483648
      %v3327 = vsel %vm3325, %v3326, %v3318
      %v3328 = vsel %vm3321, %v3324, %v3327
      %v3329 = vsel %vm3319, nan, %v3328
      %v3330 = vand.u32 2147483647, %v3122
      %vm3331 = vcmp.le.f32.partialorder %v3330, 0.7853982
      %vm3332 = vcmp.lt.s32.totalorder %v3122, 0
      %v3333 = vand.u32 %v3122, 2139095040
      %v3334 = vshrl.u32 %v3333, 23
      %v3335 = vsub.s32 %v3334, 127
      %v3336 = vand.u32 2147483647, %v3122
      %v3337 = vand.u32 %v3336, 8388607
      %v3338 = vor.u32 %v3337, 8388608
      %v3339 = vsub.s32 0, %v3338
      %v3340 = vadd.s32 %v3335, 1
      %vm3341 = vcmp.gt.s32.totalorder %v3340, 0
      %v3342 = vsel %vm3341, %v3340, 0
      %v3343 = vshrl.u32 %v3342, 5
      %v3344 = vand.u32 %v3342, 31
      %v3345 = vsub.s32 32, %v3344
      %v3346 = vshrl.u32 683565275, %v3345
      %v3347 = vshll.u32 683565275, %v3344
      %v3348 = vshrl.u32 2475754826, %v3345
      %v3349 = vor.u32 %v3347, %v3348
      %v3350 = vshll.u32 2475754826, %v3344
      %v3351 = vshrl.u32 2131351028, %v3345
      %v3352 = vor.u32 %v3350, %v3351
      %v3353 = vshll.u32 2131351028, %v3344
      %v3354 = vshrl.u32 2102212464, %v3345
      %v3355 = vor.u32 %v3353, %v3354
      %v3356 = vshll.u32 2102212464, %v3344
      %v3357 = vshrl.u32 920167782, %v3345
      %v3358 = vor.u32 %v3356, %v3357
      %v3359 = vshll.u32 920167782, %v3344
      %v3360 = vshrl.u32 1326507024, %v3345
      %v3361 = vor.u32 %v3359, %v3360
      %vm3362 = vcmp.lt.s32.totalorder %v3343, 1
      %vm3363 = vcmp.lt.s32.totalorder %v3343, 2
      %vm3364 = vcmp.lt.s32.totalorder %v3343, 3
      %vm3365 = vcmp.lt.s32.totalorder %v3343, 4
      %v3366 = vsel %vm3362, %v3346, %v3349
      %v3367 = vsel %vm3365, %v3355, 2102212464
      %v3368 = vsel %vm3364, %v3352, %v3367
      %v3369 = vsel %vm3363, %v3366, %v3368
      %v3370 = vsel %vm3362, %v3349, %v3352
      %v3371 = vsel %vm3365, %v3358, 920167782
      %v3372 = vsel %vm3364, %v3355, %v3371
      %v3373 = vsel %vm3363, %v3370, %v3372
      %v3374 = vsel %vm3362, %v3352, %v3355
      %v3375 = vsel %vm3365, %v3361, 1326507024
      %v3376 = vsel %vm3364, %v3358, %v3375
      %v3377 = vsel %vm3363, %v3374, %v3376
      %v3378 = vshll.u32 %v3338, 8
      %v3379 = vmul.u32.u64.compose %v3378, %v3377
      %v3380 = vextract.low.u32 %v3379
      %v3381 = vextract.high.u32 %v3379
      %v3382 = vmul.u32.u64.compose %v3378, %v3373
      %v3383 = vextract.low.u32 %v3382
      %v3384 = vextract.high.u32 %v3382
      %v3385 = vmul.u32 %v3378, %v3369
      %v3386 = vadd.s32 %v3381, %v3383
      %vm3387 = vc.u32 %v3381, %v3383
      %v3388 = vadd.s32 %v3384, 1
      %v3389 = vsel %vm3387, %v3388, %v3384
      %v3390 = vadd.s32 %v3385, %v3389
      %v3391 = vadd.s32 %v3390, 536870912
      %v3392 = vshrl.u32 %v3391, 30
      %v3393 = vshll.u32 %v3392, 30
      %v3394 = vsub.s32 %v3390, %v3393
      %vm3395 = vcmp.lt.s32.totalorder %v3394, 0
      %v3396 = vsub.s32 0, %v3394
      %v3397 = vsel %vm3395, %v3396, %v3394
      %v3398 = vclz %v3397
      %v3399 = vsub.s32 %v3398, 2
      %vm3400 = vcmp.gt.s32.totalorder 0, %v3399
      %v3401 = vsel %vm3400, 0, %v3399
      %v3402 = vsub.s32 32, %v3401
      %v3403 = vshll.u32 %v3394, %v3401
      %v3404 = vshrl.u32 %v3386, %v3402
      %v3405 = vor.u32 %v3403, %v3404
      %v3406 = vsub.s32 4294967266, %v3401
      %v3407 = vadd.s32 %v3406, 127
      %v3408 = vshll.u32 %v3407, 23
      %v3409 = vor.u32 4788187, %v3408
      %v3410 = vand.u32 2147483647, %v3409
      %v3412 = vcvt.s32.f32 %v3405
      %v3413 = vmul.f32 %v3412, %v3410
      %v3414 = vxor.u32 %v3413, 2147483648
      %v3415 = vsel %vm3332, %v3414, %v3413
      %v3416 = vsub.s32 4, %v3392
      %v3417 = vsel %vm3332, %v3416, %v3392
      %v3418 = vsel %vm3331, %v3122, %v3415
      %v3419 = vsel %vm3331, 0, %v3417
      %v3420 = vcosq.f32.pop %v3418
      %v3421 = vsinq.f32.pop %v3418
      %vm3422 = vweird.f32 %v3122
      %v3423 = vand.u32 %v3419, 3
      %vm3424 = vcmp.lt.s32.totalorder %v3423, 2
      %vm3425 = vcmp.eq.s32.totalorder %v3423, 0
      %v3426 = vxor.u32 %v3421, 2147483648
      %v3427 = vsel %vm3425, %v3420, %v3426
      %vm3428 = vcmp.eq.s32.totalorder %v3423, 2
      %v3429 = vxor.u32 %v3420, 2147483648
      %v3430 = vsel %vm3428, %v3429, %v3421
      %v3431 = vsel %vm3424, %v3427, %v3430
      %v3432 = vsel %vm3422, nan, %v3431
      %v3433 = vand.u32 2147483647, %v3123
      %vm3434 = vcmp.le.f32.partialorder %v3433, 0.7853982
      %vm3435 = vcmp.lt.s32.totalorder %v3123, 0
      %v3436 = vand.u32 %v3123, 2139095040
      %v3437 = vshrl.u32 %v3436, 23
      %v3438 = vsub.s32 %v3437, 127
      %v3439 = vand.u32 2147483647, %v3123
      %v3440 = vand.u32 %v3439, 8388607
      %v3441 = vor.u32 %v3440, 8388608
      %v3442 = vsub.s32 0, %v3441
      %v3443 = vadd.s32 %v3438, 1
      %vm3444 = vcmp.gt.s32.totalorder %v3443, 0
      %v3445 = vsel %vm3444, %v3443, 0
      %v3446 = vshrl.u32 %v3445, 5
      %v3447 = vand.u32 %v3445, 31
      %v3448 = vsub.s32 32, %v3447
      %v3449 = vshrl.u32 683565275, %v3448
      %v3450 = vshll.u32 683565275, %v3447
      %v3451 = vshrl.u32 2475754826, %v3448
      %v3452 = vor.u32 %v3450, %v3451
      %v3453 = vshll.u32 2475754826, %v3447
      %v3454 = vshrl.u32 2131351028, %v3448
      %v3455 = vor.u32 %v3453, %v3454
      %v3456 = vshll.u32 2131351028, %v3447
      %v3457 = vshrl.u32 2102212464, %v3448
      %v3458 = vor.u32 %v3456, %v3457
      %v3459 = vshll.u32 2102212464, %v3447
      %v3460 = vshrl.u32 920167782, %v3448
      %v3461 = vor.u32 %v3459, %v3460
      %v3462 = vshll.u32 920167782, %v3447
      %v3463 = vshrl.u32 1326507024, %v3448
      %v3464 = vor.u32 %v3462, %v3463
      %vm3465 = vcmp.lt.s32.totalorder %v3446, 1
      %vm3466 = vcmp.lt.s32.totalorder %v3446, 2
      %vm3467 = vcmp.lt.s32.totalorder %v3446, 3
      %vm3468 = vcmp.lt.s32.totalorder %v3446, 4
      %v3469 = vsel %vm3465, %v3449, %v3452
      %v3470 = vsel %vm3468, %v3458, 2102212464
      %v3471 = vsel %vm3467, %v3455, %v3470
      %v3472 = vsel %vm3466, %v3469, %v3471
      %v3473 = vsel %vm3465, %v3452, %v3455
      %v3474 = vsel %vm3468, %v3461, 920167782
      %v3475 = vsel %vm3467, %v3458, %v3474
      %v3476 = vsel %vm3466, %v3473, %v3475
      %v3477 = vsel %vm3465, %v3455, %v3458
      %v3478 = vsel %vm3468, %v3464, 1326507024
      %v3479 = vsel %vm3467, %v3461, %v3478
      %v3480 = vsel %vm3466, %v3477, %v3479
      %v3481 = vshll.u32 %v3441, 8
      %v3482 = vmul.u32.u64.compose %v3481, %v3480
      %v3483 = vextract.low.u32 %v3482
      %v3484 = vextract.high.u32 %v3482
      %v3485 = vmul.u32.u64.compose %v3481, %v3476
      %v3486 = vextract.low.u32 %v3485
      %v3487 = vextract.high.u32 %v3485
      %v3488 = vmul.u32 %v3481, %v3472
      %v3489 = vadd.s32 %v3484, %v3486
      %vm3490 = vc.u32 %v3484, %v3486
      %v3491 = vadd.s32 %v3487, 1
      %v3492 = vsel %vm3490, %v3491, %v3487
      %v3493 = vadd.s32 %v3488, %v3492
      %v3494 = vadd.s32 %v3493, 536870912
      %v3495 = vshrl.u32 %v3494, 30
      %v3496 = vshll.u32 %v3495, 30
      %v3497 = vsub.s32 %v3493, %v3496
      %vm3498 = vcmp.lt.s32.totalorder %v3497, 0
      %v3499 = vsub.s32 0, %v3497
      %v3500 = vsel %vm3498, %v3499, %v3497
      %v3501 = vclz %v3500
      %v3502 = vsub.s32 %v3501, 2
      %vm3503 = vcmp.gt.s32.totalorder 0, %v3502
      %v3504 = vsel %vm3503, 0, %v3502
      %v3505 = vsub.s32 32, %v3504
      %v3506 = vshll.u32 %v3497, %v3504
      %v3507 = vshrl.u32 %v3489, %v3505
      %v3508 = vor.u32 %v3506, %v3507
      %v3509 = vsub.s32 4294967266, %v3504
      %v3510 = vadd.s32 %v3509, 127
      %v3511 = vshll.u32 %v3510, 23
      %v3512 = vor.u32 4788187, %v3511
      %v3513 = vand.u32 2147483647, %v3512
      %v3515 = vcvt.s32.f32 %v3508
      %v3516 = vmul.f32 %v3515, %v3513
      %v3517 = vxor.u32 %v3516, 2147483648
      %v3518 = vsel %vm3435, %v3517, %v3516
      %v3519 = vsub.s32 4, %v3495
      %v3520 = vsel %vm3435, %v3519, %v3495
      %v3521 = vsel %vm3434, %v3123, %v3518
      %v3522 = vsel %vm3434, 0, %v3520
      %v3523 = vcosq.f32.pop %v3521
      %v3524 = vsinq.f32.pop %v3521
      %vm3525 = vweird.f32 %v3123
      %v3526 = vand.u32 %v3522, 3
      %vm3527 = vcmp.lt.s32.totalorder %v3526, 2
      %vm3528 = vcmp.eq.s32.totalorder %v3526, 0
      %v3529 = vxor.u32 %v3524, 2147483648
      %v3530 = vsel %vm3528, %v3523, %v3529
      %vm3531 = vcmp.eq.s32.totalorder %v3526, 2
      %v3532 = vxor.u32 %v3523, 2147483648
      %v3533 = vsel %vm3531, %v3532, %v3524
      %v3534 = vsel %vm3527, %v3530, %v3533
      %v3535 = vsel %vm3525, nan, %v3534
      %3536 = vst [vmem:[#allocation3 + $0x80] sm:$0xff] %v3226
      %3537 = vst [vmem:[#allocation3 + $0x88] sm:$0xff] %v3329
      %3538 = vst [vmem:[#allocation3 + $0x90] sm:$0xff] %v3432
      %3539 = vst [vmem:[#allocation3 + $0x98] sm:$0xff] %v3535
      %v3540 = vand.u32 2147483647, %v3120
      %vm3541 = vcmp.le.f32.partialorder %v3540, 0.7853982
      %vm3542 = vcmp.lt.s32.totalorder %v3120, 0
      %v3543 = vand.u32 %v3120, 2139095040
      %v3544 = vshrl.u32 %v3543, 23
      %v3545 = vsub.s32 %v3544, 127
      %v3546 = vand.u32 2147483647, %v3120
      %v3547 = vand.u32 %v3546, 8388607
      %v3548 = vor.u32 %v3547, 8388608
      %v3549 = vsub.s32 0, %v3548
      %v3550 = vadd.s32 %v3545, 1
      %vm3551 = vcmp.gt.s32.totalorder %v3550, 0
      %v3552 = vsel %vm3551, %v3550, 0
      %v3553 = vshrl.u32 %v3552, 5
      %v3554 = vand.u32 %v3552, 31
      %v3555 = vsub.s32 32, %v3554
      %v3556 = vshrl.u32 683565275, %v3555
      %v3557 = vshll.u32 683565275, %v3554
      %v3558 = vshrl.u32 2475754826, %v3555
      %v3559 = vor.u32 %v3557, %v3558
      %v3560 = vshll.u32 2475754826, %v3554
      %v3561 = vshrl.u32 2131351028, %v3555
      %v3562 = vor.u32 %v3560, %v3561
      %v3563 = vshll.u32 2131351028, %v3554
      %v3564 = vshrl.u32 2102212464, %v3555
      %v3565 = vor.u32 %v3563, %v3564
      %v3566 = vshll.u32 2102212464, %v3554
      %v3567 = vshrl.u32 920167782, %v3555
      %v3568 = vor.u32 %v3566, %v3567
      %v3569 = vshll.u32 920167782, %v3554
      %v3570 = vshrl.u32 1326507024, %v3555
      %v3571 = vor.u32 %v3569, %v3570
      %vm3572 = vcmp.lt.s32.totalorder %v3553, 1
      %vm3573 = vcmp.lt.s32.totalorder %v3553, 2
      %vm3574 = vcmp.lt.s32.totalorder %v3553, 3
      %vm3575 = vcmp.lt.s32.totalorder %v3553, 4
      %v3576 = vsel %vm3572, %v3556, %v3559
      %v3577 = vsel %vm3575, %v3565, 2102212464
      %v3578 = vsel %vm3574, %v3562, %v3577
      %v3579 = vsel %vm3573, %v3576, %v3578
      %v3580 = vsel %vm3572, %v3559, %v3562
      %v3581 = vsel %vm3575, %v3568, 920167782
      %v3582 = vsel %vm3574, %v3565, %v3581
      %v3583 = vsel %vm3573, %v3580, %v3582
      %v3584 = vsel %vm3572, %v3562, %v3565
      %v3585 = vsel %vm3575, %v3571, 1326507024
      %v3586 = vsel %vm3574, %v3568, %v3585
      %v3587 = vsel %vm3573, %v3584, %v3586
      %v3588 = vshll.u32 %v3548, 8
      %v3589 = vmul.u32.u64.compose %v3588, %v3587
      %v3590 = vextract.low.u32 %v3589
      %v3591 = vextract.high.u32 %v3589
      %v3592 = vmul.u32.u64.compose %v3588, %v3583
      %v3593 = vextract.low.u32 %v3592
      %v3594 = vextract.high.u32 %v3592
      %v3595 = vmul.u32 %v3588, %v3579
      %v3596 = vadd.s32 %v3591, %v3593
      %vm3597 = vc.u32 %v3591, %v3593
      %v3598 = vadd.s32 %v3594, 1
      %v3599 = vsel %vm3597, %v3598, %v3594
      %v3600 = vadd.s32 %v3595, %v3599
      %v3601 = vadd.s32 %v3600, 536870912
      %v3602 = vshrl.u32 %v3601, 30
      %v3603 = vshll.u32 %v3602, 30
      %v3604 = vsub.s32 %v3600, %v3603
      %vm3605 = vcmp.lt.s32.totalorder %v3604, 0
      %v3606 = vsub.s32 0, %v3604
      %v3607 = vsel %vm3605, %v3606, %v3604
      %v3608 = vclz %v3607
      %v3609 = vsub.s32 %v3608, 2
      %vm3610 = vcmp.gt.s32.totalorder 0, %v3609
      %v3611 = vsel %vm3610, 0, %v3609
      %v3612 = vsub.s32 32, %v3611
      %v3613 = vshll.u32 %v3604, %v3611
      %v3614 = vshrl.u32 %v3596, %v3612
      %v3615 = vor.u32 %v3613, %v3614
      %v3616 = vsub.s32 4294967266, %v3611
      %v3617 = vadd.s32 %v3616, 127
      %v3618 = vshll.u32 %v3617, 23
      %v3619 = vor.u32 4788187, %v3618
      %v3620 = vand.u32 2147483647, %v3619
      %v3622 = vcvt.s32.f32 %v3615
      %v3623 = vmul.f32 %v3622, %v3620
      %v3624 = vxor.u32 %v3623, 2147483648
      %v3625 = vsel %vm3542, %v3624, %v3623
      %v3626 = vsub.s32 4, %v3602
      %v3627 = vsel %vm3542, %v3626, %v3602
      %v3628 = vsel %vm3541, %v3120, %v3625
      %v3629 = vsel %vm3541, 0, %v3627
      %v3630 = vcosq.f32.pop %v3628
      %v3631 = vsinq.f32.pop %v3628
      %vm3632 = vweird.f32 %v3120
      %v3633 = vadd.s32 %v3629, 3
      %v3634 = vand.u32 %v3633, 3
      %vm3635 = vcmp.lt.s32.totalorder %v3634, 2
      %vm3636 = vcmp.eq.s32.totalorder %v3634, 0
      %v3637 = vxor.u32 %v3631, 2147483648
      %v3638 = vsel %vm3636, %v3630, %v3637
      %vm3639 = vcmp.eq.s32.totalorder %v3634, 2
      %v3640 = vxor.u32 %v3630, 2147483648
      %v3641 = vsel %vm3639, %v3640, %v3631
      %v3642 = vsel %vm3635, %v3638, %v3641
      %v3643 = vsel %vm3632, nan, %v3642
      %v3644 = vand.u32 2147483647, %v3121
      %vm3645 = vcmp.le.f32.partialorder %v3644, 0.7853982
      %vm3646 = vcmp.lt.s32.totalorder %v3121, 0
      %v3647 = vand.u32 %v3121, 2139095040
      %v3648 = vshrl.u32 %v3647, 23
      %v3649 = vsub.s32 %v3648, 127
      %v3650 = vand.u32 2147483647, %v3121
      %v3651 = vand.u32 %v3650, 8388607
      %v3652 = vor.u32 %v3651, 8388608
      %v3653 = vsub.s32 0, %v3652
      %v3654 = vadd.s32 %v3649, 1
      %vm3655 = vcmp.gt.s32.totalorder %v3654, 0
      %v3656 = vsel %vm3655, %v3654, 0
      %v3657 = vshrl.u32 %v3656, 5
      %v3658 = vand.u32 %v3656, 31
      %v3659 = vsub.s32 32, %v3658
      %v3660 = vshrl.u32 683565275, %v3659
      %v3661 = vshll.u32 683565275, %v3658
      %v3662 = vshrl.u32 2475754826, %v3659
      %v3663 = vor.u32 %v3661, %v3662
      %v3664 = vshll.u32 2475754826, %v3658
      %v3665 = vshrl.u32 2131351028, %v3659
      %v3666 = vor.u32 %v3664, %v3665
      %v3667 = vshll.u32 2131351028, %v3658
      %v3668 = vshrl.u32 2102212464, %v3659
      %v3669 = vor.u32 %v3667, %v3668
      %v3670 = vshll.u32 2102212464, %v3658
      %v3671 = vshrl.u32 920167782, %v3659
      %v3672 = vor.u32 %v3670, %v3671
      %v3673 = vshll.u32 920167782, %v3658
      %v3674 = vshrl.u32 1326507024, %v3659
      %v3675 = vor.u32 %v3673, %v3674
      %vm3676 = vcmp.lt.s32.totalorder %v3657, 1
      %vm3677 = vcmp.lt.s32.totalorder %v3657, 2
      %vm3678 = vcmp.lt.s32.totalorder %v3657, 3
      %vm3679 = vcmp.lt.s32.totalorder %v3657, 4
      %v3680 = vsel %vm3676, %v3660, %v3663
      %v3681 = vsel %vm3679, %v3669, 2102212464
      %v3682 = vsel %vm3678, %v3666, %v3681
      %v3683 = vsel %vm3677, %v3680, %v3682
      %v3684 = vsel %vm3676, %v3663, %v3666
      %v3685 = vsel %vm3679, %v3672, 920167782
      %v3686 = vsel %vm3678, %v3669, %v3685
      %v3687 = vsel %vm3677, %v3684, %v3686
      %v3688 = vsel %vm3676, %v3666, %v3669
      %v3689 = vsel %vm3679, %v3675, 1326507024
      %v3690 = vsel %vm3678, %v3672, %v3689
      %v3691 = vsel %vm3677, %v3688, %v3690
      %v3692 = vshll.u32 %v3652, 8
      %v3693 = vmul.u32.u64.compose %v3692, %v3691
      %v3694 = vextract.low.u32 %v3693
      %v3695 = vextract.high.u32 %v3693
      %v3696 = vmul.u32.u64.compose %v3692, %v3687
      %v3697 = vextract.low.u32 %v3696
      %v3698 = vextract.high.u32 %v3696
      %v3699 = vmul.u32 %v3692, %v3683
      %v3700 = vadd.s32 %v3695, %v3697
      %vm3701 = vc.u32 %v3695, %v3697
      %v3702 = vadd.s32 %v3698, 1
      %v3703 = vsel %vm3701, %v3702, %v3698
      %v3704 = vadd.s32 %v3699, %v3703
      %v3705 = vadd.s32 %v3704, 536870912
      %v3706 = vshrl.u32 %v3705, 30
      %v3707 = vshll.u32 %v3706, 30
      %v3708 = vsub.s32 %v3704, %v3707
      %vm3709 = vcmp.lt.s32.totalorder %v3708, 0
      %v3710 = vsub.s32 0, %v3708
      %v3711 = vsel %vm3709, %v3710, %v3708
      %v3712 = vclz %v3711
      %v3713 = vsub.s32 %v3712, 2
      %vm3714 = vcmp.gt.s32.totalorder 0, %v3713
      %v3715 = vsel %vm3714, 0, %v3713
      %v3716 = vsub.s32 32, %v3715
      %v3717 = vshll.u32 %v3708, %v3715
      %v3718 = vshrl.u32 %v3700, %v3716
      %v3719 = vor.u32 %v3717, %v3718
      %v3720 = vsub.s32 4294967266, %v3715
      %v3721 = vadd.s32 %v3720, 127
      %v3722 = vshll.u32 %v3721, 23
      %v3723 = vor.u32 4788187, %v3722
      %v3724 = vand.u32 2147483647, %v3723
      %v3726 = vcvt.s32.f32 %v3719
      %v3727 = vmul.f32 %v3726, %v3724
      %v3728 = vxor.u32 %v3727, 2147483648
      %v3729 = vsel %vm3646, %v3728, %v3727
      %v3730 = vsub.s32 4, %v3706
      %v3731 = vsel %vm3646, %v3730, %v3706
      %v3732 = vsel %vm3645, %v3121, %v3729
      %v3733 = vsel %vm3645, 0, %v3731
      %v3734 = vcosq.f32.pop %v3732
      %v3735 = vsinq.f32.pop %v3732
      %vm3736 = vweird.f32 %v3121
      %v3737 = vadd.s32 %v3733, 3
      %v3738 = vand.u32 %v3737, 3
      %vm3739 = vcmp.lt.s32.totalorder %v3738, 2
      %vm3740 = vcmp.eq.s32.totalorder %v3738, 0
      %v3741 = vxor.u32 %v3735, 2147483648
      %v3742 = vsel %vm3740, %v3734, %v3741
      %vm3743 = vcmp.eq.s32.totalorder %v3738, 2
      %v3744 = vxor.u32 %v3734, 2147483648
      %v3745 = vsel %vm3743, %v3744, %v3735
      %v3746 = vsel %vm3739, %v3742, %v3745
      %v3747 = vsel %vm3736, nan, %v3746
      %v3748 = vand.u32 2147483647, %v3122
      %vm3749 = vcmp.le.f32.partialorder %v3748, 0.7853982
      %vm3750 = vcmp.lt.s32.totalorder %v3122, 0
      %v3751 = vand.u32 %v3122, 2139095040
      %v3752 = vshrl.u32 %v3751, 23
      %v3753 = vsub.s32 %v3752, 127
      %v3754 = vand.u32 2147483647, %v3122
      %v3755 = vand.u32 %v3754, 8388607
      %v3756 = vor.u32 %v3755, 8388608
      %v3757 = vsub.s32 0, %v3756
      %v3758 = vadd.s32 %v3753, 1
      %vm3759 = vcmp.gt.s32.totalorder %v3758, 0
      %v3760 = vsel %vm3759, %v3758, 0
      %v3761 = vshrl.u32 %v3760, 5
      %v3762 = vand.u32 %v3760, 31
      %v3763 = vsub.s32 32, %v3762
      %v3764 = vshrl.u32 683565275, %v3763
      %v3765 = vshll.u32 683565275, %v3762
      %v3766 = vshrl.u32 2475754826, %v3763
      %v3767 = vor.u32 %v3765, %v3766
      %v3768 = vshll.u32 2475754826, %v3762
      %v3769 = vshrl.u32 2131351028, %v3763
      %v3770 = vor.u32 %v3768, %v3769
      %v3771 = vshll.u32 2131351028, %v3762
      %v3772 = vshrl.u32 2102212464, %v3763
      %v3773 = vor.u32 %v3771, %v3772
      %v3774 = vshll.u32 2102212464, %v3762
      %v3775 = vshrl.u32 920167782, %v3763
      %v3776 = vor.u32 %v3774, %v3775
      %v3777 = vshll.u32 920167782, %v3762
      %v3778 = vshrl.u32 1326507024, %v3763
      %v3779 = vor.u32 %v3777, %v3778
      %vm3780 = vcmp.lt.s32.totalorder %v3761, 1
      %vm3781 = vcmp.lt.s32.totalorder %v3761, 2
      %vm3782 = vcmp.lt.s32.totalorder %v3761, 3
      %vm3783 = vcmp.lt.s32.totalorder %v3761, 4
      %v3784 = vsel %vm3780, %v3764, %v3767
      %v3785 = vsel %vm3783, %v3773, 2102212464
      %v3786 = vsel %vm3782, %v3770, %v3785
      %v3787 = vsel %vm3781, %v3784, %v3786
      %v3788 = vsel %vm3780, %v3767, %v3770
      %v3789 = vsel %vm3783, %v3776, 920167782
      %v3790 = vsel %vm3782, %v3773, %v3789
      %v3791 = vsel %vm3781, %v3788, %v3790
      %v3792 = vsel %vm3780, %v3770, %v3773
      %v3793 = vsel %vm3783, %v3779, 1326507024
      %v3794 = vsel %vm3782, %v3776, %v3793
      %v3795 = vsel %vm3781, %v3792, %v3794
      %v3796 = vshll.u32 %v3756, 8
      %v3797 = vmul.u32.u64.compose %v3796, %v3795
      %v3798 = vextract.low.u32 %v3797
      %v3799 = vextract.high.u32 %v3797
      %v3800 = vmul.u32.u64.compose %v3796, %v3791
      %v3801 = vextract.low.u32 %v3800
      %v3802 = vextract.high.u32 %v3800
      %v3803 = vmul.u32 %v3796, %v3787
      %v3804 = vadd.s32 %v3799, %v3801
      %vm3805 = vc.u32 %v3799, %v3801
      %v3806 = vadd.s32 %v3802, 1
      %v3807 = vsel %vm3805, %v3806, %v3802
      %v3808 = vadd.s32 %v3803, %v3807
      %v3809 = vadd.s32 %v3808, 536870912
      %v3810 = vshrl.u32 %v3809, 30
      %v3811 = vshll.u32 %v3810, 30
      %v3812 = vsub.s32 %v3808, %v3811
      %vm3813 = vcmp.lt.s32.totalorder %v3812, 0
      %v3814 = vsub.s32 0, %v3812
      %v3815 = vsel %vm3813, %v3814, %v3812
      %v3816 = vclz %v3815
      %v3817 = vsub.s32 %v3816, 2
      %vm3818 = vcmp.gt.s32.totalorder 0, %v3817
      %v3819 = vsel %vm3818, 0, %v3817
      %v3820 = vsub.s32 32, %v3819
      %v3821 = vshll.u32 %v3812, %v3819
      %v3822 = vshrl.u32 %v3804, %v3820
      %v3823 = vor.u32 %v3821, %v3822
      %v3824 = vsub.s32 4294967266, %v3819
      %v3825 = vadd.s32 %v3824, 127
      %v3826 = vshll.u32 %v3825, 23
      %v3827 = vor.u32 4788187, %v3826
      %v3828 = vand.u32 2147483647, %v3827
      %v3830 = vcvt.s32.f32 %v3823
      %v3831 = vmul.f32 %v3830, %v3828
      %v3832 = vxor.u32 %v3831, 2147483648
      %v3833 = vsel %vm3750, %v3832, %v3831
      %v3834 = vsub.s32 4, %v3810
      %v3835 = vsel %vm3750, %v3834, %v3810
      %v3836 = vsel %vm3749, %v3122, %v3833
      %v3837 = vsel %vm3749, 0, %v3835
      %v3838 = vcosq.f32.pop %v3836
      %v3839 = vsinq.f32.pop %v3836
      %vm3840 = vweird.f32 %v3122
      %v3841 = vadd.s32 %v3837, 3
      %v3842 = vand.u32 %v3841, 3
      %vm3843 = vcmp.lt.s32.totalorder %v3842, 2
      %vm3844 = vcmp.eq.s32.totalorder %v3842, 0
      %v3845 = vxor.u32 %v3839, 2147483648
      %v3846 = vsel %vm3844, %v3838, %v3845
      %vm3847 = vcmp.eq.s32.totalorder %v3842, 2
      %v3848 = vxor.u32 %v3838, 2147483648
      %v3849 = vsel %vm3847, %v3848, %v3839
      %v3850 = vsel %vm3843, %v3846, %v3849
      %v3851 = vsel %vm3840, nan, %v3850
      %v3852 = vand.u32 2147483647, %v3123
      %vm3853 = vcmp.le.f32.partialorder %v3852, 0.7853982
      %vm3854 = vcmp.lt.s32.totalorder %v3123, 0
      %v3855 = vand.u32 %v3123, 2139095040
      %v3856 = vshrl.u32 %v3855, 23
      %v3857 = vsub.s32 %v3856, 127
      %v3858 = vand.u32 2147483647, %v3123
      %v3859 = vand.u32 %v3858, 8388607
      %v3860 = vor.u32 %v3859, 8388608
      %v3861 = vsub.s32 0, %v3860
      %v3862 = vadd.s32 %v3857, 1
      %vm3863 = vcmp.gt.s32.totalorder %v3862, 0
      %v3864 = vsel %vm3863, %v3862, 0
      %v3865 = vshrl.u32 %v3864, 5
      %v3866 = vand.u32 %v3864, 31
      %v3867 = vsub.s32 32, %v3866
      %v3868 = vshrl.u32 683565275, %v3867
      %v3869 = vshll.u32 683565275, %v3866
      %v3870 = vshrl.u32 2475754826, %v3867
      %v3871 = vor.u32 %v3869, %v3870
      %v3872 = vshll.u32 2475754826, %v3866
      %v3873 = vshrl.u32 2131351028, %v3867
      %v3874 = vor.u32 %v3872, %v3873
      %v3875 = vshll.u32 2131351028, %v3866
      %v3876 = vshrl.u32 2102212464, %v3867
      %v3877 = vor.u32 %v3875, %v3876
      %v3878 = vshll.u32 2102212464, %v3866
      %v3879 = vshrl.u32 920167782, %v3867
      %v3880 = vor.u32 %v3878, %v3879
      %v3881 = vshll.u32 920167782, %v3866
      %v3882 = vshrl.u32 1326507024, %v3867
      %v3883 = vor.u32 %v3881, %v3882
      %vm3884 = vcmp.lt.s32.totalorder %v3865, 1
      %vm3885 = vcmp.lt.s32.totalorder %v3865, 2
      %vm3886 = vcmp.lt.s32.totalorder %v3865, 3
      %vm3887 = vcmp.lt.s32.totalorder %v3865, 4
      %v3888 = vsel %vm3884, %v3868, %v3871
      %v3889 = vsel %vm3887, %v3877, 2102212464
      %v3890 = vsel %vm3886, %v3874, %v3889
      %v3891 = vsel %vm3885, %v3888, %v3890
      %v3892 = vsel %vm3884, %v3871, %v3874
      %v3893 = vsel %vm3887, %v3880, 920167782
      %v3894 = vsel %vm3886, %v3877, %v3893
      %v3895 = vsel %vm3885, %v3892, %v3894
      %v3896 = vsel %vm3884, %v3874, %v3877
      %v3897 = vsel %vm3887, %v3883, 1326507024
      %v3898 = vsel %vm3886, %v3880, %v3897
      %v3899 = vsel %vm3885, %v3896, %v3898
      %v3900 = vshll.u32 %v3860, 8
      %v3901 = vmul.u32.u64.compose %v3900, %v3899
      %v3902 = vextract.low.u32 %v3901
      %v3903 = vextract.high.u32 %v3901
      %v3904 = vmul.u32.u64.compose %v3900, %v3895
      %v3905 = vextract.low.u32 %v3904
      %v3906 = vextract.high.u32 %v3904
      %v3907 = vmul.u32 %v3900, %v3891
      %v3908 = vadd.s32 %v3903, %v3905
      %vm3909 = vc.u32 %v3903, %v3905
      %v3910 = vadd.s32 %v3906, 1
      %v3911 = vsel %vm3909, %v3910, %v3906
      %v3912 = vadd.s32 %v3907, %v3911
      %v3913 = vadd.s32 %v3912, 536870912
      %v3914 = vshrl.u32 %v3913, 30
      %v3915 = vshll.u32 %v3914, 30
      %v3916 = vsub.s32 %v3912, %v3915
      %vm3917 = vcmp.lt.s32.totalorder %v3916, 0
      %v3918 = vsub.s32 0, %v3916
      %v3919 = vsel %vm3917, %v3918, %v3916
      %v3920 = vclz %v3919
      %v3921 = vsub.s32 %v3920, 2
      %vm3922 = vcmp.gt.s32.totalorder 0, %v3921
      %v3923 = vsel %vm3922, 0, %v3921
      %v3924 = vsub.s32 32, %v3923
      %v3925 = vshll.u32 %v3916, %v3923
      %v3926 = vshrl.u32 %v3908, %v3924
      %v3927 = vor.u32 %v3925, %v3926
      %v3928 = vsub.s32 4294967266, %v3923
      %v3929 = vadd.s32 %v3928, 127
      %v3930 = vshll.u32 %v3929, 23
      %v3931 = vor.u32 4788187, %v3930
      %v3932 = vand.u32 2147483647, %v3931
      %v3934 = vcvt.s32.f32 %v3927
      %v3935 = vmul.f32 %v3934, %v3932
      %v3936 = vxor.u32 %v3935, 2147483648
      %v3937 = vsel %vm3854, %v3936, %v3935
      %v3938 = vsub.s32 4, %v3914
      %v3939 = vsel %vm3854, %v3938, %v3914
      %v3940 = vsel %vm3853, %v3123, %v3937
      %v3941 = vsel %vm3853, 0, %v3939
      %v3942 = vcosq.f32.pop %v3940
      %v3943 = vsinq.f32.pop %v3940
      %vm3944 = vweird.f32 %v3123
      %v3945 = vadd.s32 %v3941, 3
      %v3946 = vand.u32 %v3945, 3
      %vm3947 = vcmp.lt.s32.totalorder %v3946, 2
      %vm3948 = vcmp.eq.s32.totalorder %v3946, 0
      %v3949 = vxor.u32 %v3943, 2147483648
      %v3950 = vsel %vm3948, %v3942, %v3949
      %vm3951 = vcmp.eq.s32.totalorder %v3946, 2
      %v3952 = vxor.u32 %v3942, 2147483648
      %v3953 = vsel %vm3951, %v3952, %v3943
      %v3954 = vsel %vm3947, %v3950, %v3953
      %v3955 = vsel %vm3944, nan, %v3954
      %3956 = vst [vmem:[#allocation3 + $0x180] sm:$0xff] %v3643
      %3957 = vst [vmem:[#allocation3 + $0x188] sm:$0xff] %v3747
      %3958 = vst [vmem:[#allocation3 + $0x190] sm:$0xff] %v3851
      %3959 = vst [vmem:[#allocation3 + $0x198] sm:$0xff] %v3955
      %3960 = vst [vmem:[#allocation3 + $0xa0] sm:$0xff] %v3226
      %3961 = vst [vmem:[#allocation3 + $0xa8] sm:$0xff] %v3329
      %3962 = vst [vmem:[#allocation3 + $0xb0] sm:$0xff] %v3432
      %3963 = vst [vmem:[#allocation3 + $0xb8] sm:$0xff] %v3535
      %3964 = vst [vmem:[#allocation3 + $0x1a0] sm:$0xff] %v3643
      %3965 = vst [vmem:[#allocation3 + $0x1a8] sm:$0xff] %v3747
      %3966 = vst [vmem:[#allocation3 + $0x1b0] sm:$0xff] %v3851
      %3967 = vst [vmem:[#allocation3 + $0x1b8] sm:$0xff] %v3955
      %v3968 = vmul.f32 %v1424, 0.013872638
      %v3969 = vmul.f32 %v1425, 0.013872638
      %v3970 = vmul.f32 %v1426, 0.013872638
      %v3971 = vmul.f32 %v1427, 0.013872638
      %v3972 = vand.u32 2147483647, %v3968
      %vm3973 = vcmp.le.f32.partialorder %v3972, 0.7853982
      %vm3974 = vcmp.lt.s32.totalorder %v3968, 0
      %v3975 = vand.u32 %v3968, 2139095040
      %v3976 = vshrl.u32 %v3975, 23
      %v3977 = vsub.s32 %v3976, 127
      %v3978 = vand.u32 2147483647, %v3968
      %v3979 = vand.u32 %v3978, 8388607
      %v3980 = vor.u32 %v3979, 8388608
      %v3981 = vsub.s32 0, %v3980
      %v3982 = vadd.s32 %v3977, 1
      %vm3983 = vcmp.gt.s32.totalorder %v3982, 0
      %v3984 = vsel %vm3983, %v3982, 0
      %v3985 = vshrl.u32 %v3984, 5
      %v3986 = vand.u32 %v3984, 31
      %v3987 = vsub.s32 32, %v3986
      %v3988 = vshrl.u32 683565275, %v3987
      %v3989 = vshll.u32 683565275, %v3986
      %v3990 = vshrl.u32 2475754826, %v3987
      %v3991 = vor.u32 %v3989, %v3990
      %v3992 = vshll.u32 2475754826, %v3986
      %v3993 = vshrl.u32 2131351028, %v3987
      %v3994 = vor.u32 %v3992, %v3993
      %v3995 = vshll.u32 2131351028, %v3986
      %v3996 = vshrl.u32 2102212464, %v3987
      %v3997 = vor.u32 %v3995, %v3996
      %v3998 = vshll.u32 2102212464, %v3986
      %v3999 = vshrl.u32 920167782, %v3987
      %v4000 = vor.u32 %v3998, %v3999
      %v4001 = vshll.u32 920167782, %v3986
      %v4002 = vshrl.u32 1326507024, %v3987
      %v4003 = vor.u32 %v4001, %v4002
      %vm4004 = vcmp.lt.s32.totalorder %v3985, 1
      %vm4005 = vcmp.lt.s32.totalorder %v3985, 2
      %vm4006 = vcmp.lt.s32.totalorder %v3985, 3
      %vm4007 = vcmp.lt.s32.totalorder %v3985, 4
      %v4008 = vsel %vm4004, %v3988, %v3991
      %v4009 = vsel %vm4007, %v3997, 2102212464
      %v4010 = vsel %vm4006, %v3994, %v4009
      %v4011 = vsel %vm4005, %v4008, %v4010
      %v4012 = vsel %vm4004, %v3991, %v3994
      %v4013 = vsel %vm4007, %v4000, 920167782
      %v4014 = vsel %vm4006, %v3997, %v4013
      %v4015 = vsel %vm4005, %v4012, %v4014
      %v4016 = vsel %vm4004, %v3994, %v3997
      %v4017 = vsel %vm4007, %v4003, 1326507024
      %v4018 = vsel %vm4006, %v4000, %v4017
      %v4019 = vsel %vm4005, %v4016, %v4018
      %v4020 = vshll.u32 %v3980, 8
      %v4021 = vmul.u32.u64.compose %v4020, %v4019
      %v4022 = vextract.low.u32 %v4021
      %v4023 = vextract.high.u32 %v4021
      %v4024 = vmul.u32.u64.compose %v4020, %v4015
      %v4025 = vextract.low.u32 %v4024
      %v4026 = vextract.high.u32 %v4024
      %v4027 = vmul.u32 %v4020, %v4011
      %v4028 = vadd.s32 %v4023, %v4025
      %vm4029 = vc.u32 %v4023, %v4025
      %v4030 = vadd.s32 %v4026, 1
      %v4031 = vsel %vm4029, %v4030, %v4026
      %v4032 = vadd.s32 %v4027, %v4031
      %v4033 = vadd.s32 %v4032, 536870912
      %v4034 = vshrl.u32 %v4033, 30
      %v4035 = vshll.u32 %v4034, 30
      %v4036 = vsub.s32 %v4032, %v4035
      %vm4037 = vcmp.lt.s32.totalorder %v4036, 0
      %v4038 = vsub.s32 0, %v4036
      %v4039 = vsel %vm4037, %v4038, %v4036
      %v4040 = vclz %v4039
      %v4041 = vsub.s32 %v4040, 2
      %vm4042 = vcmp.gt.s32.totalorder 0, %v4041
      %v4043 = vsel %vm4042, 0, %v4041
      %v4044 = vsub.s32 32, %v4043
      %v4045 = vshll.u32 %v4036, %v4043
      %v4046 = vshrl.u32 %v4028, %v4044
      %v4047 = vor.u32 %v4045, %v4046
      %v4048 = vsub.s32 4294967266, %v4043
      %v4049 = vadd.s32 %v4048, 127
      %v4050 = vshll.u32 %v4049, 23
      %v4051 = vor.u32 4788187, %v4050
      %v4052 = vand.u32 2147483647, %v4051
      %v4054 = vcvt.s32.f32 %v4047
      %v4055 = vmul.f32 %v4054, %v4052
      %v4056 = vxor.u32 %v4055, 2147483648
      %v4057 = vsel %vm3974, %v4056, %v4055
      %v4058 = vsub.s32 4, %v4034
      %v4059 = vsel %vm3974, %v4058, %v4034
      %v4060 = vsel %vm3973, %v3968, %v4057
      %v4061 = vsel %vm3973, 0, %v4059
      %v4062 = vcosq.f32.pop %v4060
      %v4063 = vsinq.f32.pop %v4060
      %vm4064 = vweird.f32 %v3968
      %v4065 = vand.u32 %v4061, 3
      %vm4066 = vcmp.lt.s32.totalorder %v4065, 2
      %vm4067 = vcmp.eq.s32.totalorder %v4065, 0
      %v4068 = vxor.u32 %v4063, 2147483648
      %v4069 = vsel %vm4067, %v4062, %v4068
      %vm4070 = vcmp.eq.s32.totalorder %v4065, 2
      %v4071 = vxor.u32 %v4062, 2147483648
      %v4072 = vsel %vm4070, %v4071, %v4063
      %v4073 = vsel %vm4066, %v4069, %v4072
      %v4074 = vsel %vm4064, nan, %v4073
      %v4075 = vand.u32 2147483647, %v3969
      %vm4076 = vcmp.le.f32.partialorder %v4075, 0.7853982
      %vm4077 = vcmp.lt.s32.totalorder %v3969, 0
      %v4078 = vand.u32 %v3969, 2139095040
      %v4079 = vshrl.u32 %v4078, 23
      %v4080 = vsub.s32 %v4079, 127
      %v4081 = vand.u32 2147483647, %v3969
      %v4082 = vand.u32 %v4081, 8388607
      %v4083 = vor.u32 %v4082, 8388608
      %v4084 = vsub.s32 0, %v4083
      %v4085 = vadd.s32 %v4080, 1
      %vm4086 = vcmp.gt.s32.totalorder %v4085, 0
      %v4087 = vsel %vm4086, %v4085, 0
      %v4088 = vshrl.u32 %v4087, 5
      %v4089 = vand.u32 %v4087, 31
      %v4090 = vsub.s32 32, %v4089
      %v4091 = vshrl.u32 683565275, %v4090
      %v4092 = vshll.u32 683565275, %v4089
      %v4093 = vshrl.u32 2475754826, %v4090
      %v4094 = vor.u32 %v4092, %v4093
      %v4095 = vshll.u32 2475754826, %v4089
      %v4096 = vshrl.u32 2131351028, %v4090
      %v4097 = vor.u32 %v4095, %v4096
      %v4098 = vshll.u32 2131351028, %v4089
      %v4099 = vshrl.u32 2102212464, %v4090
      %v4100 = vor.u32 %v4098, %v4099
      %v4101 = vshll.u32 2102212464, %v4089
      %v4102 = vshrl.u32 920167782, %v4090
      %v4103 = vor.u32 %v4101, %v4102
      %v4104 = vshll.u32 920167782, %v4089
      %v4105 = vshrl.u32 1326507024, %v4090
      %v4106 = vor.u32 %v4104, %v4105
      %vm4107 = vcmp.lt.s32.totalorder %v4088, 1
      %vm4108 = vcmp.lt.s32.totalorder %v4088, 2
      %vm4109 = vcmp.lt.s32.totalorder %v4088, 3
      %vm4110 = vcmp.lt.s32.totalorder %v4088, 4
      %v4111 = vsel %vm4107, %v4091, %v4094
      %v4112 = vsel %vm4110, %v4100, 2102212464
      %v4113 = vsel %vm4109, %v4097, %v4112
      %v4114 = vsel %vm4108, %v4111, %v4113
      %v4115 = vsel %vm4107, %v4094, %v4097
      %v4116 = vsel %vm4110, %v4103, 920167782
      %v4117 = vsel %vm4109, %v4100, %v4116
      %v4118 = vsel %vm4108, %v4115, %v4117
      %v4119 = vsel %vm4107, %v4097, %v4100
      %v4120 = vsel %vm4110, %v4106, 1326507024
      %v4121 = vsel %vm4109, %v4103, %v4120
      %v4122 = vsel %vm4108, %v4119, %v4121
      %v4123 = vshll.u32 %v4083, 8
      %v4124 = vmul.u32.u64.compose %v4123, %v4122
      %v4125 = vextract.low.u32 %v4124
      %v4126 = vextract.high.u32 %v4124
      %v4127 = vmul.u32.u64.compose %v4123, %v4118
      %v4128 = vextract.low.u32 %v4127
      %v4129 = vextract.high.u32 %v4127
      %v4130 = vmul.u32 %v4123, %v4114
      %v4131 = vadd.s32 %v4126, %v4128
      %vm4132 = vc.u32 %v4126, %v4128
      %v4133 = vadd.s32 %v4129, 1
      %v4134 = vsel %vm4132, %v4133, %v4129
      %v4135 = vadd.s32 %v4130, %v4134
      %v4136 = vadd.s32 %v4135, 536870912
      %v4137 = vshrl.u32 %v4136, 30
      %v4138 = vshll.u32 %v4137, 30
      %v4139 = vsub.s32 %v4135, %v4138
      %vm4140 = vcmp.lt.s32.totalorder %v4139, 0
      %v4141 = vsub.s32 0, %v4139
      %v4142 = vsel %vm4140, %v4141, %v4139
      %v4143 = vclz %v4142
      %v4144 = vsub.s32 %v4143, 2
      %vm4145 = vcmp.gt.s32.totalorder 0, %v4144
      %v4146 = vsel %vm4145, 0, %v4144
      %v4147 = vsub.s32 32, %v4146
      %v4148 = vshll.u32 %v4139, %v4146
      %v4149 = vshrl.u32 %v4131, %v4147
      %v4150 = vor.u32 %v4148, %v4149
      %v4151 = vsub.s32 4294967266, %v4146
      %v4152 = vadd.s32 %v4151, 127
      %v4153 = vshll.u32 %v4152, 23
      %v4154 = vor.u32 4788187, %v4153
      %v4155 = vand.u32 2147483647, %v4154
      %v4157 = vcvt.s32.f32 %v4150
      %v4158 = vmul.f32 %v4157, %v4155
      %v4159 = vxor.u32 %v4158, 2147483648
      %v4160 = vsel %vm4077, %v4159, %v4158
      %v4161 = vsub.s32 4, %v4137
      %v4162 = vsel %vm4077, %v4161, %v4137
      %v4163 = vsel %vm4076, %v3969, %v4160
      %v4164 = vsel %vm4076, 0, %v4162
      %v4165 = vcosq.f32.pop %v4163
      %v4166 = vsinq.f32.pop %v4163
      %vm4167 = vweird.f32 %v3969
      %v4168 = vand.u32 %v4164, 3
      %vm4169 = vcmp.lt.s32.totalorder %v4168, 2
      %vm4170 = vcmp.eq.s32.totalorder %v4168, 0
      %v4171 = vxor.u32 %v4166, 2147483648
      %v4172 = vsel %vm4170, %v4165, %v4171
      %vm4173 = vcmp.eq.s32.totalorder %v4168, 2
      %v4174 = vxor.u32 %v4165, 2147483648
      %v4175 = vsel %vm4173, %v4174, %v4166
      %v4176 = vsel %vm4169, %v4172, %v4175
      %v4177 = vsel %vm4167, nan, %v4176
      %v4178 = vand.u32 2147483647, %v3970
      %vm4179 = vcmp.le.f32.partialorder %v4178, 0.7853982
      %vm4180 = vcmp.lt.s32.totalorder %v3970, 0
      %v4181 = vand.u32 %v3970, 2139095040
      %v4182 = vshrl.u32 %v4181, 23
      %v4183 = vsub.s32 %v4182, 127
      %v4184 = vand.u32 2147483647, %v3970
      %v4185 = vand.u32 %v4184, 8388607
      %v4186 = vor.u32 %v4185, 8388608
      %v4187 = vsub.s32 0, %v4186
      %v4188 = vadd.s32 %v4183, 1
      %vm4189 = vcmp.gt.s32.totalorder %v4188, 0
      %v4190 = vsel %vm4189, %v4188, 0
      %v4191 = vshrl.u32 %v4190, 5
      %v4192 = vand.u32 %v4190, 31
      %v4193 = vsub.s32 32, %v4192
      %v4194 = vshrl.u32 683565275, %v4193
      %v4195 = vshll.u32 683565275, %v4192
      %v4196 = vshrl.u32 2475754826, %v4193
      %v4197 = vor.u32 %v4195, %v4196
      %v4198 = vshll.u32 2475754826, %v4192
      %v4199 = vshrl.u32 2131351028, %v4193
      %v4200 = vor.u32 %v4198, %v4199
      %v4201 = vshll.u32 2131351028, %v4192
      %v4202 = vshrl.u32 2102212464, %v4193
      %v4203 = vor.u32 %v4201, %v4202
      %v4204 = vshll.u32 2102212464, %v4192
      %v4205 = vshrl.u32 920167782, %v4193
      %v4206 = vor.u32 %v4204, %v4205
      %v4207 = vshll.u32 920167782, %v4192
      %v4208 = vshrl.u32 1326507024, %v4193
      %v4209 = vor.u32 %v4207, %v4208
      %vm4210 = vcmp.lt.s32.totalorder %v4191, 1
      %vm4211 = vcmp.lt.s32.totalorder %v4191, 2
      %vm4212 = vcmp.lt.s32.totalorder %v4191, 3
      %vm4213 = vcmp.lt.s32.totalorder %v4191, 4
      %v4214 = vsel %vm4210, %v4194, %v4197
      %v4215 = vsel %vm4213, %v4203, 2102212464
      %v4216 = vsel %vm4212, %v4200, %v4215
      %v4217 = vsel %vm4211, %v4214, %v4216
      %v4218 = vsel %vm4210, %v4197, %v4200
      %v4219 = vsel %vm4213, %v4206, 920167782
      %v4220 = vsel %vm4212, %v4203, %v4219
      %v4221 = vsel %vm4211, %v4218, %v4220
      %v4222 = vsel %vm4210, %v4200, %v4203
      %v4223 = vsel %vm4213, %v4209, 1326507024
      %v4224 = vsel %vm4212, %v4206, %v4223
      %v4225 = vsel %vm4211, %v4222, %v4224
      %v4226 = vshll.u32 %v4186, 8
      %v4227 = vmul.u32.u64.compose %v4226, %v4225
      %v4228 = vextract.low.u32 %v4227
      %v4229 = vextract.high.u32 %v4227
      %v4230 = vmul.u32.u64.compose %v4226, %v4221
      %v4231 = vextract.low.u32 %v4230
      %v4232 = vextract.high.u32 %v4230
      %v4233 = vmul.u32 %v4226, %v4217
      %v4234 = vadd.s32 %v4229, %v4231
      %vm4235 = vc.u32 %v4229, %v4231
      %v4236 = vadd.s32 %v4232, 1
      %v4237 = vsel %vm4235, %v4236, %v4232
      %v4238 = vadd.s32 %v4233, %v4237
      %v4239 = vadd.s32 %v4238, 536870912
      %v4240 = vshrl.u32 %v4239, 30
      %v4241 = vshll.u32 %v4240, 30
      %v4242 = vsub.s32 %v4238, %v4241
      %vm4243 = vcmp.lt.s32.totalorder %v4242, 0
      %v4244 = vsub.s32 0, %v4242
      %v4245 = vsel %vm4243, %v4244, %v4242
      %v4246 = vclz %v4245
      %v4247 = vsub.s32 %v4246, 2
      %vm4248 = vcmp.gt.s32.totalorder 0, %v4247
      %v4249 = vsel %vm4248, 0, %v4247
      %v4250 = vsub.s32 32, %v4249
      %v4251 = vshll.u32 %v4242, %v4249
      %v4252 = vshrl.u32 %v4234, %v4250
      %v4253 = vor.u32 %v4251, %v4252
      %v4254 = vsub.s32 4294967266, %v4249
      %v4255 = vadd.s32 %v4254, 127
      %v4256 = vshll.u32 %v4255, 23
      %v4257 = vor.u32 4788187, %v4256
      %v4258 = vand.u32 2147483647, %v4257
      %v4260 = vcvt.s32.f32 %v4253
      %v4261 = vmul.f32 %v4260, %v4258
      %v4262 = vxor.u32 %v4261, 2147483648
      %v4263 = vsel %vm4180, %v4262, %v4261
      %v4264 = vsub.s32 4, %v4240
      %v4265 = vsel %vm4180, %v4264, %v4240
      %v4266 = vsel %vm4179, %v3970, %v4263
      %v4267 = vsel %vm4179, 0, %v4265
      %v4268 = vcosq.f32.pop %v4266
      %v4269 = vsinq.f32.pop %v4266
      %vm4270 = vweird.f32 %v3970
      %v4271 = vand.u32 %v4267, 3
      %vm4272 = vcmp.lt.s32.totalorder %v4271, 2
      %vm4273 = vcmp.eq.s32.totalorder %v4271, 0
      %v4274 = vxor.u32 %v4269, 2147483648
      %v4275 = vsel %vm4273, %v4268, %v4274
      %vm4276 = vcmp.eq.s32.totalorder %v4271, 2
      %v4277 = vxor.u32 %v4268, 2147483648
      %v4278 = vsel %vm4276, %v4277, %v4269
      %v4279 = vsel %vm4272, %v4275, %v4278
      %v4280 = vsel %vm4270, nan, %v4279
      %v4281 = vand.u32 2147483647, %v3971
      %vm4282 = vcmp.le.f32.partialorder %v4281, 0.7853982
      %vm4283 = vcmp.lt.s32.totalorder %v3971, 0
      %v4284 = vand.u32 %v3971, 2139095040
      %v4285 = vshrl.u32 %v4284, 23
      %v4286 = vsub.s32 %v4285, 127
      %v4287 = vand.u32 2147483647, %v3971
      %v4288 = vand.u32 %v4287, 8388607
      %v4289 = vor.u32 %v4288, 8388608
      %v4290 = vsub.s32 0, %v4289
      %v4291 = vadd.s32 %v4286, 1
      %vm4292 = vcmp.gt.s32.totalorder %v4291, 0
      %v4293 = vsel %vm4292, %v4291, 0
      %v4294 = vshrl.u32 %v4293, 5
      %v4295 = vand.u32 %v4293, 31
      %v4296 = vsub.s32 32, %v4295
      %v4297 = vshrl.u32 683565275, %v4296
      %v4298 = vshll.u32 683565275, %v4295
      %v4299 = vshrl.u32 2475754826, %v4296
      %v4300 = vor.u32 %v4298, %v4299
      %v4301 = vshll.u32 2475754826, %v4295
      %v4302 = vshrl.u32 2131351028, %v4296
      %v4303 = vor.u32 %v4301, %v4302
      %v4304 = vshll.u32 2131351028, %v4295
      %v4305 = vshrl.u32 2102212464, %v4296
      %v4306 = vor.u32 %v4304, %v4305
      %v4307 = vshll.u32 2102212464, %v4295
      %v4308 = vshrl.u32 920167782, %v4296
      %v4309 = vor.u32 %v4307, %v4308
      %v4310 = vshll.u32 920167782, %v4295
      %v4311 = vshrl.u32 1326507024, %v4296
      %v4312 = vor.u32 %v4310, %v4311
      %vm4313 = vcmp.lt.s32.totalorder %v4294, 1
      %vm4314 = vcmp.lt.s32.totalorder %v4294, 2
      %vm4315 = vcmp.lt.s32.totalorder %v4294, 3
      %vm4316 = vcmp.lt.s32.totalorder %v4294, 4
      %v4317 = vsel %vm4313, %v4297, %v4300
      %v4318 = vsel %vm4316, %v4306, 2102212464
      %v4319 = vsel %vm4315, %v4303, %v4318
      %v4320 = vsel %vm4314, %v4317, %v4319
      %v4321 = vsel %vm4313, %v4300, %v4303
      %v4322 = vsel %vm4316, %v4309, 920167782
      %v4323 = vsel %vm4315, %v4306, %v4322
      %v4324 = vsel %vm4314, %v4321, %v4323
      %v4325 = vsel %vm4313, %v4303, %v4306
      %v4326 = vsel %vm4316, %v4312, 1326507024
      %v4327 = vsel %vm4315, %v4309, %v4326
      %v4328 = vsel %vm4314, %v4325, %v4327
      %v4329 = vshll.u32 %v4289, 8
      %v4330 = vmul.u32.u64.compose %v4329, %v4328
      %v4331 = vextract.low.u32 %v4330
      %v4332 = vextract.high.u32 %v4330
      %v4333 = vmul.u32.u64.compose %v4329, %v4324
      %v4334 = vextract.low.u32 %v4333
      %v4335 = vextract.high.u32 %v4333
      %v4336 = vmul.u32 %v4329, %v4320
      %v4337 = vadd.s32 %v4332, %v4334
      %vm4338 = vc.u32 %v4332, %v4334
      %v4339 = vadd.s32 %v4335, 1
      %v4340 = vsel %vm4338, %v4339, %v4335
      %v4341 = vadd.s32 %v4336, %v4340
      %v4342 = vadd.s32 %v4341, 536870912
      %v4343 = vshrl.u32 %v4342, 30
      %v4344 = vshll.u32 %v4343, 30
      %v4345 = vsub.s32 %v4341, %v4344
      %vm4346 = vcmp.lt.s32.totalorder %v4345, 0
      %v4347 = vsub.s32 0, %v4345
      %v4348 = vsel %vm4346, %v4347, %v4345
      %v4349 = vclz %v4348
      %v4350 = vsub.s32 %v4349, 2
      %vm4351 = vcmp.gt.s32.totalorder 0, %v4350
      %v4352 = vsel %vm4351, 0, %v4350
      %v4353 = vsub.s32 32, %v4352
      %v4354 = vshll.u32 %v4345, %v4352
      %v4355 = vshrl.u32 %v4337, %v4353
      %v4356 = vor.u32 %v4354, %v4355
      %v4357 = vsub.s32 4294967266, %v4352
      %v4358 = vadd.s32 %v4357, 127
      %v4359 = vshll.u32 %v4358, 23
      %v4360 = vor.u32 4788187, %v4359
      %v4361 = vand.u32 2147483647, %v4360
      %v4363 = vcvt.s32.f32 %v4356
      %v4364 = vmul.f32 %v4363, %v4361
      %v4365 = vxor.u32 %v4364, 2147483648
      %v4366 = vsel %vm4283, %v4365, %v4364
      %v4367 = vsub.s32 4, %v4343
      %v4368 = vsel %vm4283, %v4367, %v4343
      %v4369 = vsel %vm4282, %v3971, %v4366
      %v4370 = vsel %vm4282, 0, %v4368
      %v4371 = vcosq.f32.pop %v4369
      %v4372 = vsinq.f32.pop %v4369
      %vm4373 = vweird.f32 %v3971
      %v4374 = vand.u32 %v4370, 3
      %vm4375 = vcmp.lt.s32.totalorder %v4374, 2
      %vm4376 = vcmp.eq.s32.totalorder %v4374, 0
      %v4377 = vxor.u32 %v4372, 2147483648
      %v4378 = vsel %vm4376, %v4371, %v4377
      %vm4379 = vcmp.eq.s32.totalorder %v4374, 2
      %v4380 = vxor.u32 %v4371, 2147483648
      %v4381 = vsel %vm4379, %v4380, %v4372
      %v4382 = vsel %vm4375, %v4378, %v4381
      %v4383 = vsel %vm4373, nan, %v4382
      %4384 = vst [vmem:[#allocation3 + $0xc0] sm:$0xff] %v4074
      %4385 = vst [vmem:[#allocation3 + $0xc8] sm:$0xff] %v4177
      %4386 = vst [vmem:[#allocation3 + $0xd0] sm:$0xff] %v4280
      %4387 = vst [vmem:[#allocation3 + $0xd8] sm:$0xff] %v4383
      %v4388 = vand.u32 2147483647, %v3968
      %vm4389 = vcmp.le.f32.partialorder %v4388, 0.7853982
      %vm4390 = vcmp.lt.s32.totalorder %v3968, 0
      %v4391 = vand.u32 %v3968, 2139095040
      %v4392 = vshrl.u32 %v4391, 23
      %v4393 = vsub.s32 %v4392, 127
      %v4394 = vand.u32 2147483647, %v3968
      %v4395 = vand.u32 %v4394, 8388607
      %v4396 = vor.u32 %v4395, 8388608
      %v4397 = vsub.s32 0, %v4396
      %v4398 = vadd.s32 %v4393, 1
      %vm4399 = vcmp.gt.s32.totalorder %v4398, 0
      %v4400 = vsel %vm4399, %v4398, 0
      %v4401 = vshrl.u32 %v4400, 5
      %v4402 = vand.u32 %v4400, 31
      %v4403 = vsub.s32 32, %v4402
      %v4404 = vshrl.u32 683565275, %v4403
      %v4405 = vshll.u32 683565275, %v4402
      %v4406 = vshrl.u32 2475754826, %v4403
      %v4407 = vor.u32 %v4405, %v4406
      %v4408 = vshll.u32 2475754826, %v4402
      %v4409 = vshrl.u32 2131351028, %v4403
      %v4410 = vor.u32 %v4408, %v4409
      %v4411 = vshll.u32 2131351028, %v4402
      %v4412 = vshrl.u32 2102212464, %v4403
      %v4413 = vor.u32 %v4411, %v4412
      %v4414 = vshll.u32 2102212464, %v4402
      %v4415 = vshrl.u32 920167782, %v4403
      %v4416 = vor.u32 %v4414, %v4415
      %v4417 = vshll.u32 920167782, %v4402
      %v4418 = vshrl.u32 1326507024, %v4403
      %v4419 = vor.u32 %v4417, %v4418
      %vm4420 = vcmp.lt.s32.totalorder %v4401, 1
      %vm4421 = vcmp.lt.s32.totalorder %v4401, 2
      %vm4422 = vcmp.lt.s32.totalorder %v4401, 3
      %vm4423 = vcmp.lt.s32.totalorder %v4401, 4
      %v4424 = vsel %vm4420, %v4404, %v4407
      %v4425 = vsel %vm4423, %v4413, 2102212464
      %v4426 = vsel %vm4422, %v4410, %v4425
      %v4427 = vsel %vm4421, %v4424, %v4426
      %v4428 = vsel %vm4420, %v4407, %v4410
      %v4429 = vsel %vm4423, %v4416, 920167782
      %v4430 = vsel %vm4422, %v4413, %v4429
      %v4431 = vsel %vm4421, %v4428, %v4430
      %v4432 = vsel %vm4420, %v4410, %v4413
      %v4433 = vsel %vm4423, %v4419, 1326507024
      %v4434 = vsel %vm4422, %v4416, %v4433
      %v4435 = vsel %vm4421, %v4432, %v4434
      %v4436 = vshll.u32 %v4396, 8
      %v4437 = vmul.u32.u64.compose %v4436, %v4435
      %v4438 = vextract.low.u32 %v4437
      %v4439 = vextract.high.u32 %v4437
      %v4440 = vmul.u32.u64.compose %v4436, %v4431
      %v4441 = vextract.low.u32 %v4440
      %v4442 = vextract.high.u32 %v4440
      %v4443 = vmul.u32 %v4436, %v4427
      %v4444 = vadd.s32 %v4439, %v4441
      %vm4445 = vc.u32 %v4439, %v4441
      %v4446 = vadd.s32 %v4442, 1
      %v4447 = vsel %vm4445, %v4446, %v4442
      %v4448 = vadd.s32 %v4443, %v4447
      %v4449 = vadd.s32 %v4448, 536870912
      %v4450 = vshrl.u32 %v4449, 30
      %v4451 = vshll.u32 %v4450, 30
      %v4452 = vsub.s32 %v4448, %v4451
      %vm4453 = vcmp.lt.s32.totalorder %v4452, 0
      %v4454 = vsub.s32 0, %v4452
      %v4455 = vsel %vm4453, %v4454, %v4452
      %v4456 = vclz %v4455
      %v4457 = vsub.s32 %v4456, 2
      %vm4458 = vcmp.gt.s32.totalorder 0, %v4457
      %v4459 = vsel %vm4458, 0, %v4457
      %v4460 = vsub.s32 32, %v4459
      %v4461 = vshll.u32 %v4452, %v4459
      %v4462 = vshrl.u32 %v4444, %v4460
      %v4463 = vor.u32 %v4461, %v4462
      %v4464 = vsub.s32 4294967266, %v4459
      %v4465 = vadd.s32 %v4464, 127
      %v4466 = vshll.u32 %v4465, 23
      %v4467 = vor.u32 4788187, %v4466
      %v4468 = vand.u32 2147483647, %v4467
      %v4470 = vcvt.s32.f32 %v4463
      %v4471 = vmul.f32 %v4470, %v4468
      %v4472 = vxor.u32 %v4471, 2147483648
      %v4473 = vsel %vm4390, %v4472, %v4471
      %v4474 = vsub.s32 4, %v4450
      %v4475 = vsel %vm4390, %v4474, %v4450
      %v4476 = vsel %vm4389, %v3968, %v4473
      %v4477 = vsel %vm4389, 0, %v4475
      %v4478 = vcosq.f32.pop %v4476
      %v4479 = vsinq.f32.pop %v4476
      %vm4480 = vweird.f32 %v3968
      %v4481 = vadd.s32 %v4477, 3
      %v4482 = vand.u32 %v4481, 3
      %vm4483 = vcmp.lt.s32.totalorder %v4482, 2
      %vm4484 = vcmp.eq.s32.totalorder %v4482, 0
      %v4485 = vxor.u32 %v4479, 2147483648
      %v4486 = vsel %vm4484, %v4478, %v4485
      %vm4487 = vcmp.eq.s32.totalorder %v4482, 2
      %v4488 = vxor.u32 %v4478, 2147483648
      %v4489 = vsel %vm4487, %v4488, %v4479
      %v4490 = vsel %vm4483, %v4486, %v4489
      %v4491 = vsel %vm4480, nan, %v4490
      %v4492 = vand.u32 2147483647, %v3969
      %vm4493 = vcmp.le.f32.partialorder %v4492, 0.7853982
      %vm4494 = vcmp.lt.s32.totalorder %v3969, 0
      %v4495 = vand.u32 %v3969, 2139095040
      %v4496 = vshrl.u32 %v4495, 23
      %v4497 = vsub.s32 %v4496, 127
      %v4498 = vand.u32 2147483647, %v3969
      %v4499 = vand.u32 %v4498, 8388607
      %v4500 = vor.u32 %v4499, 8388608
      %v4501 = vsub.s32 0, %v4500
      %v4502 = vadd.s32 %v4497, 1
      %vm4503 = vcmp.gt.s32.totalorder %v4502, 0
      %v4504 = vsel %vm4503, %v4502, 0
      %v4505 = vshrl.u32 %v4504, 5
      %v4506 = vand.u32 %v4504, 31
      %v4507 = vsub.s32 32, %v4506
      %v4508 = vshrl.u32 683565275, %v4507
      %v4509 = vshll.u32 683565275, %v4506
      %v4510 = vshrl.u32 2475754826, %v4507
      %v4511 = vor.u32 %v4509, %v4510
      %v4512 = vshll.u32 2475754826, %v4506
      %v4513 = vshrl.u32 2131351028, %v4507
      %v4514 = vor.u32 %v4512, %v4513
      %v4515 = vshll.u32 2131351028, %v4506
      %v4516 = vshrl.u32 2102212464, %v4507
      %v4517 = vor.u32 %v4515, %v4516
      %v4518 = vshll.u32 2102212464, %v4506
      %v4519 = vshrl.u32 920167782, %v4507
      %v4520 = vor.u32 %v4518, %v4519
      %v4521 = vshll.u32 920167782, %v4506
      %v4522 = vshrl.u32 1326507024, %v4507
      %v4523 = vor.u32 %v4521, %v4522
      %vm4524 = vcmp.lt.s32.totalorder %v4505, 1
      %vm4525 = vcmp.lt.s32.totalorder %v4505, 2
      %vm4526 = vcmp.lt.s32.totalorder %v4505, 3
      %vm4527 = vcmp.lt.s32.totalorder %v4505, 4
      %v4528 = vsel %vm4524, %v4508, %v4511
      %v4529 = vsel %vm4527, %v4517, 2102212464
      %v4530 = vsel %vm4526, %v4514, %v4529
      %v4531 = vsel %vm4525, %v4528, %v4530
      %v4532 = vsel %vm4524, %v4511, %v4514
      %v4533 = vsel %vm4527, %v4520, 920167782
      %v4534 = vsel %vm4526, %v4517, %v4533
      %v4535 = vsel %vm4525, %v4532, %v4534
      %v4536 = vsel %vm4524, %v4514, %v4517
      %v4537 = vsel %vm4527, %v4523, 1326507024
      %v4538 = vsel %vm4526, %v4520, %v4537
      %v4539 = vsel %vm4525, %v4536, %v4538
      %v4540 = vshll.u32 %v4500, 8
      %v4541 = vmul.u32.u64.compose %v4540, %v4539
      %v4542 = vextract.low.u32 %v4541
      %v4543 = vextract.high.u32 %v4541
      %v4544 = vmul.u32.u64.compose %v4540, %v4535
      %v4545 = vextract.low.u32 %v4544
      %v4546 = vextract.high.u32 %v4544
      %v4547 = vmul.u32 %v4540, %v4531
      %v4548 = vadd.s32 %v4543, %v4545
      %vm4549 = vc.u32 %v4543, %v4545
      %v4550 = vadd.s32 %v4546, 1
      %v4551 = vsel %vm4549, %v4550, %v4546
      %v4552 = vadd.s32 %v4547, %v4551
      %v4553 = vadd.s32 %v4552, 536870912
      %v4554 = vshrl.u32 %v4553, 30
      %v4555 = vshll.u32 %v4554, 30
      %v4556 = vsub.s32 %v4552, %v4555
      %vm4557 = vcmp.lt.s32.totalorder %v4556, 0
      %v4558 = vsub.s32 0, %v4556
      %v4559 = vsel %vm4557, %v4558, %v4556
      %v4560 = vclz %v4559
      %v4561 = vsub.s32 %v4560, 2
      %vm4562 = vcmp.gt.s32.totalorder 0, %v4561
      %v4563 = vsel %vm4562, 0, %v4561
      %v4564 = vsub.s32 32, %v4563
      %v4565 = vshll.u32 %v4556, %v4563
      %v4566 = vshrl.u32 %v4548, %v4564
      %v4567 = vor.u32 %v4565, %v4566
      %v4568 = vsub.s32 4294967266, %v4563
      %v4569 = vadd.s32 %v4568, 127
      %v4570 = vshll.u32 %v4569, 23
      %v4571 = vor.u32 4788187, %v4570
      %v4572 = vand.u32 2147483647, %v4571
      %v4574 = vcvt.s32.f32 %v4567
      %v4575 = vmul.f32 %v4574, %v4572
      %v4576 = vxor.u32 %v4575, 2147483648
      %v4577 = vsel %vm4494, %v4576, %v4575
      %v4578 = vsub.s32 4, %v4554
      %v4579 = vsel %vm4494, %v4578, %v4554
      %v4580 = vsel %vm4493, %v3969, %v4577
      %v4581 = vsel %vm4493, 0, %v4579
      %v4582 = vcosq.f32.pop %v4580
      %v4583 = vsinq.f32.pop %v4580
      %vm4584 = vweird.f32 %v3969
      %v4585 = vadd.s32 %v4581, 3
      %v4586 = vand.u32 %v4585, 3
      %vm4587 = vcmp.lt.s32.totalorder %v4586, 2
      %vm4588 = vcmp.eq.s32.totalorder %v4586, 0
      %v4589 = vxor.u32 %v4583, 2147483648
      %v4590 = vsel %vm4588, %v4582, %v4589
      %vm4591 = vcmp.eq.s32.totalorder %v4586, 2
      %v4592 = vxor.u32 %v4582, 2147483648
      %v4593 = vsel %vm4591, %v4592, %v4583
      %v4594 = vsel %vm4587, %v4590, %v4593
      %v4595 = vsel %vm4584, nan, %v4594
      %v4596 = vand.u32 2147483647, %v3970
      %vm4597 = vcmp.le.f32.partialorder %v4596, 0.7853982
      %vm4598 = vcmp.lt.s32.totalorder %v3970, 0
      %v4599 = vand.u32 %v3970, 2139095040
      %v4600 = vshrl.u32 %v4599, 23
      %v4601 = vsub.s32 %v4600, 127
      %v4602 = vand.u32 2147483647, %v3970
      %v4603 = vand.u32 %v4602, 8388607
      %v4604 = vor.u32 %v4603, 8388608
      %v4605 = vsub.s32 0, %v4604
      %v4606 = vadd.s32 %v4601, 1
      %vm4607 = vcmp.gt.s32.totalorder %v4606, 0
      %v4608 = vsel %vm4607, %v4606, 0
      %v4609 = vshrl.u32 %v4608, 5
      %v4610 = vand.u32 %v4608, 31
      %v4611 = vsub.s32 32, %v4610
      %v4612 = vshrl.u32 683565275, %v4611
      %v4613 = vshll.u32 683565275, %v4610
      %v4614 = vshrl.u32 2475754826, %v4611
      %v4615 = vor.u32 %v4613, %v4614
      %v4616 = vshll.u32 2475754826, %v4610
      %v4617 = vshrl.u32 2131351028, %v4611
      %v4618 = vor.u32 %v4616, %v4617
      %v4619 = vshll.u32 2131351028, %v4610
      %v4620 = vshrl.u32 2102212464, %v4611
      %v4621 = vor.u32 %v4619, %v4620
      %v4622 = vshll.u32 2102212464, %v4610
      %v4623 = vshrl.u32 920167782, %v4611
      %v4624 = vor.u32 %v4622, %v4623
      %v4625 = vshll.u32 920167782, %v4610
      %v4626 = vshrl.u32 1326507024, %v4611
      %v4627 = vor.u32 %v4625, %v4626
      %vm4628 = vcmp.lt.s32.totalorder %v4609, 1
      %vm4629 = vcmp.lt.s32.totalorder %v4609, 2
      %vm4630 = vcmp.lt.s32.totalorder %v4609, 3
      %vm4631 = vcmp.lt.s32.totalorder %v4609, 4
      %v4632 = vsel %vm4628, %v4612, %v4615
      %v4633 = vsel %vm4631, %v4621, 2102212464
      %v4634 = vsel %vm4630, %v4618, %v4633
      %v4635 = vsel %vm4629, %v4632, %v4634
      %v4636 = vsel %vm4628, %v4615, %v4618
      %v4637 = vsel %vm4631, %v4624, 920167782
      %v4638 = vsel %vm4630, %v4621, %v4637
      %v4639 = vsel %vm4629, %v4636, %v4638
      %v4640 = vsel %vm4628, %v4618, %v4621
      %v4641 = vsel %vm4631, %v4627, 1326507024
      %v4642 = vsel %vm4630, %v4624, %v4641
      %v4643 = vsel %vm4629, %v4640, %v4642
      %v4644 = vshll.u32 %v4604, 8
      %v4645 = vmul.u32.u64.compose %v4644, %v4643
      %v4646 = vextract.low.u32 %v4645
      %v4647 = vextract.high.u32 %v4645
      %v4648 = vmul.u32.u64.compose %v4644, %v4639
      %v4649 = vextract.low.u32 %v4648
      %v4650 = vextract.high.u32 %v4648
      %v4651 = vmul.u32 %v4644, %v4635
      %v4652 = vadd.s32 %v4647, %v4649
      %vm4653 = vc.u32 %v4647, %v4649
      %v4654 = vadd.s32 %v4650, 1
      %v4655 = vsel %vm4653, %v4654, %v4650
      %v4656 = vadd.s32 %v4651, %v4655
      %v4657 = vadd.s32 %v4656, 536870912
      %v4658 = vshrl.u32 %v4657, 30
      %v4659 = vshll.u32 %v4658, 30
      %v4660 = vsub.s32 %v4656, %v4659
      %vm4661 = vcmp.lt.s32.totalorder %v4660, 0
      %v4662 = vsub.s32 0, %v4660
      %v4663 = vsel %vm4661, %v4662, %v4660
      %v4664 = vclz %v4663
      %v4665 = vsub.s32 %v4664, 2
      %vm4666 = vcmp.gt.s32.totalorder 0, %v4665
      %v4667 = vsel %vm4666, 0, %v4665
      %v4668 = vsub.s32 32, %v4667
      %v4669 = vshll.u32 %v4660, %v4667
      %v4670 = vshrl.u32 %v4652, %v4668
      %v4671 = vor.u32 %v4669, %v4670
      %v4672 = vsub.s32 4294967266, %v4667
      %v4673 = vadd.s32 %v4672, 127
      %v4674 = vshll.u32 %v4673, 23
      %v4675 = vor.u32 4788187, %v4674
      %v4676 = vand.u32 2147483647, %v4675
      %v4678 = vcvt.s32.f32 %v4671
      %v4679 = vmul.f32 %v4678, %v4676
      %v4680 = vxor.u32 %v4679, 2147483648
      %v4681 = vsel %vm4598, %v4680, %v4679
      %v4682 = vsub.s32 4, %v4658
      %v4683 = vsel %vm4598, %v4682, %v4658
      %v4684 = vsel %vm4597, %v3970, %v4681
      %v4685 = vsel %vm4597, 0, %v4683
      %v4686 = vcosq.f32.pop %v4684
      %v4687 = vsinq.f32.pop %v4684
      %vm4688 = vweird.f32 %v3970
      %v4689 = vadd.s32 %v4685, 3
      %v4690 = vand.u32 %v4689, 3
      %vm4691 = vcmp.lt.s32.totalorder %v4690, 2
      %vm4692 = vcmp.eq.s32.totalorder %v4690, 0
      %v4693 = vxor.u32 %v4687, 2147483648
      %v4694 = vsel %vm4692, %v4686, %v4693
      %vm4695 = vcmp.eq.s32.totalorder %v4690, 2
      %v4696 = vxor.u32 %v4686, 2147483648
      %v4697 = vsel %vm4695, %v4696, %v4687
      %v4698 = vsel %vm4691, %v4694, %v4697
      %v4699 = vsel %vm4688, nan, %v4698
      %v4700 = vand.u32 2147483647, %v3971
      %vm4701 = vcmp.le.f32.partialorder %v4700, 0.7853982
      %vm4702 = vcmp.lt.s32.totalorder %v3971, 0
      %v4703 = vand.u32 %v3971, 2139095040
      %v4704 = vshrl.u32 %v4703, 23
      %v4705 = vsub.s32 %v4704, 127
      %v4706 = vand.u32 2147483647, %v3971
      %v4707 = vand.u32 %v4706, 8388607
      %v4708 = vor.u32 %v4707, 8388608
      %v4709 = vsub.s32 0, %v4708
      %v4710 = vadd.s32 %v4705, 1
      %vm4711 = vcmp.gt.s32.totalorder %v4710, 0
      %v4712 = vsel %vm4711, %v4710, 0
      %v4713 = vshrl.u32 %v4712, 5
      %v4714 = vand.u32 %v4712, 31
      %v4715 = vsub.s32 32, %v4714
      %v4716 = vshrl.u32 683565275, %v4715
      %v4717 = vshll.u32 683565275, %v4714
      %v4718 = vshrl.u32 2475754826, %v4715
      %v4719 = vor.u32 %v4717, %v4718
      %v4720 = vshll.u32 2475754826, %v4714
      %v4721 = vshrl.u32 2131351028, %v4715
      %v4722 = vor.u32 %v4720, %v4721
      %v4723 = vshll.u32 2131351028, %v4714
      %v4724 = vshrl.u32 2102212464, %v4715
      %v4725 = vor.u32 %v4723, %v4724
      %v4726 = vshll.u32 2102212464, %v4714
      %v4727 = vshrl.u32 920167782, %v4715
      %v4728 = vor.u32 %v4726, %v4727
      %v4729 = vshll.u32 920167782, %v4714
      %v4730 = vshrl.u32 1326507024, %v4715
      %v4731 = vor.u32 %v4729, %v4730
      %vm4732 = vcmp.lt.s32.totalorder %v4713, 1
      %vm4733 = vcmp.lt.s32.totalorder %v4713, 2
      %vm4734 = vcmp.lt.s32.totalorder %v4713, 3
      %vm4735 = vcmp.lt.s32.totalorder %v4713, 4
      %v4736 = vsel %vm4732, %v4716, %v4719
      %v4737 = vsel %vm4735, %v4725, 2102212464
      %v4738 = vsel %vm4734, %v4722, %v4737
      %v4739 = vsel %vm4733, %v4736, %v4738
      %v4740 = vsel %vm4732, %v4719, %v4722
      %v4741 = vsel %vm4735, %v4728, 920167782
      %v4742 = vsel %vm4734, %v4725, %v4741
      %v4743 = vsel %vm4733, %v4740, %v4742
      %v4744 = vsel %vm4732, %v4722, %v4725
      %v4745 = vsel %vm4735, %v4731, 1326507024
      %v4746 = vsel %vm4734, %v4728, %v4745
      %v4747 = vsel %vm4733, %v4744, %v4746
      %v4748 = vshll.u32 %v4708, 8
      %v4749 = vmul.u32.u64.compose %v4748, %v4747
      %v4750 = vextract.low.u32 %v4749
      %v4751 = vextract.high.u32 %v4749
      %v4752 = vmul.u32.u64.compose %v4748, %v4743
      %v4753 = vextract.low.u32 %v4752
      %v4754 = vextract.high.u32 %v4752
      %v4755 = vmul.u32 %v4748, %v4739
      %v4756 = vadd.s32 %v4751, %v4753
      %vm4757 = vc.u32 %v4751, %v4753
      %v4758 = vadd.s32 %v4754, 1
      %v4759 = vsel %vm4757, %v4758, %v4754
      %v4760 = vadd.s32 %v4755, %v4759
      %v4761 = vadd.s32 %v4760, 536870912
      %v4762 = vshrl.u32 %v4761, 30
      %v4763 = vshll.u32 %v4762, 30
      %v4764 = vsub.s32 %v4760, %v4763
      %vm4765 = vcmp.lt.s32.totalorder %v4764, 0
      %v4766 = vsub.s32 0, %v4764
      %v4767 = vsel %vm4765, %v4766, %v4764
      %v4768 = vclz %v4767
      %v4769 = vsub.s32 %v4768, 2
      %vm4770 = vcmp.gt.s32.totalorder 0, %v4769
      %v4771 = vsel %vm4770, 0, %v4769
      %v4772 = vsub.s32 32, %v4771
      %v4773 = vshll.u32 %v4764, %v4771
      %v4774 = vshrl.u32 %v4756, %v4772
      %v4775 = vor.u32 %v4773, %v4774
      %v4776 = vsub.s32 4294967266, %v4771
      %v4777 = vadd.s32 %v4776, 127
      %v4778 = vshll.u32 %v4777, 23
      %v4779 = vor.u32 4788187, %v4778
      %v4780 = vand.u32 2147483647, %v4779
      %v4782 = vcvt.s32.f32 %v4775
      %v4783 = vmul.f32 %v4782, %v4780
      %v4784 = vxor.u32 %v4783, 2147483648
      %v4785 = vsel %vm4702, %v4784, %v4783
      %v4786 = vsub.s32 4, %v4762
      %v4787 = vsel %vm4702, %v4786, %v4762
      %v4788 = vsel %vm4701, %v3971, %v4785
      %v4789 = vsel %vm4701, 0, %v4787
      %v4790 = vcosq.f32.pop %v4788
      %v4791 = vsinq.f32.pop %v4788
      %vm4792 = vweird.f32 %v3971
      %v4793 = vadd.s32 %v4789, 3
      %v4794 = vand.u32 %v4793, 3
      %vm4795 = vcmp.lt.s32.totalorder %v4794, 2
      %vm4796 = vcmp.eq.s32.totalorder %v4794, 0
      %v4797 = vxor.u32 %v4791, 2147483648
      %v4798 = vsel %vm4796, %v4790, %v4797
      %vm4799 = vcmp.eq.s32.totalorder %v4794, 2
      %v4800 = vxor.u32 %v4790, 2147483648
      %v4801 = vsel %vm4799, %v4800, %v4791
      %v4802 = vsel %vm4795, %v4798, %v4801
      %v4803 = vsel %vm4792, nan, %v4802
      %4804 = vst [vmem:[#allocation3 + $0x1c0] sm:$0xff] %v4491
      %4805 = vst [vmem:[#allocation3 + $0x1c8] sm:$0xff] %v4595
      %4806 = vst [vmem:[#allocation3 + $0x1d0] sm:$0xff] %v4699
      %4807 = vst [vmem:[#allocation3 + $0x1d8] sm:$0xff] %v4803
      %4808 = vst [vmem:[#allocation3 + $0xe0] sm:$0xff] %v4074
      %4809 = vst [vmem:[#allocation3 + $0xe8] sm:$0xff] %v4177
      %4810 = vst [vmem:[#allocation3 + $0xf0] sm:$0xff] %v4280
      %4811 = vst [vmem:[#allocation3 + $0xf8] sm:$0xff] %v4383
      %4812 = vst [vmem:[#allocation3 + $0x1e0] sm:$0xff] %v4491
      %4813 = vst [vmem:[#allocation3 + $0x1e8] sm:$0xff] %v4595
      %4814 = vst [vmem:[#allocation3 + $0x1f0] sm:$0xff] %v4699
      %4815 = vst [vmem:[#allocation3 + $0x1f8] sm:$0xff] %v4803
      loop: start=0, step=1, limit=8
      $region49: #{_lambda_.1} parent=47 // loop_pre_header
        _
      $region50: #{_lambda_.1} parent=47 // loop_header
        %s4817 = sphi 0, %s4821
        %p4818 = scmp.ge.s32.totalorder %s4817, 8
      $region51: #{_lambda_.1} parent=47 // loop_header_branch
        %4820 = sbr.rel (%p4818) target = $region55
      $region52: #{_lambda_.1} parent=47 // loop_body
        %s4822 = smul.u32 %s4817, 2
        %s4823 = sadd.s32 %s4822, 1
        %s4824 = smul.u32 %s4817, 80
        %s4825 = scalar_lea.vmem [#allocation2], %s4824
        %v4826 = vld [vmem:[%s4825] sm:$0xff]
        %v4827 = vld [vmem:[%s4825 + $0x8] sm:$0xff]
        %s4828 = sadd.s32 %s4824, 32
        %s4829 = scalar_lea.vmem [#allocation2], %s4828
        %v4830 = vld [vmem:[%s4829] sm:$0x1]
        %v4831 = vlaneseq
        %v4832 = vshrl.u32 %v4831, 7
        %v4833 = vsub.s32 0, %v4832
        %v4834 = vrot.slane %v4830, %v4833
        %s4835 = smul.u32 %s4823, 40
        %s4836 = scalar_lea.vmem [#allocation2], %s4835
        %v4837 = vld [vmem:[%s4836] sm:$0xff]
        %v4838 = vld [vmem:[%s4836 + $0x8] sm:$0xff]
        %s4839 = sadd.s32 %s4835, 32
        %s4840 = scalar_lea.vmem [#allocation2], %s4839
        %v4841 = vld [vmem:[%s4840] sm:$0x1]
        %v4842 = vlaneseq
        %v4843 = vshrl.u32 %v4842, 7
        %v4844 = vsub.s32 0, %v4843
        %v4845 = vrot.slane %v4841, %v4844
        %v4846 = vld [vmem:[#allocation3] sm:$0xff]
        %v4847 = vld [vmem:[#allocation3 + $0x8] sm:$0xff]
        %v4848 = vld [vmem:[#allocation3 + $0x10] sm:$0xff]
        %v4849 = vld [vmem:[#allocation3 + $0x18] sm:$0xff]
        %v4850 = vlaneseq
        %v4851 = vshrl.u32 %v4850, 7
        %v4852 = vsub.s32 0, %v4851
        %v4853 = vrot.slane %v4826, %v4852
        %v4854 = vmul.f32 %v4846, %v4853
        %v4855 = vmul.f32 %v4847, %v4853
        %v4856 = vmul.f32 %v4848, %v4853
        %v4857 = vmul.f32 %v4849, %v4853
        %v4858 = vadd.f32 %v4834, %v4854
        %v4859 = vadd.f32 %v4834, %v4855
        %v4860 = vadd.f32 %v4834, %v4856
        %v4861 = vadd.f32 %v4834, %v4857
        %v4862 = vlaneseq
        %v4863 = vshrl.u32 %v4862, 7
        %v4864 = vsub.s32 0, %v4863
        %v4865 = vrot.slane %v4837, %v4864
        %v4866 = vmul.f32 %v4846, %v4865
        %v4867 = vmul.f32 %v4847, %v4865
        %v4868 = vmul.f32 %v4848, %v4865
        %v4869 = vmul.f32 %v4849, %v4865
        %v4870 = vadd.f32 %v4845, %v4866
        %v4871 = vadd.f32 %v4845, %v4867
        %v4872 = vadd.f32 %v4845, %v4868
        %v4873 = vadd.f32 %v4845, %v4869
        %v4874 = vld [vmem:[#allocation3 + $0x20] sm:$0xff]
        %v4875 = vld [vmem:[#allocation3 + $0x28] sm:$0xff]
        %v4876 = vld [vmem:[#allocation3 + $0x30] sm:$0xff]
        %v4877 = vld [vmem:[#allocation3 + $0x38] sm:$0xff]
        %v4878 = vlaneseq
        %v4879 = vshrl.u32 %v4878, 7
        %v4880 = vsub.s32 1, %v4879
        %v4881 = vrot.slane %v4826, %v4880
        %v4882 = vmul.f32 %v4874, %v4881
        %v4883 = vmul.f32 %v4875, %v4881
        %v4884 = vmul.f32 %v4876, %v4881
        %v4885 = vmul.f32 %v4877, %v4881
        %v4886 = vadd.f32 %v4858, %v4882
        %v4887 = vadd.f32 %v4859, %v4883
        %v4888 = vadd.f32 %v4860, %v4884
        %v4889 = vadd.f32 %v4861, %v4885
        %v4890 = vlaneseq
        %v4891 = vshrl.u32 %v4890, 7
        %v4892 = vsub.s32 1, %v4891
        %v4893 = vrot.slane %v4837, %v4892
        %v4894 = vmul.f32 %v4874, %v4893
        %v4895 = vmul.f32 %v4875, %v4893
        %v4896 = vmul.f32 %v4876, %v4893
        %v4897 = vmul.f32 %v4877, %v4893
        %v4898 = vadd.f32 %v4870, %v4894
        %v4899 = vadd.f32 %v4871, %v4895
        %v4900 = vadd.f32 %v4872, %v4896
        %v4901 = vadd.f32 %v4873, %v4897
        %v4902 = vld [vmem:[#allocation3 + $0x40] sm:$0xff]
        %v4903 = vld [vmem:[#allocation3 + $0x48] sm:$0xff]
        %v4904 = vld [vmem:[#allocation3 + $0x50] sm:$0xff]
        %v4905 = vld [vmem:[#allocation3 + $0x58] sm:$0xff]
        %v4906 = vlaneseq
        %v4907 = vshrl.u32 %v4906, 7
        %v4908 = vsub.s32 2, %v4907
        %v4909 = vrot.slane %v4826, %v4908
        %v4910 = vmul.f32 %v4902, %v4909
        %v4911 = vmul.f32 %v4903, %v4909
        %v4912 = vmul.f32 %v4904, %v4909
        %v4913 = vmul.f32 %v4905, %v4909
        %v4914 = vadd.f32 %v4886, %v4910
        %v4915 = vadd.f32 %v4887, %v4911
        %v4916 = vadd.f32 %v4888, %v4912
        %v4917 = vadd.f32 %v4889, %v4913
        %v4918 = vlaneseq
        %v4919 = vshrl.u32 %v4918, 7
        %v4920 = vsub.s32 2, %v4919
        %v4921 = vrot.slane %v4837, %v4920
        %v4922 = vmul.f32 %v4902, %v4921
        %v4923 = vmul.f32 %v4903, %v4921
        %v4924 = vmul.f32 %v4904, %v4921
        %v4925 = vmul.f32 %v4905, %v4921
        %v4926 = vadd.f32 %v4898, %v4922
        %v4927 = vadd.f32 %v4899, %v4923
        %v4928 = vadd.f32 %v4900, %v4924
        %v4929 = vadd.f32 %v4901, %v4925
        %v4930 = vld [vmem:[#allocation3 + $0x60] sm:$0xff]
        %v4931 = vld [vmem:[#allocation3 + $0x68] sm:$0xff]
        %v4932 = vld [vmem:[#allocation3 + $0x70] sm:$0xff]
        %v4933 = vld [vmem:[#allocation3 + $0x78] sm:$0xff]
        %v4934 = vlaneseq
        %v4935 = vshrl.u32 %v4934, 7
        %v4936 = vsub.s32 3, %v4935
        %v4937 = vrot.slane %v4826, %v4936
        %v4938 = vmul.f32 %v4930, %v4937
        %v4939 = vmul.f32 %v4931, %v4937
        %v4940 = vmul.f32 %v4932, %v4937
        %v4941 = vmul.f32 %v4933, %v4937
        %v4942 = vadd.f32 %v4914, %v4938
        %v4943 = vadd.f32 %v4915, %v4939
        %v4944 = vadd.f32 %v4916, %v4940
        %v4945 = vadd.f32 %v4917, %v4941
        %v4946 = vlaneseq
        %v4947 = vshrl.u32 %v4946, 7
        %v4948 = vsub.s32 3, %v4947
        %v4949 = vrot.slane %v4837, %v4948
        %v4950 = vmul.f32 %v4930, %v4949
        %v4951 = vmul.f32 %v4931, %v4949
        %v4952 = vmul.f32 %v4932, %v4949
        %v4953 = vmul.f32 %v4933, %v4949
        %v4954 = vadd.f32 %v4926, %v4950
        %v4955 = vadd.f32 %v4927, %v4951
        %v4956 = vadd.f32 %v4928, %v4952
        %v4957 = vadd.f32 %v4929, %v4953
        %v4958 = vld [vmem:[#allocation3 + $0x80] sm:$0xff]
        %v4959 = vld [vmem:[#allocation3 + $0x88] sm:$0xff]
        %v4960 = vld [vmem:[#allocation3 + $0x90] sm:$0xff]
        %v4961 = vld [vmem:[#allocation3 + $0x98] sm:$0xff]
        %v4962 = vlaneseq
        %v4963 = vshrl.u32 %v4962, 7
        %v4964 = vsub.s32 4, %v4963
        %v4965 = vrot.slane %v4826, %v4964
        %v4966 = vmul.f32 %v4958, %v4965
        %v4967 = vmul.f32 %v4959, %v4965
        %v4968 = vmul.f32 %v4960, %v4965
        %v4969 = vmul.f32 %v4961, %v4965
        %v4970 = vadd.f32 %v4942, %v4966
        %v4971 = vadd.f32 %v4943, %v4967
        %v4972 = vadd.f32 %v4944, %v4968
        %v4973 = vadd.f32 %v4945, %v4969
        %v4974 = vlaneseq
        %v4975 = vshrl.u32 %v4974, 7
        %v4976 = vsub.s32 4, %v4975
        %v4977 = vrot.slane %v4837, %v4976
        %v4978 = vmul.f32 %v4958, %v4977
        %v4979 = vmul.f32 %v4959, %v4977
        %v4980 = vmul.f32 %v4960, %v4977
        %v4981 = vmul.f32 %v4961, %v4977
        %v4982 = vadd.f32 %v4954, %v4978
        %v4983 = vadd.f32 %v4955, %v4979
        %v4984 = vadd.f32 %v4956, %v4980
        %v4985 = vadd.f32 %v4957, %v4981
        %v4986 = vld [vmem:[#allocation3 + $0xa0] sm:$0xff]
        %v4987 = vld [vmem:[#allocation3 + $0xa8] sm:$0xff]
        %v4988 = vld [vmem:[#allocation3 + $0xb0] sm:$0xff]
        %v4989 = vld [vmem:[#allocation3 + $0xb8] sm:$0xff]
        %v4990 = vlaneseq
        %v4991 = vshrl.u32 %v4990, 7
        %v4992 = vsub.s32 5, %v4991
        %v4993 = vrot.slane %v4826, %v4992
        %v4994 = vmul.f32 %v4986, %v4993
        %v4995 = vmul.f32 %v4987, %v4993
        %v4996 = vmul.f32 %v4988, %v4993
        %v4997 = vmul.f32 %v4989, %v4993
        %v4998 = vadd.f32 %v4970, %v4994
        %v4999 = vadd.f32 %v4971, %v4995
        %v5000 = vadd.f32 %v4972, %v4996
        %v5001 = vadd.f32 %v4973, %v4997
        %v5002 = vlaneseq
        %v5003 = vshrl.u32 %v5002, 7
        %v5004 = vsub.s32 5, %v5003
        %v5005 = vrot.slane %v4837, %v5004
        %v5006 = vmul.f32 %v4986, %v5005
        %v5007 = vmul.f32 %v4987, %v5005
        %v5008 = vmul.f32 %v4988, %v5005
        %v5009 = vmul.f32 %v4989, %v5005
        %v5010 = vadd.f32 %v4982, %v5006
        %v5011 = vadd.f32 %v4983, %v5007
        %v5012 = vadd.f32 %v4984, %v5008
        %v5013 = vadd.f32 %v4985, %v5009
        %v5014 = vld [vmem:[#allocation3 + $0xc0] sm:$0xff]
        %v5015 = vld [vmem:[#allocation3 + $0xc8] sm:$0xff]
        %v5016 = vld [vmem:[#allocation3 + $0xd0] sm:$0xff]
        %v5017 = vld [vmem:[#allocation3 + $0xd8] sm:$0xff]
        %v5018 = vlaneseq
        %v5019 = vshrl.u32 %v5018, 7
        %v5020 = vsub.s32 6, %v5019
        %v5021 = vrot.slane %v4826, %v5020
        %v5022 = vmul.f32 %v5014, %v5021
        %v5023 = vmul.f32 %v5015, %v5021
        %v5024 = vmul.f32 %v5016, %v5021
        %v5025 = vmul.f32 %v5017, %v5021
        %v5026 = vadd.f32 %v4998, %v5022
        %v5027 = vadd.f32 %v4999, %v5023
        %v5028 = vadd.f32 %v5000, %v5024
        %v5029 = vadd.f32 %v5001, %v5025
        %v5030 = vlaneseq
        %v5031 = vshrl.u32 %v5030, 7
        %v5032 = vsub.s32 6, %v5031
        %v5033 = vrot.slane %v4837, %v5032
        %v5034 = vmul.f32 %v5014, %v5033
        %v5035 = vmul.f32 %v5015, %v5033
        %v5036 = vmul.f32 %v5016, %v5033
        %v5037 = vmul.f32 %v5017, %v5033
        %v5038 = vadd.f32 %v5010, %v5034
        %v5039 = vadd.f32 %v5011, %v5035
        %v5040 = vadd.f32 %v5012, %v5036
        %v5041 = vadd.f32 %v5013, %v5037
        %v5042 = vld [vmem:[#allocation3 + $0xe0] sm:$0xff]
        %v5043 = vld [vmem:[#allocation3 + $0xe8] sm:$0xff]
        %v5044 = vld [vmem:[#allocation3 + $0xf0] sm:$0xff]
        %v5045 = vld [vmem:[#allocation3 + $0xf8] sm:$0xff]
        %v5046 = vlaneseq
        %v5047 = vshrl.u32 %v5046, 7
        %v5048 = vsub.s32 7, %v5047
        %v5049 = vrot.slane %v4826, %v5048
        %v5050 = vmul.f32 %v5042, %v5049
        %v5051 = vmul.f32 %v5043, %v5049
        %v5052 = vmul.f32 %v5044, %v5049
        %v5053 = vmul.f32 %v5045, %v5049
        %v5054 = vadd.f32 %v5026, %v5050
        %v5055 = vadd.f32 %v5027, %v5051
        %v5056 = vadd.f32 %v5028, %v5052
        %v5057 = vadd.f32 %v5029, %v5053
        %v5058 = vlaneseq
        %v5059 = vshrl.u32 %v5058, 7
        %v5060 = vsub.s32 7, %v5059
        %v5061 = vrot.slane %v4837, %v5060
        %v5062 = vmul.f32 %v5042, %v5061
        %v5063 = vmul.f32 %v5043, %v5061
        %v5064 = vmul.f32 %v5044, %v5061
        %v5065 = vmul.f32 %v5045, %v5061
        %v5066 = vadd.f32 %v5038, %v5062
        %v5067 = vadd.f32 %v5039, %v5063
        %v5068 = vadd.f32 %v5040, %v5064
        %v5069 = vadd.f32 %v5041, %v5065
        %v5070 = vld [vmem:[#allocation3 + $0x100] sm:$0xff]
        %v5071 = vld [vmem:[#allocation3 + $0x108] sm:$0xff]
        %v5072 = vld [vmem:[#allocation3 + $0x110] sm:$0xff]
        %v5073 = vld [vmem:[#allocation3 + $0x118] sm:$0xff]
        %v5074 = vlaneseq
        %v5075 = vshrl.u32 %v5074, 7
        %v5076 = vsub.s32 0, %v5075
        %v5077 = vrot.slane %v4827, %v5076
        %v5078 = vmul.f32 %v5070, %v5077
        %v5079 = vmul.f32 %v5071, %v5077
        %v5080 = vmul.f32 %v5072, %v5077
        %v5081 = vmul.f32 %v5073, %v5077
        %v5082 = vadd.f32 %v5054, %v5078
        %v5083 = vadd.f32 %v5055, %v5079
        %v5084 = vadd.f32 %v5056, %v5080
        %v5085 = vadd.f32 %v5057, %v5081
        %v5086 = vlaneseq
        %v5087 = vshrl.u32 %v5086, 7
        %v5088 = vsub.s32 0, %v5087
        %v5089 = vrot.slane %v4838, %v5088
        %v5090 = vmul.f32 %v5070, %v5089
        %v5091 = vmul.f32 %v5071, %v5089
        %v5092 = vmul.f32 %v5072, %v5089
        %v5093 = vmul.f32 %v5073, %v5089
        %v5094 = vadd.f32 %v5066, %v5090
        %v5095 = vadd.f32 %v5067, %v5091
        %v5096 = vadd.f32 %v5068, %v5092
        %v5097 = vadd.f32 %v5069, %v5093
        %v5098 = vld [vmem:[#allocation3 + $0x120] sm:$0xff]
        %v5099 = vld [vmem:[#allocation3 + $0x128] sm:$0xff]
        %v5100 = vld [vmem:[#allocation3 + $0x130] sm:$0xff]
        %v5101 = vld [vmem:[#allocation3 + $0x138] sm:$0xff]
        %v5102 = vlaneseq
        %v5103 = vshrl.u32 %v5102, 7
        %v5104 = vsub.s32 1, %v5103
        %v5105 = vrot.slane %v4827, %v5104
        %v5106 = vmul.f32 %v5098, %v5105
        %v5107 = vmul.f32 %v5099, %v5105
        %v5108 = vmul.f32 %v5100, %v5105
        %v5109 = vmul.f32 %v5101, %v5105
        %v5110 = vadd.f32 %v5082, %v5106
        %v5111 = vadd.f32 %v5083, %v5107
        %v5112 = vadd.f32 %v5084, %v5108
        %v5113 = vadd.f32 %v5085, %v5109
        %v5114 = vlaneseq
        %v5115 = vshrl.u32 %v5114, 7
        %v5116 = vsub.s32 1, %v5115
        %v5117 = vrot.slane %v4838, %v5116
        %v5118 = vmul.f32 %v5098, %v5117
        %v5119 = vmul.f32 %v5099, %v5117
        %v5120 = vmul.f32 %v5100, %v5117
        %v5121 = vmul.f32 %v5101, %v5117
        %v5122 = vadd.f32 %v5094, %v5118
        %v5123 = vadd.f32 %v5095, %v5119
        %v5124 = vadd.f32 %v5096, %v5120
        %v5125 = vadd.f32 %v5097, %v5121
        %v5126 = vld [vmem:[#allocation3 + $0x140] sm:$0xff]
        %v5127 = vld [vmem:[#allocation3 + $0x148] sm:$0xff]
        %v5128 = vld [vmem:[#allocation3 + $0x150] sm:$0xff]
        %v5129 = vld [vmem:[#allocation3 + $0x158] sm:$0xff]
        %v5130 = vlaneseq
        %v5131 = vshrl.u32 %v5130, 7
        %v5132 = vsub.s32 2, %v5131
        %v5133 = vrot.slane %v4827, %v5132
        %v5134 = vmul.f32 %v5126, %v5133
        %v5135 = vmul.f32 %v5127, %v5133
        %v5136 = vmul.f32 %v5128, %v5133
        %v5137 = vmul.f32 %v5129, %v5133
        %v5138 = vadd.f32 %v5110, %v5134
        %v5139 = vadd.f32 %v5111, %v5135
        %v5140 = vadd.f32 %v5112, %v5136
        %v5141 = vadd.f32 %v5113, %v5137
        %v5142 = vlaneseq
        %v5143 = vshrl.u32 %v5142, 7
        %v5144 = vsub.s32 2, %v5143
        %v5145 = vrot.slane %v4838, %v5144
        %v5146 = vmul.f32 %v5126, %v5145
        %v5147 = vmul.f32 %v5127, %v5145
        %v5148 = vmul.f32 %v5128, %v5145
        %v5149 = vmul.f32 %v5129, %v5145
        %v5150 = vadd.f32 %v5122, %v5146
        %v5151 = vadd.f32 %v5123, %v5147
        %v5152 = vadd.f32 %v5124, %v5148
        %v5153 = vadd.f32 %v5125, %v5149
        %v5154 = vld [vmem:[#allocation3 + $0x160] sm:$0xff]
        %v5155 = vld [vmem:[#allocation3 + $0x168] sm:$0xff]
        %v5156 = vld [vmem:[#allocation3 + $0x170] sm:$0xff]
        %v5157 = vld [vmem:[#allocation3 + $0x178] sm:$0xff]
        %v5158 = vlaneseq
        %v5159 = vshrl.u32 %v5158, 7
        %v5160 = vsub.s32 3, %v5159
        %v5161 = vrot.slane %v4827, %v5160
        %v5162 = vmul.f32 %v5154, %v5161
        %v5163 = vmul.f32 %v5155, %v5161
        %v5164 = vmul.f32 %v5156, %v5161
        %v5165 = vmul.f32 %v5157, %v5161
        %v5166 = vadd.f32 %v5138, %v5162
        %v5167 = vadd.f32 %v5139, %v5163
        %v5168 = vadd.f32 %v5140, %v5164
        %v5169 = vadd.f32 %v5141, %v5165
        %v5170 = vlaneseq
        %v5171 = vshrl.u32 %v5170, 7
        %v5172 = vsub.s32 3, %v5171
        %v5173 = vrot.slane %v4838, %v5172
        %v5174 = vmul.f32 %v5154, %v5173
        %v5175 = vmul.f32 %v5155, %v5173
        %v5176 = vmul.f32 %v5156, %v5173
        %v5177 = vmul.f32 %v5157, %v5173
        %v5178 = vadd.f32 %v5150, %v5174
        %v5179 = vadd.f32 %v5151, %v5175
        %v5180 = vadd.f32 %v5152, %v5176
        %v5181 = vadd.f32 %v5153, %v5177
        %v5182 = vld [vmem:[#allocation3 + $0x180] sm:$0xff]
        %v5183 = vld [vmem:[#allocation3 + $0x188] sm:$0xff]
        %v5184 = vld [vmem:[#allocation3 + $0x190] sm:$0xff]
        %v5185 = vld [vmem:[#allocation3 + $0x198] sm:$0xff]
        %v5186 = vlaneseq
        %v5187 = vshrl.u32 %v5186, 7
        %v5188 = vsub.s32 4, %v5187
        %v5189 = vrot.slane %v4827, %v5188
        %v5190 = vmul.f32 %v5182, %v5189
        %v5191 = vmul.f32 %v5183, %v5189
        %v5192 = vmul.f32 %v5184, %v5189
        %v5193 = vmul.f32 %v5185, %v5189
        %v5194 = vadd.f32 %v5166, %v5190
        %v5195 = vadd.f32 %v5167, %v5191
        %v5196 = vadd.f32 %v5168, %v5192
        %v5197 = vadd.f32 %v5169, %v5193
        %v5198 = vlaneseq
        %v5199 = vshrl.u32 %v5198, 7
        %v5200 = vsub.s32 4, %v5199
        %v5201 = vrot.slane %v4838, %v5200
        %v5202 = vmul.f32 %v5182, %v5201
        %v5203 = vmul.f32 %v5183, %v5201
        %v5204 = vmul.f32 %v5184, %v5201
        %v5205 = vmul.f32 %v5185, %v5201
        %v5206 = vadd.f32 %v5178, %v5202
        %v5207 = vadd.f32 %v5179, %v5203
        %v5208 = vadd.f32 %v5180, %v5204
        %v5209 = vadd.f32 %v5181, %v5205
        %v5210 = vld [vmem:[#allocation3 + $0x1a0] sm:$0xff]
        %v5211 = vld [vmem:[#allocation3 + $0x1a8] sm:$0xff]
        %v5212 = vld [vmem:[#allocation3 + $0x1b0] sm:$0xff]
        %v5213 = vld [vmem:[#allocation3 + $0x1b8] sm:$0xff]
        %v5214 = vlaneseq
        %v5215 = vshrl.u32 %v5214, 7
        %v5216 = vsub.s32 5, %v5215
        %v5217 = vrot.slane %v4827, %v5216
        %v5218 = vmul.f32 %v5210, %v5217
        %v5219 = vmul.f32 %v5211, %v5217
        %v5220 = vmul.f32 %v5212, %v5217
        %v5221 = vmul.f32 %v5213, %v5217
        %v5222 = vadd.f32 %v5194, %v5218
        %v5223 = vadd.f32 %v5195, %v5219
        %v5224 = vadd.f32 %v5196, %v5220
        %v5225 = vadd.f32 %v5197, %v5221
        %v5226 = vlaneseq
        %v5227 = vshrl.u32 %v5226, 7
        %v5228 = vsub.s32 5, %v5227
        %v5229 = vrot.slane %v4838, %v5228
        %v5230 = vmul.f32 %v5210, %v5229
        %v5231 = vmul.f32 %v5211, %v5229
        %v5232 = vmul.f32 %v5212, %v5229
        %v5233 = vmul.f32 %v5213, %v5229
        %v5234 = vadd.f32 %v5206, %v5230
        %v5235 = vadd.f32 %v5207, %v5231
        %v5236 = vadd.f32 %v5208, %v5232
        %v5237 = vadd.f32 %v5209, %v5233
        %v5238 = vld [vmem:[#allocation3 + $0x1c0] sm:$0xff]
        %v5239 = vld [vmem:[#allocation3 + $0x1c8] sm:$0xff]
        %v5240 = vld [vmem:[#allocation3 + $0x1d0] sm:$0xff]
        %v5241 = vld [vmem:[#allocation3 + $0x1d8] sm:$0xff]
        %v5242 = vlaneseq
        %v5243 = vshrl.u32 %v5242, 7
        %v5244 = vsub.s32 6, %v5243
        %v5245 = vrot.slane %v4827, %v5244
        %v5246 = vmul.f32 %v5238, %v5245
        %v5247 = vmul.f32 %v5239, %v5245
        %v5248 = vmul.f32 %v5240, %v5245
        %v5249 = vmul.f32 %v5241, %v5245
        %v5250 = vadd.f32 %v5222, %v5246
        %v5251 = vadd.f32 %v5223, %v5247
        %v5252 = vadd.f32 %v5224, %v5248
        %v5253 = vadd.f32 %v5225, %v5249
        %v5254 = vlaneseq
        %v5255 = vshrl.u32 %v5254, 7
        %v5256 = vsub.s32 6, %v5255
        %v5257 = vrot.slane %v4838, %v5256
        %v5258 = vmul.f32 %v5238, %v5257
        %v5259 = vmul.f32 %v5239, %v5257
        %v5260 = vmul.f32 %v5240, %v5257
        %v5261 = vmul.f32 %v5241, %v5257
        %v5262 = vadd.f32 %v5234, %v5258
        %v5263 = vadd.f32 %v5235, %v5259
        %v5264 = vadd.f32 %v5236, %v5260
        %v5265 = vadd.f32 %v5237, %v5261
        %v5266 = vld [vmem:[#allocation3 + $0x1e0] sm:$0xff]
        %v5267 = vld [vmem:[#allocation3 + $0x1e8] sm:$0xff]
        %v5268 = vld [vmem:[#allocation3 + $0x1f0] sm:$0xff]
        %v5269 = vld [vmem:[#allocation3 + $0x1f8] sm:$0xff]
        %v5270 = vlaneseq
        %v5271 = vshrl.u32 %v5270, 7
        %v5272 = vsub.s32 7, %v5271
        %v5273 = vrot.slane %v4827, %v5272
        %v5274 = vmul.f32 %v5266, %v5273
        %v5275 = vmul.f32 %v5267, %v5273
        %v5276 = vmul.f32 %v5268, %v5273
        %v5277 = vmul.f32 %v5269, %v5273
        %v5278 = vadd.f32 %v5250, %v5274
        %v5279 = vadd.f32 %v5251, %v5275
        %v5280 = vadd.f32 %v5252, %v5276
        %v5281 = vadd.f32 %v5253, %v5277
        %v5282 = vlaneseq
        %v5283 = vshrl.u32 %v5282, 7
        %v5284 = vsub.s32 7, %v5283
        %v5285 = vrot.slane %v4838, %v5284
        %v5286 = vmul.f32 %v5266, %v5285
        %v5287 = vmul.f32 %v5267, %v5285
        %v5288 = vmul.f32 %v5268, %v5285
        %v5289 = vmul.f32 %v5269, %v5285
        %v5290 = vadd.f32 %v5262, %v5286
        %v5291 = vadd.f32 %v5263, %v5287
        %v5292 = vadd.f32 %v5264, %v5288
        %v5293 = vadd.f32 %v5265, %v5289
        %s5294 = sadd.s32 %s4822, 22
        %v5295 = vmax.f32 %v5278, -50000.0
        %v5296 = vmax.f32 %v5279, -50000.0
        %v5297 = vmax.f32 %v5280, -50000.0
        %v5298 = vmax.f32 %v5281, -50000.0
        %v5299 = vmin.f32 %v5295, 50000.0
        %v5300 = vmin.f32 %v5296, 50000.0
        %v5301 = vmin.f32 %v5297, 50000.0
        %v5302 = vmin.f32 %v5298, 50000.0
        %v5303 = vmax.f32 %v5299, %v5300
        %v5304 = vmax.f32 %v5301, %v5302
        %v5305 = vmax.f32 %v5303, %v5304
        %v5306 = vrot.slane %v5305, 4
        %v5307 = vmax.f32 %v5305, %v5306
        %v5308 = vrot.slane %v5307, 2
        %v5309 = vmax.f32 %v5307, %v5308
        %v5310 = vrot.slane %v5309, 1
        %v5311 = vmax.f32 %v5309, %v5310
        %v5312 = vsub.f32 %v5299, %v5311
        %v5313 = vsub.f32 %v5300, %v5311
        %v5314 = vsub.f32 %v5301, %v5311
        %v5315 = vsub.f32 %v5302, %v5311
        %v5316 = vmul.f32 %v5312, 1.442695
        %v5317 = vpow.pop %v5316
        %v5318 = vmul.f32 %v5313, 1.442695
        %v5319 = vpow.pop %v5318
        %v5320 = vmul.f32 %v5314, 1.442695
        %v5321 = vpow.pop %v5320
        %v5322 = vmul.f32 %v5315, 1.442695
        %v5323 = vpow.pop %v5322
        %v5324 = vmul.f32 %v5317, %v1408
        %v5325 = vmul.f32 %v5319, %v1409
        %v5326 = vmul.f32 %v5321, %v1410
        %v5327 = vmul.f32 %v5323, %v1411
        %v5328 = vadd.f32 %v5324, %v5325
        %v5329 = vadd.f32 %v5328, %v5326
        %v5330 = vadd.f32 %v5329, %v5327
        %v5331 = vrot.slane %v5330, 4
        %v5332 = vadd.f32 %v5330, %v5331
        %v5333 = vrot.slane %v5332, 2
        %v5334 = vadd.f32 %v5332, %v5333
        %v5335 = vrot.slane %v5334, 1
        %v5336 = vadd.f32 %v5334, %v5335
        %v5337 = vadd.f32 %v5317, %v5319
        %v5338 = vadd.f32 %v5337, %v5321
        %v5339 = vadd.f32 %v5338, %v5323
        %v5340 = vrot.slane %v5339, 4
        %v5341 = vadd.f32 %v5339, %v5340
        %v5342 = vrot.slane %v5341, 2
        %v5343 = vadd.f32 %v5341, %v5342
        %v5344 = vrot.slane %v5343, 1
        %v5345 = vadd.f32 %v5343, %v5344
        %v5346 = vadd.f32 %v5345, 1e-08
        %v5347 = vrcp.pop %v5346
        %v5348 = vmul.f32 %v5336, %v5347
        %v5349 = vmul.f32 %v1400, %v5348
        %v5350 = vadd.f32 %v5349, %v1402
        %s5351 = scalar_lea.vmem %s424, %s5294
        %5352 = vst [vmem:[%s5351] sm:$0x1] %v5350
        %s5353 = sadd.s32 %s4822, 23
        %v5354 = vmax.f32 %v5290, -50000.0
        %v5355 = vmax.f32 %v5291, -50000.0
        %v5356 = vmax.f32 %v5292, -50000.0
        %v5357 = vmax.f32 %v5293, -50000.0
        %v5358 = vmin.f32 %v5354, 50000.0
        %v5359 = vmin.f32 %v5355, 50000.0
        %v5360 = vmin.f32 %v5356, 50000.0
        %v5361 = vmin.f32 %v5357, 50000.0
        %v5362 = vmax.f32 %v5358, %v5359
        %v5363 = vmax.f32 %v5360, %v5361
        %v5364 = vmax.f32 %v5362, %v5363
        %v5365 = vrot.slane %v5364, 4
        %v5366 = vmax.f32 %v5364, %v5365
        %v5367 = vrot.slane %v5366, 2
        %v5368 = vmax.f32 %v5366, %v5367
        %v5369 = vrot.slane %v5368, 1
        %v5370 = vmax.f32 %v5368, %v5369
        %v5371 = vsub.f32 %v5358, %v5370
        %v5372 = vsub.f32 %v5359, %v5370
        %v5373 = vsub.f32 %v5360, %v5370
        %v5374 = vsub.f32 %v5361, %v5370
        %v5375 = vmul.f32 %v5371, 1.442695
        %v5376 = vpow.pop %v5375
        %v5377 = vmul.f32 %v5372, 1.442695
        %v5378 = vpow.pop %v5377
        %v5379 = vmul.f32 %v5373, 1.442695
        %v5380 = vpow.pop %v5379
        %v5381 = vmul.f32 %v5374, 1.442695
        %v5382 = vpow.pop %v5381
        %v5383 = vmul.f32 %v5376, %v1408
        %v5384 = vmul.f32 %v5378, %v1409
        %v5385 = vmul.f32 %v5380, %v1410
        %v5386 = vmul.f32 %v5382, %v1411
        %v5387 = vadd.f32 %v5383, %v5384
        %v5388 = vadd.f32 %v5387, %v5385
        %v5389 = vadd.f32 %v5388, %v5386
        %v5390 = vrot.slane %v5389, 4
        %v5391 = vadd.f32 %v5389, %v5390
        %v5392 = vrot.slane %v5391, 2
        %v5393 = vadd.f32 %v5391, %v5392
        %v5394 = vrot.slane %v5393, 1
        %v5395 = vadd.f32 %v5393, %v5394
        %v5396 = vadd.f32 %v5376, %v5378
        %v5397 = vadd.f32 %v5396, %v5380
        %v5398 = vadd.f32 %v5397, %v5382
        %v5399 = vrot.slane %v5398, 4
        %v5400 = vadd.f32 %v5398, %v5399
        %v5401 = vrot.slane %v5400, 2
        %v5402 = vadd.f32 %v5400, %v5401
        %v5403 = vrot.slane %v5402, 1
        %v5404 = vadd.f32 %v5402, %v5403
        %v5405 = vadd.f32 %v5404, 1e-08
        %v5406 = vrcp.pop %v5405
        %v5407 = vmul.f32 %v5395, %v5406
        %v5408 = vmul.f32 %v1400, %v5407
        %v5409 = vadd.f32 %v5408, %v1402
        %s5410 = scalar_lea.vmem %s424, %s5353
        %5411 = vst [vmem:[%s5410] sm:$0x1] %v5409
      $region53: #{_lambda_.1} parent=47 // loop_footer
        %s4821 = sadd.s32 1, %s4817
      $region54: #{_lambda_.1} parent=47 // loop_footer_branch
        %4816 = sbr.rel target = $region50
      $region55: #{_lambda_.1} parent=47 // loop_exit
        _
      %v5412 = vld [vmem:[#allocation2 + $0x280] sm:$0xff]
      %v5413 = vld [vmem:[#allocation2 + $0x288] sm:$0xff]
      %v5414 = vld [vmem:[#allocation2 + $0x2a0] sm:$0x1]
      %v5415 = vlaneseq
      %v5416 = vshrl.u32 %v5415, 7
      %v5417 = vsub.s32 0, %v5416
      %v5418 = vrot.slane %v5414, %v5417
      %v5419 = vld [vmem:[#allocation3] sm:$0xff]
      %v5420 = vld [vmem:[#allocation3 + $0x8] sm:$0xff]
      %v5421 = vld [vmem:[#allocation3 + $0x10] sm:$0xff]
      %v5422 = vld [vmem:[#allocation3 + $0x18] sm:$0xff]
      %v5423 = vlaneseq
      %v5424 = vshrl.u32 %v5423, 7
      %v5425 = vsub.s32 0, %v5424
      %v5426 = vrot.slane %v5412, %v5425
      %v5427 = vmul.f32 %v5419, %v5426
      %v5428 = vmul.f32 %v5420, %v5426
      %v5429 = vmul.f32 %v5421, %v5426
      %v5430 = vmul.f32 %v5422, %v5426
      %v5431 = vadd.f32 %v5418, %v5427
      %v5432 = vadd.f32 %v5418, %v5428
      %v5433 = vadd.f32 %v5418, %v5429
      %v5434 = vadd.f32 %v5418, %v5430
      %v5435 = vld [vmem:[#allocation3 + $0x20] sm:$0xff]
      %v5436 = vld [vmem:[#allocation3 + $0x28] sm:$0xff]
      %v5437 = vld [vmem:[#allocation3 + $0x30] sm:$0xff]
      %v5438 = vld [vmem:[#allocation3 + $0x38] sm:$0xff]
      %v5439 = vlaneseq
      %v5440 = vshrl.u32 %v5439, 7
      %v5441 = vsub.s32 1, %v5440
      %v5442 = vrot.slane %v5412, %v5441
      %v5443 = vmul.f32 %v5435, %v5442
      %v5444 = vmul.f32 %v5436, %v5442
      %v5445 = vmul.f32 %v5437, %v5442
      %v5446 = vmul.f32 %v5438, %v5442
      %v5447 = vadd.f32 %v5431, %v5443
      %v5448 = vadd.f32 %v5432, %v5444
      %v5449 = vadd.f32 %v5433, %v5445
      %v5450 = vadd.f32 %v5434, %v5446
      %v5451 = vld [vmem:[#allocation3 + $0x40] sm:$0xff]
      %v5452 = vld [vmem:[#allocation3 + $0x48] sm:$0xff]
      %v5453 = vld [vmem:[#allocation3 + $0x50] sm:$0xff]
      %v5454 = vld [vmem:[#allocation3 + $0x58] sm:$0xff]
      %v5455 = vlaneseq
      %v5456 = vshrl.u32 %v5455, 7
      %v5457 = vsub.s32 2, %v5456
      %v5458 = vrot.slane %v5412, %v5457
      %v5459 = vmul.f32 %v5451, %v5458
      %v5460 = vmul.f32 %v5452, %v5458
      %v5461 = vmul.f32 %v5453, %v5458
      %v5462 = vmul.f32 %v5454, %v5458
      %v5463 = vadd.f32 %v5447, %v5459
      %v5464 = vadd.f32 %v5448, %v5460
      %v5465 = vadd.f32 %v5449, %v5461
      %v5466 = vadd.f32 %v5450, %v5462
      %v5467 = vld [vmem:[#allocation3 + $0x60] sm:$0xff]
      %v5468 = vld [vmem:[#allocation3 + $0x68] sm:$0xff]
      %v5469 = vld [vmem:[#allocation3 + $0x70] sm:$0xff]
      %v5470 = vld [vmem:[#allocation3 + $0x78] sm:$0xff]
      %v5471 = vlaneseq
      %v5472 = vshrl.u32 %v5471, 7
      %v5473 = vsub.s32 3, %v5472
      %v5474 = vrot.slane %v5412, %v5473
      %v5475 = vmul.f32 %v5467, %v5474
      %v5476 = vmul.f32 %v5468, %v5474
      %v5477 = vmul.f32 %v5469, %v5474
      %v5478 = vmul.f32 %v5470, %v5474
      %v5479 = vadd.f32 %v5463, %v5475
      %v5480 = vadd.f32 %v5464, %v5476
      %v5481 = vadd.f32 %v5465, %v5477
      %v5482 = vadd.f32 %v5466, %v5478
      %v5483 = vld [vmem:[#allocation3 + $0x80] sm:$0xff]
      %v5484 = vld [vmem:[#allocation3 + $0x88] sm:$0xff]
      %v5485 = vld [vmem:[#allocation3 + $0x90] sm:$0xff]
      %v5486 = vld [vmem:[#allocation3 + $0x98] sm:$0xff]
      %v5487 = vlaneseq
      %v5488 = vshrl.u32 %v5487, 7
      %v5489 = vsub.s32 4, %v5488
      %v5490 = vrot.slane %v5412, %v5489
      %v5491 = vmul.f32 %v5483, %v5490
      %v5492 = vmul.f32 %v5484, %v5490
      %v5493 = vmul.f32 %v5485, %v5490
      %v5494 = vmul.f32 %v5486, %v5490
      %v5495 = vadd.f32 %v5479, %v5491
      %v5496 = vadd.f32 %v5480, %v5492
      %v5497 = vadd.f32 %v5481, %v5493
      %v5498 = vadd.f32 %v5482, %v5494
      %v5499 = vld [vmem:[#allocation3 + $0xa0] sm:$0xff]
      %v5500 = vld [vmem:[#allocation3 + $0xa8] sm:$0xff]
      %v5501 = vld [vmem:[#allocation3 + $0xb0] sm:$0xff]
      %v5502 = vld [vmem:[#allocation3 + $0xb8] sm:$0xff]
      %v5503 = vlaneseq
      %v5504 = vshrl.u32 %v5503, 7
      %v5505 = vsub.s32 5, %v5504
      %v5506 = vrot.slane %v5412, %v5505
      %v5507 = vmul.f32 %v5499, %v5506
      %v5508 = vmul.f32 %v5500, %v5506
      %v5509 = vmul.f32 %v5501, %v5506
      %v5510 = vmul.f32 %v5502, %v5506
      %v5511 = vadd.f32 %v5495, %v5507
      %v5512 = vadd.f32 %v5496, %v5508
      %v5513 = vadd.f32 %v5497, %v5509
      %v5514 = vadd.f32 %v5498, %v5510
      %v5515 = vld [vmem:[#allocation3 + $0xc0] sm:$0xff]
      %v5516 = vld [vmem:[#allocation3 + $0xc8] sm:$0xff]
      %v5517 = vld [vmem:[#allocation3 + $0xd0] sm:$0xff]
      %v5518 = vld [vmem:[#allocation3 + $0xd8] sm:$0xff]
      %v5519 = vlaneseq
      %v5520 = vshrl.u32 %v5519, 7
      %v5521 = vsub.s32 6, %v5520
      %v5522 = vrot.slane %v5412, %v5521
      %v5523 = vmul.f32 %v5515, %v5522
      %v5524 = vmul.f32 %v5516, %v5522
      %v5525 = vmul.f32 %v5517, %v5522
      %v5526 = vmul.f32 %v5518, %v5522
      %v5527 = vadd.f32 %v5511, %v5523
      %v5528 = vadd.f32 %v5512, %v5524
      %v5529 = vadd.f32 %v5513, %v5525
      %v5530 = vadd.f32 %v5514, %v5526
      %v5531 = vld [vmem:[#allocation3 + $0xe0] sm:$0xff]
      %v5532 = vld [vmem:[#allocation3 + $0xe8] sm:$0xff]
      %v5533 = vld [vmem:[#allocation3 + $0xf0] sm:$0xff]
      %v5534 = vld [vmem:[#allocation3 + $0xf8] sm:$0xff]
      %v5535 = vlaneseq
      %v5536 = vshrl.u32 %v5535, 7
      %v5537 = vsub.s32 7, %v5536
      %v5538 = vrot.slane %v5412, %v5537
      %v5539 = vmul.f32 %v5531, %v5538
      %v5540 = vmul.f32 %v5532, %v5538
      %v5541 = vmul.f32 %v5533, %v5538
      %v5542 = vmul.f32 %v5534, %v5538
      %v5543 = vadd.f32 %v5527, %v5539
      %v5544 = vadd.f32 %v5528, %v5540
      %v5545 = vadd.f32 %v5529, %v5541
      %v5546 = vadd.f32 %v5530, %v5542
      %v5547 = vld [vmem:[#allocation3 + $0x100] sm:$0xff]
      %v5548 = vld [vmem:[#allocation3 + $0x108] sm:$0xff]
      %v5549 = vld [vmem:[#allocation3 + $0x110] sm:$0xff]
      %v5550 = vld [vmem:[#allocation3 + $0x118] sm:$0xff]
      %v5551 = vlaneseq
      %v5552 = vshrl.u32 %v5551, 7
      %v5553 = vsub.s32 0, %v5552
      %v5554 = vrot.slane %v5413, %v5553
      %v5555 = vmul.f32 %v5547, %v5554
      %v5556 = vmul.f32 %v5548, %v5554
      %v5557 = vmul.f32 %v5549, %v5554
      %v5558 = vmul.f32 %v5550, %v5554
      %v5559 = vadd.f32 %v5543, %v5555
      %v5560 = vadd.f32 %v5544, %v5556
      %v5561 = vadd.f32 %v5545, %v5557
      %v5562 = vadd.f32 %v5546, %v5558
      %v5563 = vld [vmem:[#allocation3 + $0x120] sm:$0xff]
      %v5564 = vld [vmem:[#allocation3 + $0x128] sm:$0xff]
      %v5565 = vld [vmem:[#allocation3 + $0x130] sm:$0xff]
      %v5566 = vld [vmem:[#allocation3 + $0x138] sm:$0xff]
      %v5567 = vlaneseq
      %v5568 = vshrl.u32 %v5567, 7
      %v5569 = vsub.s32 1, %v5568
      %v5570 = vrot.slane %v5413, %v5569
      %v5571 = vmul.f32 %v5563, %v5570
      %v5572 = vmul.f32 %v5564, %v5570
      %v5573 = vmul.f32 %v5565, %v5570
      %v5574 = vmul.f32 %v5566, %v5570
      %v5575 = vadd.f32 %v5559, %v5571
      %v5576 = vadd.f32 %v5560, %v5572
      %v5577 = vadd.f32 %v5561, %v5573
      %v5578 = vadd.f32 %v5562, %v5574
      %v5579 = vld [vmem:[#allocation3 + $0x140] sm:$0xff]
      %v5580 = vld [vmem:[#allocation3 + $0x148] sm:$0xff]
      %v5581 = vld [vmem:[#allocation3 + $0x150] sm:$0xff]
      %v5582 = vld [vmem:[#allocation3 + $0x158] sm:$0xff]
      %v5583 = vlaneseq
      %v5584 = vshrl.u32 %v5583, 7
      %v5585 = vsub.s32 2, %v5584
      %v5586 = vrot.slane %v5413, %v5585
      %v5587 = vmul.f32 %v5579, %v5586
      %v5588 = vmul.f32 %v5580, %v5586
      %v5589 = vmul.f32 %v5581, %v5586
      %v5590 = vmul.f32 %v5582, %v5586
      %v5591 = vadd.f32 %v5575, %v5587
      %v5592 = vadd.f32 %v5576, %v5588
      %v5593 = vadd.f32 %v5577, %v5589
      %v5594 = vadd.f32 %v5578, %v5590
      %v5595 = vld [vmem:[#allocation3 + $0x160] sm:$0xff]
      %v5596 = vld [vmem:[#allocation3 + $0x168] sm:$0xff]
      %v5597 = vld [vmem:[#allocation3 + $0x170] sm:$0xff]
      %v5598 = vld [vmem:[#allocation3 + $0x178] sm:$0xff]
      %v5599 = vlaneseq
      %v5600 = vshrl.u32 %v5599, 7
      %v5601 = vsub.s32 3, %v5600
      %v5602 = vrot.slane %v5413, %v5601
      %v5603 = vmul.f32 %v5595, %v5602
      %v5604 = vmul.f32 %v5596, %v5602
      %v5605 = vmul.f32 %v5597, %v5602
      %v5606 = vmul.f32 %v5598, %v5602
      %v5607 = vadd.f32 %v5591, %v5603
      %v5608 = vadd.f32 %v5592, %v5604
      %v5609 = vadd.f32 %v5593, %v5605
      %v5610 = vadd.f32 %v5594, %v5606
      %v5611 = vld [vmem:[#allocation3 + $0x180] sm:$0xff]
      %v5612 = vld [vmem:[#allocation3 + $0x188] sm:$0xff]
      %v5613 = vld [vmem:[#allocation3 + $0x190] sm:$0xff]
      %v5614 = vld [vmem:[#allocation3 + $0x198] sm:$0xff]
      %v5615 = vlaneseq
      %v5616 = vshrl.u32 %v5615, 7
      %v5617 = vsub.s32 4, %v5616
      %v5618 = vrot.slane %v5413, %v5617
      %v5619 = vmul.f32 %v5611, %v5618
      %v5620 = vmul.f32 %v5612, %v5618
      %v5621 = vmul.f32 %v5613, %v5618
      %v5622 = vmul.f32 %v5614, %v5618
      %v5623 = vadd.f32 %v5607, %v5619
      %v5624 = vadd.f32 %v5608, %v5620
      %v5625 = vadd.f32 %v5609, %v5621
      %v5626 = vadd.f32 %v5610, %v5622
      %v5627 = vld [vmem:[#allocation3 + $0x1a0] sm:$0xff]
      %v5628 = vld [vmem:[#allocation3 + $0x1a8] sm:$0xff]
      %v5629 = vld [vmem:[#allocation3 + $0x1b0] sm:$0xff]
      %v5630 = vld [vmem:[#allocation3 + $0x1b8] sm:$0xff]
      %v5631 = vlaneseq
      %v5632 = vshrl.u32 %v5631, 7
      %v5633 = vsub.s32 5, %v5632
      %v5634 = vrot.slane %v5413, %v5633
      %v5635 = vmul.f32 %v5627, %v5634
      %v5636 = vmul.f32 %v5628, %v5634
      %v5637 = vmul.f32 %v5629, %v5634
      %v5638 = vmul.f32 %v5630, %v5634
      %v5639 = vadd.f32 %v5623, %v5635
      %v5640 = vadd.f32 %v5624, %v5636
      %v5641 = vadd.f32 %v5625, %v5637
      %v5642 = vadd.f32 %v5626, %v5638
      %v5643 = vld [vmem:[#allocation3 + $0x1c0] sm:$0xff]
      %v5644 = vld [vmem:[#allocation3 + $0x1c8] sm:$0xff]
      %v5645 = vld [vmem:[#allocation3 + $0x1d0] sm:$0xff]
      %v5646 = vld [vmem:[#allocation3 + $0x1d8] sm:$0xff]
      %v5647 = vlaneseq
      %v5648 = vshrl.u32 %v5647, 7
      %v5649 = vsub.s32 6, %v5648
      %v5650 = vrot.slane %v5413, %v5649
      %v5651 = vmul.f32 %v5643, %v5650
      %v5652 = vmul.f32 %v5644, %v5650
      %v5653 = vmul.f32 %v5645, %v5650
      %v5654 = vmul.f32 %v5646, %v5650
      %v5655 = vadd.f32 %v5639, %v5651
      %v5656 = vadd.f32 %v5640, %v5652
      %v5657 = vadd.f32 %v5641, %v5653
      %v5658 = vadd.f32 %v5642, %v5654
      %v5659 = vld [vmem:[#allocation3 + $0x1e0] sm:$0xff]
      %v5660 = vld [vmem:[#allocation3 + $0x1e8] sm:$0xff]
      %v5661 = vld [vmem:[#allocation3 + $0x1f0] sm:$0xff]
      %v5662 = vld [vmem:[#allocation3 + $0x1f8] sm:$0xff]
      %v5663 = vlaneseq
      %v5664 = vshrl.u32 %v5663, 7
      %v5665 = vsub.s32 7, %v5664
      %v5666 = vrot.slane %v5413, %v5665
      %v5667 = vmul.f32 %v5659, %v5666
      %v5668 = vmul.f32 %v5660, %v5666
      %v5669 = vmul.f32 %v5661, %v5666
      %v5670 = vmul.f32 %v5662, %v5666
      %v5671 = vadd.f32 %v5655, %v5667
      %v5672 = vadd.f32 %v5656, %v5668
      %v5673 = vadd.f32 %v5657, %v5669
      %v5674 = vadd.f32 %v5658, %v5670
      %v5675 = vmax.f32 %v5671, -50000.0
      %v5676 = vmax.f32 %v5672, -50000.0
      %v5677 = vmax.f32 %v5673, -50000.0
      %v5678 = vmax.f32 %v5674, -50000.0
      %v5679 = vmin.f32 %v5675, 50000.0
      %v5680 = vmin.f32 %v5676, 50000.0
      %v5681 = vmin.f32 %v5677, 50000.0
      %v5682 = vmin.f32 %v5678, 50000.0
      %v5683 = vmax.f32 %v5679, %v5680
      %v5684 = vmax.f32 %v5681, %v5682
      %v5685 = vmax.f32 %v5683, %v5684
      %v5686 = vrot.slane %v5685, 4
      %v5687 = vmax.f32 %v5685, %v5686
      %v5688 = vrot.slane %v5687, 2
      %v5689 = vmax.f32 %v5687, %v5688
      %v5690 = vrot.slane %v5689, 1
      %v5691 = vmax.f32 %v5689, %v5690
      %v5692 = vsub.f32 %v5679, %v5691
      %v5693 = vsub.f32 %v5680, %v5691
      %v5694 = vsub.f32 %v5681, %v5691
      %v5695 = vsub.f32 %v5682, %v5691
      %v5696 = vmul.f32 %v5692, 1.442695
      %v5697 = vpow.pop %v5696
      %v5698 = vmul.f32 %v5693, 1.442695
      %v5699 = vpow.pop %v5698
      %v5700 = vmul.f32 %v5694, 1.442695
      %v5701 = vpow.pop %v5700
      %v5702 = vmul.f32 %v5695, 1.442695
      %v5703 = vpow.pop %v5702
      %v5704 = vmul.f32 %v5697, %v1408
      %v5705 = vmul.f32 %v5699, %v1409
      %v5706 = vmul.f32 %v5701, %v1410
      %v5707 = vmul.f32 %v5703, %v1411
      %v5708 = vadd.f32 %v5704, %v5705
      %v5709 = vadd.f32 %v5708, %v5706
      %v5710 = vadd.f32 %v5709, %v5707
      %v5711 = vrot.slane %v5710, 4
      %v5712 = vadd.f32 %v5710, %v5711
      %v5713 = vrot.slane %v5712, 2
      %v5714 = vadd.f32 %v5712, %v5713
      %v5715 = vrot.slane %v5714, 1
      %v5716 = vadd.f32 %v5714, %v5715
      %v5717 = vadd.f32 %v5697, %v5699
      %v5718 = vadd.f32 %v5717, %v5701
      %v5719 = vadd.f32 %v5718, %v5703
      %v5720 = vrot.slane %v5719, 4
      %v5721 = vadd.f32 %v5719, %v5720
      %v5722 = vrot.slane %v5721, 2
      %v5723 = vadd.f32 %v5721, %v5722
      %v5724 = vrot.slane %v5723, 1
      %v5725 = vadd.f32 %v5723, %v5724
      %v5726 = vadd.f32 %v5725, 1e-08
      %v5727 = vrcp.pop %v5726
      %v5728 = vmul.f32 %v5716, %v5727
      %v5729 = vmul.f32 %v1400, %v5728
      %v5730 = vadd.f32 %v5729, %v1402
      %5731 = vst [vmem:[%s424 + $0x26] sm:$0x1] %v5730
      %v5732 = vmul.f32 %v483, 0.06666667
      %v5733 = vlaneseq
      %v5734 = vshrl.u32 %v5733, 7
      %v5735 = vsub.s32 1, %v5734
      %v5736 = vrot.slane %v5732, %v5735
      %v5737 = vmul.f32 %v1408, %v5736
      %v5738 = vmul.f32 %v1409, %v5736
      %v5739 = vlaneseq
      %v5740 = vshrl.u32 %v5739, 7
      %v5741 = vsub.s32 1, %v5740
      %v5742 = vrot.slane %v1402, %v5741
      %v5743 = vadd.f32 %v5737, %v5742
      %v5744 = vadd.f32 %v5738, %v5742
      %v5745 = vand.u32 2147483647, %v5743
      %vm5746 = vcmp.le.f32.partialorder %v5745, 0.7853982
      %vm5747 = vcmp.lt.s32.totalorder %v5743, 0
      %v5748 = vand.u32 %v5743, 2139095040
      %v5749 = vshrl.u32 %v5748, 23
      %v5750 = vsub.s32 %v5749, 127
      %v5751 = vand.u32 2147483647, %v5743
      %v5752 = vand.u32 %v5751, 8388607
      %v5753 = vor.u32 %v5752, 8388608
      %v5754 = vsub.s32 0, %v5753
      %v5755 = vadd.s32 %v5750, 1
      %vm5756 = vcmp.gt.s32.totalorder %v5755, 0
      %v5757 = vsel %vm5756, %v5755, 0
      %v5758 = vshrl.u32 %v5757, 5
      %v5759 = vand.u32 %v5757, 31
      %v5760 = vsub.s32 32, %v5759
      %v5761 = vshrl.u32 683565275, %v5760
      %v5762 = vshll.u32 683565275, %v5759
      %v5763 = vshrl.u32 2475754826, %v5760
      %v5764 = vor.u32 %v5762, %v5763
      %v5765 = vshll.u32 2475754826, %v5759
      %v5766 = vshrl.u32 2131351028, %v5760
      %v5767 = vor.u32 %v5765, %v5766
      %v5768 = vshll.u32 2131351028, %v5759
      %v5769 = vshrl.u32 2102212464, %v5760
      %v5770 = vor.u32 %v5768, %v5769
      %v5771 = vshll.u32 2102212464, %v5759
      %v5772 = vshrl.u32 920167782, %v5760
      %v5773 = vor.u32 %v5771, %v5772
      %v5774 = vshll.u32 920167782, %v5759
      %v5775 = vshrl.u32 1326507024, %v5760
      %v5776 = vor.u32 %v5774, %v5775
      %vm5777 = vcmp.lt.s32.totalorder %v5758, 1
      %vm5778 = vcmp.lt.s32.totalorder %v5758, 2
      %vm5779 = vcmp.lt.s32.totalorder %v5758, 3
      %vm5780 = vcmp.lt.s32.totalorder %v5758, 4
      %v5781 = vsel %vm5777, %v5761, %v5764
      %v5782 = vsel %vm5780, %v5770, 2102212464
      %v5783 = vsel %vm5779, %v5767, %v5782
      %v5784 = vsel %vm5778, %v5781, %v5783
      %v5785 = vsel %vm5777, %v5764, %v5767
      %v5786 = vsel %vm5780, %v5773, 920167782
      %v5787 = vsel %vm5779, %v5770, %v5786
      %v5788 = vsel %vm5778, %v5785, %v5787
      %v5789 = vsel %vm5777, %v5767, %v5770
      %v5790 = vsel %vm5780, %v5776, 1326507024
      %v5791 = vsel %vm5779, %v5773, %v5790
      %v5792 = vsel %vm5778, %v5789, %v5791
      %v5793 = vshll.u32 %v5753, 8
      %v5794 = vmul.u32.u64.compose %v5793, %v5792
      %v5795 = vextract.low.u32 %v5794
      %v5796 = vextract.high.u32 %v5794
      %v5797 = vmul.u32.u64.compose %v5793, %v5788
      %v5798 = vextract.low.u32 %v5797
      %v5799 = vextract.high.u32 %v5797
      %v5800 = vmul.u32 %v5793, %v5784
      %v5801 = vadd.s32 %v5796, %v5798
      %vm5802 = vc.u32 %v5796, %v5798
      %v5803 = vadd.s32 %v5799, 1
      %v5804 = vsel %vm5802, %v5803, %v5799
      %v5805 = vadd.s32 %v5800, %v5804
      %v5806 = vadd.s32 %v5805, 536870912
      %v5807 = vshrl.u32 %v5806, 30
      %v5808 = vshll.u32 %v5807, 30
      %v5809 = vsub.s32 %v5805, %v5808
      %vm5810 = vcmp.lt.s32.totalorder %v5809, 0
      %v5811 = vsub.s32 0, %v5809
      %v5812 = vsel %vm5810, %v5811, %v5809
      %v5813 = vclz %v5812
      %v5814 = vsub.s32 %v5813, 2
      %vm5815 = vcmp.gt.s32.totalorder 0, %v5814
      %v5816 = vsel %vm5815, 0, %v5814
      %v5817 = vsub.s32 32, %v5816
      %v5818 = vshll.u32 %v5809, %v5816
      %v5819 = vshrl.u32 %v5801, %v5817
      %v5820 = vor.u32 %v5818, %v5819
      %v5821 = vsub.s32 4294967266, %v5816
      %v5822 = vadd.s32 %v5821, 127
      %v5823 = vshll.u32 %v5822, 23
      %v5824 = vor.u32 4788187, %v5823
      %v5825 = vand.u32 2147483647, %v5824
      %v5827 = vcvt.s32.f32 %v5820
      %v5828 = vmul.f32 %v5827, %v5825
      %v5829 = vxor.u32 %v5828, 2147483648
      %v5830 = vsel %vm5747, %v5829, %v5828
      %v5831 = vsub.s32 4, %v5807
      %v5832 = vsel %vm5747, %v5831, %v5807
      %v5833 = vsel %vm5746, %v5743, %v5830
      %v5834 = vsel %vm5746, 0, %v5832
      %v5835 = vcosq.f32.pop %v5833
      %v5836 = vsinq.f32.pop %v5833
      %vm5837 = vweird.f32 %v5743
      %v5838 = vand.u32 %v5834, 3
      %vm5839 = vcmp.lt.s32.totalorder %v5838, 2
      %vm5840 = vcmp.eq.s32.totalorder %v5838, 0
      %v5841 = vxor.u32 %v5836, 2147483648
      %v5842 = vsel %vm5840, %v5835, %v5841
      %vm5843 = vcmp.eq.s32.totalorder %v5838, 2
      %v5844 = vxor.u32 %v5835, 2147483648
      %v5845 = vsel %vm5843, %v5844, %v5836
      %v5846 = vsel %vm5839, %v5842, %v5845
      %v5847 = vsel %vm5837, nan, %v5846
      %v5848 = vand.u32 2147483647, %v5744
      %vm5849 = vcmp.le.f32.partialorder %v5848, 0.7853982
      %vm5850 = vcmp.lt.s32.totalorder %v5744, 0
      %v5851 = vand.u32 %v5744, 2139095040
      %v5852 = vshrl.u32 %v5851, 23
      %v5853 = vsub.s32 %v5852, 127
      %v5854 = vand.u32 2147483647, %v5744
      %v5855 = vand.u32 %v5854, 8388607
      %v5856 = vor.u32 %v5855, 8388608
      %v5857 = vsub.s32 0, %v5856
      %v5858 = vadd.s32 %v5853, 1
      %vm5859 = vcmp.gt.s32.totalorder %v5858, 0
      %v5860 = vsel %vm5859, %v5858, 0
      %v5861 = vshrl.u32 %v5860, 5
      %v5862 = vand.u32 %v5860, 31
      %v5863 = vsub.s32 32, %v5862
      %v5864 = vshrl.u32 683565275, %v5863
      %v5865 = vshll.u32 683565275, %v5862
      %v5866 = vshrl.u32 2475754826, %v5863
      %v5867 = vor.u32 %v5865, %v5866
      %v5868 = vshll.u32 2475754826, %v5862
      %v5869 = vshrl.u32 2131351028, %v5863
      %v5870 = vor.u32 %v5868, %v5869
      %v5871 = vshll.u32 2131351028, %v5862
      %v5872 = vshrl.u32 2102212464, %v5863
      %v5873 = vor.u32 %v5871, %v5872
      %v5874 = vshll.u32 2102212464, %v5862
      %v5875 = vshrl.u32 920167782, %v5863
      %v5876 = vor.u32 %v5874, %v5875
      %v5877 = vshll.u32 920167782, %v5862
      %v5878 = vshrl.u32 1326507024, %v5863
      %v5879 = vor.u32 %v5877, %v5878
      %vm5880 = vcmp.lt.s32.totalorder %v5861, 1
      %vm5881 = vcmp.lt.s32.totalorder %v5861, 2
      %vm5882 = vcmp.lt.s32.totalorder %v5861, 3
      %vm5883 = vcmp.lt.s32.totalorder %v5861, 4
      %v5884 = vsel %vm5880, %v5864, %v5867
      %v5885 = vsel %vm5883, %v5873, 2102212464
      %v5886 = vsel %vm5882, %v5870, %v5885
      %v5887 = vsel %vm5881, %v5884, %v5886
      %v5888 = vsel %vm5880, %v5867, %v5870
      %v5889 = vsel %vm5883, %v5876, 920167782
      %v5890 = vsel %vm5882, %v5873, %v5889
      %v5891 = vsel %vm5881, %v5888, %v5890
      %v5892 = vsel %vm5880, %v5870, %v5873
      %v5893 = vsel %vm5883, %v5879, 1326507024
      %v5894 = vsel %vm5882, %v5876, %v5893
      %v5895 = vsel %vm5881, %v5892, %v5894
      %v5896 = vshll.u32 %v5856, 8
      %v5897 = vmul.u32.u64.compose %v5896, %v5895
      %v5898 = vextract.low.u32 %v5897
      %v5899 = vextract.high.u32 %v5897
      %v5900 = vmul.u32.u64.compose %v5896, %v5891
      %v5901 = vextract.low.u32 %v5900
      %v5902 = vextract.high.u32 %v5900
      %v5903 = vmul.u32 %v5896, %v5887
      %v5904 = vadd.s32 %v5899, %v5901
      %vm5905 = vc.u32 %v5899, %v5901
      %v5906 = vadd.s32 %v5902, 1
      %v5907 = vsel %vm5905, %v5906, %v5902
      %v5908 = vadd.s32 %v5903, %v5907
      %v5909 = vadd.s32 %v5908, 536870912
      %v5910 = vshrl.u32 %v5909, 30
      %v5911 = vshll.u32 %v5910, 30
      %v5912 = vsub.s32 %v5908, %v5911
      %vm5913 = vcmp.lt.s32.totalorder %v5912, 0
      %v5914 = vsub.s32 0, %v5912
      %v5915 = vsel %vm5913, %v5914, %v5912
      %v5916 = vclz %v5915
      %v5917 = vsub.s32 %v5916, 2
      %vm5918 = vcmp.gt.s32.totalorder 0, %v5917
      %v5919 = vsel %vm5918, 0, %v5917
      %v5920 = vsub.s32 32, %v5919
      %v5921 = vshll.u32 %v5912, %v5919
      %v5922 = vshrl.u32 %v5904, %v5920
      %v5923 = vor.u32 %v5921, %v5922
      %v5924 = vsub.s32 4294967266, %v5919
      %v5925 = vadd.s32 %v5924, 127
      %v5926 = vshll.u32 %v5925, 23
      %v5927 = vor.u32 4788187, %v5926
      %v5928 = vand.u32 2147483647, %v5927
      %v5930 = vcvt.s32.f32 %v5923
      %v5931 = vmul.f32 %v5930, %v5928
      %v5932 = vxor.u32 %v5931, 2147483648
      %v5933 = vsel %vm5850, %v5932, %v5931
      %v5934 = vsub.s32 4, %v5910
      %v5935 = vsel %vm5850, %v5934, %v5910
      %v5936 = vsel %vm5849, %v5744, %v5933
      %v5937 = vsel %vm5849, 0, %v5935
      %v5938 = vcosq.f32.pop %v5936
      %v5939 = vsinq.f32.pop %v5936
      %vm5940 = vweird.f32 %v5744
      %v5941 = vand.u32 %v5937, 3
      %vm5942 = vcmp.lt.s32.totalorder %v5941, 2
      %vm5943 = vcmp.eq.s32.totalorder %v5941, 0
      %v5944 = vxor.u32 %v5939, 2147483648
      %v5945 = vsel %vm5943, %v5938, %v5944
      %vm5946 = vcmp.eq.s32.totalorder %v5941, 2
      %v5947 = vxor.u32 %v5938, 2147483648
      %v5948 = vsel %vm5946, %v5947, %v5939
      %v5949 = vsel %vm5942, %v5945, %v5948
      %v5950 = vsel %vm5940, nan, %v5949
      %5951 = vst [vmem:[#allocation3] sm:$0xff] %v5847
      %5952 = vst [vmem:[#allocation3 + $0x8] sm:$0xff] %v5950
      %v5953 = vand.u32 2147483647, %v5743
      %vm5954 = vcmp.le.f32.partialorder %v5953, 0.7853982
      %vm5955 = vcmp.lt.s32.totalorder %v5743, 0
      %v5956 = vand.u32 %v5743, 2139095040
      %v5957 = vshrl.u32 %v5956, 23
      %v5958 = vsub.s32 %v5957, 127
      %v5959 = vand.u32 2147483647, %v5743
      %v5960 = vand.u32 %v5959, 8388607
      %v5961 = vor.u32 %v5960, 8388608
      %v5962 = vsub.s32 0, %v5961
      %v5963 = vadd.s32 %v5958, 1
      %vm5964 = vcmp.gt.s32.totalorder %v5963, 0
      %v5965 = vsel %vm5964, %v5963, 0
      %v5966 = vshrl.u32 %v5965, 5
      %v5967 = vand.u32 %v5965, 31
      %v5968 = vsub.s32 32, %v5967
      %v5969 = vshrl.u32 683565275, %v5968
      %v5970 = vshll.u32 683565275, %v5967
      %v5971 = vshrl.u32 2475754826, %v5968
      %v5972 = vor.u32 %v5970, %v5971
      %v5973 = vshll.u32 2475754826, %v5967
      %v5974 = vshrl.u32 2131351028, %v5968
      %v5975 = vor.u32 %v5973, %v5974
      %v5976 = vshll.u32 2131351028, %v5967
      %v5977 = vshrl.u32 2102212464, %v5968
      %v5978 = vor.u32 %v5976, %v5977
      %v5979 = vshll.u32 2102212464, %v5967
      %v5980 = vshrl.u32 920167782, %v5968
      %v5981 = vor.u32 %v5979, %v5980
      %v5982 = vshll.u32 920167782, %v5967
      %v5983 = vshrl.u32 1326507024, %v5968
      %v5984 = vor.u32 %v5982, %v5983
      %vm5985 = vcmp.lt.s32.totalorder %v5966, 1
      %vm5986 = vcmp.lt.s32.totalorder %v5966, 2
      %vm5987 = vcmp.lt.s32.totalorder %v5966, 3
      %vm5988 = vcmp.lt.s32.totalorder %v5966, 4
      %v5989 = vsel %vm5985, %v5969, %v5972
      %v5990 = vsel %vm5988, %v5978, 2102212464
      %v5991 = vsel %vm5987, %v5975, %v5990
      %v5992 = vsel %vm5986, %v5989, %v5991
      %v5993 = vsel %vm5985, %v5972, %v5975
      %v5994 = vsel %vm5988, %v5981, 920167782
      %v5995 = vsel %vm5987, %v5978, %v5994
      %v5996 = vsel %vm5986, %v5993, %v5995
      %v5997 = vsel %vm5985, %v5975, %v5978
      %v5998 = vsel %vm5988, %v5984, 1326507024
      %v5999 = vsel %vm5987, %v5981, %v5998
      %v6000 = vsel %vm5986, %v5997, %v5999
      %v6001 = vshll.u32 %v5961, 8
      %v6002 = vmul.u32.u64.compose %v6001, %v6000
      %v6003 = vextract.low.u32 %v6002
      %v6004 = vextract.high.u32 %v6002
      %v6005 = vmul.u32.u64.compose %v6001, %v5996
      %v6006 = vextract.low.u32 %v6005
      %v6007 = vextract.high.u32 %v6005
      %v6008 = vmul.u32 %v6001, %v5992
      %v6009 = vadd.s32 %v6004, %v6006
      %vm6010 = vc.u32 %v6004, %v6006
      %v6011 = vadd.s32 %v6007, 1
      %v6012 = vsel %vm6010, %v6011, %v6007
      %v6013 = vadd.s32 %v6008, %v6012
      %v6014 = vadd.s32 %v6013, 536870912
      %v6015 = vshrl.u32 %v6014, 30
      %v6016 = vshll.u32 %v6015, 30
      %v6017 = vsub.s32 %v6013, %v6016
      %vm6018 = vcmp.lt.s32.totalorder %v6017, 0
      %v6019 = vsub.s32 0, %v6017
      %v6020 = vsel %vm6018, %v6019, %v6017
      %v6021 = vclz %v6020
      %v6022 = vsub.s32 %v6021, 2
      %vm6023 = vcmp.gt.s32.totalorder 0, %v6022
      %v6024 = vsel %vm6023, 0, %v6022
      %v6025 = vsub.s32 32, %v6024
      %v6026 = vshll.u32 %v6017, %v6024
      %v6027 = vshrl.u32 %v6009, %v6025
      %v6028 = vor.u32 %v6026, %v6027
      %v6029 = vsub.s32 4294967266, %v6024
      %v6030 = vadd.s32 %v6029, 127
      %v6031 = vshll.u32 %v6030, 23
      %v6032 = vor.u32 4788187, %v6031
      %v6033 = vand.u32 2147483647, %v6032
      %v6035 = vcvt.s32.f32 %v6028
      %v6036 = vmul.f32 %v6035, %v6033
      %v6037 = vxor.u32 %v6036, 2147483648
      %v6038 = vsel %vm5955, %v6037, %v6036
      %v6039 = vsub.s32 4, %v6015
      %v6040 = vsel %vm5955, %v6039, %v6015
      %v6041 = vsel %vm5954, %v5743, %v6038
      %v6042 = vsel %vm5954, 0, %v6040
      %v6043 = vcosq.f32.pop %v6041
      %v6044 = vsinq.f32.pop %v6041
      %vm6045 = vweird.f32 %v5743
      %v6046 = vadd.s32 %v6042, 3
      %v6047 = vand.u32 %v6046, 3
      %vm6048 = vcmp.lt.s32.totalorder %v6047, 2
      %vm6049 = vcmp.eq.s32.totalorder %v6047, 0
      %v6050 = vxor.u32 %v6044, 2147483648
      %v6051 = vsel %vm6049, %v6043, %v6050
      %vm6052 = vcmp.eq.s32.totalorder %v6047, 2
      %v6053 = vxor.u32 %v6043, 2147483648
      %v6054 = vsel %vm6052, %v6053, %v6044
      %v6055 = vsel %vm6048, %v6051, %v6054
      %v6056 = vsel %vm6045, nan, %v6055
      %v6057 = vand.u32 2147483647, %v5744
      %vm6058 = vcmp.le.f32.partialorder %v6057, 0.7853982
      %vm6059 = vcmp.lt.s32.totalorder %v5744, 0
      %v6060 = vand.u32 %v5744, 2139095040
      %v6061 = vshrl.u32 %v6060, 23
      %v6062 = vsub.s32 %v6061, 127
      %v6063 = vand.u32 2147483647, %v5744
      %v6064 = vand.u32 %v6063, 8388607
      %v6065 = vor.u32 %v6064, 8388608
      %v6066 = vsub.s32 0, %v6065
      %v6067 = vadd.s32 %v6062, 1
      %vm6068 = vcmp.gt.s32.totalorder %v6067, 0
      %v6069 = vsel %vm6068, %v6067, 0
      %v6070 = vshrl.u32 %v6069, 5
      %v6071 = vand.u32 %v6069, 31
      %v6072 = vsub.s32 32, %v6071
      %v6073 = vshrl.u32 683565275, %v6072
      %v6074 = vshll.u32 683565275, %v6071
      %v6075 = vshrl.u32 2475754826, %v6072
      %v6076 = vor.u32 %v6074, %v6075
      %v6077 = vshll.u32 2475754826, %v6071
      %v6078 = vshrl.u32 2131351028, %v6072
      %v6079 = vor.u32 %v6077, %v6078
      %v6080 = vshll.u32 2131351028, %v6071
      %v6081 = vshrl.u32 2102212464, %v6072
      %v6082 = vor.u32 %v6080, %v6081
      %v6083 = vshll.u32 2102212464, %v6071
      %v6084 = vshrl.u32 920167782, %v6072
      %v6085 = vor.u32 %v6083, %v6084
      %v6086 = vshll.u32 920167782, %v6071
      %v6087 = vshrl.u32 1326507024, %v6072
      %v6088 = vor.u32 %v6086, %v6087
      %vm6089 = vcmp.lt.s32.totalorder %v6070, 1
      %vm6090 = vcmp.lt.s32.totalorder %v6070, 2
      %vm6091 = vcmp.lt.s32.totalorder %v6070, 3
      %vm6092 = vcmp.lt.s32.totalorder %v6070, 4
      %v6093 = vsel %vm6089, %v6073, %v6076
      %v6094 = vsel %vm6092, %v6082, 2102212464
      %v6095 = vsel %vm6091, %v6079, %v6094
      %v6096 = vsel %vm6090, %v6093, %v6095
      %v6097 = vsel %vm6089, %v6076, %v6079
      %v6098 = vsel %vm6092, %v6085, 920167782
      %v6099 = vsel %vm6091, %v6082, %v6098
      %v6100 = vsel %vm6090, %v6097, %v6099
      %v6101 = vsel %vm6089, %v6079, %v6082
      %v6102 = vsel %vm6092, %v6088, 1326507024
      %v6103 = vsel %vm6091, %v6085, %v6102
      %v6104 = vsel %vm6090, %v6101, %v6103
      %v6105 = vshll.u32 %v6065, 8
      %v6106 = vmul.u32.u64.compose %v6105, %v6104
      %v6107 = vextract.low.u32 %v6106
      %v6108 = vextract.high.u32 %v6106
      %v6109 = vmul.u32.u64.compose %v6105, %v6100
      %v6110 = vextract.low.u32 %v6109
      %v6111 = vextract.high.u32 %v6109
      %v6112 = vmul.u32 %v6105, %v6096
      %v6113 = vadd.s32 %v6108, %v6110
      %vm6114 = vc.u32 %v6108, %v6110
      %v6115 = vadd.s32 %v6111, 1
      %v6116 = vsel %vm6114, %v6115, %v6111
      %v6117 = vadd.s32 %v6112, %v6116
      %v6118 = vadd.s32 %v6117, 536870912
      %v6119 = vshrl.u32 %v6118, 30
      %v6120 = vshll.u32 %v6119, 30
      %v6121 = vsub.s32 %v6117, %v6120
      %vm6122 = vcmp.lt.s32.totalorder %v6121, 0
      %v6123 = vsub.s32 0, %v6121
      %v6124 = vsel %vm6122, %v6123, %v6121
      %v6125 = vclz %v6124
      %v6126 = vsub.s32 %v6125, 2
      %vm6127 = vcmp.gt.s32.totalorder 0, %v6126
      %v6128 = vsel %vm6127, 0, %v6126
      %v6129 = vsub.s32 32, %v6128
      %v6130 = vshll.u32 %v6121, %v6128
      %v6131 = vshrl.u32 %v6113, %v6129
      %v6132 = vor.u32 %v6130, %v6131
      %v6133 = vsub.s32 4294967266, %v6128
      %v6134 = vadd.s32 %v6133, 127
      %v6135 = vshll.u32 %v6134, 23
      %v6136 = vor.u32 4788187, %v6135
      %v6137 = vand.u32 2147483647, %v6136
      %v6139 = vcvt.s32.f32 %v6132
      %v6140 = vmul.f32 %v6139, %v6137
      %v6141 = vxor.u32 %v6140, 2147483648
      %v6142 = vsel %vm6059, %v6141, %v6140
      %v6143 = vsub.s32 4, %v6119
      %v6144 = vsel %vm6059, %v6143, %v6119
      %v6145 = vsel %vm6058, %v5744, %v6142
      %v6146 = vsel %vm6058, 0, %v6144
      %v6147 = vcosq.f32.pop %v6145
      %v6148 = vsinq.f32.pop %v6145
      %vm6149 = vweird.f32 %v5744
      %v6150 = vadd.s32 %v6146, 3
      %v6151 = vand.u32 %v6150, 3
      %vm6152 = vcmp.lt.s32.totalorder %v6151, 2
      %vm6153 = vcmp.eq.s32.totalorder %v6151, 0
      %v6154 = vxor.u32 %v6148, 2147483648
      %v6155 = vsel %vm6153, %v6147, %v6154
      %vm6156 = vcmp.eq.s32.totalorder %v6151, 2
      %v6157 = vxor.u32 %v6147, 2147483648
      %v6158 = vsel %vm6156, %v6157, %v6148
      %v6159 = vsel %vm6152, %v6155, %v6158
      %v6160 = vsel %vm6149, nan, %v6159
      %6161 = vst [vmem:[#allocation3 + $0x80] sm:$0xff] %v6056
      %6162 = vst [vmem:[#allocation3 + $0x88] sm:$0xff] %v6160
      %6163 = vst [vmem:[#allocation3 + $0x10] sm:$0xff] %v5847
      %6164 = vst [vmem:[#allocation3 + $0x18] sm:$0xff] %v5950
      %6165 = vst [vmem:[#allocation3 + $0x90] sm:$0xff] %v6056
      %6166 = vst [vmem:[#allocation3 + $0x98] sm:$0xff] %v6160
      %v6167 = vmul.f32 %v5743, 0.24028113
      %v6168 = vmul.f32 %v5744, 0.24028113
      %v6169 = vand.u32 2147483647, %v6167
      %vm6170 = vcmp.le.f32.partialorder %v6169, 0.7853982
      %vm6171 = vcmp.lt.s32.totalorder %v6167, 0
      %v6172 = vand.u32 %v6167, 2139095040
      %v6173 = vshrl.u32 %v6172, 23
      %v6174 = vsub.s32 %v6173, 127
      %v6175 = vand.u32 2147483647, %v6167
      %v6176 = vand.u32 %v6175, 8388607
      %v6177 = vor.u32 %v6176, 8388608
      %v6178 = vsub.s32 0, %v6177
      %v6179 = vadd.s32 %v6174, 1
      %vm6180 = vcmp.gt.s32.totalorder %v6179, 0
      %v6181 = vsel %vm6180, %v6179, 0
      %v6182 = vshrl.u32 %v6181, 5
      %v6183 = vand.u32 %v6181, 31
      %v6184 = vsub.s32 32, %v6183
      %v6185 = vshrl.u32 683565275, %v6184
      %v6186 = vshll.u32 683565275, %v6183
      %v6187 = vshrl.u32 2475754826, %v6184
      %v6188 = vor.u32 %v6186, %v6187
      %v6189 = vshll.u32 2475754826, %v6183
      %v6190 = vshrl.u32 2131351028, %v6184
      %v6191 = vor.u32 %v6189, %v6190
      %v6192 = vshll.u32 2131351028, %v6183
      %v6193 = vshrl.u32 2102212464, %v6184
      %v6194 = vor.u32 %v6192, %v6193
      %v6195 = vshll.u32 2102212464, %v6183
      %v6196 = vshrl.u32 920167782, %v6184
      %v6197 = vor.u32 %v6195, %v6196
      %v6198 = vshll.u32 920167782, %v6183
      %v6199 = vshrl.u32 1326507024, %v6184
      %v6200 = vor.u32 %v6198, %v6199
      %vm6201 = vcmp.lt.s32.totalorder %v6182, 1
      %vm6202 = vcmp.lt.s32.totalorder %v6182, 2
      %vm6203 = vcmp.lt.s32.totalorder %v6182, 3
      %vm6204 = vcmp.lt.s32.totalorder %v6182, 4
      %v6205 = vsel %vm6201, %v6185, %v6188
      %v6206 = vsel %vm6204, %v6194, 2102212464
      %v6207 = vsel %vm6203, %v6191, %v6206
      %v6208 = vsel %vm6202, %v6205, %v6207
      %v6209 = vsel %vm6201, %v6188, %v6191
      %v6210 = vsel %vm6204, %v6197, 920167782
      %v6211 = vsel %vm6203, %v6194, %v6210
      %v6212 = vsel %vm6202, %v6209, %v6211
      %v6213 = vsel %vm6201, %v6191, %v6194
      %v6214 = vsel %vm6204, %v6200, 1326507024
      %v6215 = vsel %vm6203, %v6197, %v6214
      %v6216 = vsel %vm6202, %v6213, %v6215
      %v6217 = vshll.u32 %v6177, 8
      %v6218 = vmul.u32.u64.compose %v6217, %v6216
      %v6219 = vextract.low.u32 %v6218
      %v6220 = vextract.high.u32 %v6218
      %v6221 = vmul.u32.u64.compose %v6217, %v6212
      %v6222 = vextract.low.u32 %v6221
      %v6223 = vextract.high.u32 %v6221
      %v6224 = vmul.u32 %v6217, %v6208
      %v6225 = vadd.s32 %v6220, %v6222
      %vm6226 = vc.u32 %v6220, %v6222
      %v6227 = vadd.s32 %v6223, 1
      %v6228 = vsel %vm6226, %v6227, %v6223
      %v6229 = vadd.s32 %v6224, %v6228
      %v6230 = vadd.s32 %v6229, 536870912
      %v6231 = vshrl.u32 %v6230, 30
      %v6232 = vshll.u32 %v6231, 30
      %v6233 = vsub.s32 %v6229, %v6232
      %vm6234 = vcmp.lt.s32.totalorder %v6233, 0
      %v6235 = vsub.s32 0, %v6233
      %v6236 = vsel %vm6234, %v6235, %v6233
      %v6237 = vclz %v6236
      %v6238 = vsub.s32 %v6237, 2
      %vm6239 = vcmp.gt.s32.totalorder 0, %v6238
      %v6240 = vsel %vm6239, 0, %v6238
      %v6241 = vsub.s32 32, %v6240
      %v6242 = vshll.u32 %v6233, %v6240
      %v6243 = vshrl.u32 %v6225, %v6241
      %v6244 = vor.u32 %v6242, %v6243
      %v6245 = vsub.s32 4294967266, %v6240
      %v6246 = vadd.s32 %v6245, 127
      %v6247 = vshll.u32 %v6246, 23
      %v6248 = vor.u32 4788187, %v6247
      %v6249 = vand.u32 2147483647, %v6248
      %v6251 = vcvt.s32.f32 %v6244
      %v6252 = vmul.f32 %v6251, %v6249
      %v6253 = vxor.u32 %v6252, 2147483648
      %v6254 = vsel %vm6171, %v6253, %v6252
      %v6255 = vsub.s32 4, %v6231
      %v6256 = vsel %vm6171, %v6255, %v6231
      %v6257 = vsel %vm6170, %v6167, %v6254
      %v6258 = vsel %vm6170, 0, %v6256
      %v6259 = vcosq.f32.pop %v6257
      %v6260 = vsinq.f32.pop %v6257
      %vm6261 = vweird.f32 %v6167
      %v6262 = vand.u32 %v6258, 3
      %vm6263 = vcmp.lt.s32.totalorder %v6262, 2
      %vm6264 = vcmp.eq.s32.totalorder %v6262, 0
      %v6265 = vxor.u32 %v6260, 2147483648
      %v6266 = vsel %vm6264, %v6259, %v6265
      %vm6267 = vcmp.eq.s32.totalorder %v6262, 2
      %v6268 = vxor.u32 %v6259, 2147483648
      %v6269 = vsel %vm6267, %v6268, %v6260
      %v6270 = vsel %vm6263, %v6266, %v6269
      %v6271 = vsel %vm6261, nan, %v6270
      %v6272 = vand.u32 2147483647, %v6168
      %vm6273 = vcmp.le.f32.partialorder %v6272, 0.7853982
      %vm6274 = vcmp.lt.s32.totalorder %v6168, 0
      %v6275 = vand.u32 %v6168, 2139095040
      %v6276 = vshrl.u32 %v6275, 23
      %v6277 = vsub.s32 %v6276, 127
      %v6278 = vand.u32 2147483647, %v6168
      %v6279 = vand.u32 %v6278, 8388607
      %v6280 = vor.u32 %v6279, 8388608
      %v6281 = vsub.s32 0, %v6280
      %v6282 = vadd.s32 %v6277, 1
      %vm6283 = vcmp.gt.s32.totalorder %v6282, 0
      %v6284 = vsel %vm6283, %v6282, 0
      %v6285 = vshrl.u32 %v6284, 5
      %v6286 = vand.u32 %v6284, 31
      %v6287 = vsub.s32 32, %v6286
      %v6288 = vshrl.u32 683565275, %v6287
      %v6289 = vshll.u32 683565275, %v6286
      %v6290 = vshrl.u32 2475754826, %v6287
      %v6291 = vor.u32 %v6289, %v6290
      %v6292 = vshll.u32 2475754826, %v6286
      %v6293 = vshrl.u32 2131351028, %v6287
      %v6294 = vor.u32 %v6292, %v6293
      %v6295 = vshll.u32 2131351028, %v6286
      %v6296 = vshrl.u32 2102212464, %v6287
      %v6297 = vor.u32 %v6295, %v6296
      %v6298 = vshll.u32 2102212464, %v6286
      %v6299 = vshrl.u32 920167782, %v6287
      %v6300 = vor.u32 %v6298, %v6299
      %v6301 = vshll.u32 920167782, %v6286
      %v6302 = vshrl.u32 1326507024, %v6287
      %v6303 = vor.u32 %v6301, %v6302
      %vm6304 = vcmp.lt.s32.totalorder %v6285, 1
      %vm6305 = vcmp.lt.s32.totalorder %v6285, 2
      %vm6306 = vcmp.lt.s32.totalorder %v6285, 3
      %vm6307 = vcmp.lt.s32.totalorder %v6285, 4
      %v6308 = vsel %vm6304, %v6288, %v6291
      %v6309 = vsel %vm6307, %v6297, 2102212464
      %v6310 = vsel %vm6306, %v6294, %v6309
      %v6311 = vsel %vm6305, %v6308, %v6310
      %v6312 = vsel %vm6304, %v6291, %v6294
      %v6313 = vsel %vm6307, %v6300, 920167782
      %v6314 = vsel %vm6306, %v6297, %v6313
      %v6315 = vsel %vm6305, %v6312, %v6314
      %v6316 = vsel %vm6304, %v6294, %v6297
      %v6317 = vsel %vm6307, %v6303, 1326507024
      %v6318 = vsel %vm6306, %v6300, %v6317
      %v6319 = vsel %vm6305, %v6316, %v6318
      %v6320 = vshll.u32 %v6280, 8
      %v6321 = vmul.u32.u64.compose %v6320, %v6319
      %v6322 = vextract.low.u32 %v6321
      %v6323 = vextract.high.u32 %v6321
      %v6324 = vmul.u32.u64.compose %v6320, %v6315
      %v6325 = vextract.low.u32 %v6324
      %v6326 = vextract.high.u32 %v6324
      %v6327 = vmul.u32 %v6320, %v6311
      %v6328 = vadd.s32 %v6323, %v6325
      %vm6329 = vc.u32 %v6323, %v6325
      %v6330 = vadd.s32 %v6326, 1
      %v6331 = vsel %vm6329, %v6330, %v6326
      %v6332 = vadd.s32 %v6327, %v6331
      %v6333 = vadd.s32 %v6332, 536870912
      %v6334 = vshrl.u32 %v6333, 30
      %v6335 = vshll.u32 %v6334, 30
      %v6336 = vsub.s32 %v6332, %v6335
      %vm6337 = vcmp.lt.s32.totalorder %v6336, 0
      %v6338 = vsub.s32 0, %v6336
      %v6339 = vsel %vm6337, %v6338, %v6336
      %v6340 = vclz %v6339
      %v6341 = vsub.s32 %v6340, 2
      %vm6342 = vcmp.gt.s32.totalorder 0, %v6341
      %v6343 = vsel %vm6342, 0, %v6341
      %v6344 = vsub.s32 32, %v6343
      %v6345 = vshll.u32 %v6336, %v6343
      %v6346 = vshrl.u32 %v6328, %v6344
      %v6347 = vor.u32 %v6345, %v6346
      %v6348 = vsub.s32 4294967266, %v6343
      %v6349 = vadd.s32 %v6348, 127
      %v6350 = vshll.u32 %v6349, 23
      %v6351 = vor.u32 4788187, %v6350
      %v6352 = vand.u32 2147483647, %v6351
      %v6354 = vcvt.s32.f32 %v6347
      %v6355 = vmul.f32 %v6354, %v6352
      %v6356 = vxor.u32 %v6355, 2147483648
      %v6357 = vsel %vm6274, %v6356, %v6355
      %v6358 = vsub.s32 4, %v6334
      %v6359 = vsel %vm6274, %v6358, %v6334
      %v6360 = vsel %vm6273, %v6168, %v6357
      %v6361 = vsel %vm6273, 0, %v6359
      %v6362 = vcosq.f32.pop %v6360
      %v6363 = vsinq.f32.pop %v6360
      %vm6364 = vweird.f32 %v6168
      %v6365 = vand.u32 %v6361, 3
      %vm6366 = vcmp.lt.s32.totalorder %v6365, 2
      %vm6367 = vcmp.eq.s32.totalorder %v6365, 0
      %v6368 = vxor.u32 %v6363, 2147483648
      %v6369 = vsel %vm6367, %v6362, %v6368
      %vm6370 = vcmp.eq.s32.totalorder %v6365, 2
      %v6371 = vxor.u32 %v6362, 2147483648
      %v6372 = vsel %vm6370, %v6371, %v6363
      %v6373 = vsel %vm6366, %v6369, %v6372
      %v6374 = vsel %vm6364, nan, %v6373
      %6375 = vst [vmem:[#allocation3 + $0x20] sm:$0xff] %v6271
      %6376 = vst [vmem:[#allocation3 + $0x28] sm:$0xff] %v6374
      %v6377 = vand.u32 2147483647, %v6167
      %vm6378 = vcmp.le.f32.partialorder %v6377, 0.7853982
      %vm6379 = vcmp.lt.s32.totalorder %v6167, 0
      %v6380 = vand.u32 %v6167, 2139095040
      %v6381 = vshrl.u32 %v6380, 23
      %v6382 = vsub.s32 %v6381, 127
      %v6383 = vand.u32 2147483647, %v6167
      %v6384 = vand.u32 %v6383, 8388607
      %v6385 = vor.u32 %v6384, 8388608
      %v6386 = vsub.s32 0, %v6385
      %v6387 = vadd.s32 %v6382, 1
      %vm6388 = vcmp.gt.s32.totalorder %v6387, 0
      %v6389 = vsel %vm6388, %v6387, 0
      %v6390 = vshrl.u32 %v6389, 5
      %v6391 = vand.u32 %v6389, 31
      %v6392 = vsub.s32 32, %v6391
      %v6393 = vshrl.u32 683565275, %v6392
      %v6394 = vshll.u32 683565275, %v6391
      %v6395 = vshrl.u32 2475754826, %v6392
      %v6396 = vor.u32 %v6394, %v6395
      %v6397 = vshll.u32 2475754826, %v6391
      %v6398 = vshrl.u32 2131351028, %v6392
      %v6399 = vor.u32 %v6397, %v6398
      %v6400 = vshll.u32 2131351028, %v6391
      %v6401 = vshrl.u32 2102212464, %v6392
      %v6402 = vor.u32 %v6400, %v6401
      %v6403 = vshll.u32 2102212464, %v6391
      %v6404 = vshrl.u32 920167782, %v6392
      %v6405 = vor.u32 %v6403, %v6404
      %v6406 = vshll.u32 920167782, %v6391
      %v6407 = vshrl.u32 1326507024, %v6392
      %v6408 = vor.u32 %v6406, %v6407
      %vm6409 = vcmp.lt.s32.totalorder %v6390, 1
      %vm6410 = vcmp.lt.s32.totalorder %v6390, 2
      %vm6411 = vcmp.lt.s32.totalorder %v6390, 3
      %vm6412 = vcmp.lt.s32.totalorder %v6390, 4
      %v6413 = vsel %vm6409, %v6393, %v6396
      %v6414 = vsel %vm6412, %v6402, 2102212464
      %v6415 = vsel %vm6411, %v6399, %v6414
      %v6416 = vsel %vm6410, %v6413, %v6415
      %v6417 = vsel %vm6409, %v6396, %v6399
      %v6418 = vsel %vm6412, %v6405, 920167782
      %v6419 = vsel %vm6411, %v6402, %v6418
      %v6420 = vsel %vm6410, %v6417, %v6419
      %v6421 = vsel %vm6409, %v6399, %v6402
      %v6422 = vsel %vm6412, %v6408, 1326507024
      %v6423 = vsel %vm6411, %v6405, %v6422
      %v6424 = vsel %vm6410, %v6421, %v6423
      %v6425 = vshll.u32 %v6385, 8
      %v6426 = vmul.u32.u64.compose %v6425, %v6424
      %v6427 = vextract.low.u32 %v6426
      %v6428 = vextract.high.u32 %v6426
      %v6429 = vmul.u32.u64.compose %v6425, %v6420
      %v6430 = vextract.low.u32 %v6429
      %v6431 = vextract.high.u32 %v6429
      %v6432 = vmul.u32 %v6425, %v6416
      %v6433 = vadd.s32 %v6428, %v6430
      %vm6434 = vc.u32 %v6428, %v6430
      %v6435 = vadd.s32 %v6431, 1
      %v6436 = vsel %vm6434, %v6435, %v6431
      %v6437 = vadd.s32 %v6432, %v6436
      %v6438 = vadd.s32 %v6437, 536870912
      %v6439 = vshrl.u32 %v6438, 30
      %v6440 = vshll.u32 %v6439, 30
      %v6441 = vsub.s32 %v6437, %v6440
      %vm6442 = vcmp.lt.s32.totalorder %v6441, 0
      %v6443 = vsub.s32 0, %v6441
      %v6444 = vsel %vm6442, %v6443, %v6441
      %v6445 = vclz %v6444
      %v6446 = vsub.s32 %v6445, 2
      %vm6447 = vcmp.gt.s32.totalorder 0, %v6446
      %v6448 = vsel %vm6447, 0, %v6446
      %v6449 = vsub.s32 32, %v6448
      %v6450 = vshll.u32 %v6441, %v6448
      %v6451 = vshrl.u32 %v6433, %v6449
      %v6452 = vor.u32 %v6450, %v6451
      %v6453 = vsub.s32 4294967266, %v6448
      %v6454 = vadd.s32 %v6453, 127
      %v6455 = vshll.u32 %v6454, 23
      %v6456 = vor.u32 4788187, %v6455
      %v6457 = vand.u32 2147483647, %v6456
      %v6459 = vcvt.s32.f32 %v6452
      %v6460 = vmul.f32 %v6459, %v6457
      %v6461 = vxor.u32 %v6460, 2147483648
      %v6462 = vsel %vm6379, %v6461, %v6460
      %v6463 = vsub.s32 4, %v6439
      %v6464 = vsel %vm6379, %v6463, %v6439
      %v6465 = vsel %vm6378, %v6167, %v6462
      %v6466 = vsel %vm6378, 0, %v6464
      %v6467 = vcosq.f32.pop %v6465
      %v6468 = vsinq.f32.pop %v6465
      %vm6469 = vweird.f32 %v6167
      %v6470 = vadd.s32 %v6466, 3
      %v6471 = vand.u32 %v6470, 3
      %vm6472 = vcmp.lt.s32.totalorder %v6471, 2
      %vm6473 = vcmp.eq.s32.totalorder %v6471, 0
      %v6474 = vxor.u32 %v6468, 2147483648
      %v6475 = vsel %vm6473, %v6467, %v6474
      %vm6476 = vcmp.eq.s32.totalorder %v6471, 2
      %v6477 = vxor.u32 %v6467, 2147483648
      %v6478 = vsel %vm6476, %v6477, %v6468
      %v6479 = vsel %vm6472, %v6475, %v6478
      %v6480 = vsel %vm6469, nan, %v6479
      %v6481 = vand.u32 2147483647, %v6168
      %vm6482 = vcmp.le.f32.partialorder %v6481, 0.7853982
      %vm6483 = vcmp.lt.s32.totalorder %v6168, 0
      %v6484 = vand.u32 %v6168, 2139095040
      %v6485 = vshrl.u32 %v6484, 23
      %v6486 = vsub.s32 %v6485, 127
      %v6487 = vand.u32 2147483647, %v6168
      %v6488 = vand.u32 %v6487, 8388607
      %v6489 = vor.u32 %v6488, 8388608
      %v6490 = vsub.s32 0, %v6489
      %v6491 = vadd.s32 %v6486, 1
      %vm6492 = vcmp.gt.s32.totalorder %v6491, 0
      %v6493 = vsel %vm6492, %v6491, 0
      %v6494 = vshrl.u32 %v6493, 5
      %v6495 = vand.u32 %v6493, 31
      %v6496 = vsub.s32 32, %v6495
      %v6497 = vshrl.u32 683565275, %v6496
      %v6498 = vshll.u32 683565275, %v6495
      %v6499 = vshrl.u32 2475754826, %v6496
      %v6500 = vor.u32 %v6498, %v6499
      %v6501 = vshll.u32 2475754826, %v6495
      %v6502 = vshrl.u32 2131351028, %v6496
      %v6503 = vor.u32 %v6501, %v6502
      %v6504 = vshll.u32 2131351028, %v6495
      %v6505 = vshrl.u32 2102212464, %v6496
      %v6506 = vor.u32 %v6504, %v6505
      %v6507 = vshll.u32 2102212464, %v6495
      %v6508 = vshrl.u32 920167782, %v6496
      %v6509 = vor.u32 %v6507, %v6508
      %v6510 = vshll.u32 920167782, %v6495
      %v6511 = vshrl.u32 1326507024, %v6496
      %v6512 = vor.u32 %v6510, %v6511
      %vm6513 = vcmp.lt.s32.totalorder %v6494, 1
      %vm6514 = vcmp.lt.s32.totalorder %v6494, 2
      %vm6515 = vcmp.lt.s32.totalorder %v6494, 3
      %vm6516 = vcmp.lt.s32.totalorder %v6494, 4
      %v6517 = vsel %vm6513, %v6497, %v6500
      %v6518 = vsel %vm6516, %v6506, 2102212464
      %v6519 = vsel %vm6515, %v6503, %v6518
      %v6520 = vsel %vm6514, %v6517, %v6519
      %v6521 = vsel %vm6513, %v6500, %v6503
      %v6522 = vsel %vm6516, %v6509, 920167782
      %v6523 = vsel %vm6515, %v6506, %v6522
      %v6524 = vsel %vm6514, %v6521, %v6523
      %v6525 = vsel %vm6513, %v6503, %v6506
      %v6526 = vsel %vm6516, %v6512, 1326507024
      %v6527 = vsel %vm6515, %v6509, %v6526
      %v6528 = vsel %vm6514, %v6525, %v6527
      %v6529 = vshll.u32 %v6489, 8
      %v6530 = vmul.u32.u64.compose %v6529, %v6528
      %v6531 = vextract.low.u32 %v6530
      %v6532 = vextract.high.u32 %v6530
      %v6533 = vmul.u32.u64.compose %v6529, %v6524
      %v6534 = vextract.low.u32 %v6533
      %v6535 = vextract.high.u32 %v6533
      %v6536 = vmul.u32 %v6529, %v6520
      %v6537 = vadd.s32 %v6532, %v6534
      %vm6538 = vc.u32 %v6532, %v6534
      %v6539 = vadd.s32 %v6535, 1
      %v6540 = vsel %vm6538, %v6539, %v6535
      %v6541 = vadd.s32 %v6536, %v6540
      %v6542 = vadd.s32 %v6541, 536870912
      %v6543 = vshrl.u32 %v6542, 30
      %v6544 = vshll.u32 %v6543, 30
      %v6545 = vsub.s32 %v6541, %v6544
      %vm6546 = vcmp.lt.s32.totalorder %v6545, 0
      %v6547 = vsub.s32 0, %v6545
      %v6548 = vsel %vm6546, %v6547, %v6545
      %v6549 = vclz %v6548
      %v6550 = vsub.s32 %v6549, 2
      %vm6551 = vcmp.gt.s32.totalorder 0, %v6550
      %v6552 = vsel %vm6551, 0, %v6550
      %v6553 = vsub.s32 32, %v6552
      %v6554 = vshll.u32 %v6545, %v6552
      %v6555 = vshrl.u32 %v6537, %v6553
      %v6556 = vor.u32 %v6554, %v6555
      %v6557 = vsub.s32 4294967266, %v6552
      %v6558 = vadd.s32 %v6557, 127
      %v6559 = vshll.u32 %v6558, 23
      %v6560 = vor.u32 4788187, %v6559
      %v6561 = vand.u32 2147483647, %v6560
      %v6563 = vcvt.s32.f32 %v6556
      %v6564 = vmul.f32 %v6563, %v6561
      %v6565 = vxor.u32 %v6564, 2147483648
      %v6566 = vsel %vm6483, %v6565, %v6564
      %v6567 = vsub.s32 4, %v6543
      %v6568 = vsel %vm6483, %v6567, %v6543
      %v6569 = vsel %vm6482, %v6168, %v6566
      %v6570 = vsel %vm6482, 0, %v6568
      %v6571 = vcosq.f32.pop %v6569
      %v6572 = vsinq.f32.pop %v6569
      %vm6573 = vweird.f32 %v6168
      %v6574 = vadd.s32 %v6570, 3
      %v6575 = vand.u32 %v6574, 3
      %vm6576 = vcmp.lt.s32.totalorder %v6575, 2
      %vm6577 = vcmp.eq.s32.totalorder %v6575, 0
      %v6578 = vxor.u32 %v6572, 2147483648
      %v6579 = vsel %vm6577, %v6571, %v6578
      %vm6580 = vcmp.eq.s32.totalorder %v6575, 2
      %v6581 = vxor.u32 %v6571, 2147483648
      %v6582 = vsel %vm6580, %v6581, %v6572
      %v6583 = vsel %vm6576, %v6579, %v6582
      %v6584 = vsel %vm6573, nan, %v6583
      %6585 = vst [vmem:[#allocation3 + $0xa0] sm:$0xff] %v6480
      %6586 = vst [vmem:[#allocation3 + $0xa8] sm:$0xff] %v6584
      %6587 = vst [vmem:[#allocation3 + $0x30] sm:$0xff] %v6271
      %6588 = vst [vmem:[#allocation3 + $0x38] sm:$0xff] %v6374
      %6589 = vst [vmem:[#allocation3 + $0xb0] sm:$0xff] %v6480
      %6590 = vst [vmem:[#allocation3 + $0xb8] sm:$0xff] %v6584
      %v6591 = vmul.f32 %v5743, 0.057735026
      %v6592 = vmul.f32 %v5744, 0.057735026
      %v6593 = vand.u32 2147483647, %v6591
      %vm6594 = vcmp.le.f32.partialorder %v6593, 0.7853982
      %vm6595 = vcmp.lt.s32.totalorder %v6591, 0
      %v6596 = vand.u32 %v6591, 2139095040
      %v6597 = vshrl.u32 %v6596, 23
      %v6598 = vsub.s32 %v6597, 127
      %v6599 = vand.u32 2147483647, %v6591
      %v6600 = vand.u32 %v6599, 8388607
      %v6601 = vor.u32 %v6600, 8388608
      %v6602 = vsub.s32 0, %v6601
      %v6603 = vadd.s32 %v6598, 1
      %vm6604 = vcmp.gt.s32.totalorder %v6603, 0
      %v6605 = vsel %vm6604, %v6603, 0
      %v6606 = vshrl.u32 %v6605, 5
      %v6607 = vand.u32 %v6605, 31
      %v6608 = vsub.s32 32, %v6607
      %v6609 = vshrl.u32 683565275, %v6608
      %v6610 = vshll.u32 683565275, %v6607
      %v6611 = vshrl.u32 2475754826, %v6608
      %v6612 = vor.u32 %v6610, %v6611
      %v6613 = vshll.u32 2475754826, %v6607
      %v6614 = vshrl.u32 2131351028, %v6608
      %v6615 = vor.u32 %v6613, %v6614
      %v6616 = vshll.u32 2131351028, %v6607
      %v6617 = vshrl.u32 2102212464, %v6608
      %v6618 = vor.u32 %v6616, %v6617
      %v6619 = vshll.u32 2102212464, %v6607
      %v6620 = vshrl.u32 920167782, %v6608
      %v6621 = vor.u32 %v6619, %v6620
      %v6622 = vshll.u32 920167782, %v6607
      %v6623 = vshrl.u32 1326507024, %v6608
      %v6624 = vor.u32 %v6622, %v6623
      %vm6625 = vcmp.lt.s32.totalorder %v6606, 1
      %vm6626 = vcmp.lt.s32.totalorder %v6606, 2
      %vm6627 = vcmp.lt.s32.totalorder %v6606, 3
      %vm6628 = vcmp.lt.s32.totalorder %v6606, 4
      %v6629 = vsel %vm6625, %v6609, %v6612
      %v6630 = vsel %vm6628, %v6618, 2102212464
      %v6631 = vsel %vm6627, %v6615, %v6630
      %v6632 = vsel %vm6626, %v6629, %v6631
      %v6633 = vsel %vm6625, %v6612, %v6615
      %v6634 = vsel %vm6628, %v6621, 920167782
      %v6635 = vsel %vm6627, %v6618, %v6634
      %v6636 = vsel %vm6626, %v6633, %v6635
      %v6637 = vsel %vm6625, %v6615, %v6618
      %v6638 = vsel %vm6628, %v6624, 1326507024
      %v6639 = vsel %vm6627, %v6621, %v6638
      %v6640 = vsel %vm6626, %v6637, %v6639
      %v6641 = vshll.u32 %v6601, 8
      %v6642 = vmul.u32.u64.compose %v6641, %v6640
      %v6643 = vextract.low.u32 %v6642
      %v6644 = vextract.high.u32 %v6642
      %v6645 = vmul.u32.u64.compose %v6641, %v6636
      %v6646 = vextract.low.u32 %v6645
      %v6647 = vextract.high.u32 %v6645
      %v6648 = vmul.u32 %v6641, %v6632
      %v6649 = vadd.s32 %v6644, %v6646
      %vm6650 = vc.u32 %v6644, %v6646
      %v6651 = vadd.s32 %v6647, 1
      %v6652 = vsel %vm6650, %v6651, %v6647
      %v6653 = vadd.s32 %v6648, %v6652
      %v6654 = vadd.s32 %v6653, 536870912
      %v6655 = vshrl.u32 %v6654, 30
      %v6656 = vshll.u32 %v6655, 30
      %v6657 = vsub.s32 %v6653, %v6656
      %vm6658 = vcmp.lt.s32.totalorder %v6657, 0
      %v6659 = vsub.s32 0, %v6657
      %v6660 = vsel %vm6658, %v6659, %v6657
      %v6661 = vclz %v6660
      %v6662 = vsub.s32 %v6661, 2
      %vm6663 = vcmp.gt.s32.totalorder 0, %v6662
      %v6664 = vsel %vm6663, 0, %v6662
      %v6665 = vsub.s32 32, %v6664
      %v6666 = vshll.u32 %v6657, %v6664
      %v6667 = vshrl.u32 %v6649, %v6665
      %v6668 = vor.u32 %v6666, %v6667
      %v6669 = vsub.s32 4294967266, %v6664
      %v6670 = vadd.s32 %v6669, 127
      %v6671 = vshll.u32 %v6670, 23
      %v6672 = vor.u32 4788187, %v6671
      %v6673 = vand.u32 2147483647, %v6672
      %v6675 = vcvt.s32.f32 %v6668
      %v6676 = vmul.f32 %v6675, %v6673
      %v6677 = vxor.u32 %v6676, 2147483648
      %v6678 = vsel %vm6595, %v6677, %v6676
      %v6679 = vsub.s32 4, %v6655
      %v6680 = vsel %vm6595, %v6679, %v6655
      %v6681 = vsel %vm6594, %v6591, %v6678
      %v6682 = vsel %vm6594, 0, %v6680
      %v6683 = vcosq.f32.pop %v6681
      %v6684 = vsinq.f32.pop %v6681
      %vm6685 = vweird.f32 %v6591
      %v6686 = vand.u32 %v6682, 3
      %vm6687 = vcmp.lt.s32.totalorder %v6686, 2
      %vm6688 = vcmp.eq.s32.totalorder %v6686, 0
      %v6689 = vxor.u32 %v6684, 2147483648
      %v6690 = vsel %vm6688, %v6683, %v6689
      %vm6691 = vcmp.eq.s32.totalorder %v6686, 2
      %v6692 = vxor.u32 %v6683, 2147483648
      %v6693 = vsel %vm6691, %v6692, %v6684
      %v6694 = vsel %vm6687, %v6690, %v6693
      %v6695 = vsel %vm6685, nan, %v6694
      %v6696 = vand.u32 2147483647, %v6592
      %vm6697 = vcmp.le.f32.partialorder %v6696, 0.7853982
      %vm6698 = vcmp.lt.s32.totalorder %v6592, 0
      %v6699 = vand.u32 %v6592, 2139095040
      %v6700 = vshrl.u32 %v6699, 23
      %v6701 = vsub.s32 %v6700, 127
      %v6702 = vand.u32 2147483647, %v6592
      %v6703 = vand.u32 %v6702, 8388607
      %v6704 = vor.u32 %v6703, 8388608
      %v6705 = vsub.s32 0, %v6704
      %v6706 = vadd.s32 %v6701, 1
      %vm6707 = vcmp.gt.s32.totalorder %v6706, 0
      %v6708 = vsel %vm6707, %v6706, 0
      %v6709 = vshrl.u32 %v6708, 5
      %v6710 = vand.u32 %v6708, 31
      %v6711 = vsub.s32 32, %v6710
      %v6712 = vshrl.u32 683565275, %v6711
      %v6713 = vshll.u32 683565275, %v6710
      %v6714 = vshrl.u32 2475754826, %v6711
      %v6715 = vor.u32 %v6713, %v6714
      %v6716 = vshll.u32 2475754826, %v6710
      %v6717 = vshrl.u32 2131351028, %v6711
      %v6718 = vor.u32 %v6716, %v6717
      %v6719 = vshll.u32 2131351028, %v6710
      %v6720 = vshrl.u32 2102212464, %v6711
      %v6721 = vor.u32 %v6719, %v6720
      %v6722 = vshll.u32 2102212464, %v6710
      %v6723 = vshrl.u32 920167782, %v6711
      %v6724 = vor.u32 %v6722, %v6723
      %v6725 = vshll.u32 920167782, %v6710
      %v6726 = vshrl.u32 1326507024, %v6711
      %v6727 = vor.u32 %v6725, %v6726
      %vm6728 = vcmp.lt.s32.totalorder %v6709, 1
      %vm6729 = vcmp.lt.s32.totalorder %v6709, 2
      %vm6730 = vcmp.lt.s32.totalorder %v6709, 3
      %vm6731 = vcmp.lt.s32.totalorder %v6709, 4
      %v6732 = vsel %vm6728, %v6712, %v6715
      %v6733 = vsel %vm6731, %v6721, 2102212464
      %v6734 = vsel %vm6730, %v6718, %v6733
      %v6735 = vsel %vm6729, %v6732, %v6734
      %v6736 = vsel %vm6728, %v6715, %v6718
      %v6737 = vsel %vm6731, %v6724, 920167782
      %v6738 = vsel %vm6730, %v6721, %v6737
      %v6739 = vsel %vm6729, %v6736, %v6738
      %v6740 = vsel %vm6728, %v6718, %v6721
      %v6741 = vsel %vm6731, %v6727, 1326507024
      %v6742 = vsel %vm6730, %v6724, %v6741
      %v6743 = vsel %vm6729, %v6740, %v6742
      %v6744 = vshll.u32 %v6704, 8
      %v6745 = vmul.u32.u64.compose %v6744, %v6743
      %v6746 = vextract.low.u32 %v6745
      %v6747 = vextract.high.u32 %v6745
      %v6748 = vmul.u32.u64.compose %v6744, %v6739
      %v6749 = vextract.low.u32 %v6748
      %v6750 = vextract.high.u32 %v6748
      %v6751 = vmul.u32 %v6744, %v6735
      %v6752 = vadd.s32 %v6747, %v6749
      %vm6753 = vc.u32 %v6747, %v6749
      %v6754 = vadd.s32 %v6750, 1
      %v6755 = vsel %vm6753, %v6754, %v6750
      %v6756 = vadd.s32 %v6751, %v6755
      %v6757 = vadd.s32 %v6756, 536870912
      %v6758 = vshrl.u32 %v6757, 30
      %v6759 = vshll.u32 %v6758, 30
      %v6760 = vsub.s32 %v6756, %v6759
      %vm6761 = vcmp.lt.s32.totalorder %v6760, 0
      %v6762 = vsub.s32 0, %v6760
      %v6763 = vsel %vm6761, %v6762, %v6760
      %v6764 = vclz %v6763
      %v6765 = vsub.s32 %v6764, 2
      %vm6766 = vcmp.gt.s32.totalorder 0, %v6765
      %v6767 = vsel %vm6766, 0, %v6765
      %v6768 = vsub.s32 32, %v6767
      %v6769 = vshll.u32 %v6760, %v6767
      %v6770 = vshrl.u32 %v6752, %v6768
      %v6771 = vor.u32 %v6769, %v6770
      %v6772 = vsub.s32 4294967266, %v6767
      %v6773 = vadd.s32 %v6772, 127
      %v6774 = vshll.u32 %v6773, 23
      %v6775 = vor.u32 4788187, %v6774
      %v6776 = vand.u32 2147483647, %v6775
      %v6778 = vcvt.s32.f32 %v6771
      %v6779 = vmul.f32 %v6778, %v6776
      %v6780 = vxor.u32 %v6779, 2147483648
      %v6781 = vsel %vm6698, %v6780, %v6779
      %v6782 = vsub.s32 4, %v6758
      %v6783 = vsel %vm6698, %v6782, %v6758
      %v6784 = vsel %vm6697, %v6592, %v6781
      %v6785 = vsel %vm6697, 0, %v6783
      %v6786 = vcosq.f32.pop %v6784
      %v6787 = vsinq.f32.pop %v6784
      %vm6788 = vweird.f32 %v6592
      %v6789 = vand.u32 %v6785, 3
      %vm6790 = vcmp.lt.s32.totalorder %v6789, 2
      %vm6791 = vcmp.eq.s32.totalorder %v6789, 0
      %v6792 = vxor.u32 %v6787, 2147483648
      %v6793 = vsel %vm6791, %v6786, %v6792
      %vm6794 = vcmp.eq.s32.totalorder %v6789, 2
      %v6795 = vxor.u32 %v6786, 2147483648
      %v6796 = vsel %vm6794, %v6795, %v6787
      %v6797 = vsel %vm6790, %v6793, %v6796
      %v6798 = vsel %vm6788, nan, %v6797
      %6799 = vst [vmem:[#allocation3 + $0x40] sm:$0xff] %v6695
      %6800 = vst [vmem:[#allocation3 + $0x48] sm:$0xff] %v6798
      %v6801 = vand.u32 2147483647, %v6591
      %vm6802 = vcmp.le.f32.partialorder %v6801, 0.7853982
      %vm6803 = vcmp.lt.s32.totalorder %v6591, 0
      %v6804 = vand.u32 %v6591, 2139095040
      %v6805 = vshrl.u32 %v6804, 23
      %v6806 = vsub.s32 %v6805, 127
      %v6807 = vand.u32 2147483647, %v6591
      %v6808 = vand.u32 %v6807, 8388607
      %v6809 = vor.u32 %v6808, 8388608
      %v6810 = vsub.s32 0, %v6809
      %v6811 = vadd.s32 %v6806, 1
      %vm6812 = vcmp.gt.s32.totalorder %v6811, 0
      %v6813 = vsel %vm6812, %v6811, 0
      %v6814 = vshrl.u32 %v6813, 5
      %v6815 = vand.u32 %v6813, 31
      %v6816 = vsub.s32 32, %v6815
      %v6817 = vshrl.u32 683565275, %v6816
      %v6818 = vshll.u32 683565275, %v6815
      %v6819 = vshrl.u32 2475754826, %v6816
      %v6820 = vor.u32 %v6818, %v6819
      %v6821 = vshll.u32 2475754826, %v6815
      %v6822 = vshrl.u32 2131351028, %v6816
      %v6823 = vor.u32 %v6821, %v6822
      %v6824 = vshll.u32 2131351028, %v6815
      %v6825 = vshrl.u32 2102212464, %v6816
      %v6826 = vor.u32 %v6824, %v6825
      %v6827 = vshll.u32 2102212464, %v6815
      %v6828 = vshrl.u32 920167782, %v6816
      %v6829 = vor.u32 %v6827, %v6828
      %v6830 = vshll.u32 920167782, %v6815
      %v6831 = vshrl.u32 1326507024, %v6816
      %v6832 = vor.u32 %v6830, %v6831
      %vm6833 = vcmp.lt.s32.totalorder %v6814, 1
      %vm6834 = vcmp.lt.s32.totalorder %v6814, 2
      %vm6835 = vcmp.lt.s32.totalorder %v6814, 3
      %vm6836 = vcmp.lt.s32.totalorder %v6814, 4
      %v6837 = vsel %vm6833, %v6817, %v6820
      %v6838 = vsel %vm6836, %v6826, 2102212464
      %v6839 = vsel %vm6835, %v6823, %v6838
      %v6840 = vsel %vm6834, %v6837, %v6839
      %v6841 = vsel %vm6833, %v6820, %v6823
      %v6842 = vsel %vm6836, %v6829, 920167782
      %v6843 = vsel %vm6835, %v6826, %v6842
      %v6844 = vsel %vm6834, %v6841, %v6843
      %v6845 = vsel %vm6833, %v6823, %v6826
      %v6846 = vsel %vm6836, %v6832, 1326507024
      %v6847 = vsel %vm6835, %v6829, %v6846
      %v6848 = vsel %vm6834, %v6845, %v6847
      %v6849 = vshll.u32 %v6809, 8
      %v6850 = vmul.u32.u64.compose %v6849, %v6848
      %v6851 = vextract.low.u32 %v6850
      %v6852 = vextract.high.u32 %v6850
      %v6853 = vmul.u32.u64.compose %v6849, %v6844
      %v6854 = vextract.low.u32 %v6853
      %v6855 = vextract.high.u32 %v6853
      %v6856 = vmul.u32 %v6849, %v6840
      %v6857 = vadd.s32 %v6852, %v6854
      %vm6858 = vc.u32 %v6852, %v6854
      %v6859 = vadd.s32 %v6855, 1
      %v6860 = vsel %vm6858, %v6859, %v6855
      %v6861 = vadd.s32 %v6856, %v6860
      %v6862 = vadd.s32 %v6861, 536870912
      %v6863 = vshrl.u32 %v6862, 30
      %v6864 = vshll.u32 %v6863, 30
      %v6865 = vsub.s32 %v6861, %v6864
      %vm6866 = vcmp.lt.s32.totalorder %v6865, 0
      %v6867 = vsub.s32 0, %v6865
      %v6868 = vsel %vm6866, %v6867, %v6865
      %v6869 = vclz %v6868
      %v6870 = vsub.s32 %v6869, 2
      %vm6871 = vcmp.gt.s32.totalorder 0, %v6870
      %v6872 = vsel %vm6871, 0, %v6870
      %v6873 = vsub.s32 32, %v6872
      %v6874 = vshll.u32 %v6865, %v6872
      %v6875 = vshrl.u32 %v6857, %v6873
      %v6876 = vor.u32 %v6874, %v6875
      %v6877 = vsub.s32 4294967266, %v6872
      %v6878 = vadd.s32 %v6877, 127
      %v6879 = vshll.u32 %v6878, 23
      %v6880 = vor.u32 4788187, %v6879
      %v6881 = vand.u32 2147483647, %v6880
      %v6883 = vcvt.s32.f32 %v6876
      %v6884 = vmul.f32 %v6883, %v6881
      %v6885 = vxor.u32 %v6884, 2147483648
      %v6886 = vsel %vm6803, %v6885, %v6884
      %v6887 = vsub.s32 4, %v6863
      %v6888 = vsel %vm6803, %v6887, %v6863
      %v6889 = vsel %vm6802, %v6591, %v6886
      %v6890 = vsel %vm6802, 0, %v6888
      %v6891 = vcosq.f32.pop %v6889
      %v6892 = vsinq.f32.pop %v6889
      %vm6893 = vweird.f32 %v6591
      %v6894 = vadd.s32 %v6890, 3
      %v6895 = vand.u32 %v6894, 3
      %vm6896 = vcmp.lt.s32.totalorder %v6895, 2
      %vm6897 = vcmp.eq.s32.totalorder %v6895, 0
      %v6898 = vxor.u32 %v6892, 2147483648
      %v6899 = vsel %vm6897, %v6891, %v6898
      %vm6900 = vcmp.eq.s32.totalorder %v6895, 2
      %v6901 = vxor.u32 %v6891, 2147483648
      %v6902 = vsel %vm6900, %v6901, %v6892
      %v6903 = vsel %vm6896, %v6899, %v6902
      %v6904 = vsel %vm6893, nan, %v6903
      %v6905 = vand.u32 2147483647, %v6592
      %vm6906 = vcmp.le.f32.partialorder %v6905, 0.7853982
      %vm6907 = vcmp.lt.s32.totalorder %v6592, 0
      %v6908 = vand.u32 %v6592, 2139095040
      %v6909 = vshrl.u32 %v6908, 23
      %v6910 = vsub.s32 %v6909, 127
      %v6911 = vand.u32 2147483647, %v6592
      %v6912 = vand.u32 %v6911, 8388607
      %v6913 = vor.u32 %v6912, 8388608
      %v6914 = vsub.s32 0, %v6913
      %v6915 = vadd.s32 %v6910, 1
      %vm6916 = vcmp.gt.s32.totalorder %v6915, 0
      %v6917 = vsel %vm6916, %v6915, 0
      %v6918 = vshrl.u32 %v6917, 5
      %v6919 = vand.u32 %v6917, 31
      %v6920 = vsub.s32 32, %v6919
      %v6921 = vshrl.u32 683565275, %v6920
      %v6922 = vshll.u32 683565275, %v6919
      %v6923 = vshrl.u32 2475754826, %v6920
      %v6924 = vor.u32 %v6922, %v6923
      %v6925 = vshll.u32 2475754826, %v6919
      %v6926 = vshrl.u32 2131351028, %v6920
      %v6927 = vor.u32 %v6925, %v6926
      %v6928 = vshll.u32 2131351028, %v6919
      %v6929 = vshrl.u32 2102212464, %v6920
      %v6930 = vor.u32 %v6928, %v6929
      %v6931 = vshll.u32 2102212464, %v6919
      %v6932 = vshrl.u32 920167782, %v6920
      %v6933 = vor.u32 %v6931, %v6932
      %v6934 = vshll.u32 920167782, %v6919
      %v6935 = vshrl.u32 1326507024, %v6920
      %v6936 = vor.u32 %v6934, %v6935
      %vm6937 = vcmp.lt.s32.totalorder %v6918, 1
      %vm6938 = vcmp.lt.s32.totalorder %v6918, 2
      %vm6939 = vcmp.lt.s32.totalorder %v6918, 3
      %vm6940 = vcmp.lt.s32.totalorder %v6918, 4
      %v6941 = vsel %vm6937, %v6921, %v6924
      %v6942 = vsel %vm6940, %v6930, 2102212464
      %v6943 = vsel %vm6939, %v6927, %v6942
      %v6944 = vsel %vm6938, %v6941, %v6943
      %v6945 = vsel %vm6937, %v6924, %v6927
      %v6946 = vsel %vm6940, %v6933, 920167782
      %v6947 = vsel %vm6939, %v6930, %v6946
      %v6948 = vsel %vm6938, %v6945, %v6947
      %v6949 = vsel %vm6937, %v6927, %v6930
      %v6950 = vsel %vm6940, %v6936, 1326507024
      %v6951 = vsel %vm6939, %v6933, %v6950
      %v6952 = vsel %vm6938, %v6949, %v6951
      %v6953 = vshll.u32 %v6913, 8
      %v6954 = vmul.u32.u64.compose %v6953, %v6952
      %v6955 = vextract.low.u32 %v6954
      %v6956 = vextract.high.u32 %v6954
      %v6957 = vmul.u32.u64.compose %v6953, %v6948
      %v6958 = vextract.low.u32 %v6957
      %v6959 = vextract.high.u32 %v6957
      %v6960 = vmul.u32 %v6953, %v6944
      %v6961 = vadd.s32 %v6956, %v6958
      %vm6962 = vc.u32 %v6956, %v6958
      %v6963 = vadd.s32 %v6959, 1
      %v6964 = vsel %vm6962, %v6963, %v6959
      %v6965 = vadd.s32 %v6960, %v6964
      %v6966 = vadd.s32 %v6965, 536870912
      %v6967 = vshrl.u32 %v6966, 30
      %v6968 = vshll.u32 %v6967, 30
      %v6969 = vsub.s32 %v6965, %v6968
      %vm6970 = vcmp.lt.s32.totalorder %v6969, 0
      %v6971 = vsub.s32 0, %v6969
      %v6972 = vsel %vm6970, %v6971, %v6969
      %v6973 = vclz %v6972
      %v6974 = vsub.s32 %v6973, 2
      %vm6975 = vcmp.gt.s32.totalorder 0, %v6974
      %v6976 = vsel %vm6975, 0, %v6974
      %v6977 = vsub.s32 32, %v6976
      %v6978 = vshll.u32 %v6969, %v6976
      %v6979 = vshrl.u32 %v6961, %v6977
      %v6980 = vor.u32 %v6978, %v6979
      %v6981 = vsub.s32 4294967266, %v6976
      %v6982 = vadd.s32 %v6981, 127
      %v6983 = vshll.u32 %v6982, 23
      %v6984 = vor.u32 4788187, %v6983
      %v6985 = vand.u32 2147483647, %v6984
      %v6987 = vcvt.s32.f32 %v6980
      %v6988 = vmul.f32 %v6987, %v6985
      %v6989 = vxor.u32 %v6988, 2147483648
      %v6990 = vsel %vm6907, %v6989, %v6988
      %v6991 = vsub.s32 4, %v6967
      %v6992 = vsel %vm6907, %v6991, %v6967
      %v6993 = vsel %vm6906, %v6592, %v6990
      %v6994 = vsel %vm6906, 0, %v6992
      %v6995 = vcosq.f32.pop %v6993
      %v6996 = vsinq.f32.pop %v6993
      %vm6997 = vweird.f32 %v6592
      %v6998 = vadd.s32 %v6994, 3
      %v6999 = vand.u32 %v6998, 3
      %vm7000 = vcmp.lt.s32.totalorder %v6999, 2
      %vm7001 = vcmp.eq.s32.totalorder %v6999, 0
      %v7002 = vxor.u32 %v6996, 2147483648
      %v7003 = vsel %vm7001, %v6995, %v7002
      %vm7004 = vcmp.eq.s32.totalorder %v6999, 2
      %v7005 = vxor.u32 %v6995, 2147483648
      %v7006 = vsel %vm7004, %v7005, %v6996
      %v7007 = vsel %vm7000, %v7003, %v7006
      %v7008 = vsel %vm6997, nan, %v7007
      %7009 = vst [vmem:[#allocation3 + $0xc0] sm:$0xff] %v6904
      %7010 = vst [vmem:[#allocation3 + $0xc8] sm:$0xff] %v7008
      %7011 = vst [vmem:[#allocation3 + $0x50] sm:$0xff] %v6695
      %7012 = vst [vmem:[#allocation3 + $0x58] sm:$0xff] %v6798
      %7013 = vst [vmem:[#allocation3 + $0xd0] sm:$0xff] %v6904
      %7014 = vst [vmem:[#allocation3 + $0xd8] sm:$0xff] %v7008
      %v7015 = vmul.f32 %v5743, 0.013872638
      %v7016 = vmul.f32 %v5744, 0.013872638
      %v7017 = vand.u32 2147483647, %v7015
      %vm7018 = vcmp.le.f32.partialorder %v7017, 0.7853982
      %vm7019 = vcmp.lt.s32.totalorder %v7015, 0
      %v7020 = vand.u32 %v7015, 2139095040
      %v7021 = vshrl.u32 %v7020, 23
      %v7022 = vsub.s32 %v7021, 127
      %v7023 = vand.u32 2147483647, %v7015
      %v7024 = vand.u32 %v7023, 8388607
      %v7025 = vor.u32 %v7024, 8388608
      %v7026 = vsub.s32 0, %v7025
      %v7027 = vadd.s32 %v7022, 1
      %vm7028 = vcmp.gt.s32.totalorder %v7027, 0
      %v7029 = vsel %vm7028, %v7027, 0
      %v7030 = vshrl.u32 %v7029, 5
      %v7031 = vand.u32 %v7029, 31
      %v7032 = vsub.s32 32, %v7031
      %v7033 = vshrl.u32 683565275, %v7032
      %v7034 = vshll.u32 683565275, %v7031
      %v7035 = vshrl.u32 2475754826, %v7032
      %v7036 = vor.u32 %v7034, %v7035
      %v7037 = vshll.u32 2475754826, %v7031
      %v7038 = vshrl.u32 2131351028, %v7032
      %v7039 = vor.u32 %v7037, %v7038
      %v7040 = vshll.u32 2131351028, %v7031
      %v7041 = vshrl.u32 2102212464, %v7032
      %v7042 = vor.u32 %v7040, %v7041
      %v7043 = vshll.u32 2102212464, %v7031
      %v7044 = vshrl.u32 920167782, %v7032
      %v7045 = vor.u32 %v7043, %v7044
      %v7046 = vshll.u32 920167782, %v7031
      %v7047 = vshrl.u32 1326507024, %v7032
      %v7048 = vor.u32 %v7046, %v7047
      %vm7049 = vcmp.lt.s32.totalorder %v7030, 1
      %vm7050 = vcmp.lt.s32.totalorder %v7030, 2
      %vm7051 = vcmp.lt.s32.totalorder %v7030, 3
      %vm7052 = vcmp.lt.s32.totalorder %v7030, 4
      %v7053 = vsel %vm7049, %v7033, %v7036
      %v7054 = vsel %vm7052, %v7042, 2102212464
      %v7055 = vsel %vm7051, %v7039, %v7054
      %v7056 = vsel %vm7050, %v7053, %v7055
      %v7057 = vsel %vm7049, %v7036, %v7039
      %v7058 = vsel %vm7052, %v7045, 920167782
      %v7059 = vsel %vm7051, %v7042, %v7058
      %v7060 = vsel %vm7050, %v7057, %v7059
      %v7061 = vsel %vm7049, %v7039, %v7042
      %v7062 = vsel %vm7052, %v7048, 1326507024
      %v7063 = vsel %vm7051, %v7045, %v7062
      %v7064 = vsel %vm7050, %v7061, %v7063
      %v7065 = vshll.u32 %v7025, 8
      %v7066 = vmul.u32.u64.compose %v7065, %v7064
      %v7067 = vextract.low.u32 %v7066
      %v7068 = vextract.high.u32 %v7066
      %v7069 = vmul.u32.u64.compose %v7065, %v7060
      %v7070 = vextract.low.u32 %v7069
      %v7071 = vextract.high.u32 %v7069
      %v7072 = vmul.u32 %v7065, %v7056
      %v7073 = vadd.s32 %v7068, %v7070
      %vm7074 = vc.u32 %v7068, %v7070
      %v7075 = vadd.s32 %v7071, 1
      %v7076 = vsel %vm7074, %v7075, %v7071
      %v7077 = vadd.s32 %v7072, %v7076
      %v7078 = vadd.s32 %v7077, 536870912
      %v7079 = vshrl.u32 %v7078, 30
      %v7080 = vshll.u32 %v7079, 30
      %v7081 = vsub.s32 %v7077, %v7080
      %vm7082 = vcmp.lt.s32.totalorder %v7081, 0
      %v7083 = vsub.s32 0, %v7081
      %v7084 = vsel %vm7082, %v7083, %v7081
      %v7085 = vclz %v7084
      %v7086 = vsub.s32 %v7085, 2
      %vm7087 = vcmp.gt.s32.totalorder 0, %v7086
      %v7088 = vsel %vm7087, 0, %v7086
      %v7089 = vsub.s32 32, %v7088
      %v7090 = vshll.u32 %v7081, %v7088
      %v7091 = vshrl.u32 %v7073, %v7089
      %v7092 = vor.u32 %v7090, %v7091
      %v7093 = vsub.s32 4294967266, %v7088
      %v7094 = vadd.s32 %v7093, 127
      %v7095 = vshll.u32 %v7094, 23
      %v7096 = vor.u32 4788187, %v7095
      %v7097 = vand.u32 2147483647, %v7096
      %v7099 = vcvt.s32.f32 %v7092
      %v7100 = vmul.f32 %v7099, %v7097
      %v7101 = vxor.u32 %v7100, 2147483648
      %v7102 = vsel %vm7019, %v7101, %v7100
      %v7103 = vsub.s32 4, %v7079
      %v7104 = vsel %vm7019, %v7103, %v7079
      %v7105 = vsel %vm7018, %v7015, %v7102
      %v7106 = vsel %vm7018, 0, %v7104
      %v7107 = vcosq.f32.pop %v7105
      %v7108 = vsinq.f32.pop %v7105
      %vm7109 = vweird.f32 %v7015
      %v7110 = vand.u32 %v7106, 3
      %vm7111 = vcmp.lt.s32.totalorder %v7110, 2
      %vm7112 = vcmp.eq.s32.totalorder %v7110, 0
      %v7113 = vxor.u32 %v7108, 2147483648
      %v7114 = vsel %vm7112, %v7107, %v7113
      %vm7115 = vcmp.eq.s32.totalorder %v7110, 2
      %v7116 = vxor.u32 %v7107, 2147483648
      %v7117 = vsel %vm7115, %v7116, %v7108
      %v7118 = vsel %vm7111, %v7114, %v7117
      %v7119 = vsel %vm7109, nan, %v7118
      %v7120 = vand.u32 2147483647, %v7016
      %vm7121 = vcmp.le.f32.partialorder %v7120, 0.7853982
      %vm7122 = vcmp.lt.s32.totalorder %v7016, 0
      %v7123 = vand.u32 %v7016, 2139095040
      %v7124 = vshrl.u32 %v7123, 23
      %v7125 = vsub.s32 %v7124, 127
      %v7126 = vand.u32 2147483647, %v7016
      %v7127 = vand.u32 %v7126, 8388607
      %v7128 = vor.u32 %v7127, 8388608
      %v7129 = vsub.s32 0, %v7128
      %v7130 = vadd.s32 %v7125, 1
      %vm7131 = vcmp.gt.s32.totalorder %v7130, 0
      %v7132 = vsel %vm7131, %v7130, 0
      %v7133 = vshrl.u32 %v7132, 5
      %v7134 = vand.u32 %v7132, 31
      %v7135 = vsub.s32 32, %v7134
      %v7136 = vshrl.u32 683565275, %v7135
      %v7137 = vshll.u32 683565275, %v7134
      %v7138 = vshrl.u32 2475754826, %v7135
      %v7139 = vor.u32 %v7137, %v7138
      %v7140 = vshll.u32 2475754826, %v7134
      %v7141 = vshrl.u32 2131351028, %v7135
      %v7142 = vor.u32 %v7140, %v7141
      %v7143 = vshll.u32 2131351028, %v7134
      %v7144 = vshrl.u32 2102212464, %v7135
      %v7145 = vor.u32 %v7143, %v7144
      %v7146 = vshll.u32 2102212464, %v7134
      %v7147 = vshrl.u32 920167782, %v7135
      %v7148 = vor.u32 %v7146, %v7147
      %v7149 = vshll.u32 920167782, %v7134
      %v7150 = vshrl.u32 1326507024, %v7135
      %v7151 = vor.u32 %v7149, %v7150
      %vm7152 = vcmp.lt.s32.totalorder %v7133, 1
      %vm7153 = vcmp.lt.s32.totalorder %v7133, 2
      %vm7154 = vcmp.lt.s32.totalorder %v7133, 3
      %vm7155 = vcmp.lt.s32.totalorder %v7133, 4
      %v7156 = vsel %vm7152, %v7136, %v7139
      %v7157 = vsel %vm7155, %v7145, 2102212464
      %v7158 = vsel %vm7154, %v7142, %v7157
      %v7159 = vsel %vm7153, %v7156, %v7158
      %v7160 = vsel %vm7152, %v7139, %v7142
      %v7161 = vsel %vm7155, %v7148, 920167782
      %v7162 = vsel %vm7154, %v7145, %v7161
      %v7163 = vsel %vm7153, %v7160, %v7162
      %v7164 = vsel %vm7152, %v7142, %v7145
      %v7165 = vsel %vm7155, %v7151, 1326507024
      %v7166 = vsel %vm7154, %v7148, %v7165
      %v7167 = vsel %vm7153, %v7164, %v7166
      %v7168 = vshll.u32 %v7128, 8
      %v7169 = vmul.u32.u64.compose %v7168, %v7167
      %v7170 = vextract.low.u32 %v7169
      %v7171 = vextract.high.u32 %v7169
      %v7172 = vmul.u32.u64.compose %v7168, %v7163
      %v7173 = vextract.low.u32 %v7172
      %v7174 = vextract.high.u32 %v7172
      %v7175 = vmul.u32 %v7168, %v7159
      %v7176 = vadd.s32 %v7171, %v7173
      %vm7177 = vc.u32 %v7171, %v7173
      %v7178 = vadd.s32 %v7174, 1
      %v7179 = vsel %vm7177, %v7178, %v7174
      %v7180 = vadd.s32 %v7175, %v7179
      %v7181 = vadd.s32 %v7180, 536870912
      %v7182 = vshrl.u32 %v7181, 30
      %v7183 = vshll.u32 %v7182, 30
      %v7184 = vsub.s32 %v7180, %v7183
      %vm7185 = vcmp.lt.s32.totalorder %v7184, 0
      %v7186 = vsub.s32 0, %v7184
      %v7187 = vsel %vm7185, %v7186, %v7184
      %v7188 = vclz %v7187
      %v7189 = vsub.s32 %v7188, 2
      %vm7190 = vcmp.gt.s32.totalorder 0, %v7189
      %v7191 = vsel %vm7190, 0, %v7189
      %v7192 = vsub.s32 32, %v7191
      %v7193 = vshll.u32 %v7184, %v7191
      %v7194 = vshrl.u32 %v7176, %v7192
      %v7195 = vor.u32 %v7193, %v7194
      %v7196 = vsub.s32 4294967266, %v7191
      %v7197 = vadd.s32 %v7196, 127
      %v7198 = vshll.u32 %v7197, 23
      %v7199 = vor.u32 4788187, %v7198
      %v7200 = vand.u32 2147483647, %v7199
      %v7202 = vcvt.s32.f32 %v7195
      %v7203 = vmul.f32 %v7202, %v7200
      %v7204 = vxor.u32 %v7203, 2147483648
      %v7205 = vsel %vm7122, %v7204, %v7203
      %v7206 = vsub.s32 4, %v7182
      %v7207 = vsel %vm7122, %v7206, %v7182
      %v7208 = vsel %vm7121, %v7016, %v7205
      %v7209 = vsel %vm7121, 0, %v7207
      %v7210 = vcosq.f32.pop %v7208
      %v7211 = vsinq.f32.pop %v7208
      %vm7212 = vweird.f32 %v7016
      %v7213 = vand.u32 %v7209, 3
      %vm7214 = vcmp.lt.s32.totalorder %v7213, 2
      %vm7215 = vcmp.eq.s32.totalorder %v7213, 0
      %v7216 = vxor.u32 %v7211, 2147483648
      %v7217 = vsel %vm7215, %v7210, %v7216
      %vm7218 = vcmp.eq.s32.totalorder %v7213, 2
      %v7219 = vxor.u32 %v7210, 2147483648
      %v7220 = vsel %vm7218, %v7219, %v7211
      %v7221 = vsel %vm7214, %v7217, %v7220
      %v7222 = vsel %vm7212, nan, %v7221
      %7223 = vst [vmem:[#allocation3 + $0x60] sm:$0xff] %v7119
      %7224 = vst [vmem:[#allocation3 + $0x68] sm:$0xff] %v7222
      %v7225 = vand.u32 2147483647, %v7015
      %vm7226 = vcmp.le.f32.partialorder %v7225, 0.7853982
      %vm7227 = vcmp.lt.s32.totalorder %v7015, 0
      %v7228 = vand.u32 %v7015, 2139095040
      %v7229 = vshrl.u32 %v7228, 23
      %v7230 = vsub.s32 %v7229, 127
      %v7231 = vand.u32 2147483647, %v7015
      %v7232 = vand.u32 %v7231, 8388607
      %v7233 = vor.u32 %v7232, 8388608
      %v7234 = vsub.s32 0, %v7233
      %v7235 = vadd.s32 %v7230, 1
      %vm7236 = vcmp.gt.s32.totalorder %v7235, 0
      %v7237 = vsel %vm7236, %v7235, 0
      %v7238 = vshrl.u32 %v7237, 5
      %v7239 = vand.u32 %v7237, 31
      %v7240 = vsub.s32 32, %v7239
      %v7241 = vshrl.u32 683565275, %v7240
      %v7242 = vshll.u32 683565275, %v7239
      %v7243 = vshrl.u32 2475754826, %v7240
      %v7244 = vor.u32 %v7242, %v7243
      %v7245 = vshll.u32 2475754826, %v7239
      %v7246 = vshrl.u32 2131351028, %v7240
      %v7247 = vor.u32 %v7245, %v7246
      %v7248 = vshll.u32 2131351028, %v7239
      %v7249 = vshrl.u32 2102212464, %v7240
      %v7250 = vor.u32 %v7248, %v7249
      %v7251 = vshll.u32 2102212464, %v7239
      %v7252 = vshrl.u32 920167782, %v7240
      %v7253 = vor.u32 %v7251, %v7252
      %v7254 = vshll.u32 920167782, %v7239
      %v7255 = vshrl.u32 1326507024, %v7240
      %v7256 = vor.u32 %v7254, %v7255
      %vm7257 = vcmp.lt.s32.totalorder %v7238, 1
      %vm7258 = vcmp.lt.s32.totalorder %v7238, 2
      %vm7259 = vcmp.lt.s32.totalorder %v7238, 3
      %vm7260 = vcmp.lt.s32.totalorder %v7238, 4
      %v7261 = vsel %vm7257, %v7241, %v7244
      %v7262 = vsel %vm7260, %v7250, 2102212464
      %v7263 = vsel %vm7259, %v7247, %v7262
      %v7264 = vsel %vm7258, %v7261, %v7263
      %v7265 = vsel %vm7257, %v7244, %v7247
      %v7266 = vsel %vm7260, %v7253, 920167782
      %v7267 = vsel %vm7259, %v7250, %v7266
      %v7268 = vsel %vm7258, %v7265, %v7267
      %v7269 = vsel %vm7257, %v7247, %v7250
      %v7270 = vsel %vm7260, %v7256, 1326507024
      %v7271 = vsel %vm7259, %v7253, %v7270
      %v7272 = vsel %vm7258, %v7269, %v7271
      %v7273 = vshll.u32 %v7233, 8
      %v7274 = vmul.u32.u64.compose %v7273, %v7272
      %v7275 = vextract.low.u32 %v7274
      %v7276 = vextract.high.u32 %v7274
      %v7277 = vmul.u32.u64.compose %v7273, %v7268
      %v7278 = vextract.low.u32 %v7277
      %v7279 = vextract.high.u32 %v7277
      %v7280 = vmul.u32 %v7273, %v7264
      %v7281 = vadd.s32 %v7276, %v7278
      %vm7282 = vc.u32 %v7276, %v7278
      %v7283 = vadd.s32 %v7279, 1
      %v7284 = vsel %vm7282, %v7283, %v7279
      %v7285 = vadd.s32 %v7280, %v7284
      %v7286 = vadd.s32 %v7285, 536870912
      %v7287 = vshrl.u32 %v7286, 30
      %v7288 = vshll.u32 %v7287, 30
      %v7289 = vsub.s32 %v7285, %v7288
      %vm7290 = vcmp.lt.s32.totalorder %v7289, 0
      %v7291 = vsub.s32 0, %v7289
      %v7292 = vsel %vm7290, %v7291, %v7289
      %v7293 = vclz %v7292
      %v7294 = vsub.s32 %v7293, 2
      %vm7295 = vcmp.gt.s32.totalorder 0, %v7294
      %v7296 = vsel %vm7295, 0, %v7294
      %v7297 = vsub.s32 32, %v7296
      %v7298 = vshll.u32 %v7289, %v7296
      %v7299 = vshrl.u32 %v7281, %v7297
      %v7300 = vor.u32 %v7298, %v7299
      %v7301 = vsub.s32 4294967266, %v7296
      %v7302 = vadd.s32 %v7301, 127
      %v7303 = vshll.u32 %v7302, 23
      %v7304 = vor.u32 4788187, %v7303
      %v7305 = vand.u32 2147483647, %v7304
      %v7307 = vcvt.s32.f32 %v7300
      %v7308 = vmul.f32 %v7307, %v7305
      %v7309 = vxor.u32 %v7308, 2147483648
      %v7310 = vsel %vm7227, %v7309, %v7308
      %v7311 = vsub.s32 4, %v7287
      %v7312 = vsel %vm7227, %v7311, %v7287
      %v7313 = vsel %vm7226, %v7015, %v7310
      %v7314 = vsel %vm7226, 0, %v7312
      %v7315 = vcosq.f32.pop %v7313
      %v7316 = vsinq.f32.pop %v7313
      %vm7317 = vweird.f32 %v7015
      %v7318 = vadd.s32 %v7314, 3
      %v7319 = vand.u32 %v7318, 3
      %vm7320 = vcmp.lt.s32.totalorder %v7319, 2
      %vm7321 = vcmp.eq.s32.totalorder %v7319, 0
      %v7322 = vxor.u32 %v7316, 2147483648
      %v7323 = vsel %vm7321, %v7315, %v7322
      %vm7324 = vcmp.eq.s32.totalorder %v7319, 2
      %v7325 = vxor.u32 %v7315, 2147483648
      %v7326 = vsel %vm7324, %v7325, %v7316
      %v7327 = vsel %vm7320, %v7323, %v7326
      %v7328 = vsel %vm7317, nan, %v7327
      %v7329 = vand.u32 2147483647, %v7016
      %vm7330 = vcmp.le.f32.partialorder %v7329, 0.7853982
      %vm7331 = vcmp.lt.s32.totalorder %v7016, 0
      %v7332 = vand.u32 %v7016, 2139095040
      %v7333 = vshrl.u32 %v7332, 23
      %v7334 = vsub.s32 %v7333, 127
      %v7335 = vand.u32 2147483647, %v7016
      %v7336 = vand.u32 %v7335, 8388607
      %v7337 = vor.u32 %v7336, 8388608
      %v7338 = vsub.s32 0, %v7337
      %v7339 = vadd.s32 %v7334, 1
      %vm7340 = vcmp.gt.s32.totalorder %v7339, 0
      %v7341 = vsel %vm7340, %v7339, 0
      %v7342 = vshrl.u32 %v7341, 5
      %v7343 = vand.u32 %v7341, 31
      %v7344 = vsub.s32 32, %v7343
      %v7345 = vshrl.u32 683565275, %v7344
      %v7346 = vshll.u32 683565275, %v7343
      %v7347 = vshrl.u32 2475754826, %v7344
      %v7348 = vor.u32 %v7346, %v7347
      %v7349 = vshll.u32 2475754826, %v7343
      %v7350 = vshrl.u32 2131351028, %v7344
      %v7351 = vor.u32 %v7349, %v7350
      %v7352 = vshll.u32 2131351028, %v7343
      %v7353 = vshrl.u32 2102212464, %v7344
      %v7354 = vor.u32 %v7352, %v7353
      %v7355 = vshll.u32 2102212464, %v7343
      %v7356 = vshrl.u32 920167782, %v7344
      %v7357 = vor.u32 %v7355, %v7356
      %v7358 = vshll.u32 920167782, %v7343
      %v7359 = vshrl.u32 1326507024, %v7344
      %v7360 = vor.u32 %v7358, %v7359
      %vm7361 = vcmp.lt.s32.totalorder %v7342, 1
      %vm7362 = vcmp.lt.s32.totalorder %v7342, 2
      %vm7363 = vcmp.lt.s32.totalorder %v7342, 3
      %vm7364 = vcmp.lt.s32.totalorder %v7342, 4
      %v7365 = vsel %vm7361, %v7345, %v7348
      %v7366 = vsel %vm7364, %v7354, 2102212464
      %v7367 = vsel %vm7363, %v7351, %v7366
      %v7368 = vsel %vm7362, %v7365, %v7367
      %v7369 = vsel %vm7361, %v7348, %v7351
      %v7370 = vsel %vm7364, %v7357, 920167782
      %v7371 = vsel %vm7363, %v7354, %v7370
      %v7372 = vsel %vm7362, %v7369, %v7371
      %v7373 = vsel %vm7361, %v7351, %v7354
      %v7374 = vsel %vm7364, %v7360, 1326507024
      %v7375 = vsel %vm7363, %v7357, %v7374
      %v7376 = vsel %vm7362, %v7373, %v7375
      %v7377 = vshll.u32 %v7337, 8
      %v7378 = vmul.u32.u64.compose %v7377, %v7376
      %v7379 = vextract.low.u32 %v7378
      %v7380 = vextract.high.u32 %v7378
      %v7381 = vmul.u32.u64.compose %v7377, %v7372
      %v7382 = vextract.low.u32 %v7381
      %v7383 = vextract.high.u32 %v7381
      %v7384 = vmul.u32 %v7377, %v7368
      %v7385 = vadd.s32 %v7380, %v7382
      %vm7386 = vc.u32 %v7380, %v7382
      %v7387 = vadd.s32 %v7383, 1
      %v7388 = vsel %vm7386, %v7387, %v7383
      %v7389 = vadd.s32 %v7384, %v7388
      %v7390 = vadd.s32 %v7389, 536870912
      %v7391 = vshrl.u32 %v7390, 30
      %v7392 = vshll.u32 %v7391, 30
      %v7393 = vsub.s32 %v7389, %v7392
      %vm7394 = vcmp.lt.s32.totalorder %v7393, 0
      %v7395 = vsub.s32 0, %v7393
      %v7396 = vsel %vm7394, %v7395, %v7393
      %v7397 = vclz %v7396
      %v7398 = vsub.s32 %v7397, 2
      %vm7399 = vcmp.gt.s32.totalorder 0, %v7398
      %v7400 = vsel %vm7399, 0, %v7398
      %v7401 = vsub.s32 32, %v7400
      %v7402 = vshll.u32 %v7393, %v7400
      %v7403 = vshrl.u32 %v7385, %v7401
      %v7404 = vor.u32 %v7402, %v7403
      %v7405 = vsub.s32 4294967266, %v7400
      %v7406 = vadd.s32 %v7405, 127
      %v7407 = vshll.u32 %v7406, 23
      %v7408 = vor.u32 4788187, %v7407
      %v7409 = vand.u32 2147483647, %v7408
      %v7411 = vcvt.s32.f32 %v7404
      %v7412 = vmul.f32 %v7411, %v7409
      %v7413 = vxor.u32 %v7412, 2147483648
      %v7414 = vsel %vm7331, %v7413, %v7412
      %v7415 = vsub.s32 4, %v7391
      %v7416 = vsel %vm7331, %v7415, %v7391
      %v7417 = vsel %vm7330, %v7016, %v7414
      %v7418 = vsel %vm7330, 0, %v7416
      %v7419 = vcosq.f32.pop %v7417
      %v7420 = vsinq.f32.pop %v7417
      %vm7421 = vweird.f32 %v7016
      %v7422 = vadd.s32 %v7418, 3
      %v7423 = vand.u32 %v7422, 3
      %vm7424 = vcmp.lt.s32.totalorder %v7423, 2
      %vm7425 = vcmp.eq.s32.totalorder %v7423, 0
      %v7426 = vxor.u32 %v7420, 2147483648
      %v7427 = vsel %vm7425, %v7419, %v7426
      %vm7428 = vcmp.eq.s32.totalorder %v7423, 2
      %v7429 = vxor.u32 %v7419, 2147483648
      %v7430 = vsel %vm7428, %v7429, %v7420
      %v7431 = vsel %vm7424, %v7427, %v7430
      %v7432 = vsel %vm7421, nan, %v7431
      %7433 = vst [vmem:[#allocation3 + $0xe0] sm:$0xff] %v7328
      %7434 = vst [vmem:[#allocation3 + $0xe8] sm:$0xff] %v7432
      %7435 = vst [vmem:[#allocation3 + $0x70] sm:$0xff] %v7119
      %7436 = vst [vmem:[#allocation3 + $0x78] sm:$0xff] %v7222
      %7437 = vst [vmem:[#allocation3 + $0xf0] sm:$0xff] %v7328
      %7438 = vst [vmem:[#allocation3 + $0xf8] sm:$0xff] %v7432
      loop: start=0, step=1, limit=8
      $region56: #{_lambda_.1} parent=47 // loop_pre_header
        _
      $region57: #{_lambda_.1} parent=47 // loop_header
        %s7440 = sphi 0, %s7444
        %p7441 = scmp.ge.s32.totalorder %s7440, 8
      $region58: #{_lambda_.1} parent=47 // loop_header_branch
        %7443 = sbr.rel (%p7441) target = $region62
      $region59: #{_lambda_.1} parent=47 // loop_body
        %s7445 = smul.u32 %s7440, 2
        %s7446 = sadd.s32 %s7445, 1
        %s7447 = smul.u32 %s7440, 80
        %s7448 = sadd.s32 %s7447, 16
        %s7449 = scalar_lea.vmem [#allocation2], %s7448
        %v7450 = vld [vmem:[%s7449] sm:$0xff]
        %v7451 = vld [vmem:[%s7449 + $0x8] sm:$0xff]
        %s7452 = sadd.s32 %s7447, 33
        %s7453 = scalar_lea.vmem [#allocation2], %s7452
        %v7454 = vld [vmem:[%s7453] sm:$0x1]
        %v7455 = vlaneseq
        %v7456 = vshrl.u32 %v7455, 7
        %v7457 = vsub.s32 0, %v7456
        %v7458 = vrot.slane %v7454, %v7457
        %s7459 = smul.u32 %s7446, 40
        %s7460 = sadd.s32 %s7459, 16
        %s7461 = scalar_lea.vmem [#allocation2], %s7460
        %v7462 = vld [vmem:[%s7461] sm:$0xff]
        %v7463 = vld [vmem:[%s7461 + $0x8] sm:$0xff]
        %s7464 = sadd.s32 %s7459, 33
        %s7465 = scalar_lea.vmem [#allocation2], %s7464
        %v7466 = vld [vmem:[%s7465] sm:$0x1]
        %v7467 = vlaneseq
        %v7468 = vshrl.u32 %v7467, 7
        %v7469 = vsub.s32 0, %v7468
        %v7470 = vrot.slane %v7466, %v7469
        %v7471 = vld [vmem:[#allocation3] sm:$0xff]
        %v7472 = vld [vmem:[#allocation3 + $0x8] sm:$0xff]
        %v7473 = vlaneseq
        %v7474 = vshrl.u32 %v7473, 7
        %v7475 = vsub.s32 0, %v7474
        %v7476 = vrot.slane %v7450, %v7475
        %v7477 = vmul.f32 %v7471, %v7476
        %v7478 = vmul.f32 %v7472, %v7476
        %v7479 = vadd.f32 %v7458, %v7477
        %v7480 = vadd.f32 %v7458, %v7478
        %v7481 = vlaneseq
        %v7482 = vshrl.u32 %v7481, 7
        %v7483 = vsub.s32 0, %v7482
        %v7484 = vrot.slane %v7462, %v7483
        %v7485 = vmul.f32 %v7471, %v7484
        %v7486 = vmul.f32 %v7472, %v7484
        %v7487 = vadd.f32 %v7470, %v7485
        %v7488 = vadd.f32 %v7470, %v7486
        %v7489 = vld [vmem:[#allocation3 + $0x10] sm:$0xff]
        %v7490 = vld [vmem:[#allocation3 + $0x18] sm:$0xff]
        %v7491 = vlaneseq
        %v7492 = vshrl.u32 %v7491, 7
        %v7493 = vsub.s32 1, %v7492
        %v7494 = vrot.slane %v7450, %v7493
        %v7495 = vmul.f32 %v7489, %v7494
        %v7496 = vmul.f32 %v7490, %v7494
        %v7497 = vadd.f32 %v7479, %v7495
        %v7498 = vadd.f32 %v7480, %v7496
        %v7499 = vlaneseq
        %v7500 = vshrl.u32 %v7499, 7
        %v7501 = vsub.s32 1, %v7500
        %v7502 = vrot.slane %v7462, %v7501
        %v7503 = vmul.f32 %v7489, %v7502
        %v7504 = vmul.f32 %v7490, %v7502
        %v7505 = vadd.f32 %v7487, %v7503
        %v7506 = vadd.f32 %v7488, %v7504
        %v7507 = vld [vmem:[#allocation3 + $0x20] sm:$0xff]
        %v7508 = vld [vmem:[#allocation3 + $0x28] sm:$0xff]
        %v7509 = vlaneseq
        %v7510 = vshrl.u32 %v7509, 7
        %v7511 = vsub.s32 2, %v7510
        %v7512 = vrot.slane %v7450, %v7511
        %v7513 = vmul.f32 %v7507, %v7512
        %v7514 = vmul.f32 %v7508, %v7512
        %v7515 = vadd.f32 %v7497, %v7513
        %v7516 = vadd.f32 %v7498, %v7514
        %v7517 = vlaneseq
        %v7518 = vshrl.u32 %v7517, 7
        %v7519 = vsub.s32 2, %v7518
        %v7520 = vrot.slane %v7462, %v7519
        %v7521 = vmul.f32 %v7507, %v7520
        %v7522 = vmul.f32 %v7508, %v7520
        %v7523 = vadd.f32 %v7505, %v7521
        %v7524 = vadd.f32 %v7506, %v7522
        %v7525 = vld [vmem:[#allocation3 + $0x30] sm:$0xff]
        %v7526 = vld [vmem:[#allocation3 + $0x38] sm:$0xff]
        %v7527 = vlaneseq
        %v7528 = vshrl.u32 %v7527, 7
        %v7529 = vsub.s32 3, %v7528
        %v7530 = vrot.slane %v7450, %v7529
        %v7531 = vmul.f32 %v7525, %v7530
        %v7532 = vmul.f32 %v7526, %v7530
        %v7533 = vadd.f32 %v7515, %v7531
        %v7534 = vadd.f32 %v7516, %v7532
        %v7535 = vlaneseq
        %v7536 = vshrl.u32 %v7535, 7
        %v7537 = vsub.s32 3, %v7536
        %v7538 = vrot.slane %v7462, %v7537
        %v7539 = vmul.f32 %v7525, %v7538
        %v7540 = vmul.f32 %v7526, %v7538
        %v7541 = vadd.f32 %v7523, %v7539
        %v7542 = vadd.f32 %v7524, %v7540
        %v7543 = vld [vmem:[#allocation3 + $0x40] sm:$0xff]
        %v7544 = vld [vmem:[#allocation3 + $0x48] sm:$0xff]
        %v7545 = vlaneseq
        %v7546 = vshrl.u32 %v7545, 7
        %v7547 = vsub.s32 4, %v7546
        %v7548 = vrot.slane %v7450, %v7547
        %v7549 = vmul.f32 %v7543, %v7548
        %v7550 = vmul.f32 %v7544, %v7548
        %v7551 = vadd.f32 %v7533, %v7549
        %v7552 = vadd.f32 %v7534, %v7550
        %v7553 = vlaneseq
        %v7554 = vshrl.u32 %v7553, 7
        %v7555 = vsub.s32 4, %v7554
        %v7556 = vrot.slane %v7462, %v7555
        %v7557 = vmul.f32 %v7543, %v7556
        %v7558 = vmul.f32 %v7544, %v7556
        %v7559 = vadd.f32 %v7541, %v7557
        %v7560 = vadd.f32 %v7542, %v7558
        %v7561 = vld [vmem:[#allocation3 + $0x50] sm:$0xff]
        %v7562 = vld [vmem:[#allocation3 + $0x58] sm:$0xff]
        %v7563 = vlaneseq
        %v7564 = vshrl.u32 %v7563, 7
        %v7565 = vsub.s32 5, %v7564
        %v7566 = vrot.slane %v7450, %v7565
        %v7567 = vmul.f32 %v7561, %v7566
        %v7568 = vmul.f32 %v7562, %v7566
        %v7569 = vadd.f32 %v7551, %v7567
        %v7570 = vadd.f32 %v7552, %v7568
        %v7571 = vlaneseq
        %v7572 = vshrl.u32 %v7571, 7
        %v7573 = vsub.s32 5, %v7572
        %v7574 = vrot.slane %v7462, %v7573
        %v7575 = vmul.f32 %v7561, %v7574
        %v7576 = vmul.f32 %v7562, %v7574
        %v7577 = vadd.f32 %v7559, %v7575
        %v7578 = vadd.f32 %v7560, %v7576
        %v7579 = vld [vmem:[#allocation3 + $0x60] sm:$0xff]
        %v7580 = vld [vmem:[#allocation3 + $0x68] sm:$0xff]
        %v7581 = vlaneseq
        %v7582 = vshrl.u32 %v7581, 7
        %v7583 = vsub.s32 6, %v7582
        %v7584 = vrot.slane %v7450, %v7583
        %v7585 = vmul.f32 %v7579, %v7584
        %v7586 = vmul.f32 %v7580, %v7584
        %v7587 = vadd.f32 %v7569, %v7585
        %v7588 = vadd.f32 %v7570, %v7586
        %v7589 = vlaneseq
        %v7590 = vshrl.u32 %v7589, 7
        %v7591 = vsub.s32 6, %v7590
        %v7592 = vrot.slane %v7462, %v7591
        %v7593 = vmul.f32 %v7579, %v7592
        %v7594 = vmul.f32 %v7580, %v7592
        %v7595 = vadd.f32 %v7577, %v7593
        %v7596 = vadd.f32 %v7578, %v7594
        %v7597 = vld [vmem:[#allocation3 + $0x70] sm:$0xff]
        %v7598 = vld [vmem:[#allocation3 + $0x78] sm:$0xff]
        %v7599 = vlaneseq
        %v7600 = vshrl.u32 %v7599, 7
        %v7601 = vsub.s32 7, %v7600
        %v7602 = vrot.slane %v7450, %v7601
        %v7603 = vmul.f32 %v7597, %v7602
        %v7604 = vmul.f32 %v7598, %v7602
        %v7605 = vadd.f32 %v7587, %v7603
        %v7606 = vadd.f32 %v7588, %v7604
        %v7607 = vlaneseq
        %v7608 = vshrl.u32 %v7607, 7
        %v7609 = vsub.s32 7, %v7608
        %v7610 = vrot.slane %v7462, %v7609
        %v7611 = vmul.f32 %v7597, %v7610
        %v7612 = vmul.f32 %v7598, %v7610
        %v7613 = vadd.f32 %v7595, %v7611
        %v7614 = vadd.f32 %v7596, %v7612
        %v7615 = vld [vmem:[#allocation3 + $0x80] sm:$0xff]
        %v7616 = vld [vmem:[#allocation3 + $0x88] sm:$0xff]
        %v7617 = vlaneseq
        %v7618 = vshrl.u32 %v7617, 7
        %v7619 = vsub.s32 0, %v7618
        %v7620 = vrot.slane %v7451, %v7619
        %v7621 = vmul.f32 %v7615, %v7620
        %v7622 = vmul.f32 %v7616, %v7620
        %v7623 = vadd.f32 %v7605, %v7621
        %v7624 = vadd.f32 %v7606, %v7622
        %v7625 = vlaneseq
        %v7626 = vshrl.u32 %v7625, 7
        %v7627 = vsub.s32 0, %v7626
        %v7628 = vrot.slane %v7463, %v7627
        %v7629 = vmul.f32 %v7615, %v7628
        %v7630 = vmul.f32 %v7616, %v7628
        %v7631 = vadd.f32 %v7613, %v7629
        %v7632 = vadd.f32 %v7614, %v7630
        %v7633 = vld [vmem:[#allocation3 + $0x90] sm:$0xff]
        %v7634 = vld [vmem:[#allocation3 + $0x98] sm:$0xff]
        %v7635 = vlaneseq
        %v7636 = vshrl.u32 %v7635, 7
        %v7637 = vsub.s32 1, %v7636
        %v7638 = vrot.slane %v7451, %v7637
        %v7639 = vmul.f32 %v7633, %v7638
        %v7640 = vmul.f32 %v7634, %v7638
        %v7641 = vadd.f32 %v7623, %v7639
        %v7642 = vadd.f32 %v7624, %v7640
        %v7643 = vlaneseq
        %v7644 = vshrl.u32 %v7643, 7
        %v7645 = vsub.s32 1, %v7644
        %v7646 = vrot.slane %v7463, %v7645
        %v7647 = vmul.f32 %v7633, %v7646
        %v7648 = vmul.f32 %v7634, %v7646
        %v7649 = vadd.f32 %v7631, %v7647
        %v7650 = vadd.f32 %v7632, %v7648
        %v7651 = vld [vmem:[#allocation3 + $0xa0] sm:$0xff]
        %v7652 = vld [vmem:[#allocation3 + $0xa8] sm:$0xff]
        %v7653 = vlaneseq
        %v7654 = vshrl.u32 %v7653, 7
        %v7655 = vsub.s32 2, %v7654
        %v7656 = vrot.slane %v7451, %v7655
        %v7657 = vmul.f32 %v7651, %v7656
        %v7658 = vmul.f32 %v7652, %v7656
        %v7659 = vadd.f32 %v7641, %v7657
        %v7660 = vadd.f32 %v7642, %v7658
        %v7661 = vlaneseq
        %v7662 = vshrl.u32 %v7661, 7
        %v7663 = vsub.s32 2, %v7662
        %v7664 = vrot.slane %v7463, %v7663
        %v7665 = vmul.f32 %v7651, %v7664
        %v7666 = vmul.f32 %v7652, %v7664
        %v7667 = vadd.f32 %v7649, %v7665
        %v7668 = vadd.f32 %v7650, %v7666
        %v7669 = vld [vmem:[#allocation3 + $0xb0] sm:$0xff]
        %v7670 = vld [vmem:[#allocation3 + $0xb8] sm:$0xff]
        %v7671 = vlaneseq
        %v7672 = vshrl.u32 %v7671, 7
        %v7673 = vsub.s32 3, %v7672
        %v7674 = vrot.slane %v7451, %v7673
        %v7675 = vmul.f32 %v7669, %v7674
        %v7676 = vmul.f32 %v7670, %v7674
        %v7677 = vadd.f32 %v7659, %v7675
        %v7678 = vadd.f32 %v7660, %v7676
        %v7679 = vlaneseq
        %v7680 = vshrl.u32 %v7679, 7
        %v7681 = vsub.s32 3, %v7680
        %v7682 = vrot.slane %v7463, %v7681
        %v7683 = vmul.f32 %v7669, %v7682
        %v7684 = vmul.f32 %v7670, %v7682
        %v7685 = vadd.f32 %v7667, %v7683
        %v7686 = vadd.f32 %v7668, %v7684
        %v7687 = vld [vmem:[#allocation3 + $0xc0] sm:$0xff]
        %v7688 = vld [vmem:[#allocation3 + $0xc8] sm:$0xff]
        %v7689 = vlaneseq
        %v7690 = vshrl.u32 %v7689, 7
        %v7691 = vsub.s32 4, %v7690
        %v7692 = vrot.slane %v7451, %v7691
        %v7693 = vmul.f32 %v7687, %v7692
        %v7694 = vmul.f32 %v7688, %v7692
        %v7695 = vadd.f32 %v7677, %v7693
        %v7696 = vadd.f32 %v7678, %v7694
        %v7697 = vlaneseq
        %v7698 = vshrl.u32 %v7697, 7
        %v7699 = vsub.s32 4, %v7698
        %v7700 = vrot.slane %v7463, %v7699
        %v7701 = vmul.f32 %v7687, %v7700
        %v7702 = vmul.f32 %v7688, %v7700
        %v7703 = vadd.f32 %v7685, %v7701
        %v7704 = vadd.f32 %v7686, %v7702
        %v7705 = vld [vmem:[#allocation3 + $0xd0] sm:$0xff]
        %v7706 = vld [vmem:[#allocation3 + $0xd8] sm:$0xff]
        %v7707 = vlaneseq
        %v7708 = vshrl.u32 %v7707, 7
        %v7709 = vsub.s32 5, %v7708
        %v7710 = vrot.slane %v7451, %v7709
        %v7711 = vmul.f32 %v7705, %v7710
        %v7712 = vmul.f32 %v7706, %v7710
        %v7713 = vadd.f32 %v7695, %v7711
        %v7714 = vadd.f32 %v7696, %v7712
        %v7715 = vlaneseq
        %v7716 = vshrl.u32 %v7715, 7
        %v7717 = vsub.s32 5, %v7716
        %v7718 = vrot.slane %v7463, %v7717
        %v7719 = vmul.f32 %v7705, %v7718
        %v7720 = vmul.f32 %v7706, %v7718
        %v7721 = vadd.f32 %v7703, %v7719
        %v7722 = vadd.f32 %v7704, %v7720
        %v7723 = vld [vmem:[#allocation3 + $0xe0] sm:$0xff]
        %v7724 = vld [vmem:[#allocation3 + $0xe8] sm:$0xff]
        %v7725 = vlaneseq
        %v7726 = vshrl.u32 %v7725, 7
        %v7727 = vsub.s32 6, %v7726
        %v7728 = vrot.slane %v7451, %v7727
        %v7729 = vmul.f32 %v7723, %v7728
        %v7730 = vmul.f32 %v7724, %v7728
        %v7731 = vadd.f32 %v7713, %v7729
        %v7732 = vadd.f32 %v7714, %v7730
        %v7733 = vlaneseq
        %v7734 = vshrl.u32 %v7733, 7
        %v7735 = vsub.s32 6, %v7734
        %v7736 = vrot.slane %v7463, %v7735
        %v7737 = vmul.f32 %v7723, %v7736
        %v7738 = vmul.f32 %v7724, %v7736
        %v7739 = vadd.f32 %v7721, %v7737
        %v7740 = vadd.f32 %v7722, %v7738
        %v7741 = vld [vmem:[#allocation3 + $0xf0] sm:$0xff]
        %v7742 = vld [vmem:[#allocation3 + $0xf8] sm:$0xff]
        %v7743 = vlaneseq
        %v7744 = vshrl.u32 %v7743, 7
        %v7745 = vsub.s32 7, %v7744
        %v7746 = vrot.slane %v7451, %v7745
        %v7747 = vmul.f32 %v7741, %v7746
        %v7748 = vmul.f32 %v7742, %v7746
        %v7749 = vadd.f32 %v7731, %v7747
        %v7750 = vadd.f32 %v7732, %v7748
        %v7751 = vlaneseq
        %v7752 = vshrl.u32 %v7751, 7
        %v7753 = vsub.s32 7, %v7752
        %v7754 = vrot.slane %v7463, %v7753
        %v7755 = vmul.f32 %v7741, %v7754
        %v7756 = vmul.f32 %v7742, %v7754
        %v7757 = vadd.f32 %v7739, %v7755
        %v7758 = vadd.f32 %v7740, %v7756
        %s7759 = sadd.s32 %s7445, 39
        %v7760 = vmax.f32 %v7749, -50000.0
        %v7761 = vmax.f32 %v7750, -50000.0
        %v7762 = vmin.f32 %v7760, 50000.0
        %v7763 = vmin.f32 %v7761, 50000.0
        %v7764 = vmax.f32 %v7762, %v7763
        %v7765 = vrot.slane %v7764, 4
        %v7766 = vmax.f32 %v7764, %v7765
        %v7767 = vrot.slane %v7766, 2
        %v7768 = vmax.f32 %v7766, %v7767
        %v7769 = vrot.slane %v7768, 1
        %v7770 = vmax.f32 %v7768, %v7769
        %v7771 = vsub.f32 %v7762, %v7770
        %v7772 = vsub.f32 %v7763, %v7770
        %v7773 = vmul.f32 %v7771, 1.442695
        %v7774 = vpow.pop %v7773
        %v7775 = vmul.f32 %v7772, 1.442695
        %v7776 = vpow.pop %v7775
        %v7777 = vmul.f32 %v7774, %v1408
        %v7778 = vmul.f32 %v7776, %v1409
        %v7779 = vadd.f32 %v7777, %v7778
        %v7780 = vrot.slane %v7779, 4
        %v7781 = vadd.f32 %v7779, %v7780
        %v7782 = vrot.slane %v7781, 2
        %v7783 = vadd.f32 %v7781, %v7782
        %v7784 = vrot.slane %v7783, 1
        %v7785 = vadd.f32 %v7783, %v7784
        %v7786 = vadd.f32 %v7774, %v7776
        %v7787 = vrot.slane %v7786, 4
        %v7788 = vadd.f32 %v7786, %v7787
        %v7789 = vrot.slane %v7788, 2
        %v7790 = vadd.f32 %v7788, %v7789
        %v7791 = vrot.slane %v7790, 1
        %v7792 = vadd.f32 %v7790, %v7791
        %v7793 = vadd.f32 %v7792, 1e-08
        %v7794 = vrcp.pop %v7793
        %v7795 = vmul.f32 %v7785, %v7794
        %v7796 = vmul.f32 %v5732, %v7795
        %v7797 = vadd.f32 %v7796, %v1402
        %s7798 = scalar_lea.vmem %s424, %s7759
        %7799 = vst [vmem:[%s7798 - $0x1] sm:$0x2] %v7797
        %s7800 = sadd.s32 %s7445, 40
        %v7801 = vmax.f32 %v7757, -50000.0
        %v7802 = vmax.f32 %v7758, -50000.0
        %v7803 = vmin.f32 %v7801, 50000.0
        %v7804 = vmin.f32 %v7802, 50000.0
        %v7805 = vmax.f32 %v7803, %v7804
        %v7806 = vrot.slane %v7805, 4
        %v7807 = vmax.f32 %v7805, %v7806
        %v7808 = vrot.slane %v7807, 2
        %v7809 = vmax.f32 %v7807, %v7808
        %v7810 = vrot.slane %v7809, 1
        %v7811 = vmax.f32 %v7809, %v7810
        %v7812 = vsub.f32 %v7803, %v7811
        %v7813 = vsub.f32 %v7804, %v7811
        %v7814 = vmul.f32 %v7812, 1.442695
        %v7815 = vpow.pop %v7814
        %v7816 = vmul.f32 %v7813, 1.442695
        %v7817 = vpow.pop %v7816
        %v7818 = vmul.f32 %v7815, %v1408
        %v7819 = vmul.f32 %v7817, %v1409
        %v7820 = vadd.f32 %v7818, %v7819
        %v7821 = vrot.slane %v7820, 4
        %v7822 = vadd.f32 %v7820, %v7821
        %v7823 = vrot.slane %v7822, 2
        %v7824 = vadd.f32 %v7822, %v7823
        %v7825 = vrot.slane %v7824, 1
        %v7826 = vadd.f32 %v7824, %v7825
        %v7827 = vadd.f32 %v7815, %v7817
        %v7828 = vrot.slane %v7827, 4
        %v7829 = vadd.f32 %v7827, %v7828
        %v7830 = vrot.slane %v7829, 2
        %v7831 = vadd.f32 %v7829, %v7830
        %v7832 = vrot.slane %v7831, 1
        %v7833 = vadd.f32 %v7831, %v7832
        %v7834 = vadd.f32 %v7833, 1e-08
        %v7835 = vrcp.pop %v7834
        %v7836 = vmul.f32 %v7826, %v7835
        %v7837 = vmul.f32 %v5732, %v7836
        %v7838 = vadd.f32 %v7837, %v1402
        %s7839 = scalar_lea.vmem %s424, %s7800
        %7840 = vst [vmem:[%s7839 - $0x1] sm:$0x2] %v7838
      $region60: #{_lambda_.1} parent=47 // loop_footer
        %s7444 = sadd.s32 1, %s7440
      $region61: #{_lambda_.1} parent=47 // loop_footer_branch
        %7439 = sbr.rel target = $region57
      $region62: #{_lambda_.1} parent=47 // loop_exit
        _
      %v7841 = vld [vmem:[#allocation2 + $0x290] sm:$0xff]
      %v7842 = vld [vmem:[#allocation2 + $0x298] sm:$0xff]
      %v7843 = vld [vmem:[#allocation2 + $0x2a1] sm:$0x1]
      %v7844 = vlaneseq
      %v7845 = vshrl.u32 %v7844, 7
      %v7846 = vsub.s32 0, %v7845
      %v7847 = vrot.slane %v7843, %v7846
      %v7848 = vld [vmem:[#allocation3] sm:$0xff]
      %v7849 = vld [vmem:[#allocation3 + $0x8] sm:$0xff]
      %v7850 = vlaneseq
      %v7851 = vshrl.u32 %v7850, 7
      %v7852 = vsub.s32 0, %v7851
      %v7853 = vrot.slane %v7841, %v7852
      %v7854 = vmul.f32 %v7848, %v7853
      %v7855 = vmul.f32 %v7849, %v7853
      %v7856 = vadd.f32 %v7847, %v7854
      %v7857 = vadd.f32 %v7847, %v7855
      %v7858 = vld [vmem:[#allocation3 + $0x10] sm:$0xff]
      %v7859 = vld [vmem:[#allocation3 + $0x18] sm:$0xff]
      %v7860 = vlaneseq
      %v7861 = vshrl.u32 %v7860, 7
      %v7862 = vsub.s32 1, %v7861
      %v7863 = vrot.slane %v7841, %v7862
      %v7864 = vmul.f32 %v7858, %v7863
      %v7865 = vmul.f32 %v7859, %v7863
      %v7866 = vadd.f32 %v7856, %v7864
      %v7867 = vadd.f32 %v7857, %v7865
      %v7868 = vld [vmem:[#allocation3 + $0x20] sm:$0xff]
      %v7869 = vld [vmem:[#allocation3 + $0x28] sm:$0xff]
      %v7870 = vlaneseq
      %v7871 = vshrl.u32 %v7870, 7
      %v7872 = vsub.s32 2, %v7871
      %v7873 = vrot.slane %v7841, %v7872
      %v7874 = vmul.f32 %v7868, %v7873
      %v7875 = vmul.f32 %v7869, %v7873
      %v7876 = vadd.f32 %v7866, %v7874
      %v7877 = vadd.f32 %v7867, %v7875
      %v7878 = vld [vmem:[#allocation3 + $0x30] sm:$0xff]
      %v7879 = vld [vmem:[#allocation3 + $0x38] sm:$0xff]
      %v7880 = vlaneseq
      %v7881 = vshrl.u32 %v7880, 7
      %v7882 = vsub.s32 3, %v7881
      %v7883 = vrot.slane %v7841, %v7882
      %v7884 = vmul.f32 %v7878, %v7883
      %v7885 = vmul.f32 %v7879, %v7883
      %v7886 = vadd.f32 %v7876, %v7884
      %v7887 = vadd.f32 %v7877, %v7885
      %v7888 = vld [vmem:[#allocation3 + $0x40] sm:$0xff]
      %v7889 = vld [vmem:[#allocation3 + $0x48] sm:$0xff]
      %v7890 = vlaneseq
      %v7891 = vshrl.u32 %v7890, 7
      %v7892 = vsub.s32 4, %v7891
      %v7893 = vrot.slane %v7841, %v7892
      %v7894 = vmul.f32 %v7888, %v7893
      %v7895 = vmul.f32 %v7889, %v7893
      %v7896 = vadd.f32 %v7886, %v7894
      %v7897 = vadd.f32 %v7887, %v7895
      %v7898 = vld [vmem:[#allocation3 + $0x50] sm:$0xff]
      %v7899 = vld [vmem:[#allocation3 + $0x58] sm:$0xff]
      %v7900 = vlaneseq
      %v7901 = vshrl.u32 %v7900, 7
      %v7902 = vsub.s32 5, %v7901
      %v7903 = vrot.slane %v7841, %v7902
      %v7904 = vmul.f32 %v7898, %v7903
      %v7905 = vmul.f32 %v7899, %v7903
      %v7906 = vadd.f32 %v7896, %v7904
      %v7907 = vadd.f32 %v7897, %v7905
      %v7908 = vld [vmem:[#allocation3 + $0x60] sm:$0xff]
      %v7909 = vld [vmem:[#allocation3 + $0x68] sm:$0xff]
      %v7910 = vlaneseq
      %v7911 = vshrl.u32 %v7910, 7
      %v7912 = vsub.s32 6, %v7911
      %v7913 = vrot.slane %v7841, %v7912
      %v7914 = vmul.f32 %v7908, %v7913
      %v7915 = vmul.f32 %v7909, %v7913
      %v7916 = vadd.f32 %v7906, %v7914
      %v7917 = vadd.f32 %v7907, %v7915
      %v7918 = vld [vmem:[#allocation3 + $0x70] sm:$0xff]
      %v7919 = vld [vmem:[#allocation3 + $0x78] sm:$0xff]
      %v7920 = vlaneseq
      %v7921 = vshrl.u32 %v7920, 7
      %v7922 = vsub.s32 7, %v7921
      %v7923 = vrot.slane %v7841, %v7922
      %v7924 = vmul.f32 %v7918, %v7923
      %v7925 = vmul.f32 %v7919, %v7923
      %v7926 = vadd.f32 %v7916, %v7924
      %v7927 = vadd.f32 %v7917, %v7925
      %v7928 = vld [vmem:[#allocation3 + $0x80] sm:$0xff]
      %v7929 = vld [vmem:[#allocation3 + $0x88] sm:$0xff]
      %v7930 = vlaneseq
      %v7931 = vshrl.u32 %v7930, 7
      %v7932 = vsub.s32 0, %v7931
      %v7933 = vrot.slane %v7842, %v7932
      %v7934 = vmul.f32 %v7928, %v7933
      %v7935 = vmul.f32 %v7929, %v7933
      %v7936 = vadd.f32 %v7926, %v7934
      %v7937 = vadd.f32 %v7927, %v7935
      %v7938 = vld [vmem:[#allocation3 + $0x90] sm:$0xff]
      %v7939 = vld [vmem:[#allocation3 + $0x98] sm:$0xff]
      %v7940 = vlaneseq
      %v7941 = vshrl.u32 %v7940, 7
      %v7942 = vsub.s32 1, %v7941
      %v7943 = vrot.slane %v7842, %v7942
      %v7944 = vmul.f32 %v7938, %v7943
      %v7945 = vmul.f32 %v7939, %v7943
      %v7946 = vadd.f32 %v7936, %v7944
      %v7947 = vadd.f32 %v7937, %v7945
      %v7948 = vld [vmem:[#allocation3 + $0xa0] sm:$0xff]
      %v7949 = vld [vmem:[#allocation3 + $0xa8] sm:$0xff]
      %v7950 = vlaneseq
      %v7951 = vshrl.u32 %v7950, 7
      %v7952 = vsub.s32 2, %v7951
      %v7953 = vrot.slane %v7842, %v7952
      %v7954 = vmul.f32 %v7948, %v7953
      %v7955 = vmul.f32 %v7949, %v7953
      %v7956 = vadd.f32 %v7946, %v7954
      %v7957 = vadd.f32 %v7947, %v7955
      %v7958 = vld [vmem:[#allocation3 + $0xb0] sm:$0xff]
      %v7959 = vld [vmem:[#allocation3 + $0xb8] sm:$0xff]
      %v7960 = vlaneseq
      %v7961 = vshrl.u32 %v7960, 7
      %v7962 = vsub.s32 3, %v7961
      %v7963 = vrot.slane %v7842, %v7962
      %v7964 = vmul.f32 %v7958, %v7963
      %v7965 = vmul.f32 %v7959, %v7963
      %v7966 = vadd.f32 %v7956, %v7964
      %v7967 = vadd.f32 %v7957, %v7965
      %v7968 = vld [vmem:[#allocation3 + $0xc0] sm:$0xff]
      %v7969 = vld [vmem:[#allocation3 + $0xc8] sm:$0xff]
      %v7970 = vlaneseq
      %v7971 = vshrl.u32 %v7970, 7
      %v7972 = vsub.s32 4, %v7971
      %v7973 = vrot.slane %v7842, %v7972
      %v7974 = vmul.f32 %v7968, %v7973
      %v7975 = vmul.f32 %v7969, %v7973
      %v7976 = vadd.f32 %v7966, %v7974
      %v7977 = vadd.f32 %v7967, %v7975
      %v7978 = vld [vmem:[#allocation3 + $0xd0] sm:$0xff]
      %v7979 = vld [vmem:[#allocation3 + $0xd8] sm:$0xff]
      %v7980 = vlaneseq
      %v7981 = vshrl.u32 %v7980, 7
      %v7982 = vsub.s32 5, %v7981
      %v7983 = vrot.slane %v7842, %v7982
      %v7984 = vmul.f32 %v7978, %v7983
      %v7985 = vmul.f32 %v7979, %v7983
      %v7986 = vadd.f32 %v7976, %v7984
      %v7987 = vadd.f32 %v7977, %v7985
      %v7988 = vld [vmem:[#allocation3 + $0xe0] sm:$0xff]
      %v7989 = vld [vmem:[#allocation3 + $0xe8] sm:$0xff]
      %v7990 = vlaneseq
      %v7991 = vshrl.u32 %v7990, 7
      %v7992 = vsub.s32 6, %v7991
      %v7993 = vrot.slane %v7842, %v7992
      %v7994 = vmul.f32 %v7988, %v7993
      %v7995 = vmul.f32 %v7989, %v7993
      %v7996 = vadd.f32 %v7986, %v7994
      %v7997 = vadd.f32 %v7987, %v7995
      %v7998 = vld [vmem:[#allocation3 + $0xf0] sm:$0xff]
      %v7999 = vld [vmem:[#allocation3 + $0xf8] sm:$0xff]
      %v8000 = vlaneseq
      %v8001 = vshrl.u32 %v8000, 7
      %v8002 = vsub.s32 7, %v8001
      %v8003 = vrot.slane %v7842, %v8002
      %v8004 = vmul.f32 %v7998, %v8003
      %v8005 = vmul.f32 %v7999, %v8003
      %v8006 = vadd.f32 %v7996, %v8004
      %v8007 = vadd.f32 %v7997, %v8005
      %v8008 = vmax.f32 %v8006, -50000.0
      %v8009 = vmax.f32 %v8007, -50000.0
      %v8010 = vmin.f32 %v8008, 50000.0
      %v8011 = vmin.f32 %v8009, 50000.0
      %v8012 = vmax.f32 %v8010, %v8011
      %v8013 = vrot.slane %v8012, 4
      %v8014 = vmax.f32 %v8012, %v8013
      %v8015 = vrot.slane %v8014, 2
      %v8016 = vmax.f32 %v8014, %v8015
      %v8017 = vrot.slane %v8016, 1
      %v8018 = vmax.f32 %v8016, %v8017
      %v8019 = vsub.f32 %v8010, %v8018
      %v8020 = vsub.f32 %v8011, %v8018
      %v8021 = vmul.f32 %v8019, 1.442695
      %v8022 = vpow.pop %v8021
      %v8023 = vmul.f32 %v8020, 1.442695
      %v8024 = vpow.pop %v8023
      %v8025 = vmul.f32 %v8022, %v1408
      %v8026 = vmul.f32 %v8024, %v1409
      %v8027 = vadd.f32 %v8025, %v8026
      %v8028 = vrot.slane %v8027, 4
      %v8029 = vadd.f32 %v8027, %v8028
      %v8030 = vrot.slane %v8029, 2
      %v8031 = vadd.f32 %v8029, %v8030
      %v8032 = vrot.slane %v8031, 1
      %v8033 = vadd.f32 %v8031, %v8032
      %v8034 = vadd.f32 %v8022, %v8024
      %v8035 = vrot.slane %v8034, 4
      %v8036 = vadd.f32 %v8034, %v8035
      %v8037 = vrot.slane %v8036, 2
      %v8038 = vadd.f32 %v8036, %v8037
      %v8039 = vrot.slane %v8038, 1
      %v8040 = vadd.f32 %v8038, %v8039
      %v8041 = vadd.f32 %v8040, 1e-08
      %v8042 = vrcp.pop %v8041
      %v8043 = vmul.f32 %v8033, %v8042
      %v8044 = vmul.f32 %v5732, %v8043
      %v8045 = vadd.f32 %v8044, %v1402
      %8046 = vst [vmem:[%s424 + $0x36] sm:$0x2] %v8045
      %p8047 = scmp.lt.s32.totalorder %s22, 1
      %s8048 = scalar_select %p8047, %s22, 1
      %p8049 = scmp.lt.s32.totalorder %s23, 0
      %s8050 = scalar_select %p8049, %s23, 0
      %s8051 = smul.addr %s8048, 7
      %s8052 = sadd.s32 %s8050, %s8051
      %s8053 = smul.addr %s8052, 8
      %s8054 = scalar_lea.vmem %s7, %s8053
      // Predicated region
      $region63: #{_lambda_.1} parent=47 // pred_check
        %p8055 = pneg %p235
      $region64: #{_lambda_.1} parent=47 // pred_check_branch
        %8057 = sbr.rel (%p8055) target = $region66
      $region65: #{_lambda_.1} parent=47 // pred_region
        _
      $region66: #{_lambda_.1} parent=47 // pred_fallthru
        _
    $region48: #{_lambda_.1} parent=5 // pred_fallthru
      _
    %p8058 = scmp.le.s32.totalorder 2, %s13
    // Predicated region
    $region67: #{_lambda_.1} parent=5 // pred_check
      %p8059 = pneg %p8058
    $region68: #{_lambda_.1} parent=5 // pred_check_branch
      %8061 = sbr.rel (%p8059) target = $region70
    $region69: #{_lambda_.1} parent=5 // pred_region
      %s8062 = ssub.s32 %s13, 2
      // Predicated region
      $region71: #{_lambda_.1} parent=69 // pred_check
        %p8063 = pneg %p241
      $region72: #{_lambda_.1} parent=69 // pred_check_branch
        %8065 = sbr.rel (%p8063) target = $region74
      $region73: #{_lambda_.1} parent=69 // pred_region
        %p8066 = scmp.lt.s32.totalorder %s24, 1
        %s8067 = scalar_select %p8066, %s24, 1
        %p8068 = scmp.lt.s32.totalorder %s25, 0
        %s8069 = scalar_select %p8068, %s25, 0
        %s8070 = smul.addr %s8067, 7
        %s8071 = sadd.s32 %s8069, %s8070
        %s8072 = smul.addr %s8071, 8
        %s8073 = scalar_lea.vmem %s7, %s8072
      $region74: #{_lambda_.1} parent=69 // pred_fallthru
        _
    $region70: #{_lambda_.1} parent=5 // pred_fallthru
      _
  $region6: #{_lambda_.1} parent=0 // loop_footer
    %s17 = sadd.s32 1, %s13
  $region7: #{_lambda_.1} parent=0 // loop_footer_branch
    %12 = sbr.rel target = $region3
  $region8: #{_lambda_.1} parent=0 // loop_exit
    _

</llo_original>
